<compile_context>
chip_gen: v7x
topology: tpu7x:2x2x1
jax: 0.10.0
libtpu: 0.0.40
codegen_flags: <defaults>
</compile_context>

<pallas_src>
import math

import jax
import jax.numpy as jnp
from jax.experimental import pallas as pl
from jax.experimental.pallas import tpu as pltpu

NUM_HEADS = 8
CIN_PAD = 8            # Conv1d input channels zero-padded 1 -> 8 (exact math)
CMAX = 256             # widest channel width; sizes the shared VMEM scratch buffers
D_MODEL = 256
OUTPUT_DIM = 128
PROJECTION_DIM = 64
N_WEIGHT_REFS = 3 * 8 + 2 * 4 + 6   # 3 resblocks, 2 attention blocks (fused qkv), head = 38 refs


def _bf16(x):
    return x.astype(jnp.bfloat16)


# ----------------------------- Fused forward kernel -----------------------------
def _fused_kernel(*refs):
    x_ref = refs[0]
    w = refs[1:1 + N_WEIGHT_REFS]
    o_ref = refs[1 + N_WEIGHT_REFS]
    pad_ref = refs[2 + N_WEIGHT_REFS]    # (B, L+2, CMAX) f32: conv 'same' padding slab
    ctx_ref = refs[3 + N_WEIGHT_REFS]    # (B, L,   CMAX) f32: per-head attention context

    B, L, _ = x_ref.shape

    # Zero the per-sequence conv border rows once (full 256-lane width), so every later
    # read of columns 0:cin sees zeros without re-zeroing per conv.
    pad_ref[:, 0:1, :] = jnp.zeros((B, 1, CMAX), jnp.float32)
    pad_ref[:, L + 1:L + 2, :] = jnp.zeros((B, 1, CMAX), jnp.float32)

    def mm(a, w_ref, b_ref=None):
        # bf16 operands on the MXU, f32 accumulation; bias add in f32.
        y = jnp.dot(_bf16(a), w_ref[...], preferred_element_type=jnp.float32)
        if b_ref is not None:
            y = y + b_ref[...]
        return y

    def conv3_same(h3, w_ref, b_ref):
        # h3: (B, L, cin) f32 -> (B*L, cout) f32. k=3 'same' conv as ONE im2col matmul
        # (weight pre-reshaped to (3*cin, cout) in the wrapper).
        cin = h3.shape[-1]
        pad_ref[:, 1:L + 1, 0:cin] = h3
        x0 = pad_ref[:, 0:L, 0:cin].reshape(B * L, cin)        # x[t-1]
        x1 = pad_ref[:, 1:L + 1, 0:cin].reshape(B * L, cin)    # x[t]
        x2 = pad_ref[:, 2:L + 2, 0:cin].reshape(B * L, cin)    # x[t+1]
        g = jnp.concatenate([x0, x1, x2], axis=-1)             # (B*L, 3*cin)
        return mm(g, w_ref, b_ref)

    def resblock(h3, w1_ref, b1_ref, w2_ref, b2_ref, wd_ref, bd_ref, s_ref, t_ref):
        cin = h3.shape[-1]
        cout = b1_ref.shape[-1]
        h1 = jnp.maximum(conv3_same(h3, w1_ref, b1_ref), 0.0)          # conv1 + ReLU
        h2 = conv3_same(h1.reshape(B, L, cout), w2_ref, b2_ref)        # conv2
        res = mm(h3.reshape(B * L, cin), wd_ref, bd_ref)               # 1x1 downsample
        out = (h2 + res) * s_ref[...] + t_ref[...]                     # eval-mode BatchNorm1d (folded)
        return jnp.maximum(out, 0.0).reshape(B, L, cout)

    def attention(h3, wqkv_ref, bqkv_ref, wo_ref, bo_ref):
        d = wo_ref.shape[0]
        hd = d // NUM_HEADS
        h2d = h3.reshape(B * L, d)
        qkv = mm(h2d, wqkv_ref, bqkv_ref)                              # (B*L, 3d), scale folded in q
        q = qkv[:, 0:d].reshape(B, L, d)
        k = qkv[:, d:2 * d].reshape(B, L, d)
        v = qkv[:, 2 * d:3 * d].reshape(B, L, d)
        for hh in range(NUM_HEADS):                                    # static head loop
            lo, hi = hh * hd, (hh + 1) * hd
            s = jnp.einsum('bld,bmd->blm', _bf16(q[:, :, lo:hi]), _bf16(k[:, :, lo:hi]),
                           preferred_element_type=jnp.float32)
            s = s - jnp.max(s, axis=-1, keepdims=True)
            e = jnp.exp(s)
            p = e * pl.reciprocal(jnp.sum(e, axis=-1, keepdims=True), approx=True)
            ctx_ref[:, :, lo:hi] = jnp.einsum('blm,bmd->bld', _bf16(p), _bf16(v[:, :, lo:hi]),
                                              preferred_element_type=jnp.float32)
        attn = mm(ctx_ref[...].reshape(B * L, d), wo_ref, bo_ref)
        return jnp.maximum(attn + h2d, 0.0).reshape(B, L, d)           # fused residual + ReLU

    def head(h3, wfc_ref, bfc_ref, w1_ref, b1_ref, w2_ref, b2_ref):
        pooled = jnp.mean(h3, axis=1)                                  # adaptive_avg_pool1d(., 1)
        feat = mm(pooled, wfc_ref, bfc_ref)                            # fc
        hmid = jnp.maximum(mm(feat, w1_ref, b1_ref), 0.0)              # head Linear + ReLU
        z = mm(hmid, w2_ref, b2_ref)                                   # head Linear -> projection
        nrm = jnp.sqrt(jnp.sum(z * z, axis=1, keepdims=True))
        return z / jnp.maximum(nrm, 1e-12)                             # F.normalize(dim=1), exact div

    h = x_ref[...]                                                     # (B, L, 8) f32
    h = resblock(h, *w[0:8])                                           # (B, L, 64)
    h = resblock(h, *w[8:16])                                          # (B, L, 128)
    h = resblock(h, *w[16:24])                                         # (B, L, 256)
    h = attention(h, *w[24:28])                                        # (B, L, 256)
    h = attention(h, *w[28:32])                                        # (B, L, 256)
    o_ref[...] = head(h, *w[32:38])                                    # (B, 64)


# ----------------------------- Wrapper -----------------------------
def _full_spec(a):
    nd = a.ndim
    return pl.BlockSpec(a.shape, lambda i, _nd=nd: (0,) * _nd)


def _flatten_params(params):
    flat = []
    for name in ("block1", "block2", "block3"):
        p = params[name]
        flat += [p["w1"], p["b1"], p["w2"], p["b2"], p["wd"], p["bd"],
                 p["bn_scale"], p["bn_shift"]]
    for name in ("attn1", "attn2"):
        p = params[name]
        flat += [p["wqkv"], p["bqkv"], p["wo"], p["bo"]]
    p = params["head"]
    flat += [p["wfc"], p["bfc"], p["w1"], p["b1"], p["w2"], p["b2"]]
    assert len(flat) == N_WEIGHT_REFS
    return flat


def supcon_cnn_attention_forward(x, params):
    # x: (B, L) f32 — the PyTorch module input before x.unsqueeze(1)
    B, L = x.shape
    h = jnp.pad(x[:, :, None], ((0, 0), (0, 0), (0, CIN_PAD - 1)))     # (B, L, 8) channels-last
    flat = _flatten_params(params)
    args = [h] + flat
    return pl.pallas_call(
        _fused_kernel,
        out_shape=jax.ShapeDtypeStruct((B, PROJECTION_DIM), jnp.float32),
        grid_spec=pltpu.PrefetchScalarGridSpec(
            num_scalar_prefetch=0,
            grid=(1,),
            in_specs=[_full_spec(a) for a in args],
            out_specs=pl.BlockSpec((B, PROJECTION_DIM), lambda i: (0, 0)),
            scratch_shapes=[
                pltpu.VMEM((B, L + 2, CMAX), jnp.float32),   # conv 'same' padding slab
                pltpu.VMEM((B, L, CMAX), jnp.float32),       # attention context
            ],
        ),
        compiler_params=pltpu.CompilerParams(dimension_semantics=("arbitrary",)),
    )(*args)


# ----------------------------- Deterministic parameter init -----------------------------
def _normal(key, shape, std):
    return std * jax.random.normal(key, shape, dtype=jnp.float32)


def init_resblock(key, cin, cout, cin_pad=None, k=3):
    ks = jax.random.split(key, 10)
    w1 = _normal(ks[0], (k, cin, cout), 1.0 / math.sqrt(cin * k))
    b1 = _normal(ks[1], (1, cout), 0.05)
    w2 = _normal(ks[2], (k, cout, cout), 1.0 / math.sqrt(cout * k))
    b2 = _normal(ks[3], (1, cout), 0.05)
    wd = _normal(ks[4], (cin, cout), 1.0 / math.sqrt(cin))
    bd = _normal(ks[5], (1, cout), 0.05)
    gamma = 1.0 + 0.1 * jax.random.normal(ks[6], (1, cout), dtype=jnp.float32)
    beta = _normal(ks[7], (1, cout), 0.1)
    r_mean = _normal(ks[8], (1, cout), 0.1)
    r_var = 1.0 + 0.1 * jnp.abs(jax.random.normal(ks[9], (1, cout), dtype=jnp.float32))
    bn_scale = gamma / jnp.sqrt(r_var + 1e-5)     # eval-mode BatchNorm1d folded to scale/shift
    bn_shift = beta - r_mean * bn_scale
    if cin_pad is not None and cin_pad > cin:     # zero-pad input channels (exact math)
        w1 = jnp.pad(w1, ((0, 0), (0, cin_pad - cin), (0, 0)))
        wd = jnp.pad(wd, ((0, cin_pad - cin), (0, 0)))
        cin = cin_pad
    return dict(
        w1=w1.reshape(k * cin, cout).astype(jnp.bfloat16),    # im2col weight layout
        b1=b1,
        w2=w2.reshape(k * cout, cout).astype(jnp.bfloat16),
        b2=b2,
        wd=wd.astype(jnp.bfloat16), bd=bd,
        bn_scale=bn_scale, bn_shift=bn_shift)


def init_mha(key, d=D_MODEL):
    ks = jax.random.split(key, 4)
    in_proj_w = _normal(ks[0], (3 * d, d), 1.0 / math.sqrt(d))   # PyTorch in_proj_weight (3d, d)
    in_proj_b = _normal(ks[1], (3 * d,), 0.02)
    out_w = _normal(ks[2], (d, d), 1.0 / math.sqrt(d))
    out_b = _normal(ks[3], (d,), 0.02)
    scale = 1.0 / math.sqrt(d // NUM_HEADS)                      # fold attention scale into q proj
    wq = in_proj_w[0:d].T * scale
    wk = in_proj_w[d:2 * d].T
    wv = in_proj_w[2 * d:3 * d].T
    bq = in_proj_b[0:d] * scale
    bk = in_proj_b[d:2 * d]
    bv = in_proj_b[2 * d:3 * d]
    return dict(
        wqkv=jnp.concatenate([wq, wk, wv], axis=1).astype(jnp.bfloat16),   # (d, 3d)
        bqkv=jnp.concatenate([bq, bk, bv]).reshape(1, 3 * d),
        wo=out_w.T.astype(jnp.bfloat16),
        bo=out_b.reshape(1, d))


def init_head(key, d_model=D_MODEL, output_dim=OUTPUT_DIM, projection_dim=PROJECTION_DIM):
    ks = jax.random.split(key, 6)
    return dict(
        wfc=_normal(ks[0], (output_dim, d_model), 1.0 / math.sqrt(d_model)).T.astype(jnp.bfloat16),
        bfc=_normal(ks[1], (1, output_dim), 0.02),
        w1=_normal(ks[2], (output_dim, output_dim), 1.0 / math.sqrt(output_dim)).T.astype(jnp.bfloat16),
        b1=_normal(ks[3], (1, output_dim), 0.02),
        w2=_normal(ks[4], (projection_dim, output_dim), 1.0 / math.sqrt(output_dim)).T.astype(jnp.bfloat16),
        b2=_normal(ks[5], (1, projection_dim), 0.02))


if __name__ == "__main__":
    B, L = 2, 16
    key = jax.random.PRNGKey(0)
    kx, kp = jax.random.split(key)
    x = jax.random.normal(kx, (B, L), dtype=jnp.float32)

    kb1, kb2, kb3, ka1, ka2, kh = jax.random.split(kp, 6)
    params = dict(
        block1=init_resblock(kb1, 1, 64, cin_pad=CIN_PAD),
        block2=init_resblock(kb2, 64, 128),
        block3=init_resblock(kb3, 128, 256),
        attn1=init_mha(ka1, D_MODEL),
        attn2=init_mha(ka2, D_MODEL),
        head=init_head(kh, D_MODEL, OUTPUT_DIM, PROJECTION_DIM),
    )

    out = jax.jit(supcon_cnn_attention_forward)(x, params)
    out = jax.block_until_ready(out)

    assert out.shape == (B, PROJECTION_DIM), out.shape
    assert bool(jnp.all(jnp.isfinite(out)))
    assert bool(jnp.allclose(jnp.linalg.norm(out, axis=1), 1.0, atol=1e-3))
    print("KERNEL_OK")
</pallas_src>

<mosaic_0001>
module attributes {stable_mosaic.version = 11 : i64} {
  func.func @_fused_kernel(%arg0: i32, %arg1: memref<2x16x8xf32, #tpu.memory_space<vmem>>, %arg2: memref<24x64xbf16, #tpu.memory_space<vmem>>, %arg3: memref<1x64xf32, #tpu.memory_space<vmem>>, %arg4: memref<192x64xbf16, #tpu.memory_space<vmem>>, %arg5: memref<1x64xf32, #tpu.memory_space<vmem>>, %arg6: memref<8x64xbf16, #tpu.memory_space<vmem>>, %arg7: memref<1x64xf32, #tpu.memory_space<vmem>>, %arg8: memref<1x64xf32, #tpu.memory_space<vmem>>, %arg9: memref<1x64xf32, #tpu.memory_space<vmem>>, %arg10: memref<192x128xbf16, #tpu.memory_space<vmem>>, %arg11: memref<1x128xf32, #tpu.memory_space<vmem>>, %arg12: memref<384x128xbf16, #tpu.memory_space<vmem>>, %arg13: memref<1x128xf32, #tpu.memory_space<vmem>>, %arg14: memref<64x128xbf16, #tpu.memory_space<vmem>>, %arg15: memref<1x128xf32, #tpu.memory_space<vmem>>, %arg16: memref<1x128xf32, #tpu.memory_space<vmem>>, %arg17: memref<1x128xf32, #tpu.memory_space<vmem>>, %arg18: memref<384x256xbf16, #tpu.memory_space<vmem>>, %arg19: memref<1x256xf32, #tpu.memory_space<vmem>>, %arg20: memref<768x256xbf16, #tpu.memory_space<vmem>>, %arg21: memref<1x256xf32, #tpu.memory_space<vmem>>, %arg22: memref<128x256xbf16, #tpu.memory_space<vmem>>, %arg23: memref<1x256xf32, #tpu.memory_space<vmem>>, %arg24: memref<1x256xf32, #tpu.memory_space<vmem>>, %arg25: memref<1x256xf32, #tpu.memory_space<vmem>>, %arg26: memref<256x768xbf16, #tpu.memory_space<vmem>>, %arg27: memref<1x768xf32, #tpu.memory_space<vmem>>, %arg28: memref<256x256xbf16, #tpu.memory_space<vmem>>, %arg29: memref<1x256xf32, #tpu.memory_space<vmem>>, %arg30: memref<256x768xbf16, #tpu.memory_space<vmem>>, %arg31: memref<1x768xf32, #tpu.memory_space<vmem>>, %arg32: memref<256x256xbf16, #tpu.memory_space<vmem>>, %arg33: memref<1x256xf32, #tpu.memory_space<vmem>>, %arg34: memref<256x128xbf16, #tpu.memory_space<vmem>>, %arg35: memref<1x128xf32, #tpu.memory_space<vmem>>, %arg36: memref<128x128xbf16, #tpu.memory_space<vmem>>, %arg37: memref<1x128xf32, #tpu.memory_space<vmem>>, %arg38: memref<128x64xbf16, #tpu.memory_space<vmem>>, %arg39: memref<1x64xf32, #tpu.memory_space<vmem>>, %arg40: memref<2x64xf32, #tpu.memory_space<vmem>>, %arg41: memref<2x18x256xf32, #tpu.memory_space<vmem>>, %arg42: memref<2x16x256xf32, #tpu.memory_space<vmem>>) attributes {dimension_semantics = [#tpu.dimension_semantics<arbitrary>], iteration_bounds = array<i64: 1>, scalar_prefetch = 0 : i64, scratch_operands = 2 : i64, tpu.core_type = #tpu.core_type<tc>, window_params = [{pipeline_mode = #tpu.pipeline_mode<synchronous>, transform_indices = @transform_0, window_bounds = array<i64: 2, 16, 8>}, {pipeline_mode = #tpu.pipeline_mode<synchronous>, transform_indices = @transform_1, window_bounds = array<i64: 24, 64>}, {pipeline_mode = #tpu.pipeline_mode<synchronous>, transform_indices = @transform_2, window_bounds = array<i64: 1, 64>}, {pipeline_mode = #tpu.pipeline_mode<synchronous>, transform_indices = @transform_3, window_bounds = array<i64: 192, 64>}, {pipeline_mode = #tpu.pipeline_mode<synchronous>, transform_indices = @transform_4, window_bounds = array<i64: 1, 64>}, {pipeline_mode = #tpu.pipeline_mode<synchronous>, transform_indices = @transform_5, window_bounds = array<i64: 8, 64>}, {pipeline_mode = #tpu.pipeline_mode<synchronous>, transform_indices = @transform_6, window_bounds = array<i64: 1, 64>}, {pipeline_mode = #tpu.pipeline_mode<synchronous>, transform_indices = @transform_7, window_bounds = array<i64: 1, 64>}, {pipeline_mode = #tpu.pipeline_mode<synchronous>, transform_indices = @transform_8, window_bounds = array<i64: 1, 64>}, {pipeline_mode = #tpu.pipeline_mode<synchronous>, transform_indices = @transform_9, window_bounds = array<i64: 192, 128>}, {pipeline_mode = #tpu.pipeline_mode<synchronous>, transform_indices = @transform_10, window_bounds = array<i64: 1, 128>}, {pipeline_mode = #tpu.pipeline_mode<synchronous>, transform_indices = @transform_11, window_bounds = array<i64: 384, 128>}, {pipeline_mode = #tpu.pipeline_mode<synchronous>, transform_indices = @transform_12, window_bounds = array<i64: 1, 128>}, {pipeline_mode = #tpu.pipeline_mode<synchronous>, transform_indices = @transform_13, window_bounds = array<i64: 64, 128>}, {pipeline_mode = #tpu.pipeline_mode<synchronous>, transform_indices = @transform_14, window_bounds = array<i64: 1, 128>}, {pipeline_mode = #tpu.pipeline_mode<synchronous>, transform_indices = @transform_15, window_bounds = array<i64: 1, 128>}, {pipeline_mode = #tpu.pipeline_mode<synchronous>, transform_indices = @transform_16, window_bounds = array<i64: 1, 128>}, {pipeline_mode = #tpu.pipeline_mode<synchronous>, transform_indices = @transform_17, window_bounds = array<i64: 384, 256>}, {pipeline_mode = #tpu.pipeline_mode<synchronous>, transform_indices = @transform_18, window_bounds = array<i64: 1, 256>}, {pipeline_mode = #tpu.pipeline_mode<synchronous>, transform_indices = @transform_19, window_bounds = array<i64: 768, 256>}, {pipeline_mode = #tpu.pipeline_mode<synchronous>, transform_indices = @transform_20, window_bounds = array<i64: 1, 256>}, {pipeline_mode = #tpu.pipeline_mode<synchronous>, transform_indices = @transform_21, window_bounds = array<i64: 128, 256>}, {pipeline_mode = #tpu.pipeline_mode<synchronous>, transform_indices = @transform_22, window_bounds = array<i64: 1, 256>}, {pipeline_mode = #tpu.pipeline_mode<synchronous>, transform_indices = @transform_23, window_bounds = array<i64: 1, 256>}, {pipeline_mode = #tpu.pipeline_mode<synchronous>, transform_indices = @transform_24, window_bounds = array<i64: 1, 256>}, {pipeline_mode = #tpu.pipeline_mode<synchronous>, transform_indices = @transform_25, window_bounds = array<i64: 256, 768>}, {pipeline_mode = #tpu.pipeline_mode<synchronous>, transform_indices = @transform_26, window_bounds = array<i64: 1, 768>}, {pipeline_mode = #tpu.pipeline_mode<synchronous>, transform_indices = @transform_27, window_bounds = array<i64: 256, 256>}, {pipeline_mode = #tpu.pipeline_mode<synchronous>, transform_indices = @transform_28, window_bounds = array<i64: 1, 256>}, {pipeline_mode = #tpu.pipeline_mode<synchronous>, transform_indices = @transform_29, window_bounds = array<i64: 256, 768>}, {pipeline_mode = #tpu.pipeline_mode<synchronous>, transform_indices = @transform_30, window_bounds = array<i64: 1, 768>}, {pipeline_mode = #tpu.pipeline_mode<synchronous>, transform_indices = @transform_31, window_bounds = array<i64: 256, 256>}, {pipeline_mode = #tpu.pipeline_mode<synchronous>, transform_indices = @transform_32, window_bounds = array<i64: 1, 256>}, {pipeline_mode = #tpu.pipeline_mode<synchronous>, transform_indices = @transform_33, window_bounds = array<i64: 256, 128>}, {pipeline_mode = #tpu.pipeline_mode<synchronous>, transform_indices = @transform_34, window_bounds = array<i64: 1, 128>}, {pipeline_mode = #tpu.pipeline_mode<synchronous>, transform_indices = @transform_35, window_bounds = array<i64: 128, 128>}, {pipeline_mode = #tpu.pipeline_mode<synchronous>, transform_indices = @transform_36, window_bounds = array<i64: 1, 128>}, {pipeline_mode = #tpu.pipeline_mode<synchronous>, transform_indices = @transform_37, window_bounds = array<i64: 128, 64>}, {pipeline_mode = #tpu.pipeline_mode<synchronous>, transform_indices = @transform_38, window_bounds = array<i64: 1, 64>}, {pipeline_mode = #tpu.pipeline_mode<synchronous>, transform_indices = @transform_39, window_bounds = array<i64: 2, 64>}]} {
    %cst = arith.constant 0.000000e+00 : f32
    %0 = vector.broadcast %cst : f32 to vector<2x1x256xf32>
    %c0 = arith.constant 0 : index
    %c0_0 = arith.constant 0 : index
    %c0_1 = arith.constant 0 : index
    %1 = vector.load %arg41[%c0, %c0_0, %c0_1] : memref<2x18x256xf32, #tpu.memory_space<vmem>>, vector<2x1x256xf32>
    tpu.vector_store %arg41[%c0, %c0_0, %c0_1], %0 {strides = array<i32>} : memref<2x18x256xf32, #tpu.memory_space<vmem>>, vector<2x1x256xf32>,
    %cst_2 = arith.constant 0.000000e+00 : f32
    %2 = vector.broadcast %cst_2 : f32 to vector<2x1x256xf32>
    %c0_3 = arith.constant 0 : index
    %c17 = arith.constant 17 : index
    %c0_4 = arith.constant 0 : index
    %3 = vector.load %arg41[%c0_3, %c17, %c0_4] : memref<2x18x256xf32, #tpu.memory_space<vmem>>, vector<2x1x256xf32>
    tpu.vector_store %arg41[%c0_3, %c17, %c0_4], %2 {strides = array<i32>} : memref<2x18x256xf32, #tpu.memory_space<vmem>>, vector<2x1x256xf32>,
    %c0_5 = arith.constant 0 : index
    %c0_6 = arith.constant 0 : index
    %c0_7 = arith.constant 0 : index
    %4 = vector.load %arg1[%c0_5, %c0_6, %c0_7] : memref<2x16x8xf32, #tpu.memory_space<vmem>>, vector<2x16x8xf32>
    %c0_8 = arith.constant 0 : index
    %c1 = arith.constant 1 : index
    %c0_9 = arith.constant 0 : index
    %5 = vector.load %arg41[%c0_8, %c1, %c0_9] : memref<2x18x256xf32, #tpu.memory_space<vmem>>, vector<2x16x8xf32>
    tpu.vector_store %arg41[%c0_8, %c1, %c0_9], %4 {strides = array<i32>} : memref<2x18x256xf32, #tpu.memory_space<vmem>>, vector<2x16x8xf32>,
    %c0_10 = arith.constant 0 : index
    %c0_11 = arith.constant 0 : index
    %c0_12 = arith.constant 0 : index
    %6 = vector.load %arg41[%c0_10, %c0_11, %c0_12] : memref<2x18x256xf32, #tpu.memory_space<vmem>>, vector<2x16x8xf32>
    %7 = vector.shape_cast %6 : vector<2x16x8xf32> to vector<32x8xf32>
    %c0_13 = arith.constant 0 : index
    %c1_14 = arith.constant 1 : index
    %c0_15 = arith.constant 0 : index
    %8 = vector.load %arg41[%c0_13, %c1_14, %c0_15] : memref<2x18x256xf32, #tpu.memory_space<vmem>>, vector<2x16x8xf32>
    %9 = vector.shape_cast %8 : vector<2x16x8xf32> to vector<32x8xf32>
    %c0_16 = arith.constant 0 : index
    %c2 = arith.constant 2 : index
    %c0_17 = arith.constant 0 : index
    %10 = vector.load %arg41[%c0_16, %c2, %c0_17] : memref<2x18x256xf32, #tpu.memory_space<vmem>>, vector<2x16x8xf32>
    %11 = vector.shape_cast %10 : vector<2x16x8xf32> to vector<32x8xf32>
    %12 = tpu.concatenate %7, %9, %11 in 1 : vector<32x8xf32>, vector<32x8xf32>, vector<32x8xf32> -> vector<32x24xf32>
    %13 = arith.truncf %12 : vector<32x24xf32> to vector<32x24xbf16>
    %c0_18 = arith.constant 0 : index
    %c0_19 = arith.constant 0 : index
    %14 = vector.load %arg2[%c0_18, %c0_19] : memref<24x64xbf16, #tpu.memory_space<vmem>>, vector<24x64xbf16>
    %cst_20 = arith.constant dense<0.000000e+00> : vector<32x64xf32>
    %15 = tpu.matmul %13, %14, %cst_20 {dimension_numbers = #tpu.dot_dimension_numbers<[1], [0], [0], [1], [0, 0, 1, 1], [], []>} : vector<32x24xbf16>, vector<24x64xbf16>, vector<32x64xf32> -> vector<32x64xf32>
    %c0_21 = arith.constant 0 : index
    %c0_22 = arith.constant 0 : index
    %16 = vector.load %arg3[%c0_21, %c0_22] : memref<1x64xf32, #tpu.memory_space<vmem>>, vector<1x64xf32>
    %17 = vector.broadcast %16 : vector<1x64xf32> to vector<32x64xf32>
    %18 = arith.addf %15, %17 : vector<32x64xf32>
    %cst_23 = arith.constant 0.000000e+00 : f32
    %19 = vector.broadcast %cst_23 : f32 to vector<32x64xf32>
    %20 = arith.maximumf %18, %19 : vector<32x64xf32>
    %21 = vector.shape_cast %20 : vector<32x64xf32> to vector<2x16x64xf32>
    %c0_24 = arith.constant 0 : index
    %c1_25 = arith.constant 1 : index
    %c0_26 = arith.constant 0 : index
    %22 = vector.load %arg41[%c0_24, %c1_25, %c0_26] : memref<2x18x256xf32, #tpu.memory_space<vmem>>, vector<2x16x64xf32>
    tpu.vector_store %arg41[%c0_24, %c1_25, %c0_26], %21 {strides = array<i32>} : memref<2x18x256xf32, #tpu.memory_space<vmem>>, vector<2x16x64xf32>,
    %c0_27 = arith.constant 0 : index
    %c0_28 = arith.constant 0 : index
    %c0_29 = arith.constant 0 : index
    %23 = vector.load %arg41[%c0_27, %c0_28, %c0_29] : memref<2x18x256xf32, #tpu.memory_space<vmem>>, vector<2x16x64xf32>
    %24 = vector.shape_cast %23 : vector<2x16x64xf32> to vector<32x64xf32>
    %c0_30 = arith.constant 0 : index
    %c1_31 = arith.constant 1 : index
    %c0_32 = arith.constant 0 : index
    %25 = vector.load %arg41[%c0_30, %c1_31, %c0_32] : memref<2x18x256xf32, #tpu.memory_space<vmem>>, vector<2x16x64xf32>
    %26 = vector.shape_cast %25 : vector<2x16x64xf32> to vector<32x64xf32>
    %c0_33 = arith.constant 0 : index
    %c2_34 = arith.constant 2 : index
    %c0_35 = arith.constant 0 : index
    %27 = vector.load %arg41[%c0_33, %c2_34, %c0_35] : memref<2x18x256xf32, #tpu.memory_space<vmem>>, vector<2x16x64xf32>
    %28 = vector.shape_cast %27 : vector<2x16x64xf32> to vector<32x64xf32>
    %29 = tpu.concatenate %24, %26, %28 in 1 : vector<32x64xf32>, vector<32x64xf32>, vector<32x64xf32> -> vector<32x192xf32>
    %30 = arith.truncf %29 : vector<32x192xf32> to vector<32x192xbf16>
    %c0_36 = arith.constant 0 : index
    %c0_37 = arith.constant 0 : index
    %31 = vector.load %arg4[%c0_36, %c0_37] : memref<192x64xbf16, #tpu.memory_space<vmem>>, vector<192x64xbf16>
    %cst_38 = arith.constant dense<0.000000e+00> : vector<32x64xf32>
    %32 = tpu.matmul %30, %31, %cst_38 {dimension_numbers = #tpu.dot_dimension_numbers<[1], [0], [0], [1], [0, 0, 1, 1], [], []>} : vector<32x192xbf16>, vector<192x64xbf16>, vector<32x64xf32> -> vector<32x64xf32>
    %c0_39 = arith.constant 0 : index
    %c0_40 = arith.constant 0 : index
    %33 = vector.load %arg5[%c0_39, %c0_40] : memref<1x64xf32, #tpu.memory_space<vmem>>, vector<1x64xf32>
    %34 = vector.broadcast %33 : vector<1x64xf32> to vector<32x64xf32>
    %35 = arith.addf %32, %34 : vector<32x64xf32>
    %36 = vector.shape_cast %4 : vector<2x16x8xf32> to vector<32x8xf32>
    %37 = arith.truncf %36 : vector<32x8xf32> to vector<32x8xbf16>
    %c0_41 = arith.constant 0 : index
    %c0_42 = arith.constant 0 : index
    %38 = vector.load %arg6[%c0_41, %c0_42] : memref<8x64xbf16, #tpu.memory_space<vmem>>, vector<8x64xbf16>
    %cst_43 = arith.constant dense<0.000000e+00> : vector<32x64xf32>
    %39 = tpu.matmul %37, %38, %cst_43 {dimension_numbers = #tpu.dot_dimension_numbers<[1], [0], [0], [1], [0, 0, 1, 1], [], []>} : vector<32x8xbf16>, vector<8x64xbf16>, vector<32x64xf32> -> vector<32x64xf32>
    %c0_44 = arith.constant 0 : index
    %c0_45 = arith.constant 0 : index
    %40 = vector.load %arg7[%c0_44, %c0_45] : memref<1x64xf32, #tpu.memory_space<vmem>>, vector<1x64xf32>
    %41 = vector.broadcast %40 : vector<1x64xf32> to vector<32x64xf32>
    %42 = arith.addf %39, %41 : vector<32x64xf32>
    %43 = arith.addf %35, %42 : vector<32x64xf32>
    %c0_46 = arith.constant 0 : index
    %c0_47 = arith.constant 0 : index
    %44 = vector.load %arg8[%c0_46, %c0_47] : memref<1x64xf32, #tpu.memory_space<vmem>>, vector<1x64xf32>
    %45 = vector.broadcast %44 : vector<1x64xf32> to vector<32x64xf32>
    %46 = arith.mulf %43, %45 : vector<32x64xf32>
    %c0_48 = arith.constant 0 : index
    %c0_49 = arith.constant 0 : index
    %47 = vector.load %arg9[%c0_48, %c0_49] : memref<1x64xf32, #tpu.memory_space<vmem>>, vector<1x64xf32>
    %48 = vector.broadcast %47 : vector<1x64xf32> to vector<32x64xf32>
    %49 = arith.addf %46, %48 : vector<32x64xf32>
    %cst_50 = arith.constant 0.000000e+00 : f32
    %50 = vector.broadcast %cst_50 : f32 to vector<32x64xf32>
    %51 = arith.maximumf %49, %50 : vector<32x64xf32>
    %52 = vector.shape_cast %51 : vector<32x64xf32> to vector<2x16x64xf32>
    %c0_51 = arith.constant 0 : index
    %c1_52 = arith.constant 1 : index
    %c0_53 = arith.constant 0 : index
    %53 = vector.load %arg41[%c0_51, %c1_52, %c0_53] : memref<2x18x256xf32, #tpu.memory_space<vmem>>, vector<2x16x64xf32>
    tpu.vector_store %arg41[%c0_51, %c1_52, %c0_53], %52 {strides = array<i32>} : memref<2x18x256xf32, #tpu.memory_space<vmem>>, vector<2x16x64xf32>,
    %c0_54 = arith.constant 0 : index
    %c0_55 = arith.constant 0 : index
    %c0_56 = arith.constant 0 : index
    %54 = vector.load %arg41[%c0_54, %c0_55, %c0_56] : memref<2x18x256xf32, #tpu.memory_space<vmem>>, vector<2x16x64xf32>
    %55 = vector.shape_cast %54 : vector<2x16x64xf32> to vector<32x64xf32>
    %c0_57 = arith.constant 0 : index
    %c1_58 = arith.constant 1 : index
    %c0_59 = arith.constant 0 : index
    %56 = vector.load %arg41[%c0_57, %c1_58, %c0_59] : memref<2x18x256xf32, #tpu.memory_space<vmem>>, vector<2x16x64xf32>
    %57 = vector.shape_cast %56 : vector<2x16x64xf32> to vector<32x64xf32>
    %c0_60 = arith.constant 0 : index
    %c2_61 = arith.constant 2 : index
    %c0_62 = arith.constant 0 : index
    %58 = vector.load %arg41[%c0_60, %c2_61, %c0_62] : memref<2x18x256xf32, #tpu.memory_space<vmem>>, vector<2x16x64xf32>
    %59 = vector.shape_cast %58 : vector<2x16x64xf32> to vector<32x64xf32>
    %60 = tpu.concatenate %55, %57, %59 in 1 : vector<32x64xf32>, vector<32x64xf32>, vector<32x64xf32> -> vector<32x192xf32>
    %61 = arith.truncf %60 : vector<32x192xf32> to vector<32x192xbf16>
    %c0_63 = arith.constant 0 : index
    %c0_64 = arith.constant 0 : index
    %62 = vector.load %arg10[%c0_63, %c0_64] : memref<192x128xbf16, #tpu.memory_space<vmem>>, vector<192x128xbf16>
    %cst_65 = arith.constant dense<0.000000e+00> : vector<32x128xf32>
    %63 = tpu.matmul %61, %62, %cst_65 {dimension_numbers = #tpu.dot_dimension_numbers<[1], [0], [0], [1], [0, 0, 1, 1], [], []>} : vector<32x192xbf16>, vector<192x128xbf16>, vector<32x128xf32> -> vector<32x128xf32>
    %c0_66 = arith.constant 0 : index
    %c0_67 = arith.constant 0 : index
    %64 = vector.load %arg11[%c0_66, %c0_67] : memref<1x128xf32, #tpu.memory_space<vmem>>, vector<1x128xf32>
    %65 = vector.broadcast %64 : vector<1x128xf32> to vector<32x128xf32>
    %66 = arith.addf %63, %65 : vector<32x128xf32>
    %cst_68 = arith.constant 0.000000e+00 : f32
    %67 = vector.broadcast %cst_68 : f32 to vector<32x128xf32>
    %68 = arith.maximumf %66, %67 : vector<32x128xf32>
    %69 = vector.shape_cast %68 : vector<32x128xf32> to vector<2x16x128xf32>
    %c0_69 = arith.constant 0 : index
    %c1_70 = arith.constant 1 : index
    %c0_71 = arith.constant 0 : index
    %70 = vector.load %arg41[%c0_69, %c1_70, %c0_71] : memref<2x18x256xf32, #tpu.memory_space<vmem>>, vector<2x16x128xf32>
    tpu.vector_store %arg41[%c0_69, %c1_70, %c0_71], %69 {strides = array<i32>} : memref<2x18x256xf32, #tpu.memory_space<vmem>>, vector<2x16x128xf32>,
    %c0_72 = arith.constant 0 : index
    %c0_73 = arith.constant 0 : index
    %c0_74 = arith.constant 0 : index
    %71 = vector.load %arg41[%c0_72, %c0_73, %c0_74] : memref<2x18x256xf32, #tpu.memory_space<vmem>>, vector<2x16x128xf32>
    %72 = vector.shape_cast %71 : vector<2x16x128xf32> to vector<32x128xf32>
    %c0_75 = arith.constant 0 : index
    %c1_76 = arith.constant 1 : index
    %c0_77 = arith.constant 0 : index
    %73 = vector.load %arg41[%c0_75, %c1_76, %c0_77] : memref<2x18x256xf32, #tpu.memory_space<vmem>>, vector<2x16x128xf32>
    %74 = vector.shape_cast %73 : vector<2x16x128xf32> to vector<32x128xf32>
    %c0_78 = arith.constant 0 : index
    %c2_79 = arith.constant 2 : index
    %c0_80 = arith.constant 0 : index
    %75 = vector.load %arg41[%c0_78, %c2_79, %c0_80] : memref<2x18x256xf32, #tpu.memory_space<vmem>>, vector<2x16x128xf32>
    %76 = vector.shape_cast %75 : vector<2x16x128xf32> to vector<32x128xf32>
    %77 = tpu.concatenate %72, %74, %76 in 1 : vector<32x128xf32>, vector<32x128xf32>, vector<32x128xf32> -> vector<32x384xf32>
    %78 = arith.truncf %77 : vector<32x384xf32> to vector<32x384xbf16>
    %c0_81 = arith.constant 0 : index
    %c0_82 = arith.constant 0 : index
    %79 = vector.load %arg12[%c0_81, %c0_82] : memref<384x128xbf16, #tpu.memory_space<vmem>>, vector<384x128xbf16>
    %cst_83 = arith.constant dense<0.000000e+00> : vector<32x128xf32>
    %80 = tpu.matmul %78, %79, %cst_83 {dimension_numbers = #tpu.dot_dimension_numbers<[1], [0], [0], [1], [0, 0, 1, 1], [], []>} : vector<32x384xbf16>, vector<384x128xbf16>, vector<32x128xf32> -> vector<32x128xf32>
    %c0_84 = arith.constant 0 : index
    %c0_85 = arith.constant 0 : index
    %81 = vector.load %arg13[%c0_84, %c0_85] : memref<1x128xf32, #tpu.memory_space<vmem>>, vector<1x128xf32>
    %82 = vector.broadcast %81 : vector<1x128xf32> to vector<32x128xf32>
    %83 = arith.addf %80, %82 : vector<32x128xf32>
    %84 = vector.shape_cast %52 : vector<2x16x64xf32> to vector<32x64xf32>
    %85 = arith.truncf %84 : vector<32x64xf32> to vector<32x64xbf16>
    %c0_86 = arith.constant 0 : index
    %c0_87 = arith.constant 0 : index
    %86 = vector.load %arg14[%c0_86, %c0_87] : memref<64x128xbf16, #tpu.memory_space<vmem>>, vector<64x128xbf16>
    %cst_88 = arith.constant dense<0.000000e+00> : vector<32x128xf32>
    %87 = tpu.matmul %85, %86, %cst_88 {dimension_numbers = #tpu.dot_dimension_numbers<[1], [0], [0], [1], [0, 0, 1, 1], [], []>} : vector<32x64xbf16>, vector<64x128xbf16>, vector<32x128xf32> -> vector<32x128xf32>
    %c0_89 = arith.constant 0 : index
    %c0_90 = arith.constant 0 : index
    %88 = vector.load %arg15[%c0_89, %c0_90] : memref<1x128xf32, #tpu.memory_space<vmem>>, vector<1x128xf32>
    %89 = vector.broadcast %88 : vector<1x128xf32> to vector<32x128xf32>
    %90 = arith.addf %87, %89 : vector<32x128xf32>
    %91 = arith.addf %83, %90 : vector<32x128xf32>
    %c0_91 = arith.constant 0 : index
    %c0_92 = arith.constant 0 : index
    %92 = vector.load %arg16[%c0_91, %c0_92] : memref<1x128xf32, #tpu.memory_space<vmem>>, vector<1x128xf32>
    %93 = vector.broadcast %92 : vector<1x128xf32> to vector<32x128xf32>
    %94 = arith.mulf %91, %93 : vector<32x128xf32>
    %c0_93 = arith.constant 0 : index
    %c0_94 = arith.constant 0 : index
    %95 = vector.load %arg17[%c0_93, %c0_94] : memref<1x128xf32, #tpu.memory_space<vmem>>, vector<1x128xf32>
    %96 = vector.broadcast %95 : vector<1x128xf32> to vector<32x128xf32>
    %97 = arith.addf %94, %96 : vector<32x128xf32>
    %cst_95 = arith.constant 0.000000e+00 : f32
    %98 = vector.broadcast %cst_95 : f32 to vector<32x128xf32>
    %99 = arith.maximumf %97, %98 : vector<32x128xf32>
    %100 = vector.shape_cast %99 : vector<32x128xf32> to vector<2x16x128xf32>
    %c0_96 = arith.constant 0 : index
    %c1_97 = arith.constant 1 : index
    %c0_98 = arith.constant 0 : index
    %101 = vector.load %arg41[%c0_96, %c1_97, %c0_98] : memref<2x18x256xf32, #tpu.memory_space<vmem>>, vector<2x16x128xf32>
    tpu.vector_store %arg41[%c0_96, %c1_97, %c0_98], %100 {strides = array<i32>} : memref<2x18x256xf32, #tpu.memory_space<vmem>>, vector<2x16x128xf32>,
    %c0_99 = arith.constant 0 : index
    %c0_100 = arith.constant 0 : index
    %c0_101 = arith.constant 0 : index
    %102 = vector.load %arg41[%c0_99, %c0_100, %c0_101] : memref<2x18x256xf32, #tpu.memory_space<vmem>>, vector<2x16x128xf32>
    %103 = vector.shape_cast %102 : vector<2x16x128xf32> to vector<32x128xf32>
    %c0_102 = arith.constant 0 : index
    %c1_103 = arith.constant 1 : index
    %c0_104 = arith.constant 0 : index
    %104 = vector.load %arg41[%c0_102, %c1_103, %c0_104] : memref<2x18x256xf32, #tpu.memory_space<vmem>>, vector<2x16x128xf32>
    %105 = vector.shape_cast %104 : vector<2x16x128xf32> to vector<32x128xf32>
    %c0_105 = arith.constant 0 : index
    %c2_106 = arith.constant 2 : index
    %c0_107 = arith.constant 0 : index
    %106 = vector.load %arg41[%c0_105, %c2_106, %c0_107] : memref<2x18x256xf32, #tpu.memory_space<vmem>>, vector<2x16x128xf32>
    %107 = vector.shape_cast %106 : vector<2x16x128xf32> to vector<32x128xf32>
    %108 = tpu.concatenate %103, %105, %107 in 1 : vector<32x128xf32>, vector<32x128xf32>, vector<32x128xf32> -> vector<32x384xf32>
    %109 = arith.truncf %108 : vector<32x384xf32> to vector<32x384xbf16>
    %c0_108 = arith.constant 0 : index
    %c0_109 = arith.constant 0 : index
    %110 = vector.load %arg18[%c0_108, %c0_109] : memref<384x256xbf16, #tpu.memory_space<vmem>>, vector<384x256xbf16>
    %cst_110 = arith.constant dense<0.000000e+00> : vector<32x256xf32>
    %111 = tpu.matmul %109, %110, %cst_110 {dimension_numbers = #tpu.dot_dimension_numbers<[1], [0], [0], [1], [0, 0, 1, 1], [], []>} : vector<32x384xbf16>, vector<384x256xbf16>, vector<32x256xf32> -> vector<32x256xf32>
    %c0_111 = arith.constant 0 : index
    %c0_112 = arith.constant 0 : index
    %112 = vector.load %arg19[%c0_111, %c0_112] : memref<1x256xf32, #tpu.memory_space<vmem>>, vector<1x256xf32>
    %113 = vector.broadcast %112 : vector<1x256xf32> to vector<32x256xf32>
    %114 = arith.addf %111, %113 : vector<32x256xf32>
    %cst_113 = arith.constant 0.000000e+00 : f32
    %115 = vector.broadcast %cst_113 : f32 to vector<32x256xf32>
    %116 = arith.maximumf %114, %115 : vector<32x256xf32>
    %117 = vector.shape_cast %116 : vector<32x256xf32> to vector<2x16x256xf32>
    %c0_114 = arith.constant 0 : index
    %c1_115 = arith.constant 1 : index
    %c0_116 = arith.constant 0 : index
    %118 = vector.load %arg41[%c0_114, %c1_115, %c0_116] : memref<2x18x256xf32, #tpu.memory_space<vmem>>, vector<2x16x256xf32>
    tpu.vector_store %arg41[%c0_114, %c1_115, %c0_116], %117 {strides = array<i32>} : memref<2x18x256xf32, #tpu.memory_space<vmem>>, vector<2x16x256xf32>,
    %c0_117 = arith.constant 0 : index
    %c0_118 = arith.constant 0 : index
    %c0_119 = arith.constant 0 : index
    %119 = vector.load %arg41[%c0_117, %c0_118, %c0_119] : memref<2x18x256xf32, #tpu.memory_space<vmem>>, vector<2x16x256xf32>
    %120 = vector.shape_cast %119 : vector<2x16x256xf32> to vector<32x256xf32>
    %c0_120 = arith.constant 0 : index
    %c1_121 = arith.constant 1 : index
    %c0_122 = arith.constant 0 : index
    %121 = vector.load %arg41[%c0_120, %c1_121, %c0_122] : memref<2x18x256xf32, #tpu.memory_space<vmem>>, vector<2x16x256xf32>
    %122 = vector.shape_cast %121 : vector<2x16x256xf32> to vector<32x256xf32>
    %c0_123 = arith.constant 0 : index
    %c2_124 = arith.constant 2 : index
    %c0_125 = arith.constant 0 : index
    %123 = vector.load %arg41[%c0_123, %c2_124, %c0_125] : memref<2x18x256xf32, #tpu.memory_space<vmem>>, vector<2x16x256xf32>
    %124 = vector.shape_cast %123 : vector<2x16x256xf32> to vector<32x256xf32>
    %125 = tpu.concatenate %120, %122, %124 in 1 : vector<32x256xf32>, vector<32x256xf32>, vector<32x256xf32> -> vector<32x768xf32>
    %126 = arith.truncf %125 : vector<32x768xf32> to vector<32x768xbf16>
    %c0_126 = arith.constant 0 : index
    %c0_127 = arith.constant 0 : index
    %127 = vector.load %arg20[%c0_126, %c0_127] : memref<768x256xbf16, #tpu.memory_space<vmem>>, vector<768x256xbf16>
    %cst_128 = arith.constant dense<0.000000e+00> : vector<32x256xf32>
    %128 = tpu.matmul %126, %127, %cst_128 {dimension_numbers = #tpu.dot_dimension_numbers<[1], [0], [0], [1], [0, 0, 1, 1], [], []>} : vector<32x768xbf16>, vector<768x256xbf16>, vector<32x256xf32> -> vector<32x256xf32>
    %c0_129 = arith.constant 0 : index
    %c0_130 = arith.constant 0 : index
    %129 = vector.load %arg21[%c0_129, %c0_130] : memref<1x256xf32, #tpu.memory_space<vmem>>, vector<1x256xf32>
    %130 = vector.broadcast %129 : vector<1x256xf32> to vector<32x256xf32>
    %131 = arith.addf %128, %130 : vector<32x256xf32>
    %132 = vector.shape_cast %100 : vector<2x16x128xf32> to vector<32x128xf32>
    %133 = arith.truncf %132 : vector<32x128xf32> to vector<32x128xbf16>
    %c0_131 = arith.constant 0 : index
    %c0_132 = arith.constant 0 : index
    %134 = vector.load %arg22[%c0_131, %c0_132] : memref<128x256xbf16, #tpu.memory_space<vmem>>, vector<128x256xbf16>
    %cst_133 = arith.constant dense<0.000000e+00> : vector<32x256xf32>
    %135 = tpu.matmul %133, %134, %cst_133 {dimension_numbers = #tpu.dot_dimension_numbers<[1], [0], [0], [1], [0, 0, 1, 1], [], []>} : vector<32x128xbf16>, vector<128x256xbf16>, vector<32x256xf32> -> vector<32x256xf32>
    %c0_134 = arith.constant 0 : index
    %c0_135 = arith.constant 0 : index
    %136 = vector.load %arg23[%c0_134, %c0_135] : memref<1x256xf32, #tpu.memory_space<vmem>>, vector<1x256xf32>
    %137 = vector.broadcast %136 : vector<1x256xf32> to vector<32x256xf32>
    %138 = arith.addf %135, %137 : vector<32x256xf32>
    %139 = arith.addf %131, %138 : vector<32x256xf32>
    %c0_136 = arith.constant 0 : index
    %c0_137 = arith.constant 0 : index
    %140 = vector.load %arg24[%c0_136, %c0_137] : memref<1x256xf32, #tpu.memory_space<vmem>>, vector<1x256xf32>
    %141 = vector.broadcast %140 : vector<1x256xf32> to vector<32x256xf32>
    %142 = arith.mulf %139, %141 : vector<32x256xf32>
    %c0_138 = arith.constant 0 : index
    %c0_139 = arith.constant 0 : index
    %143 = vector.load %arg25[%c0_138, %c0_139] : memref<1x256xf32, #tpu.memory_space<vmem>>, vector<1x256xf32>
    %144 = vector.broadcast %143 : vector<1x256xf32> to vector<32x256xf32>
    %145 = arith.addf %142, %144 : vector<32x256xf32>
    %cst_140 = arith.constant 0.000000e+00 : f32
    %146 = vector.broadcast %cst_140 : f32 to vector<32x256xf32>
    %147 = arith.maximumf %145, %146 : vector<32x256xf32>
    %148 = vector.shape_cast %147 : vector<32x256xf32> to vector<2x16x256xf32>
    %149 = vector.shape_cast %148 : vector<2x16x256xf32> to vector<32x256xf32>
    %150 = arith.truncf %149 : vector<32x256xf32> to vector<32x256xbf16>
    %c0_141 = arith.constant 0 : index
    %c0_142 = arith.constant 0 : index
    %151 = vector.load %arg26[%c0_141, %c0_142] : memref<256x768xbf16, #tpu.memory_space<vmem>>, vector<256x768xbf16>
    %cst_143 = arith.constant dense<0.000000e+00> : vector<32x768xf32>
    %152 = tpu.matmul %150, %151, %cst_143 {dimension_numbers = #tpu.dot_dimension_numbers<[1], [0], [0], [1], [0, 0, 1, 1], [], []>} : vector<32x256xbf16>, vector<256x768xbf16>, vector<32x768xf32> -> vector<32x768xf32>
    %c0_144 = arith.constant 0 : index
    %c0_145 = arith.constant 0 : index
    %153 = vector.load %arg27[%c0_144, %c0_145] : memref<1x768xf32, #tpu.memory_space<vmem>>, vector<1x768xf32>
    %154 = vector.broadcast %153 : vector<1x768xf32> to vector<32x768xf32>
    %155 = arith.addf %152, %154 : vector<32x768xf32>
    %156 = vector.extract_strided_slice %155 {offsets = [0, 0], sizes = [32, 256], strides = [1, 1]} : vector<32x768xf32> to vector<32x256xf32>
    %157 = vector.shape_cast %156 : vector<32x256xf32> to vector<2x16x256xf32>
    %158 = vector.extract_strided_slice %155 {offsets = [0, 256], sizes = [32, 256], strides = [1, 1]} : vector<32x768xf32> to vector<32x256xf32>
    %159 = vector.shape_cast %158 : vector<32x256xf32> to vector<2x16x256xf32>
    %160 = vector.extract_strided_slice %155 {offsets = [0, 512], sizes = [32, 256], strides = [1, 1]} : vector<32x768xf32> to vector<32x256xf32>
    %161 = vector.shape_cast %160 : vector<32x256xf32> to vector<2x16x256xf32>
    %162 = vector.extract_strided_slice %157 {offsets = [0, 0, 0], sizes = [2, 16, 32], strides = [1, 1, 1]} : vector<2x16x256xf32> to vector<2x16x32xf32>
    %163 = arith.truncf %162 : vector<2x16x32xf32> to vector<2x16x32xbf16>
    %164 = vector.extract_strided_slice %159 {offsets = [0, 0, 0], sizes = [2, 16, 32], strides = [1, 1, 1]} : vector<2x16x256xf32> to vector<2x16x32xf32>
    %165 = arith.truncf %164 : vector<2x16x32xf32> to vector<2x16x32xbf16>
    "tpu.trace_start"() <{level = 10 : i32, message = "bld,bmd->blm"}> : () -> ()
    %cst_146 = arith.constant dense<0.000000e+00> : vector<2x16x16xf32>
    %166 = tpu.matmul %163, %165, %cst_146 {dimension_numbers = #tpu.dot_dimension_numbers<[2], [2], [1], [1], [0, 0, 0, 1, 1, 1], [0], [0]>} : vector<2x16x32xbf16>, vector<2x16x32xbf16>, vector<2x16x16xf32> -> vector<2x16x16xf32>
    "tpu.trace_stop"() : () -> ()
    %cst_147 = arith.constant dense<0xFF800000> : vector<2x16xf32>
    %167 = vector.multi_reduction <maximumf>, %166, %cst_147 [2] : vector<2x16x16xf32> to vector<2x16xf32>
    %168 = vector.shape_cast %167 : vector<2x16xf32> to vector<2x16x1xf32>
    %169 = vector.broadcast %168 : vector<2x16x1xf32> to vector<2x16x16xf32>
    %170 = arith.subf %166, %169 : vector<2x16x16xf32>
    %171 = math.exp %170 : vector<2x16x16xf32>
    %cst_148 = arith.constant dense<0.000000e+00> : vector<2x16xf32>
    %172 = vector.multi_reduction <add>, %171, %cst_148 [2] : vector<2x16x16xf32> to vector<2x16xf32>
    %173 = vector.shape_cast %172 : vector<2x16xf32> to vector<2x16x1xf32>
    %174 = tpu.reciprocal %173 {approx = true} : vector<2x16x1xf32> -> vector<2x16x1xf32>
    %175 = vector.broadcast %174 : vector<2x16x1xf32> to vector<2x16x16xf32>
    %176 = arith.mulf %171, %175 : vector<2x16x16xf32>
    %177 = arith.truncf %176 : vector<2x16x16xf32> to vector<2x16x16xbf16>
    %178 = vector.extract_strided_slice %161 {offsets = [0, 0, 0], sizes = [2, 16, 32], strides = [1, 1, 1]} : vector<2x16x256xf32> to vector<2x16x32xf32>
    %179 = arith.truncf %178 : vector<2x16x32xf32> to vector<2x16x32xbf16>
    "tpu.trace_start"() <{level = 10 : i32, message = "blm,bmd->bld"}> : () -> ()
    %cst_149 = arith.constant dense<0.000000e+00> : vector<2x16x32xf32>
    %180 = tpu.matmul %177, %179, %cst_149 {dimension_numbers = #tpu.dot_dimension_numbers<[2], [1], [1], [2], [0, 0, 0, 1, 1, 2], [0], [0]>} : vector<2x16x16xbf16>, vector<2x16x32xbf16>, vector<2x16x32xf32> -> vector<2x16x32xf32>
    "tpu.trace_stop"() : () -> ()
    %c0_150 = arith.constant 0 : index
    %c0_151 = arith.constant 0 : index
    %c0_152 = arith.constant 0 : index
    %181 = vector.load %arg42[%c0_150, %c0_151, %c0_152] : memref<2x16x256xf32, #tpu.memory_space<vmem>>, vector<2x16x32xf32>
    tpu.vector_store %arg42[%c0_150, %c0_151, %c0_152], %180 {strides = array<i32>} : memref<2x16x256xf32, #tpu.memory_space<vmem>>, vector<2x16x32xf32>,
    %182 = vector.extract_strided_slice %157 {offsets = [0, 0, 32], sizes = [2, 16, 32], strides = [1, 1, 1]} : vector<2x16x256xf32> to vector<2x16x32xf32>
    %183 = arith.truncf %182 : vector<2x16x32xf32> to vector<2x16x32xbf16>
    %184 = vector.extract_strided_slice %159 {offsets = [0, 0, 32], sizes = [2, 16, 32], strides = [1, 1, 1]} : vector<2x16x256xf32> to vector<2x16x32xf32>
    %185 = arith.truncf %184 : vector<2x16x32xf32> to vector<2x16x32xbf16>
    "tpu.trace_start"() <{level = 10 : i32, message = "bld,bmd->blm"}> : () -> ()
    %cst_153 = arith.constant dense<0.000000e+00> : vector<2x16x16xf32>
    %186 = tpu.matmul %183, %185, %cst_153 {dimension_numbers = #tpu.dot_dimension_numbers<[2], [2], [1], [1], [0, 0, 0, 1, 1, 1], [0], [0]>} : vector<2x16x32xbf16>, vector<2x16x32xbf16>, vector<2x16x16xf32> -> vector<2x16x16xf32>
    "tpu.trace_stop"() : () -> ()
    %cst_154 = arith.constant dense<0xFF800000> : vector<2x16xf32>
    %187 = vector.multi_reduction <maximumf>, %186, %cst_154 [2] : vector<2x16x16xf32> to vector<2x16xf32>
    %188 = vector.shape_cast %187 : vector<2x16xf32> to vector<2x16x1xf32>
    %189 = vector.broadcast %188 : vector<2x16x1xf32> to vector<2x16x16xf32>
    %190 = arith.subf %186, %189 : vector<2x16x16xf32>
    %191 = math.exp %190 : vector<2x16x16xf32>
    %cst_155 = arith.constant dense<0.000000e+00> : vector<2x16xf32>
    %192 = vector.multi_reduction <add>, %191, %cst_155 [2] : vector<2x16x16xf32> to vector<2x16xf32>
    %193 = vector.shape_cast %192 : vector<2x16xf32> to vector<2x16x1xf32>
    %194 = tpu.reciprocal %193 {approx = true} : vector<2x16x1xf32> -> vector<2x16x1xf32>
    %195 = vector.broadcast %194 : vector<2x16x1xf32> to vector<2x16x16xf32>
    %196 = arith.mulf %191, %195 : vector<2x16x16xf32>
    %197 = arith.truncf %196 : vector<2x16x16xf32> to vector<2x16x16xbf16>
    %198 = vector.extract_strided_slice %161 {offsets = [0, 0, 32], sizes = [2, 16, 32], strides = [1, 1, 1]} : vector<2x16x256xf32> to vector<2x16x32xf32>
    %199 = arith.truncf %198 : vector<2x16x32xf32> to vector<2x16x32xbf16>
    "tpu.trace_start"() <{level = 10 : i32, message = "blm,bmd->bld"}> : () -> ()
    %cst_156 = arith.constant dense<0.000000e+00> : vector<2x16x32xf32>
    %200 = tpu.matmul %197, %199, %cst_156 {dimension_numbers = #tpu.dot_dimension_numbers<[2], [1], [1], [2], [0, 0, 0, 1, 1, 2], [0], [0]>} : vector<2x16x16xbf16>, vector<2x16x32xbf16>, vector<2x16x32xf32> -> vector<2x16x32xf32>
    "tpu.trace_stop"() : () -> ()
    %c0_157 = arith.constant 0 : index
    %c0_158 = arith.constant 0 : index
    %c32 = arith.constant 32 : index
    %201 = vector.load %arg42[%c0_157, %c0_158, %c32] : memref<2x16x256xf32, #tpu.memory_space<vmem>>, vector<2x16x32xf32>
    tpu.vector_store %arg42[%c0_157, %c0_158, %c32], %200 {strides = array<i32>} : memref<2x16x256xf32, #tpu.memory_space<vmem>>, vector<2x16x32xf32>,
    %202 = vector.extract_strided_slice %157 {offsets = [0, 0, 64], sizes = [2, 16, 32], strides = [1, 1, 1]} : vector<2x16x256xf32> to vector<2x16x32xf32>
    %203 = arith.truncf %202 : vector<2x16x32xf32> to vector<2x16x32xbf16>
    %204 = vector.extract_strided_slice %159 {offsets = [0, 0, 64], sizes = [2, 16, 32], strides = [1, 1, 1]} : vector<2x16x256xf32> to vector<2x16x32xf32>
    %205 = arith.truncf %204 : vector<2x16x32xf32> to vector<2x16x32xbf16>
    "tpu.trace_start"() <{level = 10 : i32, message = "bld,bmd->blm"}> : () -> ()
    %cst_159 = arith.constant dense<0.000000e+00> : vector<2x16x16xf32>
    %206 = tpu.matmul %203, %205, %cst_159 {dimension_numbers = #tpu.dot_dimension_numbers<[2], [2], [1], [1], [0, 0, 0, 1, 1, 1], [0], [0]>} : vector<2x16x32xbf16>, vector<2x16x32xbf16>, vector<2x16x16xf32> -> vector<2x16x16xf32>
    "tpu.trace_stop"() : () -> ()
    %cst_160 = arith.constant dense<0xFF800000> : vector<2x16xf32>
    %207 = vector.multi_reduction <maximumf>, %206, %cst_160 [2] : vector<2x16x16xf32> to vector<2x16xf32>
    %208 = vector.shape_cast %207 : vector<2x16xf32> to vector<2x16x1xf32>
    %209 = vector.broadcast %208 : vector<2x16x1xf32> to vector<2x16x16xf32>
    %210 = arith.subf %206, %209 : vector<2x16x16xf32>
    %211 = math.exp %210 : vector<2x16x16xf32>
    %cst_161 = arith.constant dense<0.000000e+00> : vector<2x16xf32>
    %212 = vector.multi_reduction <add>, %211, %cst_161 [2] : vector<2x16x16xf32> to vector<2x16xf32>
    %213 = vector.shape_cast %212 : vector<2x16xf32> to vector<2x16x1xf32>
    %214 = tpu.reciprocal %213 {approx = true} : vector<2x16x1xf32> -> vector<2x16x1xf32>
    %215 = vector.broadcast %214 : vector<2x16x1xf32> to vector<2x16x16xf32>
    %216 = arith.mulf %211, %215 : vector<2x16x16xf32>
    %217 = arith.truncf %216 : vector<2x16x16xf32> to vector<2x16x16xbf16>
    %218 = vector.extract_strided_slice %161 {offsets = [0, 0, 64], sizes = [2, 16, 32], strides = [1, 1, 1]} : vector<2x16x256xf32> to vector<2x16x32xf32>
    %219 = arith.truncf %218 : vector<2x16x32xf32> to vector<2x16x32xbf16>
    "tpu.trace_start"() <{level = 10 : i32, message = "blm,bmd->bld"}> : () -> ()
    %cst_162 = arith.constant dense<0.000000e+00> : vector<2x16x32xf32>
    %220 = tpu.matmul %217, %219, %cst_162 {dimension_numbers = #tpu.dot_dimension_numbers<[2], [1], [1], [2], [0, 0, 0, 1, 1, 2], [0], [0]>} : vector<2x16x16xbf16>, vector<2x16x32xbf16>, vector<2x16x32xf32> -> vector<2x16x32xf32>
    "tpu.trace_stop"() : () -> ()
    %c0_163 = arith.constant 0 : index
    %c0_164 = arith.constant 0 : index
    %c64 = arith.constant 64 : index
    %221 = vector.load %arg42[%c0_163, %c0_164, %c64] : memref<2x16x256xf32, #tpu.memory_space<vmem>>, vector<2x16x32xf32>
    tpu.vector_store %arg42[%c0_163, %c0_164, %c64], %220 {strides = array<i32>} : memref<2x16x256xf32, #tpu.memory_space<vmem>>, vector<2x16x32xf32>,
    %222 = vector.extract_strided_slice %157 {offsets = [0, 0, 96], sizes = [2, 16, 32], strides = [1, 1, 1]} : vector<2x16x256xf32> to vector<2x16x32xf32>
    %223 = arith.truncf %222 : vector<2x16x32xf32> to vector<2x16x32xbf16>
    %224 = vector.extract_strided_slice %159 {offsets = [0, 0, 96], sizes = [2, 16, 32], strides = [1, 1, 1]} : vector<2x16x256xf32> to vector<2x16x32xf32>
    %225 = arith.truncf %224 : vector<2x16x32xf32> to vector<2x16x32xbf16>
    "tpu.trace_start"() <{level = 10 : i32, message = "bld,bmd->blm"}> : () -> ()
    %cst_165 = arith.constant dense<0.000000e+00> : vector<2x16x16xf32>
    %226 = tpu.matmul %223, %225, %cst_165 {dimension_numbers = #tpu.dot_dimension_numbers<[2], [2], [1], [1], [0, 0, 0, 1, 1, 1], [0], [0]>} : vector<2x16x32xbf16>, vector<2x16x32xbf16>, vector<2x16x16xf32> -> vector<2x16x16xf32>
    "tpu.trace_stop"() : () -> ()
    %cst_166 = arith.constant dense<0xFF800000> : vector<2x16xf32>
    %227 = vector.multi_reduction <maximumf>, %226, %cst_166 [2] : vector<2x16x16xf32> to vector<2x16xf32>
    %228 = vector.shape_cast %227 : vector<2x16xf32> to vector<2x16x1xf32>
    %229 = vector.broadcast %228 : vector<2x16x1xf32> to vector<2x16x16xf32>
    %230 = arith.subf %226, %229 : vector<2x16x16xf32>
    %231 = math.exp %230 : vector<2x16x16xf32>
    %cst_167 = arith.constant dense<0.000000e+00> : vector<2x16xf32>
    %232 = vector.multi_reduction <add>, %231, %cst_167 [2] : vector<2x16x16xf32> to vector<2x16xf32>
    %233 = vector.shape_cast %232 : vector<2x16xf32> to vector<2x16x1xf32>
    %234 = tpu.reciprocal %233 {approx = true} : vector<2x16x1xf32> -> vector<2x16x1xf32>
    %235 = vector.broadcast %234 : vector<2x16x1xf32> to vector<2x16x16xf32>
    %236 = arith.mulf %231, %235 : vector<2x16x16xf32>
    %237 = arith.truncf %236 : vector<2x16x16xf32> to vector<2x16x16xbf16>
    %238 = vector.extract_strided_slice %161 {offsets = [0, 0, 96], sizes = [2, 16, 32], strides = [1, 1, 1]} : vector<2x16x256xf32> to vector<2x16x32xf32>
    %239 = arith.truncf %238 : vector<2x16x32xf32> to vector<2x16x32xbf16>
    "tpu.trace_start"() <{level = 10 : i32, message = "blm,bmd->bld"}> : () -> ()
    %cst_168 = arith.constant dense<0.000000e+00> : vector<2x16x32xf32>
    %240 = tpu.matmul %237, %239, %cst_168 {dimension_numbers = #tpu.dot_dimension_numbers<[2], [1], [1], [2], [0, 0, 0, 1, 1, 2], [0], [0]>} : vector<2x16x16xbf16>, vector<2x16x32xbf16>, vector<2x16x32xf32> -> vector<2x16x32xf32>
    "tpu.trace_stop"() : () -> ()
    %c0_169 = arith.constant 0 : index
    %c0_170 = arith.constant 0 : index
    %c96 = arith.constant 96 : index
    %241 = vector.load %arg42[%c0_169, %c0_170, %c96] : memref<2x16x256xf32, #tpu.memory_space<vmem>>, vector<2x16x32xf32>
    tpu.vector_store %arg42[%c0_169, %c0_170, %c96], %240 {strides = array<i32>} : memref<2x16x256xf32, #tpu.memory_space<vmem>>, vector<2x16x32xf32>,
    %242 = vector.extract_strided_slice %157 {offsets = [0, 0, 128], sizes = [2, 16, 32], strides = [1, 1, 1]} : vector<2x16x256xf32> to vector<2x16x32xf32>
    %243 = arith.truncf %242 : vector<2x16x32xf32> to vector<2x16x32xbf16>
    %244 = vector.extract_strided_slice %159 {offsets = [0, 0, 128], sizes = [2, 16, 32], strides = [1, 1, 1]} : vector<2x16x256xf32> to vector<2x16x32xf32>
    %245 = arith.truncf %244 : vector<2x16x32xf32> to vector<2x16x32xbf16>
    "tpu.trace_start"() <{level = 10 : i32, message = "bld,bmd->blm"}> : () -> ()
    %cst_171 = arith.constant dense<0.000000e+00> : vector<2x16x16xf32>
    %246 = tpu.matmul %243, %245, %cst_171 {dimension_numbers = #tpu.dot_dimension_numbers<[2], [2], [1], [1], [0, 0, 0, 1, 1, 1], [0], [0]>} : vector<2x16x32xbf16>, vector<2x16x32xbf16>, vector<2x16x16xf32> -> vector<2x16x16xf32>
    "tpu.trace_stop"() : () -> ()
    %cst_172 = arith.constant dense<0xFF800000> : vector<2x16xf32>
    %247 = vector.multi_reduction <maximumf>, %246, %cst_172 [2] : vector<2x16x16xf32> to vector<2x16xf32>
    %248 = vector.shape_cast %247 : vector<2x16xf32> to vector<2x16x1xf32>
    %249 = vector.broadcast %248 : vector<2x16x1xf32> to vector<2x16x16xf32>
    %250 = arith.subf %246, %249 : vector<2x16x16xf32>
    %251 = math.exp %250 : vector<2x16x16xf32>
    %cst_173 = arith.constant dense<0.000000e+00> : vector<2x16xf32>
    %252 = vector.multi_reduction <add>, %251, %cst_173 [2] : vector<2x16x16xf32> to vector<2x16xf32>
    %253 = vector.shape_cast %252 : vector<2x16xf32> to vector<2x16x1xf32>
    %254 = tpu.reciprocal %253 {approx = true} : vector<2x16x1xf32> -> vector<2x16x1xf32>
    %255 = vector.broadcast %254 : vector<2x16x1xf32> to vector<2x16x16xf32>
    %256 = arith.mulf %251, %255 : vector<2x16x16xf32>
    %257 = arith.truncf %256 : vector<2x16x16xf32> to vector<2x16x16xbf16>
    %258 = vector.extract_strided_slice %161 {offsets = [0, 0, 128], sizes = [2, 16, 32], strides = [1, 1, 1]} : vector<2x16x256xf32> to vector<2x16x32xf32>
    %259 = arith.truncf %258 : vector<2x16x32xf32> to vector<2x16x32xbf16>
    "tpu.trace_start"() <{level = 10 : i32, message = "blm,bmd->bld"}> : () -> ()
    %cst_174 = arith.constant dense<0.000000e+00> : vector<2x16x32xf32>
    %260 = tpu.matmul %257, %259, %cst_174 {dimension_numbers = #tpu.dot_dimension_numbers<[2], [1], [1], [2], [0, 0, 0, 1, 1, 2], [0], [0]>} : vector<2x16x16xbf16>, vector<2x16x32xbf16>, vector<2x16x32xf32> -> vector<2x16x32xf32>
    "tpu.trace_stop"() : () -> ()
    %c0_175 = arith.constant 0 : index
    %c0_176 = arith.constant 0 : index
    %c128 = arith.constant 128 : index
    %261 = vector.load %arg42[%c0_175, %c0_176, %c128] : memref<2x16x256xf32, #tpu.memory_space<vmem>>, vector<2x16x32xf32>
    tpu.vector_store %arg42[%c0_175, %c0_176, %c128], %260 {strides = array<i32>} : memref<2x16x256xf32, #tpu.memory_space<vmem>>, vector<2x16x32xf32>,
    %262 = vector.extract_strided_slice %157 {offsets = [0, 0, 160], sizes = [2, 16, 32], strides = [1, 1, 1]} : vector<2x16x256xf32> to vector<2x16x32xf32>
    %263 = arith.truncf %262 : vector<2x16x32xf32> to vector<2x16x32xbf16>
    %264 = vector.extract_strided_slice %159 {offsets = [0, 0, 160], sizes = [2, 16, 32], strides = [1, 1, 1]} : vector<2x16x256xf32> to vector<2x16x32xf32>
    %265 = arith.truncf %264 : vector<2x16x32xf32> to vector<2x16x32xbf16>
    "tpu.trace_start"() <{level = 10 : i32, message = "bld,bmd->blm"}> : () -> ()
    %cst_177 = arith.constant dense<0.000000e+00> : vector<2x16x16xf32>
    %266 = tpu.matmul %263, %265, %cst_177 {dimension_numbers = #tpu.dot_dimension_numbers<[2], [2], [1], [1], [0, 0, 0, 1, 1, 1], [0], [0]>} : vector<2x16x32xbf16>, vector<2x16x32xbf16>, vector<2x16x16xf32> -> vector<2x16x16xf32>
    "tpu.trace_stop"() : () -> ()
    %cst_178 = arith.constant dense<0xFF800000> : vector<2x16xf32>
    %267 = vector.multi_reduction <maximumf>, %266, %cst_178 [2] : vector<2x16x16xf32> to vector<2x16xf32>
    %268 = vector.shape_cast %267 : vector<2x16xf32> to vector<2x16x1xf32>
    %269 = vector.broadcast %268 : vector<2x16x1xf32> to vector<2x16x16xf32>
    %270 = arith.subf %266, %269 : vector<2x16x16xf32>
    %271 = math.exp %270 : vector<2x16x16xf32>
    %cst_179 = arith.constant dense<0.000000e+00> : vector<2x16xf32>
    %272 = vector.multi_reduction <add>, %271, %cst_179 [2] : vector<2x16x16xf32> to vector<2x16xf32>
    %273 = vector.shape_cast %272 : vector<2x16xf32> to vector<2x16x1xf32>
    %274 = tpu.reciprocal %273 {approx = true} : vector<2x16x1xf32> -> vector<2x16x1xf32>
    %275 = vector.broadcast %274 : vector<2x16x1xf32> to vector<2x16x16xf32>
    %276 = arith.mulf %271, %275 : vector<2x16x16xf32>
    %277 = arith.truncf %276 : vector<2x16x16xf32> to vector<2x16x16xbf16>
    %278 = vector.extract_strided_slice %161 {offsets = [0, 0, 160], sizes = [2, 16, 32], strides = [1, 1, 1]} : vector<2x16x256xf32> to vector<2x16x32xf32>
    %279 = arith.truncf %278 : vector<2x16x32xf32> to vector<2x16x32xbf16>
    "tpu.trace_start"() <{level = 10 : i32, message = "blm,bmd->bld"}> : () -> ()
    %cst_180 = arith.constant dense<0.000000e+00> : vector<2x16x32xf32>
    %280 = tpu.matmul %277, %279, %cst_180 {dimension_numbers = #tpu.dot_dimension_numbers<[2], [1], [1], [2], [0, 0, 0, 1, 1, 2], [0], [0]>} : vector<2x16x16xbf16>, vector<2x16x32xbf16>, vector<2x16x32xf32> -> vector<2x16x32xf32>
    "tpu.trace_stop"() : () -> ()
    %c0_181 = arith.constant 0 : index
    %c0_182 = arith.constant 0 : index
    %c160 = arith.constant 160 : index
    %281 = vector.load %arg42[%c0_181, %c0_182, %c160] : memref<2x16x256xf32, #tpu.memory_space<vmem>>, vector<2x16x32xf32>
    tpu.vector_store %arg42[%c0_181, %c0_182, %c160], %280 {strides = array<i32>} : memref<2x16x256xf32, #tpu.memory_space<vmem>>, vector<2x16x32xf32>,
    %282 = vector.extract_strided_slice %157 {offsets = [0, 0, 192], sizes = [2, 16, 32], strides = [1, 1, 1]} : vector<2x16x256xf32> to vector<2x16x32xf32>
    %283 = arith.truncf %282 : vector<2x16x32xf32> to vector<2x16x32xbf16>
    %284 = vector.extract_strided_slice %159 {offsets = [0, 0, 192], sizes = [2, 16, 32], strides = [1, 1, 1]} : vector<2x16x256xf32> to vector<2x16x32xf32>
    %285 = arith.truncf %284 : vector<2x16x32xf32> to vector<2x16x32xbf16>
    "tpu.trace_start"() <{level = 10 : i32, message = "bld,bmd->blm"}> : () -> ()
    %cst_183 = arith.constant dense<0.000000e+00> : vector<2x16x16xf32>
    %286 = tpu.matmul %283, %285, %cst_183 {dimension_numbers = #tpu.dot_dimension_numbers<[2], [2], [1], [1], [0, 0, 0, 1, 1, 1], [0], [0]>} : vector<2x16x32xbf16>, vector<2x16x32xbf16>, vector<2x16x16xf32> -> vector<2x16x16xf32>
    "tpu.trace_stop"() : () -> ()
    %cst_184 = arith.constant dense<0xFF800000> : vector<2x16xf32>
    %287 = vector.multi_reduction <maximumf>, %286, %cst_184 [2] : vector<2x16x16xf32> to vector<2x16xf32>
    %288 = vector.shape_cast %287 : vector<2x16xf32> to vector<2x16x1xf32>
    %289 = vector.broadcast %288 : vector<2x16x1xf32> to vector<2x16x16xf32>
    %290 = arith.subf %286, %289 : vector<2x16x16xf32>
    %291 = math.exp %290 : vector<2x16x16xf32>
    %cst_185 = arith.constant dense<0.000000e+00> : vector<2x16xf32>
    %292 = vector.multi_reduction <add>, %291, %cst_185 [2] : vector<2x16x16xf32> to vector<2x16xf32>
    %293 = vector.shape_cast %292 : vector<2x16xf32> to vector<2x16x1xf32>
    %294 = tpu.reciprocal %293 {approx = true} : vector<2x16x1xf32> -> vector<2x16x1xf32>
    %295 = vector.broadcast %294 : vector<2x16x1xf32> to vector<2x16x16xf32>
    %296 = arith.mulf %291, %295 : vector<2x16x16xf32>
    %297 = arith.truncf %296 : vector<2x16x16xf32> to vector<2x16x16xbf16>
    %298 = vector.extract_strided_slice %161 {offsets = [0, 0, 192], sizes = [2, 16, 32], strides = [1, 1, 1]} : vector<2x16x256xf32> to vector<2x16x32xf32>
    %299 = arith.truncf %298 : vector<2x16x32xf32> to vector<2x16x32xbf16>
    "tpu.trace_start"() <{level = 10 : i32, message = "blm,bmd->bld"}> : () -> ()
    %cst_186 = arith.constant dense<0.000000e+00> : vector<2x16x32xf32>
    %300 = tpu.matmul %297, %299, %cst_186 {dimension_numbers = #tpu.dot_dimension_numbers<[2], [1], [1], [2], [0, 0, 0, 1, 1, 2], [0], [0]>} : vector<2x16x16xbf16>, vector<2x16x32xbf16>, vector<2x16x32xf32> -> vector<2x16x32xf32>
    "tpu.trace_stop"() : () -> ()
    %c0_187 = arith.constant 0 : index
    %c0_188 = arith.constant 0 : index
    %c192 = arith.constant 192 : index
    %301 = vector.load %arg42[%c0_187, %c0_188, %c192] : memref<2x16x256xf32, #tpu.memory_space<vmem>>, vector<2x16x32xf32>
    tpu.vector_store %arg42[%c0_187, %c0_188, %c192], %300 {strides = array<i32>} : memref<2x16x256xf32, #tpu.memory_space<vmem>>, vector<2x16x32xf32>,
    %302 = vector.extract_strided_slice %157 {offsets = [0, 0, 224], sizes = [2, 16, 32], strides = [1, 1, 1]} : vector<2x16x256xf32> to vector<2x16x32xf32>
    %303 = arith.truncf %302 : vector<2x16x32xf32> to vector<2x16x32xbf16>
    %304 = vector.extract_strided_slice %159 {offsets = [0, 0, 224], sizes = [2, 16, 32], strides = [1, 1, 1]} : vector<2x16x256xf32> to vector<2x16x32xf32>
    %305 = arith.truncf %304 : vector<2x16x32xf32> to vector<2x16x32xbf16>
    "tpu.trace_start"() <{level = 10 : i32, message = "bld,bmd->blm"}> : () -> ()
    %cst_189 = arith.constant dense<0.000000e+00> : vector<2x16x16xf32>
    %306 = tpu.matmul %303, %305, %cst_189 {dimension_numbers = #tpu.dot_dimension_numbers<[2], [2], [1], [1], [0, 0, 0, 1, 1, 1], [0], [0]>} : vector<2x16x32xbf16>, vector<2x16x32xbf16>, vector<2x16x16xf32> -> vector<2x16x16xf32>
    "tpu.trace_stop"() : () -> ()
    %cst_190 = arith.constant dense<0xFF800000> : vector<2x16xf32>
    %307 = vector.multi_reduction <maximumf>, %306, %cst_190 [2] : vector<2x16x16xf32> to vector<2x16xf32>
    %308 = vector.shape_cast %307 : vector<2x16xf32> to vector<2x16x1xf32>
    %309 = vector.broadcast %308 : vector<2x16x1xf32> to vector<2x16x16xf32>
    %310 = arith.subf %306, %309 : vector<2x16x16xf32>
    %311 = math.exp %310 : vector<2x16x16xf32>
    %cst_191 = arith.constant dense<0.000000e+00> : vector<2x16xf32>
    %312 = vector.multi_reduction <add>, %311, %cst_191 [2] : vector<2x16x16xf32> to vector<2x16xf32>
    %313 = vector.shape_cast %312 : vector<2x16xf32> to vector<2x16x1xf32>
    %314 = tpu.reciprocal %313 {approx = true} : vector<2x16x1xf32> -> vector<2x16x1xf32>
    %315 = vector.broadcast %314 : vector<2x16x1xf32> to vector<2x16x16xf32>
    %316 = arith.mulf %311, %315 : vector<2x16x16xf32>
    %317 = arith.truncf %316 : vector<2x16x16xf32> to vector<2x16x16xbf16>
    %318 = vector.extract_strided_slice %161 {offsets = [0, 0, 224], sizes = [2, 16, 32], strides = [1, 1, 1]} : vector<2x16x256xf32> to vector<2x16x32xf32>
    %319 = arith.truncf %318 : vector<2x16x32xf32> to vector<2x16x32xbf16>
    "tpu.trace_start"() <{level = 10 : i32, message = "blm,bmd->bld"}> : () -> ()
    %cst_192 = arith.constant dense<0.000000e+00> : vector<2x16x32xf32>
    %320 = tpu.matmul %317, %319, %cst_192 {dimension_numbers = #tpu.dot_dimension_numbers<[2], [1], [1], [2], [0, 0, 0, 1, 1, 2], [0], [0]>} : vector<2x16x16xbf16>, vector<2x16x32xbf16>, vector<2x16x32xf32> -> vector<2x16x32xf32>
    "tpu.trace_stop"() : () -> ()
    %c0_193 = arith.constant 0 : index
    %c0_194 = arith.constant 0 : index
    %c224 = arith.constant 224 : index
    %321 = vector.load %arg42[%c0_193, %c0_194, %c224] : memref<2x16x256xf32, #tpu.memory_space<vmem>>, vector<2x16x32xf32>
    tpu.vector_store %arg42[%c0_193, %c0_194, %c224], %320 {strides = array<i32>} : memref<2x16x256xf32, #tpu.memory_space<vmem>>, vector<2x16x32xf32>,
    %c0_195 = arith.constant 0 : index
    %c0_196 = arith.constant 0 : index
    %c0_197 = arith.constant 0 : index
    %322 = vector.load %arg42[%c0_195, %c0_196, %c0_197] : memref<2x16x256xf32, #tpu.memory_space<vmem>>, vector<2x16x256xf32>
    %323 = vector.shape_cast %322 : vector<2x16x256xf32> to vector<32x256xf32>
    %324 = arith.truncf %323 : vector<32x256xf32> to vector<32x256xbf16>
    %c0_198 = arith.constant 0 : index
    %c0_199 = arith.constant 0 : index
    %325 = vector.load %arg28[%c0_198, %c0_199] : memref<256x256xbf16, #tpu.memory_space<vmem>>, vector<256x256xbf16>
    %cst_200 = arith.constant dense<0.000000e+00> : vector<32x256xf32>
    %326 = tpu.matmul %324, %325, %cst_200 {dimension_numbers = #tpu.dot_dimension_numbers<[1], [0], [0], [1], [0, 0, 1, 1], [], []>} : vector<32x256xbf16>, vector<256x256xbf16>, vector<32x256xf32> -> vector<32x256xf32>
    %c0_201 = arith.constant 0 : index
    %c0_202 = arith.constant 0 : index
    %327 = vector.load %arg29[%c0_201, %c0_202] : memref<1x256xf32, #tpu.memory_space<vmem>>, vector<1x256xf32>
    %328 = vector.broadcast %327 : vector<1x256xf32> to vector<32x256xf32>
    %329 = arith.addf %326, %328 : vector<32x256xf32>
    %330 = arith.addf %329, %149 : vector<32x256xf32>
    %cst_203 = arith.constant 0.000000e+00 : f32
    %331 = vector.broadcast %cst_203 : f32 to vector<32x256xf32>
    %332 = arith.maximumf %330, %331 : vector<32x256xf32>
    %333 = vector.shape_cast %332 : vector<32x256xf32> to vector<2x16x256xf32>
    %334 = vector.shape_cast %333 : vector<2x16x256xf32> to vector<32x256xf32>
    %335 = arith.truncf %334 : vector<32x256xf32> to vector<32x256xbf16>
    %c0_204 = arith.constant 0 : index
    %c0_205 = arith.constant 0 : index
    %336 = vector.load %arg30[%c0_204, %c0_205] : memref<256x768xbf16, #tpu.memory_space<vmem>>, vector<256x768xbf16>
    %cst_206 = arith.constant dense<0.000000e+00> : vector<32x768xf32>
    %337 = tpu.matmul %335, %336, %cst_206 {dimension_numbers = #tpu.dot_dimension_numbers<[1], [0], [0], [1], [0, 0, 1, 1], [], []>} : vector<32x256xbf16>, vector<256x768xbf16>, vector<32x768xf32> -> vector<32x768xf32>
    %c0_207 = arith.constant 0 : index
    %c0_208 = arith.constant 0 : index
    %338 = vector.load %arg31[%c0_207, %c0_208] : memref<1x768xf32, #tpu.memory_space<vmem>>, vector<1x768xf32>
    %339 = vector.broadcast %338 : vector<1x768xf32> to vector<32x768xf32>
    %340 = arith.addf %337, %339 : vector<32x768xf32>
    %341 = vector.extract_strided_slice %340 {offsets = [0, 0], sizes = [32, 256], strides = [1, 1]} : vector<32x768xf32> to vector<32x256xf32>
    %342 = vector.shape_cast %341 : vector<32x256xf32> to vector<2x16x256xf32>
    %343 = vector.extract_strided_slice %340 {offsets = [0, 256], sizes = [32, 256], strides = [1, 1]} : vector<32x768xf32> to vector<32x256xf32>
    %344 = vector.shape_cast %343 : vector<32x256xf32> to vector<2x16x256xf32>
    %345 = vector.extract_strided_slice %340 {offsets = [0, 512], sizes = [32, 256], strides = [1, 1]} : vector<32x768xf32> to vector<32x256xf32>
    %346 = vector.shape_cast %345 : vector<32x256xf32> to vector<2x16x256xf32>
    %347 = vector.extract_strided_slice %342 {offsets = [0, 0, 0], sizes = [2, 16, 32], strides = [1, 1, 1]} : vector<2x16x256xf32> to vector<2x16x32xf32>
    %348 = arith.truncf %347 : vector<2x16x32xf32> to vector<2x16x32xbf16>
    %349 = vector.extract_strided_slice %344 {offsets = [0, 0, 0], sizes = [2, 16, 32], strides = [1, 1, 1]} : vector<2x16x256xf32> to vector<2x16x32xf32>
    %350 = arith.truncf %349 : vector<2x16x32xf32> to vector<2x16x32xbf16>
    "tpu.trace_start"() <{level = 10 : i32, message = "bld,bmd->blm"}> : () -> ()
    %cst_209 = arith.constant dense<0.000000e+00> : vector<2x16x16xf32>
    %351 = tpu.matmul %348, %350, %cst_209 {dimension_numbers = #tpu.dot_dimension_numbers<[2], [2], [1], [1], [0, 0, 0, 1, 1, 1], [0], [0]>} : vector<2x16x32xbf16>, vector<2x16x32xbf16>, vector<2x16x16xf32> -> vector<2x16x16xf32>
    "tpu.trace_stop"() : () -> ()
    %cst_210 = arith.constant dense<0xFF800000> : vector<2x16xf32>
    %352 = vector.multi_reduction <maximumf>, %351, %cst_210 [2] : vector<2x16x16xf32> to vector<2x16xf32>
    %353 = vector.shape_cast %352 : vector<2x16xf32> to vector<2x16x1xf32>
    %354 = vector.broadcast %353 : vector<2x16x1xf32> to vector<2x16x16xf32>
    %355 = arith.subf %351, %354 : vector<2x16x16xf32>
    %356 = math.exp %355 : vector<2x16x16xf32>
    %cst_211 = arith.constant dense<0.000000e+00> : vector<2x16xf32>
    %357 = vector.multi_reduction <add>, %356, %cst_211 [2] : vector<2x16x16xf32> to vector<2x16xf32>
    %358 = vector.shape_cast %357 : vector<2x16xf32> to vector<2x16x1xf32>
    %359 = tpu.reciprocal %358 {approx = true} : vector<2x16x1xf32> -> vector<2x16x1xf32>
    %360 = vector.broadcast %359 : vector<2x16x1xf32> to vector<2x16x16xf32>
    %361 = arith.mulf %356, %360 : vector<2x16x16xf32>
    %362 = arith.truncf %361 : vector<2x16x16xf32> to vector<2x16x16xbf16>
    %363 = vector.extract_strided_slice %346 {offsets = [0, 0, 0], sizes = [2, 16, 32], strides = [1, 1, 1]} : vector<2x16x256xf32> to vector<2x16x32xf32>
    %364 = arith.truncf %363 : vector<2x16x32xf32> to vector<2x16x32xbf16>
    "tpu.trace_start"() <{level = 10 : i32, message = "blm,bmd->bld"}> : () -> ()
    %cst_212 = arith.constant dense<0.000000e+00> : vector<2x16x32xf32>
    %365 = tpu.matmul %362, %364, %cst_212 {dimension_numbers = #tpu.dot_dimension_numbers<[2], [1], [1], [2], [0, 0, 0, 1, 1, 2], [0], [0]>} : vector<2x16x16xbf16>, vector<2x16x32xbf16>, vector<2x16x32xf32> -> vector<2x16x32xf32>
    "tpu.trace_stop"() : () -> ()
    %c0_213 = arith.constant 0 : index
    %c0_214 = arith.constant 0 : index
    %c0_215 = arith.constant 0 : index
    %366 = vector.load %arg42[%c0_213, %c0_214, %c0_215] : memref<2x16x256xf32, #tpu.memory_space<vmem>>, vector<2x16x32xf32>
    tpu.vector_store %arg42[%c0_213, %c0_214, %c0_215], %365 {strides = array<i32>} : memref<2x16x256xf32, #tpu.memory_space<vmem>>, vector<2x16x32xf32>,
    %367 = vector.extract_strided_slice %342 {offsets = [0, 0, 32], sizes = [2, 16, 32], strides = [1, 1, 1]} : vector<2x16x256xf32> to vector<2x16x32xf32>
    %368 = arith.truncf %367 : vector<2x16x32xf32> to vector<2x16x32xbf16>
    %369 = vector.extract_strided_slice %344 {offsets = [0, 0, 32], sizes = [2, 16, 32], strides = [1, 1, 1]} : vector<2x16x256xf32> to vector<2x16x32xf32>
    %370 = arith.truncf %369 : vector<2x16x32xf32> to vector<2x16x32xbf16>
    "tpu.trace_start"() <{level = 10 : i32, message = "bld,bmd->blm"}> : () -> ()
    %cst_216 = arith.constant dense<0.000000e+00> : vector<2x16x16xf32>
    %371 = tpu.matmul %368, %370, %cst_216 {dimension_numbers = #tpu.dot_dimension_numbers<[2], [2], [1], [1], [0, 0, 0, 1, 1, 1], [0], [0]>} : vector<2x16x32xbf16>, vector<2x16x32xbf16>, vector<2x16x16xf32> -> vector<2x16x16xf32>
    "tpu.trace_stop"() : () -> ()
    %cst_217 = arith.constant dense<0xFF800000> : vector<2x16xf32>
    %372 = vector.multi_reduction <maximumf>, %371, %cst_217 [2] : vector<2x16x16xf32> to vector<2x16xf32>
    %373 = vector.shape_cast %372 : vector<2x16xf32> to vector<2x16x1xf32>
    %374 = vector.broadcast %373 : vector<2x16x1xf32> to vector<2x16x16xf32>
    %375 = arith.subf %371, %374 : vector<2x16x16xf32>
    %376 = math.exp %375 : vector<2x16x16xf32>
    %cst_218 = arith.constant dense<0.000000e+00> : vector<2x16xf32>
    %377 = vector.multi_reduction <add>, %376, %cst_218 [2] : vector<2x16x16xf32> to vector<2x16xf32>
    %378 = vector.shape_cast %377 : vector<2x16xf32> to vector<2x16x1xf32>
    %379 = tpu.reciprocal %378 {approx = true} : vector<2x16x1xf32> -> vector<2x16x1xf32>
    %380 = vector.broadcast %379 : vector<2x16x1xf32> to vector<2x16x16xf32>
    %381 = arith.mulf %376, %380 : vector<2x16x16xf32>
    %382 = arith.truncf %381 : vector<2x16x16xf32> to vector<2x16x16xbf16>
    %383 = vector.extract_strided_slice %346 {offsets = [0, 0, 32], sizes = [2, 16, 32], strides = [1, 1, 1]} : vector<2x16x256xf32> to vector<2x16x32xf32>
    %384 = arith.truncf %383 : vector<2x16x32xf32> to vector<2x16x32xbf16>
    "tpu.trace_start"() <{level = 10 : i32, message = "blm,bmd->bld"}> : () -> ()
    %cst_219 = arith.constant dense<0.000000e+00> : vector<2x16x32xf32>
    %385 = tpu.matmul %382, %384, %cst_219 {dimension_numbers = #tpu.dot_dimension_numbers<[2], [1], [1], [2], [0, 0, 0, 1, 1, 2], [0], [0]>} : vector<2x16x16xbf16>, vector<2x16x32xbf16>, vector<2x16x32xf32> -> vector<2x16x32xf32>
    "tpu.trace_stop"() : () -> ()
    %c0_220 = arith.constant 0 : index
    %c0_221 = arith.constant 0 : index
    %c32_222 = arith.constant 32 : index
    %386 = vector.load %arg42[%c0_220, %c0_221, %c32_222] : memref<2x16x256xf32, #tpu.memory_space<vmem>>, vector<2x16x32xf32>
    tpu.vector_store %arg42[%c0_220, %c0_221, %c32_222], %385 {strides = array<i32>} : memref<2x16x256xf32, #tpu.memory_space<vmem>>, vector<2x16x32xf32>,
    %387 = vector.extract_strided_slice %342 {offsets = [0, 0, 64], sizes = [2, 16, 32], strides = [1, 1, 1]} : vector<2x16x256xf32> to vector<2x16x32xf32>
    %388 = arith.truncf %387 : vector<2x16x32xf32> to vector<2x16x32xbf16>
    %389 = vector.extract_strided_slice %344 {offsets = [0, 0, 64], sizes = [2, 16, 32], strides = [1, 1, 1]} : vector<2x16x256xf32> to vector<2x16x32xf32>
    %390 = arith.truncf %389 : vector<2x16x32xf32> to vector<2x16x32xbf16>
    "tpu.trace_start"() <{level = 10 : i32, message = "bld,bmd->blm"}> : () -> ()
    %cst_223 = arith.constant dense<0.000000e+00> : vector<2x16x16xf32>
    %391 = tpu.matmul %388, %390, %cst_223 {dimension_numbers = #tpu.dot_dimension_numbers<[2], [2], [1], [1], [0, 0, 0, 1, 1, 1], [0], [0]>} : vector<2x16x32xbf16>, vector<2x16x32xbf16>, vector<2x16x16xf32> -> vector<2x16x16xf32>
    "tpu.trace_stop"() : () -> ()
    %cst_224 = arith.constant dense<0xFF800000> : vector<2x16xf32>
    %392 = vector.multi_reduction <maximumf>, %391, %cst_224 [2] : vector<2x16x16xf32> to vector<2x16xf32>
    %393 = vector.shape_cast %392 : vector<2x16xf32> to vector<2x16x1xf32>
    %394 = vector.broadcast %393 : vector<2x16x1xf32> to vector<2x16x16xf32>
    %395 = arith.subf %391, %394 : vector<2x16x16xf32>
    %396 = math.exp %395 : vector<2x16x16xf32>
    %cst_225 = arith.constant dense<0.000000e+00> : vector<2x16xf32>
    %397 = vector.multi_reduction <add>, %396, %cst_225 [2] : vector<2x16x16xf32> to vector<2x16xf32>
    %398 = vector.shape_cast %397 : vector<2x16xf32> to vector<2x16x1xf32>
    %399 = tpu.reciprocal %398 {approx = true} : vector<2x16x1xf32> -> vector<2x16x1xf32>
    %400 = vector.broadcast %399 : vector<2x16x1xf32> to vector<2x16x16xf32>
    %401 = arith.mulf %396, %400 : vector<2x16x16xf32>
    %402 = arith.truncf %401 : vector<2x16x16xf32> to vector<2x16x16xbf16>
    %403 = vector.extract_strided_slice %346 {offsets = [0, 0, 64], sizes = [2, 16, 32], strides = [1, 1, 1]} : vector<2x16x256xf32> to vector<2x16x32xf32>
    %404 = arith.truncf %403 : vector<2x16x32xf32> to vector<2x16x32xbf16>
    "tpu.trace_start"() <{level = 10 : i32, message = "blm,bmd->bld"}> : () -> ()
    %cst_226 = arith.constant dense<0.000000e+00> : vector<2x16x32xf32>
    %405 = tpu.matmul %402, %404, %cst_226 {dimension_numbers = #tpu.dot_dimension_numbers<[2], [1], [1], [2], [0, 0, 0, 1, 1, 2], [0], [0]>} : vector<2x16x16xbf16>, vector<2x16x32xbf16>, vector<2x16x32xf32> -> vector<2x16x32xf32>
    "tpu.trace_stop"() : () -> ()
    %c0_227 = arith.constant 0 : index
    %c0_228 = arith.constant 0 : index
    %c64_229 = arith.constant 64 : index
    %406 = vector.load %arg42[%c0_227, %c0_228, %c64_229] : memref<2x16x256xf32, #tpu.memory_space<vmem>>, vector<2x16x32xf32>
    tpu.vector_store %arg42[%c0_227, %c0_228, %c64_229], %405 {strides = array<i32>} : memref<2x16x256xf32, #tpu.memory_space<vmem>>, vector<2x16x32xf32>,
    %407 = vector.extract_strided_slice %342 {offsets = [0, 0, 96], sizes = [2, 16, 32], strides = [1, 1, 1]} : vector<2x16x256xf32> to vector<2x16x32xf32>
    %408 = arith.truncf %407 : vector<2x16x32xf32> to vector<2x16x32xbf16>
    %409 = vector.extract_strided_slice %344 {offsets = [0, 0, 96], sizes = [2, 16, 32], strides = [1, 1, 1]} : vector<2x16x256xf32> to vector<2x16x32xf32>
    %410 = arith.truncf %409 : vector<2x16x32xf32> to vector<2x16x32xbf16>
    "tpu.trace_start"() <{level = 10 : i32, message = "bld,bmd->blm"}> : () -> ()
    %cst_230 = arith.constant dense<0.000000e+00> : vector<2x16x16xf32>
    %411 = tpu.matmul %408, %410, %cst_230 {dimension_numbers = #tpu.dot_dimension_numbers<[2], [2], [1], [1], [0, 0, 0, 1, 1, 1], [0], [0]>} : vector<2x16x32xbf16>, vector<2x16x32xbf16>, vector<2x16x16xf32> -> vector<2x16x16xf32>
    "tpu.trace_stop"() : () -> ()
    %cst_231 = arith.constant dense<0xFF800000> : vector<2x16xf32>
    %412 = vector.multi_reduction <maximumf>, %411, %cst_231 [2] : vector<2x16x16xf32> to vector<2x16xf32>
    %413 = vector.shape_cast %412 : vector<2x16xf32> to vector<2x16x1xf32>
    %414 = vector.broadcast %413 : vector<2x16x1xf32> to vector<2x16x16xf32>
    %415 = arith.subf %411, %414 : vector<2x16x16xf32>
    %416 = math.exp %415 : vector<2x16x16xf32>
    %cst_232 = arith.constant dense<0.000000e+00> : vector<2x16xf32>
    %417 = vector.multi_reduction <add>, %416, %cst_232 [2] : vector<2x16x16xf32> to vector<2x16xf32>
    %418 = vector.shape_cast %417 : vector<2x16xf32> to vector<2x16x1xf32>
    %419 = tpu.reciprocal %418 {approx = true} : vector<2x16x1xf32> -> vector<2x16x1xf32>
    %420 = vector.broadcast %419 : vector<2x16x1xf32> to vector<2x16x16xf32>
    %421 = arith.mulf %416, %420 : vector<2x16x16xf32>
    %422 = arith.truncf %421 : vector<2x16x16xf32> to vector<2x16x16xbf16>
    %423 = vector.extract_strided_slice %346 {offsets = [0, 0, 96], sizes = [2, 16, 32], strides = [1, 1, 1]} : vector<2x16x256xf32> to vector<2x16x32xf32>
    %424 = arith.truncf %423 : vector<2x16x32xf32> to vector<2x16x32xbf16>
    "tpu.trace_start"() <{level = 10 : i32, message = "blm,bmd->bld"}> : () -> ()
    %cst_233 = arith.constant dense<0.000000e+00> : vector<2x16x32xf32>
    %425 = tpu.matmul %422, %424, %cst_233 {dimension_numbers = #tpu.dot_dimension_numbers<[2], [1], [1], [2], [0, 0, 0, 1, 1, 2], [0], [0]>} : vector<2x16x16xbf16>, vector<2x16x32xbf16>, vector<2x16x32xf32> -> vector<2x16x32xf32>
    "tpu.trace_stop"() : () -> ()
    %c0_234 = arith.constant 0 : index
    %c0_235 = arith.constant 0 : index
    %c96_236 = arith.constant 96 : index
    %426 = vector.load %arg42[%c0_234, %c0_235, %c96_236] : memref<2x16x256xf32, #tpu.memory_space<vmem>>, vector<2x16x32xf32>
    tpu.vector_store %arg42[%c0_234, %c0_235, %c96_236], %425 {strides = array<i32>} : memref<2x16x256xf32, #tpu.memory_space<vmem>>, vector<2x16x32xf32>,
    %427 = vector.extract_strided_slice %342 {offsets = [0, 0, 128], sizes = [2, 16, 32], strides = [1, 1, 1]} : vector<2x16x256xf32> to vector<2x16x32xf32>
    %428 = arith.truncf %427 : vector<2x16x32xf32> to vector<2x16x32xbf16>
    %429 = vector.extract_strided_slice %344 {offsets = [0, 0, 128], sizes = [2, 16, 32], strides = [1, 1, 1]} : vector<2x16x256xf32> to vector<2x16x32xf32>
    %430 = arith.truncf %429 : vector<2x16x32xf32> to vector<2x16x32xbf16>
    "tpu.trace_start"() <{level = 10 : i32, message = "bld,bmd->blm"}> : () -> ()
    %cst_237 = arith.constant dense<0.000000e+00> : vector<2x16x16xf32>
    %431 = tpu.matmul %428, %430, %cst_237 {dimension_numbers = #tpu.dot_dimension_numbers<[2], [2], [1], [1], [0, 0, 0, 1, 1, 1], [0], [0]>} : vector<2x16x32xbf16>, vector<2x16x32xbf16>, vector<2x16x16xf32> -> vector<2x16x16xf32>
    "tpu.trace_stop"() : () -> ()
    %cst_238 = arith.constant dense<0xFF800000> : vector<2x16xf32>
    %432 = vector.multi_reduction <maximumf>, %431, %cst_238 [2] : vector<2x16x16xf32> to vector<2x16xf32>
    %433 = vector.shape_cast %432 : vector<2x16xf32> to vector<2x16x1xf32>
    %434 = vector.broadcast %433 : vector<2x16x1xf32> to vector<2x16x16xf32>
    %435 = arith.subf %431, %434 : vector<2x16x16xf32>
    %436 = math.exp %435 : vector<2x16x16xf32>
    %cst_239 = arith.constant dense<0.000000e+00> : vector<2x16xf32>
    %437 = vector.multi_reduction <add>, %436, %cst_239 [2] : vector<2x16x16xf32> to vector<2x16xf32>
    %438 = vector.shape_cast %437 : vector<2x16xf32> to vector<2x16x1xf32>
    %439 = tpu.reciprocal %438 {approx = true} : vector<2x16x1xf32> -> vector<2x16x1xf32>
    %440 = vector.broadcast %439 : vector<2x16x1xf32> to vector<2x16x16xf32>
    %441 = arith.mulf %436, %440 : vector<2x16x16xf32>
    %442 = arith.truncf %441 : vector<2x16x16xf32> to vector<2x16x16xbf16>
    %443 = vector.extract_strided_slice %346 {offsets = [0, 0, 128], sizes = [2, 16, 32], strides = [1, 1, 1]} : vector<2x16x256xf32> to vector<2x16x32xf32>
    %444 = arith.truncf %443 : vector<2x16x32xf32> to vector<2x16x32xbf16>
    "tpu.trace_start"() <{level = 10 : i32, message = "blm,bmd->bld"}> : () -> ()
    %cst_240 = arith.constant dense<0.000000e+00> : vector<2x16x32xf32>
    %445 = tpu.matmul %442, %444, %cst_240 {dimension_numbers = #tpu.dot_dimension_numbers<[2], [1], [1], [2], [0, 0, 0, 1, 1, 2], [0], [0]>} : vector<2x16x16xbf16>, vector<2x16x32xbf16>, vector<2x16x32xf32> -> vector<2x16x32xf32>
    "tpu.trace_stop"() : () -> ()
    %c0_241 = arith.constant 0 : index
    %c0_242 = arith.constant 0 : index
    %c128_243 = arith.constant 128 : index
    %446 = vector.load %arg42[%c0_241, %c0_242, %c128_243] : memref<2x16x256xf32, #tpu.memory_space<vmem>>, vector<2x16x32xf32>
    tpu.vector_store %arg42[%c0_241, %c0_242, %c128_243], %445 {strides = array<i32>} : memref<2x16x256xf32, #tpu.memory_space<vmem>>, vector<2x16x32xf32>,
    %447 = vector.extract_strided_slice %342 {offsets = [0, 0, 160], sizes = [2, 16, 32], strides = [1, 1, 1]} : vector<2x16x256xf32> to vector<2x16x32xf32>
    %448 = arith.truncf %447 : vector<2x16x32xf32> to vector<2x16x32xbf16>
    %449 = vector.extract_strided_slice %344 {offsets = [0, 0, 160], sizes = [2, 16, 32], strides = [1, 1, 1]} : vector<2x16x256xf32> to vector<2x16x32xf32>
    %450 = arith.truncf %449 : vector<2x16x32xf32> to vector<2x16x32xbf16>
    "tpu.trace_start"() <{level = 10 : i32, message = "bld,bmd->blm"}> : () -> ()
    %cst_244 = arith.constant dense<0.000000e+00> : vector<2x16x16xf32>
    %451 = tpu.matmul %448, %450, %cst_244 {dimension_numbers = #tpu.dot_dimension_numbers<[2], [2], [1], [1], [0, 0, 0, 1, 1, 1], [0], [0]>} : vector<2x16x32xbf16>, vector<2x16x32xbf16>, vector<2x16x16xf32> -> vector<2x16x16xf32>
    "tpu.trace_stop"() : () -> ()
    %cst_245 = arith.constant dense<0xFF800000> : vector<2x16xf32>
    %452 = vector.multi_reduction <maximumf>, %451, %cst_245 [2] : vector<2x16x16xf32> to vector<2x16xf32>
    %453 = vector.shape_cast %452 : vector<2x16xf32> to vector<2x16x1xf32>
    %454 = vector.broadcast %453 : vector<2x16x1xf32> to vector<2x16x16xf32>
    %455 = arith.subf %451, %454 : vector<2x16x16xf32>
    %456 = math.exp %455 : vector<2x16x16xf32>
    %cst_246 = arith.constant dense<0.000000e+00> : vector<2x16xf32>
    %457 = vector.multi_reduction <add>, %456, %cst_246 [2] : vector<2x16x16xf32> to vector<2x16xf32>
    %458 = vector.shape_cast %457 : vector<2x16xf32> to vector<2x16x1xf32>
    %459 = tpu.reciprocal %458 {approx = true} : vector<2x16x1xf32> -> vector<2x16x1xf32>
    %460 = vector.broadcast %459 : vector<2x16x1xf32> to vector<2x16x16xf32>
    %461 = arith.mulf %456, %460 : vector<2x16x16xf32>
    %462 = arith.truncf %461 : vector<2x16x16xf32> to vector<2x16x16xbf16>
    %463 = vector.extract_strided_slice %346 {offsets = [0, 0, 160], sizes = [2, 16, 32], strides = [1, 1, 1]} : vector<2x16x256xf32> to vector<2x16x32xf32>
    %464 = arith.truncf %463 : vector<2x16x32xf32> to vector<2x16x32xbf16>
    "tpu.trace_start"() <{level = 10 : i32, message = "blm,bmd->bld"}> : () -> ()
    %cst_247 = arith.constant dense<0.000000e+00> : vector<2x16x32xf32>
    %465 = tpu.matmul %462, %464, %cst_247 {dimension_numbers = #tpu.dot_dimension_numbers<[2], [1], [1], [2], [0, 0, 0, 1, 1, 2], [0], [0]>} : vector<2x16x16xbf16>, vector<2x16x32xbf16>, vector<2x16x32xf32> -> vector<2x16x32xf32>
    "tpu.trace_stop"() : () -> ()
    %c0_248 = arith.constant 0 : index
    %c0_249 = arith.constant 0 : index
    %c160_250 = arith.constant 160 : index
    %466 = vector.load %arg42[%c0_248, %c0_249, %c160_250] : memref<2x16x256xf32, #tpu.memory_space<vmem>>, vector<2x16x32xf32>
    tpu.vector_store %arg42[%c0_248, %c0_249, %c160_250], %465 {strides = array<i32>} : memref<2x16x256xf32, #tpu.memory_space<vmem>>, vector<2x16x32xf32>,
    %467 = vector.extract_strided_slice %342 {offsets = [0, 0, 192], sizes = [2, 16, 32], strides = [1, 1, 1]} : vector<2x16x256xf32> to vector<2x16x32xf32>
    %468 = arith.truncf %467 : vector<2x16x32xf32> to vector<2x16x32xbf16>
    %469 = vector.extract_strided_slice %344 {offsets = [0, 0, 192], sizes = [2, 16, 32], strides = [1, 1, 1]} : vector<2x16x256xf32> to vector<2x16x32xf32>
    %470 = arith.truncf %469 : vector<2x16x32xf32> to vector<2x16x32xbf16>
    "tpu.trace_start"() <{level = 10 : i32, message = "bld,bmd->blm"}> : () -> ()
    %cst_251 = arith.constant dense<0.000000e+00> : vector<2x16x16xf32>
    %471 = tpu.matmul %468, %470, %cst_251 {dimension_numbers = #tpu.dot_dimension_numbers<[2], [2], [1], [1], [0, 0, 0, 1, 1, 1], [0], [0]>} : vector<2x16x32xbf16>, vector<2x16x32xbf16>, vector<2x16x16xf32> -> vector<2x16x16xf32>
    "tpu.trace_stop"() : () -> ()
    %cst_252 = arith.constant dense<0xFF800000> : vector<2x16xf32>
    %472 = vector.multi_reduction <maximumf>, %471, %cst_252 [2] : vector<2x16x16xf32> to vector<2x16xf32>
    %473 = vector.shape_cast %472 : vector<2x16xf32> to vector<2x16x1xf32>
    %474 = vector.broadcast %473 : vector<2x16x1xf32> to vector<2x16x16xf32>
    %475 = arith.subf %471, %474 : vector<2x16x16xf32>
    %476 = math.exp %475 : vector<2x16x16xf32>
    %cst_253 = arith.constant dense<0.000000e+00> : vector<2x16xf32>
    %477 = vector.multi_reduction <add>, %476, %cst_253 [2] : vector<2x16x16xf32> to vector<2x16xf32>
    %478 = vector.shape_cast %477 : vector<2x16xf32> to vector<2x16x1xf32>
    %479 = tpu.reciprocal %478 {approx = true} : vector<2x16x1xf32> -> vector<2x16x1xf32>
    %480 = vector.broadcast %479 : vector<2x16x1xf32> to vector<2x16x16xf32>
    %481 = arith.mulf %476, %480 : vector<2x16x16xf32>
    %482 = arith.truncf %481 : vector<2x16x16xf32> to vector<2x16x16xbf16>
    %483 = vector.extract_strided_slice %346 {offsets = [0, 0, 192], sizes = [2, 16, 32], strides = [1, 1, 1]} : vector<2x16x256xf32> to vector<2x16x32xf32>
    %484 = arith.truncf %483 : vector<2x16x32xf32> to vector<2x16x32xbf16>
    "tpu.trace_start"() <{level = 10 : i32, message = "blm,bmd->bld"}> : () -> ()
    %cst_254 = arith.constant dense<0.000000e+00> : vector<2x16x32xf32>
    %485 = tpu.matmul %482, %484, %cst_254 {dimension_numbers = #tpu.dot_dimension_numbers<[2], [1], [1], [2], [0, 0, 0, 1, 1, 2], [0], [0]>} : vector<2x16x16xbf16>, vector<2x16x32xbf16>, vector<2x16x32xf32> -> vector<2x16x32xf32>
    "tpu.trace_stop"() : () -> ()
    %c0_255 = arith.constant 0 : index
    %c0_256 = arith.constant 0 : index
    %c192_257 = arith.constant 192 : index
    %486 = vector.load %arg42[%c0_255, %c0_256, %c192_257] : memref<2x16x256xf32, #tpu.memory_space<vmem>>, vector<2x16x32xf32>
    tpu.vector_store %arg42[%c0_255, %c0_256, %c192_257], %485 {strides = array<i32>} : memref<2x16x256xf32, #tpu.memory_space<vmem>>, vector<2x16x32xf32>,
    %487 = vector.extract_strided_slice %342 {offsets = [0, 0, 224], sizes = [2, 16, 32], strides = [1, 1, 1]} : vector<2x16x256xf32> to vector<2x16x32xf32>
    %488 = arith.truncf %487 : vector<2x16x32xf32> to vector<2x16x32xbf16>
    %489 = vector.extract_strided_slice %344 {offsets = [0, 0, 224], sizes = [2, 16, 32], strides = [1, 1, 1]} : vector<2x16x256xf32> to vector<2x16x32xf32>
    %490 = arith.truncf %489 : vector<2x16x32xf32> to vector<2x16x32xbf16>
    "tpu.trace_start"() <{level = 10 : i32, message = "bld,bmd->blm"}> : () -> ()
    %cst_258 = arith.constant dense<0.000000e+00> : vector<2x16x16xf32>
    %491 = tpu.matmul %488, %490, %cst_258 {dimension_numbers = #tpu.dot_dimension_numbers<[2], [2], [1], [1], [0, 0, 0, 1, 1, 1], [0], [0]>} : vector<2x16x32xbf16>, vector<2x16x32xbf16>, vector<2x16x16xf32> -> vector<2x16x16xf32>
    "tpu.trace_stop"() : () -> ()
    %cst_259 = arith.constant dense<0xFF800000> : vector<2x16xf32>
    %492 = vector.multi_reduction <maximumf>, %491, %cst_259 [2] : vector<2x16x16xf32> to vector<2x16xf32>
    %493 = vector.shape_cast %492 : vector<2x16xf32> to vector<2x16x1xf32>
    %494 = vector.broadcast %493 : vector<2x16x1xf32> to vector<2x16x16xf32>
    %495 = arith.subf %491, %494 : vector<2x16x16xf32>
    %496 = math.exp %495 : vector<2x16x16xf32>
    %cst_260 = arith.constant dense<0.000000e+00> : vector<2x16xf32>
    %497 = vector.multi_reduction <add>, %496, %cst_260 [2] : vector<2x16x16xf32> to vector<2x16xf32>
    %498 = vector.shape_cast %497 : vector<2x16xf32> to vector<2x16x1xf32>
    %499 = tpu.reciprocal %498 {approx = true} : vector<2x16x1xf32> -> vector<2x16x1xf32>
    %500 = vector.broadcast %499 : vector<2x16x1xf32> to vector<2x16x16xf32>
    %501 = arith.mulf %496, %500 : vector<2x16x16xf32>
    %502 = arith.truncf %501 : vector<2x16x16xf32> to vector<2x16x16xbf16>
    %503 = vector.extract_strided_slice %346 {offsets = [0, 0, 224], sizes = [2, 16, 32], strides = [1, 1, 1]} : vector<2x16x256xf32> to vector<2x16x32xf32>
    %504 = arith.truncf %503 : vector<2x16x32xf32> to vector<2x16x32xbf16>
    "tpu.trace_start"() <{level = 10 : i32, message = "blm,bmd->bld"}> : () -> ()
    %cst_261 = arith.constant dense<0.000000e+00> : vector<2x16x32xf32>
    %505 = tpu.matmul %502, %504, %cst_261 {dimension_numbers = #tpu.dot_dimension_numbers<[2], [1], [1], [2], [0, 0, 0, 1, 1, 2], [0], [0]>} : vector<2x16x16xbf16>, vector<2x16x32xbf16>, vector<2x16x32xf32> -> vector<2x16x32xf32>
    "tpu.trace_stop"() : () -> ()
    %c0_262 = arith.constant 0 : index
    %c0_263 = arith.constant 0 : index
    %c224_264 = arith.constant 224 : index
    %506 = vector.load %arg42[%c0_262, %c0_263, %c224_264] : memref<2x16x256xf32, #tpu.memory_space<vmem>>, vector<2x16x32xf32>
    tpu.vector_store %arg42[%c0_262, %c0_263, %c224_264], %505 {strides = array<i32>} : memref<2x16x256xf32, #tpu.memory_space<vmem>>, vector<2x16x32xf32>,
    %c0_265 = arith.constant 0 : index
    %c0_266 = arith.constant 0 : index
    %c0_267 = arith.constant 0 : index
    %507 = vector.load %arg42[%c0_265, %c0_266, %c0_267] : memref<2x16x256xf32, #tpu.memory_space<vmem>>, vector<2x16x256xf32>
    %508 = vector.shape_cast %507 : vector<2x16x256xf32> to vector<32x256xf32>
    %509 = arith.truncf %508 : vector<32x256xf32> to vector<32x256xbf16>
    %c0_268 = arith.constant 0 : index
    %c0_269 = arith.constant 0 : index
    %510 = vector.load %arg32[%c0_268, %c0_269] : memref<256x256xbf16, #tpu.memory_space<vmem>>, vector<256x256xbf16>
    %cst_270 = arith.constant dense<0.000000e+00> : vector<32x256xf32>
    %511 = tpu.matmul %509, %510, %cst_270 {dimension_numbers = #tpu.dot_dimension_numbers<[1], [0], [0], [1], [0, 0, 1, 1], [], []>} : vector<32x256xbf16>, vector<256x256xbf16>, vector<32x256xf32> -> vector<32x256xf32>
    %c0_271 = arith.constant 0 : index
    %c0_272 = arith.constant 0 : index
    %512 = vector.load %arg33[%c0_271, %c0_272] : memref<1x256xf32, #tpu.memory_space<vmem>>, vector<1x256xf32>
    %513 = vector.broadcast %512 : vector<1x256xf32> to vector<32x256xf32>
    %514 = arith.addf %511, %513 : vector<32x256xf32>
    %515 = arith.addf %514, %334 : vector<32x256xf32>
    %cst_273 = arith.constant 0.000000e+00 : f32
    %516 = vector.broadcast %cst_273 : f32 to vector<32x256xf32>
    %517 = arith.maximumf %515, %516 : vector<32x256xf32>
    %518 = vector.shape_cast %517 : vector<32x256xf32> to vector<2x16x256xf32>
    %cst_274 = arith.constant dense<0.000000e+00> : vector<2x256xf32>
    %519 = vector.multi_reduction <add>, %518, %cst_274 [1] : vector<2x16x256xf32> to vector<2x256xf32>
    %cst_275 = arith.constant 1.600000e+01 : f32
    %520 = vector.broadcast %cst_275 : f32 to vector<2x256xf32>
    %521 = arith.divf %519, %520 : vector<2x256xf32>
    %522 = arith.truncf %521 : vector<2x256xf32> to vector<2x256xbf16>
    %c0_276 = arith.constant 0 : index
    %c0_277 = arith.constant 0 : index
    %523 = vector.load %arg34[%c0_276, %c0_277] : memref<256x128xbf16, #tpu.memory_space<vmem>>, vector<256x128xbf16>
    %cst_278 = arith.constant dense<0.000000e+00> : vector<2x128xf32>
    %524 = tpu.matmul %522, %523, %cst_278 {dimension_numbers = #tpu.dot_dimension_numbers<[1], [0], [0], [1], [0, 0, 1, 1], [], []>} : vector<2x256xbf16>, vector<256x128xbf16>, vector<2x128xf32> -> vector<2x128xf32>
    %c0_279 = arith.constant 0 : index
    %c0_280 = arith.constant 0 : index
    %525 = vector.load %arg35[%c0_279, %c0_280] : memref<1x128xf32, #tpu.memory_space<vmem>>, vector<1x128xf32>
    %526 = vector.broadcast %525 : vector<1x128xf32> to vector<2x128xf32>
    %527 = arith.addf %524, %526 : vector<2x128xf32>
    %528 = arith.truncf %527 : vector<2x128xf32> to vector<2x128xbf16>
    %c0_281 = arith.constant 0 : index
    %c0_282 = arith.constant 0 : index
    %529 = vector.load %arg36[%c0_281, %c0_282] : memref<128x128xbf16, #tpu.memory_space<vmem>>, vector<128x128xbf16>
    %cst_283 = arith.constant dense<0.000000e+00> : vector<2x128xf32>
    %530 = tpu.matmul %528, %529, %cst_283 {dimension_numbers = #tpu.dot_dimension_numbers<[1], [0], [0], [1], [0, 0, 1, 1], [], []>} : vector<2x128xbf16>, vector<128x128xbf16>, vector<2x128xf32> -> vector<2x128xf32>
    %c0_284 = arith.constant 0 : index
    %c0_285 = arith.constant 0 : index
    %531 = vector.load %arg37[%c0_284, %c0_285] : memref<1x128xf32, #tpu.memory_space<vmem>>, vector<1x128xf32>
    %532 = vector.broadcast %531 : vector<1x128xf32> to vector<2x128xf32>
    %533 = arith.addf %530, %532 : vector<2x128xf32>
    %cst_286 = arith.constant 0.000000e+00 : f32
    %534 = vector.broadcast %cst_286 : f32 to vector<2x128xf32>
    %535 = arith.maximumf %533, %534 : vector<2x128xf32>
    %536 = arith.truncf %535 : vector<2x128xf32> to vector<2x128xbf16>
    %c0_287 = arith.constant 0 : index
    %c0_288 = arith.constant 0 : index
    %537 = vector.load %arg38[%c0_287, %c0_288] : memref<128x64xbf16, #tpu.memory_space<vmem>>, vector<128x64xbf16>
    %cst_289 = arith.constant dense<0.000000e+00> : vector<2x64xf32>
    %538 = tpu.matmul %536, %537, %cst_289 {dimension_numbers = #tpu.dot_dimension_numbers<[1], [0], [0], [1], [0, 0, 1, 1], [], []>} : vector<2x128xbf16>, vector<128x64xbf16>, vector<2x64xf32> -> vector<2x64xf32>
    %c0_290 = arith.constant 0 : index
    %c0_291 = arith.constant 0 : index
    %539 = vector.load %arg39[%c0_290, %c0_291] : memref<1x64xf32, #tpu.memory_space<vmem>>, vector<1x64xf32>
    %540 = vector.broadcast %539 : vector<1x64xf32> to vector<2x64xf32>
    %541 = arith.addf %538, %540 : vector<2x64xf32>
    %542 = arith.mulf %541, %541 : vector<2x64xf32>
    %cst_292 = arith.constant dense<0.000000e+00> : vector<2xf32>
    %543 = vector.multi_reduction <add>, %542, %cst_292 [1] : vector<2x64xf32> to vector<2xf32>
    %544 = vector.shape_cast %543 : vector<2xf32> to vector<2x1xf32>
    %545 = math.sqrt %544 : vector<2x1xf32>
    %cst_293 = arith.constant 9.99999996E-13 : f32
    %546 = vector.broadcast %cst_293 : f32 to vector<2x1xf32>
    %547 = arith.maximumf %545, %546 : vector<2x1xf32>
    %548 = vector.broadcast %547 : vector<2x1xf32> to vector<2x64xf32>
    %549 = arith.divf %541, %548 : vector<2x64xf32>
    %c0_294 = arith.constant 0 : index
    %c0_295 = arith.constant 0 : index
    %550 = vector.load %arg40[%c0_294, %c0_295] : memref<2x64xf32, #tpu.memory_space<vmem>>, vector<2x64xf32>
    tpu.vector_store %arg40[%c0_294, %c0_295], %549 {strides = array<i32>} : memref<2x64xf32, #tpu.memory_space<vmem>>, vector<2x64xf32>,
    return
  }
  func.func @transform_0(%arg0: i32) -> (i32, i32, i32) {
    %c0_i32 = arith.constant 0 : i32
    %c0_i32_0 = arith.constant 0 : i32
    %c0_i32_1 = arith.constant 0 : i32
    %c0_i32_2 = arith.constant 0 : i32
    return %c0_i32, %c0_i32_0, %c0_i32_1 : i32, i32, i32
  }
  func.func @transform_1(%arg0: i32) -> (i32, i32) {
    %c0_i32 = arith.constant 0 : i32
    %c0_i32_0 = arith.constant 0 : i32
    %c0_i32_1 = arith.constant 0 : i32
    return %c0_i32, %c0_i32_0 : i32, i32
  }
  func.func @transform_2(%arg0: i32) -> (i32, i32) {
    %c0_i32 = arith.constant 0 : i32
    %c0_i32_0 = arith.constant 0 : i32
    %c0_i32_1 = arith.constant 0 : i32
    return %c0_i32, %c0_i32_0 : i32, i32
  }
  func.func @transform_3(%arg0: i32) -> (i32, i32) {
    %c0_i32 = arith.constant 0 : i32
    %c0_i32_0 = arith.constant 0 : i32
    %c0_i32_1 = arith.constant 0 : i32
    return %c0_i32, %c0_i32_0 : i32, i32
  }
  func.func @transform_4(%arg0: i32) -> (i32, i32) {
    %c0_i32 = arith.constant 0 : i32
    %c0_i32_0 = arith.constant 0 : i32
    %c0_i32_1 = arith.constant 0 : i32
    return %c0_i32, %c0_i32_0 : i32, i32
  }
  func.func @transform_5(%arg0: i32) -> (i32, i32) {
    %c0_i32 = arith.constant 0 : i32
    %c0_i32_0 = arith.constant 0 : i32
    %c0_i32_1 = arith.constant 0 : i32
    return %c0_i32, %c0_i32_0 : i32, i32
  }
  func.func @transform_6(%arg0: i32) -> (i32, i32) {
    %c0_i32 = arith.constant 0 : i32
    %c0_i32_0 = arith.constant 0 : i32
    %c0_i32_1 = arith.constant 0 : i32
    return %c0_i32, %c0_i32_0 : i32, i32
  }
  func.func @transform_7(%arg0: i32) -> (i32, i32) {
    %c0_i32 = arith.constant 0 : i32
    %c0_i32_0 = arith.constant 0 : i32
    %c0_i32_1 = arith.constant 0 : i32
    return %c0_i32, %c0_i32_0 : i32, i32
  }
  func.func @transform_8(%arg0: i32) -> (i32, i32) {
    %c0_i32 = arith.constant 0 : i32
    %c0_i32_0 = arith.constant 0 : i32
    %c0_i32_1 = arith.constant 0 : i32
    return %c0_i32, %c0_i32_0 : i32, i32
  }
  func.func @transform_9(%arg0: i32) -> (i32, i32) {
    %c0_i32 = arith.constant 0 : i32
    %c0_i32_0 = arith.constant 0 : i32
    %c0_i32_1 = arith.constant 0 : i32
    return %c0_i32, %c0_i32_0 : i32, i32
  }
  func.func @transform_10(%arg0: i32) -> (i32, i32) {
    %c0_i32 = arith.constant 0 : i32
    %c0_i32_0 = arith.constant 0 : i32
    %c0_i32_1 = arith.constant 0 : i32
    return %c0_i32, %c0_i32_0 : i32, i32
  }
  func.func @transform_11(%arg0: i32) -> (i32, i32) {
    %c0_i32 = arith.constant 0 : i32
    %c0_i32_0 = arith.constant 0 : i32
    %c0_i32_1 = arith.constant 0 : i32
    return %c0_i32, %c0_i32_0 : i32, i32
  }
  func.func @transform_12(%arg0: i32) -> (i32, i32) {
    %c0_i32 = arith.constant 0 : i32
    %c0_i32_0 = arith.constant 0 : i32
    %c0_i32_1 = arith.constant 0 : i32
    return %c0_i32, %c0_i32_0 : i32, i32
  }
  func.func @transform_13(%arg0: i32) -> (i32, i32) {
    %c0_i32 = arith.constant 0 : i32
    %c0_i32_0 = arith.constant 0 : i32
    %c0_i32_1 = arith.constant 0 : i32
    return %c0_i32, %c0_i32_0 : i32, i32
  }
  func.func @transform_14(%arg0: i32) -> (i32, i32) {
    %c0_i32 = arith.constant 0 : i32
    %c0_i32_0 = arith.constant 0 : i32
    %c0_i32_1 = arith.constant 0 : i32
    return %c0_i32, %c0_i32_0 : i32, i32
  }
  func.func @transform_15(%arg0: i32) -> (i32, i32) {
    %c0_i32 = arith.constant 0 : i32
    %c0_i32_0 = arith.constant 0 : i32
    %c0_i32_1 = arith.constant 0 : i32
    return %c0_i32, %c0_i32_0 : i32, i32
  }
  func.func @transform_16(%arg0: i32) -> (i32, i32) {
    %c0_i32 = arith.constant 0 : i32
    %c0_i32_0 = arith.constant 0 : i32
    %c0_i32_1 = arith.constant 0 : i32
    return %c0_i32, %c0_i32_0 : i32, i32
  }
  func.func @transform_17(%arg0: i32) -> (i32, i32) {
    %c0_i32 = arith.constant 0 : i32
    %c0_i32_0 = arith.constant 0 : i32
    %c0_i32_1 = arith.constant 0 : i32
    return %c0_i32, %c0_i32_0 : i32, i32
  }
  func.func @transform_18(%arg0: i32) -> (i32, i32) {
    %c0_i32 = arith.constant 0 : i32
    %c0_i32_0 = arith.constant 0 : i32
    %c0_i32_1 = arith.constant 0 : i32
    return %c0_i32, %c0_i32_0 : i32, i32
  }
  func.func @transform_19(%arg0: i32) -> (i32, i32) {
    %c0_i32 = arith.constant 0 : i32
    %c0_i32_0 = arith.constant 0 : i32
    %c0_i32_1 = arith.constant 0 : i32
    return %c0_i32, %c0_i32_0 : i32, i32
  }
  func.func @transform_20(%arg0: i32) -> (i32, i32) {
    %c0_i32 = arith.constant 0 : i32
    %c0_i32_0 = arith.constant 0 : i32
    %c0_i32_1 = arith.constant 0 : i32
    return %c0_i32, %c0_i32_0 : i32, i32
  }
  func.func @transform_21(%arg0: i32) -> (i32, i32) {
    %c0_i32 = arith.constant 0 : i32
    %c0_i32_0 = arith.constant 0 : i32
    %c0_i32_1 = arith.constant 0 : i32
    return %c0_i32, %c0_i32_0 : i32, i32
  }
  func.func @transform_22(%arg0: i32) -> (i32, i32) {
    %c0_i32 = arith.constant 0 : i32
    %c0_i32_0 = arith.constant 0 : i32
    %c0_i32_1 = arith.constant 0 : i32
    return %c0_i32, %c0_i32_0 : i32, i32
  }
  func.func @transform_23(%arg0: i32) -> (i32, i32) {
    %c0_i32 = arith.constant 0 : i32
    %c0_i32_0 = arith.constant 0 : i32
    %c0_i32_1 = arith.constant 0 : i32
    return %c0_i32, %c0_i32_0 : i32, i32
  }
  func.func @transform_24(%arg0: i32) -> (i32, i32) {
    %c0_i32 = arith.constant 0 : i32
    %c0_i32_0 = arith.constant 0 : i32
    %c0_i32_1 = arith.constant 0 : i32
    return %c0_i32, %c0_i32_0 : i32, i32
  }
  func.func @transform_25(%arg0: i32) -> (i32, i32) {
    %c0_i32 = arith.constant 0 : i32
    %c0_i32_0 = arith.constant 0 : i32
    %c0_i32_1 = arith.constant 0 : i32
    return %c0_i32, %c0_i32_0 : i32, i32
  }
  func.func @transform_26(%arg0: i32) -> (i32, i32) {
    %c0_i32 = arith.constant 0 : i32
    %c0_i32_0 = arith.constant 0 : i32
    %c0_i32_1 = arith.constant 0 : i32
    return %c0_i32, %c0_i32_0 : i32, i32
  }
  func.func @transform_27(%arg0: i32) -> (i32, i32) {
    %c0_i32 = arith.constant 0 : i32
    %c0_i32_0 = arith.constant 0 : i32
    %c0_i32_1 = arith.constant 0 : i32
    return %c0_i32, %c0_i32_0 : i32, i32
  }
  func.func @transform_28(%arg0: i32) -> (i32, i32) {
    %c0_i32 = arith.constant 0 : i32
    %c0_i32_0 = arith.constant 0 : i32
    %c0_i32_1 = arith.constant 0 : i32
    return %c0_i32, %c0_i32_0 : i32, i32
  }
  func.func @transform_29(%arg0: i32) -> (i32, i32) {
    %c0_i32 = arith.constant 0 : i32
    %c0_i32_0 = arith.constant 0 : i32
    %c0_i32_1 = arith.constant 0 : i32
    return %c0_i32, %c0_i32_0 : i32, i32
  }
  func.func @transform_30(%arg0: i32) -> (i32, i32) {
    %c0_i32 = arith.constant 0 : i32
    %c0_i32_0 = arith.constant 0 : i32
    %c0_i32_1 = arith.constant 0 : i32
    return %c0_i32, %c0_i32_0 : i32, i32
  }
  func.func @transform_31(%arg0: i32) -> (i32, i32) {
    %c0_i32 = arith.constant 0 : i32
    %c0_i32_0 = arith.constant 0 : i32
    %c0_i32_1 = arith.constant 0 : i32
    return %c0_i32, %c0_i32_0 : i32, i32
  }
  func.func @transform_32(%arg0: i32) -> (i32, i32) {
    %c0_i32 = arith.constant 0 : i32
    %c0_i32_0 = arith.constant 0 : i32
    %c0_i32_1 = arith.constant 0 : i32
    return %c0_i32, %c0_i32_0 : i32, i32
  }
  func.func @transform_33(%arg0: i32) -> (i32, i32) {
    %c0_i32 = arith.constant 0 : i32
    %c0_i32_0 = arith.constant 0 : i32
    %c0_i32_1 = arith.constant 0 : i32
    return %c0_i32, %c0_i32_0 : i32, i32
  }
  func.func @transform_34(%arg0: i32) -> (i32, i32) {
    %c0_i32 = arith.constant 0 : i32
    %c0_i32_0 = arith.constant 0 : i32
    %c0_i32_1 = arith.constant 0 : i32
    return %c0_i32, %c0_i32_0 : i32, i32
  }
  func.func @transform_35(%arg0: i32) -> (i32, i32) {
    %c0_i32 = arith.constant 0 : i32
    %c0_i32_0 = arith.constant 0 : i32
    %c0_i32_1 = arith.constant 0 : i32
    return %c0_i32, %c0_i32_0 : i32, i32
  }
  func.func @transform_36(%arg0: i32) -> (i32, i32) {
    %c0_i32 = arith.constant 0 : i32
    %c0_i32_0 = arith.constant 0 : i32
    %c0_i32_1 = arith.constant 0 : i32
    return %c0_i32, %c0_i32_0 : i32, i32
  }
  func.func @transform_37(%arg0: i32) -> (i32, i32) {
    %c0_i32 = arith.constant 0 : i32
    %c0_i32_0 = arith.constant 0 : i32
    %c0_i32_1 = arith.constant 0 : i32
    return %c0_i32, %c0_i32_0 : i32, i32
  }
  func.func @transform_38(%arg0: i32) -> (i32, i32) {
    %c0_i32 = arith.constant 0 : i32
    %c0_i32_0 = arith.constant 0 : i32
    %c0_i32_1 = arith.constant 0 : i32
    return %c0_i32, %c0_i32_0 : i32, i32
  }
  func.func @transform_39(%arg0: i32) -> (i32, i32) {
    %c0_i32 = arith.constant 0 : i32
    %c0_i32_0 = arith.constant 0 : i32
    %c0_i32_1 = arith.constant 0 : i32
    return %c0_i32, %c0_i32_0 : i32, i32
  }
}

</mosaic_0001>

<llo_original>
// kernel: supcon_cnn_attention_forward.1
$region0: #{supcon_cnn_attention_forward.1}
  #allocation0 [shape = 'u32[]', space=smem, size = 0x4, offset = 0x4, fixed_abs, tag = 'smem constant byte address 0x4 - core index']
  #allocation1 [shape = 'u32[144,128]{1,0:T(1,128)}', space=vmem, size = 0x12000, scoped, tag = 'internal scratch']
  #allocation2 [shape = 'f32[2,18,256]{2,1,0:T(8,128)}', space=vmem, size = 0xc000, scoped, tag = 'scratch operand']
  #allocation3 [shape = 'f32[2,16,256]{2,1,0:T(8,128)}', space=vmem, size = 0x8000, scoped, tag = 'scratch operand']
  %s0 = inlined_call_operand.smem [shape: u32[40], index: -1, kind: input, shape index: {}]
  %s1 = sld [smem:[%s0]]
  %s2 = scalar_lea.smem %s0, 1
  %s3 = sld [smem:[%s2]]
  %s4 = scalar_lea.smem %s0, 2
  %s5 = sld [smem:[%s4]]
  %s6 = scalar_lea.smem %s0, 3
  %s7 = sld [smem:[%s6]]
  %s8 = scalar_lea.smem %s0, 4
  %s9 = sld [smem:[%s8]]
  %s10 = scalar_lea.smem %s0, 5
  %s11 = sld [smem:[%s10]]
  %s12 = scalar_lea.smem %s0, 6
  %s13 = sld [smem:[%s12]]
  %s14 = scalar_lea.smem %s0, 7
  %s15 = sld [smem:[%s14]]
  %s16 = scalar_lea.smem %s0, 8
  %s17 = sld [smem:[%s16]]
  %s18 = scalar_lea.smem %s0, 9
  %s19 = sld [smem:[%s18]]
  %s20 = scalar_lea.smem %s0, 10
  %s21 = sld [smem:[%s20]]
  %s22 = scalar_lea.smem %s0, 11
  %s23 = sld [smem:[%s22]]
  %s24 = scalar_lea.smem %s0, 12
  %s25 = sld [smem:[%s24]]
  %s26 = scalar_lea.smem %s0, 13
  %s27 = sld [smem:[%s26]]
  %s28 = scalar_lea.smem %s0, 14
  %s29 = sld [smem:[%s28]]
  %s30 = scalar_lea.smem %s0, 15
  %s31 = sld [smem:[%s30]]
  %s32 = scalar_lea.smem %s0, 16
  %s33 = sld [smem:[%s32]]
  %s34 = scalar_lea.smem %s0, 17
  %s35 = sld [smem:[%s34]]
  %s36 = scalar_lea.smem %s0, 18
  %s37 = sld [smem:[%s36]]
  %s38 = scalar_lea.smem %s0, 19
  %s39 = sld [smem:[%s38]]
  %s40 = scalar_lea.smem %s0, 20
  %s41 = sld [smem:[%s40]]
  %s42 = scalar_lea.smem %s0, 21
  %s43 = sld [smem:[%s42]]
  %s44 = scalar_lea.smem %s0, 22
  %s45 = sld [smem:[%s44]]
  %s46 = scalar_lea.smem %s0, 23
  %s47 = sld [smem:[%s46]]
  %s48 = scalar_lea.smem %s0, 24
  %s49 = sld [smem:[%s48]]
  %s50 = scalar_lea.smem %s0, 25
  %s51 = sld [smem:[%s50]]
  %s52 = scalar_lea.smem %s0, 26
  %s53 = sld [smem:[%s52]]
  %s54 = scalar_lea.smem %s0, 27
  %s55 = sld [smem:[%s54]]
  %s56 = scalar_lea.smem %s0, 28
  %s57 = sld [smem:[%s56]]
  %s58 = scalar_lea.smem %s0, 29
  %s59 = sld [smem:[%s58]]
  %s60 = scalar_lea.smem %s0, 30
  %s61 = sld [smem:[%s60]]
  %s62 = scalar_lea.smem %s0, 31
  %s63 = sld [smem:[%s62]]
  %s64 = scalar_lea.smem %s0, 32
  %s65 = sld [smem:[%s64]]
  %s66 = scalar_lea.smem %s0, 33
  %s67 = sld [smem:[%s66]]
  %s68 = scalar_lea.smem %s0, 34
  %s69 = sld [smem:[%s68]]
  %s70 = scalar_lea.smem %s0, 35
  %s71 = sld [smem:[%s70]]
  %s72 = scalar_lea.smem %s0, 36
  %s73 = sld [smem:[%s72]]
  %s74 = scalar_lea.smem %s0, 37
  %s75 = sld [smem:[%s74]]
  %s76 = scalar_lea.smem %s0, 38
  %s77 = sld [smem:[%s76]]
  %s78 = scalar_lea.smem %s0, 39
  %s79 = sld [smem:[%s78]]
  %s80 = sld [smem:[#allocation0]]
  $region290: #{supcon_cnn_attention_forward.1} parent=0
    _
  %s82 = ssub.s32 1, %s80
  %s83 = scalar_select 0, %s82, %s80
  $region1: #{supcon_cnn_attention_forward.1} parent=0
    #allocation4 [shape = 'u8[6144]{0}', space=vmem, size = 0x1800, scoped, tag = 'input window, operand 1, single buffered']
    #allocation5 [shape = 's32[1]{0}', space=sflag, size = 0x4, scoped, tag = 'scoped memory for supcon_cnn_attention_forward.1']
    #allocation6 [shape = 's32[1]{0}', space=sflag, size = 0x4, scoped, tag = 'scoped memory for supcon_cnn_attention_forward.1']
    #allocation7 [shape = 'u8[512]{0}', space=vmem, size = 0x400, scoped, tag = 'input window, operand 4, single buffered']
    #allocation8 [shape = 's32[1]{0}', space=sflag, size = 0x4, scoped, tag = 'scoped memory for supcon_cnn_attention_forward.1']
    #allocation9 [shape = 'u8[2048]{0}', space=vmem, size = 0x800, scoped, tag = 'input window, operand 5, single buffered']
    #allocation10 [shape = 'u8[512]{0}', space=vmem, size = 0x400, scoped, tag = 'input window, operand 6, single buffered']
    #allocation11 [shape = 's32[1]{0}', space=sflag, size = 0x4, scoped, tag = 'scoped memory for supcon_cnn_attention_forward.1']
    #allocation12 [shape = 'u8[512]{0}', space=vmem, size = 0x400, scoped, tag = 'input window, operand 7, single buffered']
    #allocation13 [shape = 'u8[512]{0}', space=vmem, size = 0x400, scoped, tag = 'input window, operand 8, single buffered']
    #allocation14 [shape = 's32[1]{0}', space=sflag, size = 0x4, scoped, tag = 'scoped memory for supcon_cnn_attention_forward.1']
    #allocation15 [shape = 'u8[49152]{0}', space=vmem, size = 0xc000, scoped, tag = 'input window, operand 9, single buffered']
    #allocation16 [shape = 'u8[512]{0}', space=vmem, size = 0x400, scoped, tag = 'input window, operand 10, single buffered']
    #allocation17 [shape = 's32[1]{0}', space=sflag, size = 0x4, scoped, tag = 'scoped memory for supcon_cnn_attention_forward.1']
    #allocation18 [shape = 'u8[98304]{0}', space=vmem, size = 0x18000, scoped, tag = 'input window, operand 11, single buffered']
    #allocation19 [shape = 'u8[512]{0}', space=vmem, size = 0x400, scoped, tag = 'input window, operand 12, single buffered']
    #allocation20 [shape = 's32[1]{0}', space=sflag, size = 0x4, scoped, tag = 'scoped memory for supcon_cnn_attention_forward.1']
    #allocation21 [shape = 'u8[16384]{0}', space=vmem, size = 0x4000, scoped, tag = 'input window, operand 13, single buffered']
    #allocation22 [shape = 'u8[512]{0}', space=vmem, size = 0x400, scoped, tag = 'input window, operand 14, single buffered']
    #allocation23 [shape = 's32[1]{0}', space=sflag, size = 0x4, scoped, tag = 'scoped memory for supcon_cnn_attention_forward.1']
    #allocation24 [shape = 'u8[512]{0}', space=vmem, size = 0x400, scoped, tag = 'input window, operand 15, single buffered']
    #allocation25 [shape = 'u8[512]{0}', space=vmem, size = 0x400, scoped, tag = 'input window, operand 16, single buffered']
    #allocation26 [shape = 's32[1]{0}', space=sflag, size = 0x4, scoped, tag = 'scoped memory for supcon_cnn_attention_forward.1']
    #allocation27 [shape = 'u8[393216]{0}', space=vmem, size = 0x60000, scoped, tag = 'input window, operand 19, single buffered']
    #allocation28 [shape = 'u8[1024]{0}', space=vmem, size = 0x400, scoped, tag = 'input window, operand 20, single buffered']
    #allocation29 [shape = 's32[1]{0}', space=sflag, size = 0x4, scoped, tag = 'scoped memory for supcon_cnn_attention_forward.1']
    #allocation30 [shape = 'u8[65536]{0}', space=vmem, size = 0x10000, scoped, tag = 'input window, operand 21, single buffered']
    #allocation31 [shape = 'u8[1024]{0}', space=vmem, size = 0x400, scoped, tag = 'input window, operand 22, single buffered']
    #allocation32 [shape = 's32[1]{0}', space=sflag, size = 0x4, scoped, tag = 'scoped memory for supcon_cnn_attention_forward.1']
    #allocation33 [shape = 'u8[1024]{0}', space=vmem, size = 0x400, scoped, tag = 'input window, operand 23, single buffered']
    #allocation34 [shape = 'u8[1024]{0}', space=vmem, size = 0x400, scoped, tag = 'input window, operand 24, single buffered']
    #allocation35 [shape = 's32[1]{0}', space=sflag, size = 0x4, scoped, tag = 'scoped memory for supcon_cnn_attention_forward.1']
    #allocation36 [shape = 'u8[393216]{0}', space=vmem, size = 0x60000, scoped, tag = 'input window, operand 25, single buffered']
    #allocation37 [shape = 'u8[3072]{0}', space=vmem, size = 0xc00, scoped, tag = 'input window, operand 26, single buffered']
    #allocation38 [shape = 's32[1]{0}', space=sflag, size = 0x4, scoped, tag = 'scoped memory for supcon_cnn_attention_forward.1']
    #allocation39 [shape = 'u8[131072]{0}', space=vmem, size = 0x20000, scoped, tag = 'input window, operand 27, single buffered']
    #allocation40 [shape = 'u8[1024]{0}', space=vmem, size = 0x400, scoped, tag = 'input window, operand 28, single buffered']
    #allocation41 [shape = 's32[1]{0}', space=sflag, size = 0x4, scoped, tag = 'scoped memory for supcon_cnn_attention_forward.1']
    #allocation42 [shape = 'u8[393216]{0}', space=vmem, size = 0x60000, scoped, tag = 'input window, operand 29, single buffered']
    #allocation43 [shape = 'u8[3072]{0}', space=vmem, size = 0xc00, scoped, tag = 'input window, operand 30, single buffered']
    #allocation44 [shape = 's32[1]{0}', space=sflag, size = 0x4, scoped, tag = 'scoped memory for supcon_cnn_attention_forward.1']
    #allocation45 [shape = 'u8[131072]{0}', space=vmem, size = 0x20000, scoped, tag = 'input window, operand 31, single buffered']
    #allocation46 [shape = 'u8[1024]{0}', space=vmem, size = 0x400, scoped, tag = 'input window, operand 32, single buffered']
    #allocation47 [shape = 's32[1]{0}', space=sflag, size = 0x4, scoped, tag = 'scoped memory for supcon_cnn_attention_forward.1']
    #allocation48 [shape = 'u8[65536]{0}', space=vmem, size = 0x10000, scoped, tag = 'input window, operand 33, single buffered']
    #allocation49 [shape = 'u8[512]{0}', space=vmem, size = 0x400, scoped, tag = 'input window, operand 36, single buffered']
    #allocation50 [shape = 's32[1]{0}', space=sflag, size = 0x4, scoped, tag = 'scoped memory for supcon_cnn_attention_forward.1']
    #allocation51 [shape = 'u8[512]{0}', space=vmem, size = 0x400, scoped, tag = 'input window, operand 38, single buffered']
    #allocation52 [shape = 'u8[1024]{0}', space=vmem, size = 0x400, scoped, tag = 'output window, operand 0, single buffered']
    %84 = vsyncpa [#allocation5], 0
    %85 = vsyncpa [#allocation8], 0
    %86 = vsyncpa [#allocation11], 0
    %87 = vsyncpa [#allocation14], 0
    %88 = vsyncpa [#allocation17], 0
    %89 = vsyncpa [#allocation20], 0
    %90 = vsyncpa [#allocation23], 0
    %91 = vsyncpa [#allocation26], 0
    %92 = vsyncpa [#allocation29], 0
    %93 = vsyncpa [#allocation32], 0
    %94 = vsyncpa [#allocation35], 0
    %95 = vsyncpa [#allocation38], 0
    %96 = vsyncpa [#allocation41], 0
    %97 = vsyncpa [#allocation44], 0
    %98 = vsyncpa [#allocation47], 0
    %99 = vsyncpa [#allocation50], 0
    %100 = vsyncpa [#allocation6], 0
    // Predicated region
    $region2: #{supcon_cnn_attention_forward.1} parent=1 // pred_check
      _
    $region3: #{supcon_cnn_attention_forward.1} parent=1 // pred_check_branch
      %102 = sbr.rel (0) target = $region5
    $region4: #{supcon_cnn_attention_forward.1} parent=1 // pred_region
      _
    $region5: #{supcon_cnn_attention_forward.1} parent=1 // pred_fallthru
      _
    // Predicated region
    $region6: #{supcon_cnn_attention_forward.1} parent=1 // pred_check
      _
    $region7: #{supcon_cnn_attention_forward.1} parent=1 // pred_check_branch
      %104 = sbr.rel (0) target = $region9
    $region8: #{supcon_cnn_attention_forward.1} parent=1 // pred_region
      %s106 = ssub.s32 192, 192
      %107 = vsyncadd [#allocation5], %s106
      %s108 = sshll.u32 [#allocation4], 4
      %s109 = int_to_ptr.vmem [resolvable:$true] %s108
      %114 = dma.hbm_to_vmem [thread:$0]  %s3, 192, %s109, [#allocation5], 64, 64, 4
    $region9: #{supcon_cnn_attention_forward.1} parent=1 // pred_fallthru
      _
    // Predicated region
    $region10: #{supcon_cnn_attention_forward.1} parent=1 // pred_check
      _
    $region11: #{supcon_cnn_attention_forward.1} parent=1 // pred_check_branch
      %116 = sbr.rel (0) target = $region13
    $region12: #{supcon_cnn_attention_forward.1} parent=1 // pred_region
      _
    $region13: #{supcon_cnn_attention_forward.1} parent=1 // pred_fallthru
      _
    // Predicated region
    $region14: #{supcon_cnn_attention_forward.1} parent=1 // pred_check
      _
    $region15: #{supcon_cnn_attention_forward.1} parent=1 // pred_check_branch
      %118 = sbr.rel (0) target = $region17
    $region16: #{supcon_cnn_attention_forward.1} parent=1 // pred_region
      _
    $region17: #{supcon_cnn_attention_forward.1} parent=1 // pred_fallthru
      _
    // Predicated region
    $region18: #{supcon_cnn_attention_forward.1} parent=1 // pred_check
      _
    $region19: #{supcon_cnn_attention_forward.1} parent=1 // pred_check_branch
      %120 = sbr.rel (0) target = $region21
    $region20: #{supcon_cnn_attention_forward.1} parent=1 // pred_region
      %s122 = ssub.s32 16, 16
      %123 = vsyncadd [#allocation8], %s122
      %s125 = sshll.u32 [#allocation7], 4
      %s126 = int_to_ptr.vmem [resolvable:$true] %s125
      %128 = dma.hbm_to_vmem [thread:$0]  %s9, 16, %s126, [#allocation8]
    $region21: #{supcon_cnn_attention_forward.1} parent=1 // pred_fallthru
      _
    // Predicated region
    $region22: #{supcon_cnn_attention_forward.1} parent=1 // pred_check
      _
    $region23: #{supcon_cnn_attention_forward.1} parent=1 // pred_check_branch
      %130 = sbr.rel (0) target = $region25
    $region24: #{supcon_cnn_attention_forward.1} parent=1 // pred_region
      %s132 = ssub.s32 64, 64
      %133 = vsyncadd [#allocation8], %s132
      %s135 = sshll.u32 [#allocation9], 4
      %s136 = int_to_ptr.vmem [resolvable:$true] %s135
      %138 = dma.hbm_to_vmem [thread:$0]  %s11, 64, %s136, [#allocation8]
    $region25: #{supcon_cnn_attention_forward.1} parent=1 // pred_fallthru
      _
    // Predicated region
    $region26: #{supcon_cnn_attention_forward.1} parent=1 // pred_check
      _
    $region27: #{supcon_cnn_attention_forward.1} parent=1 // pred_check_branch
      %140 = sbr.rel (0) target = $region29
    $region28: #{supcon_cnn_attention_forward.1} parent=1 // pred_region
      %s142 = ssub.s32 16, 16
      %143 = vsyncadd [#allocation11], %s142
      %s145 = sshll.u32 [#allocation10], 4
      %s146 = int_to_ptr.vmem [resolvable:$true] %s145
      %148 = dma.hbm_to_vmem [thread:$0]  %s13, 16, %s146, [#allocation11]
    $region29: #{supcon_cnn_attention_forward.1} parent=1 // pred_fallthru
      _
    // Predicated region
    $region30: #{supcon_cnn_attention_forward.1} parent=1 // pred_check
      _
    $region31: #{supcon_cnn_attention_forward.1} parent=1 // pred_check_branch
      %150 = sbr.rel (0) target = $region33
    $region32: #{supcon_cnn_attention_forward.1} parent=1 // pred_region
      %s152 = ssub.s32 16, 16
      %153 = vsyncadd [#allocation11], %s152
      %s155 = sshll.u32 [#allocation12], 4
      %s156 = int_to_ptr.vmem [resolvable:$true] %s155
      %158 = dma.hbm_to_vmem [thread:$0]  %s15, 16, %s156, [#allocation11]
    $region33: #{supcon_cnn_attention_forward.1} parent=1 // pred_fallthru
      _
    // Predicated region
    $region34: #{supcon_cnn_attention_forward.1} parent=1 // pred_check
      _
    $region35: #{supcon_cnn_attention_forward.1} parent=1 // pred_check_branch
      %160 = sbr.rel (0) target = $region37
    $region36: #{supcon_cnn_attention_forward.1} parent=1 // pred_region
      %s162 = ssub.s32 16, 16
      %163 = vsyncadd [#allocation14], %s162
      %s165 = sshll.u32 [#allocation13], 4
      %s166 = int_to_ptr.vmem [resolvable:$true] %s165
      %168 = dma.hbm_to_vmem [thread:$0]  %s17, 16, %s166, [#allocation14]
    $region37: #{supcon_cnn_attention_forward.1} parent=1 // pred_fallthru
      _
    // Predicated region
    $region38: #{supcon_cnn_attention_forward.1} parent=1 // pred_check
      _
    $region39: #{supcon_cnn_attention_forward.1} parent=1 // pred_check_branch
      %170 = sbr.rel (0) target = $region41
    $region40: #{supcon_cnn_attention_forward.1} parent=1 // pred_region
      %s172 = ssub.s32 1536, 1536
      %173 = vsyncadd [#allocation14], %s172
      %s174 = sshll.u32 [#allocation15], 4
      %s175 = int_to_ptr.vmem [resolvable:$true] %s174
      %180 = dma.hbm_to_vmem [thread:$0]  %s19, 1536, %s175, [#allocation14], 64, 64, 4
    $region41: #{supcon_cnn_attention_forward.1} parent=1 // pred_fallthru
      _
    // Predicated region
    $region42: #{supcon_cnn_attention_forward.1} parent=1 // pred_check
      _
    $region43: #{supcon_cnn_attention_forward.1} parent=1 // pred_check_branch
      %182 = sbr.rel (0) target = $region45
    $region44: #{supcon_cnn_attention_forward.1} parent=1 // pred_region
      %s184 = ssub.s32 16, 16
      %185 = vsyncadd [#allocation17], %s184
      %s187 = sshll.u32 [#allocation16], 4
      %s188 = int_to_ptr.vmem [resolvable:$true] %s187
      %190 = dma.hbm_to_vmem [thread:$0]  %s21, 16, %s188, [#allocation17]
    $region45: #{supcon_cnn_attention_forward.1} parent=1 // pred_fallthru
      _
    // Predicated region
    $region46: #{supcon_cnn_attention_forward.1} parent=1 // pred_check
      _
    $region47: #{supcon_cnn_attention_forward.1} parent=1 // pred_check_branch
      %192 = sbr.rel (0) target = $region49
    $region48: #{supcon_cnn_attention_forward.1} parent=1 // pred_region
      %s194 = ssub.s32 3072, 3072
      %195 = vsyncadd [#allocation17], %s194
      %s196 = sshll.u32 [#allocation18], 4
      %s197 = int_to_ptr.vmem [resolvable:$true] %s196
      %202 = dma.hbm_to_vmem [thread:$0]  %s23, 3072, %s197, [#allocation17], 64, 64, 4
    $region49: #{supcon_cnn_attention_forward.1} parent=1 // pred_fallthru
      _
    // Predicated region
    $region50: #{supcon_cnn_attention_forward.1} parent=1 // pred_check
      _
    $region51: #{supcon_cnn_attention_forward.1} parent=1 // pred_check_branch
      %204 = sbr.rel (0) target = $region53
    $region52: #{supcon_cnn_attention_forward.1} parent=1 // pred_region
      %s206 = ssub.s32 16, 16
      %207 = vsyncadd [#allocation20], %s206
      %s209 = sshll.u32 [#allocation19], 4
      %s210 = int_to_ptr.vmem [resolvable:$true] %s209
      %212 = dma.hbm_to_vmem [thread:$0]  %s25, 16, %s210, [#allocation20]
    $region53: #{supcon_cnn_attention_forward.1} parent=1 // pred_fallthru
      _
    // Predicated region
    $region54: #{supcon_cnn_attention_forward.1} parent=1 // pred_check
      _
    $region55: #{supcon_cnn_attention_forward.1} parent=1 // pred_check_branch
      %214 = sbr.rel (0) target = $region57
    $region56: #{supcon_cnn_attention_forward.1} parent=1 // pred_region
      %s216 = ssub.s32 512, 512
      %217 = vsyncadd [#allocation20], %s216
      %s218 = sshll.u32 [#allocation21], 4
      %s219 = int_to_ptr.vmem [resolvable:$true] %s218
      %224 = dma.hbm_to_vmem [thread:$0]  %s27, 512, %s219, [#allocation20], 64, 64, 4
    $region57: #{supcon_cnn_attention_forward.1} parent=1 // pred_fallthru
      _
    // Predicated region
    $region58: #{supcon_cnn_attention_forward.1} parent=1 // pred_check
      _
    $region59: #{supcon_cnn_attention_forward.1} parent=1 // pred_check_branch
      %226 = sbr.rel (0) target = $region61
    $region60: #{supcon_cnn_attention_forward.1} parent=1 // pred_region
      %s228 = ssub.s32 16, 16
      %229 = vsyncadd [#allocation23], %s228
      %s231 = sshll.u32 [#allocation22], 4
      %s232 = int_to_ptr.vmem [resolvable:$true] %s231
      %234 = dma.hbm_to_vmem [thread:$0]  %s29, 16, %s232, [#allocation23]
    $region61: #{supcon_cnn_attention_forward.1} parent=1 // pred_fallthru
      _
    // Predicated region
    $region62: #{supcon_cnn_attention_forward.1} parent=1 // pred_check
      _
    $region63: #{supcon_cnn_attention_forward.1} parent=1 // pred_check_branch
      %236 = sbr.rel (0) target = $region65
    $region64: #{supcon_cnn_attention_forward.1} parent=1 // pred_region
      %s238 = ssub.s32 16, 16
      %239 = vsyncadd [#allocation23], %s238
      %s241 = sshll.u32 [#allocation24], 4
      %s242 = int_to_ptr.vmem [resolvable:$true] %s241
      %244 = dma.hbm_to_vmem [thread:$0]  %s31, 16, %s242, [#allocation23]
    $region65: #{supcon_cnn_attention_forward.1} parent=1 // pred_fallthru
      _
    // Predicated region
    $region66: #{supcon_cnn_attention_forward.1} parent=1 // pred_check
      _
    $region67: #{supcon_cnn_attention_forward.1} parent=1 // pred_check_branch
      %246 = sbr.rel (0) target = $region69
    $region68: #{supcon_cnn_attention_forward.1} parent=1 // pred_region
      %s248 = ssub.s32 16, 16
      %249 = vsyncadd [#allocation26], %s248
      %s251 = sshll.u32 [#allocation25], 4
      %s252 = int_to_ptr.vmem [resolvable:$true] %s251
      %254 = dma.hbm_to_vmem [thread:$0]  %s33, 16, %s252, [#allocation26]
    $region69: #{supcon_cnn_attention_forward.1} parent=1 // pred_fallthru
      _
    // Predicated region
    $region70: #{supcon_cnn_attention_forward.1} parent=1 // pred_check
      _
    $region71: #{supcon_cnn_attention_forward.1} parent=1 // pred_check_branch
      %256 = sbr.rel (0) target = $region73
    $region72: #{supcon_cnn_attention_forward.1} parent=1 // pred_region
      _
    $region73: #{supcon_cnn_attention_forward.1} parent=1 // pred_fallthru
      _
    // Predicated region
    $region74: #{supcon_cnn_attention_forward.1} parent=1 // pred_check
      _
    $region75: #{supcon_cnn_attention_forward.1} parent=1 // pred_check_branch
      %258 = sbr.rel (0) target = $region77
    $region76: #{supcon_cnn_attention_forward.1} parent=1 // pred_region
      _
    $region77: #{supcon_cnn_attention_forward.1} parent=1 // pred_fallthru
      _
    // Predicated region
    $region78: #{supcon_cnn_attention_forward.1} parent=1 // pred_check
      _
    $region79: #{supcon_cnn_attention_forward.1} parent=1 // pred_check_branch
      %260 = sbr.rel (0) target = $region81
    $region80: #{supcon_cnn_attention_forward.1} parent=1 // pred_region
      %s262 = ssub.s32 12288, 12288
      %263 = vsyncadd [#allocation26], %s262
      %s264 = sshll.u32 [#allocation27], 4
      %s265 = int_to_ptr.vmem [resolvable:$true] %s264
      %270 = dma.hbm_to_vmem [thread:$0]  %s39, 12288, %s265, [#allocation26], 128, 128, 8
    $region81: #{supcon_cnn_attention_forward.1} parent=1 // pred_fallthru
      _
    // Predicated region
    $region82: #{supcon_cnn_attention_forward.1} parent=1 // pred_check
      _
    $region83: #{supcon_cnn_attention_forward.1} parent=1 // pred_check_branch
      %272 = sbr.rel (0) target = $region85
    $region84: #{supcon_cnn_attention_forward.1} parent=1 // pred_region
      %s274 = ssub.s32 32, 32
      %275 = vsyncadd [#allocation29], %s274
      %s277 = sshll.u32 [#allocation28], 4
      %s278 = int_to_ptr.vmem [resolvable:$true] %s277
      %280 = dma.hbm_to_vmem [thread:$0]  %s41, 32, %s278, [#allocation29]
    $region85: #{supcon_cnn_attention_forward.1} parent=1 // pred_fallthru
      _
    // Predicated region
    $region86: #{supcon_cnn_attention_forward.1} parent=1 // pred_check
      _
    $region87: #{supcon_cnn_attention_forward.1} parent=1 // pred_check_branch
      %282 = sbr.rel (0) target = $region89
    $region88: #{supcon_cnn_attention_forward.1} parent=1 // pred_region
      %s284 = ssub.s32 2048, 2048
      %285 = vsyncadd [#allocation29], %s284
      %s286 = sshll.u32 [#allocation30], 4
      %s287 = int_to_ptr.vmem [resolvable:$true] %s286
      %292 = dma.hbm_to_vmem [thread:$0]  %s43, 2048, %s287, [#allocation29], 128, 128, 8
    $region89: #{supcon_cnn_attention_forward.1} parent=1 // pred_fallthru
      _
    // Predicated region
    $region90: #{supcon_cnn_attention_forward.1} parent=1 // pred_check
      _
    $region91: #{supcon_cnn_attention_forward.1} parent=1 // pred_check_branch
      %294 = sbr.rel (0) target = $region93
    $region92: #{supcon_cnn_attention_forward.1} parent=1 // pred_region
      %s296 = ssub.s32 32, 32
      %297 = vsyncadd [#allocation32], %s296
      %s299 = sshll.u32 [#allocation31], 4
      %s300 = int_to_ptr.vmem [resolvable:$true] %s299
      %302 = dma.hbm_to_vmem [thread:$0]  %s45, 32, %s300, [#allocation32]
    $region93: #{supcon_cnn_attention_forward.1} parent=1 // pred_fallthru
      _
    // Predicated region
    $region94: #{supcon_cnn_attention_forward.1} parent=1 // pred_check
      _
    $region95: #{supcon_cnn_attention_forward.1} parent=1 // pred_check_branch
      %304 = sbr.rel (0) target = $region97
    $region96: #{supcon_cnn_attention_forward.1} parent=1 // pred_region
      %s306 = ssub.s32 32, 32
      %307 = vsyncadd [#allocation32], %s306
      %s309 = sshll.u32 [#allocation33], 4
      %s310 = int_to_ptr.vmem [resolvable:$true] %s309
      %312 = dma.hbm_to_vmem [thread:$0]  %s47, 32, %s310, [#allocation32]
    $region97: #{supcon_cnn_attention_forward.1} parent=1 // pred_fallthru
      _
    // Predicated region
    $region98: #{supcon_cnn_attention_forward.1} parent=1 // pred_check
      _
    $region99: #{supcon_cnn_attention_forward.1} parent=1 // pred_check_branch
      %314 = sbr.rel (0) target = $region101
    $region100: #{supcon_cnn_attention_forward.1} parent=1 // pred_region
      %s316 = ssub.s32 32, 32
      %317 = vsyncadd [#allocation35], %s316
      %s319 = sshll.u32 [#allocation34], 4
      %s320 = int_to_ptr.vmem [resolvable:$true] %s319
      %322 = dma.hbm_to_vmem [thread:$0]  %s49, 32, %s320, [#allocation35]
    $region101: #{supcon_cnn_attention_forward.1} parent=1 // pred_fallthru
      _
    // Predicated region
    $region102: #{supcon_cnn_attention_forward.1} parent=1 // pred_check
      _
    $region103: #{supcon_cnn_attention_forward.1} parent=1 // pred_check_branch
      %324 = sbr.rel (0) target = $region105
    $region104: #{supcon_cnn_attention_forward.1} parent=1 // pred_region
      %s326 = ssub.s32 12288, 12288
      %327 = vsyncadd [#allocation35], %s326
      %s328 = sshll.u32 [#allocation36], 4
      %s329 = int_to_ptr.vmem [resolvable:$true] %s328
      %334 = dma.hbm_to_vmem [thread:$0]  %s51, 12288, %s329, [#allocation35], 384, 384, 24
    $region105: #{supcon_cnn_attention_forward.1} parent=1 // pred_fallthru
      _
    // Predicated region
    $region106: #{supcon_cnn_attention_forward.1} parent=1 // pred_check
      _
    $region107: #{supcon_cnn_attention_forward.1} parent=1 // pred_check_branch
      %336 = sbr.rel (0) target = $region109
    $region108: #{supcon_cnn_attention_forward.1} parent=1 // pred_region
      %s338 = ssub.s32 96, 96
      %339 = vsyncadd [#allocation38], %s338
      %s341 = sshll.u32 [#allocation37], 4
      %s342 = int_to_ptr.vmem [resolvable:$true] %s341
      %344 = dma.hbm_to_vmem [thread:$0]  %s53, 96, %s342, [#allocation38]
    $region109: #{supcon_cnn_attention_forward.1} parent=1 // pred_fallthru
      _
    // Predicated region
    $region110: #{supcon_cnn_attention_forward.1} parent=1 // pred_check
      _
    $region111: #{supcon_cnn_attention_forward.1} parent=1 // pred_check_branch
      %346 = sbr.rel (0) target = $region113
    $region112: #{supcon_cnn_attention_forward.1} parent=1 // pred_region
      %s348 = ssub.s32 4096, 4096
      %349 = vsyncadd [#allocation38], %s348
      %s350 = sshll.u32 [#allocation39], 4
      %s351 = int_to_ptr.vmem [resolvable:$true] %s350
      %356 = dma.hbm_to_vmem [thread:$0]  %s55, 4096, %s351, [#allocation38], 128, 128, 8
    $region113: #{supcon_cnn_attention_forward.1} parent=1 // pred_fallthru
      _
    // Predicated region
    $region114: #{supcon_cnn_attention_forward.1} parent=1 // pred_check
      _
    $region115: #{supcon_cnn_attention_forward.1} parent=1 // pred_check_branch
      %358 = sbr.rel (0) target = $region117
    $region116: #{supcon_cnn_attention_forward.1} parent=1 // pred_region
      %s360 = ssub.s32 32, 32
      %361 = vsyncadd [#allocation41], %s360
      %s363 = sshll.u32 [#allocation40], 4
      %s364 = int_to_ptr.vmem [resolvable:$true] %s363
      %366 = dma.hbm_to_vmem [thread:$0]  %s57, 32, %s364, [#allocation41]
    $region117: #{supcon_cnn_attention_forward.1} parent=1 // pred_fallthru
      _
    // Predicated region
    $region118: #{supcon_cnn_attention_forward.1} parent=1 // pred_check
      _
    $region119: #{supcon_cnn_attention_forward.1} parent=1 // pred_check_branch
      %368 = sbr.rel (0) target = $region121
    $region120: #{supcon_cnn_attention_forward.1} parent=1 // pred_region
      %s370 = ssub.s32 12288, 12288
      %371 = vsyncadd [#allocation41], %s370
      %s372 = sshll.u32 [#allocation42], 4
      %s373 = int_to_ptr.vmem [resolvable:$true] %s372
      %378 = dma.hbm_to_vmem [thread:$0]  %s59, 12288, %s373, [#allocation41], 384, 384, 24
    $region121: #{supcon_cnn_attention_forward.1} parent=1 // pred_fallthru
      _
    // Predicated region
    $region122: #{supcon_cnn_attention_forward.1} parent=1 // pred_check
      _
    $region123: #{supcon_cnn_attention_forward.1} parent=1 // pred_check_branch
      %380 = sbr.rel (0) target = $region125
    $region124: #{supcon_cnn_attention_forward.1} parent=1 // pred_region
      %s382 = ssub.s32 96, 96
      %383 = vsyncadd [#allocation44], %s382
      %s385 = sshll.u32 [#allocation43], 4
      %s386 = int_to_ptr.vmem [resolvable:$true] %s385
      %388 = dma.hbm_to_vmem [thread:$0]  %s61, 96, %s386, [#allocation44]
    $region125: #{supcon_cnn_attention_forward.1} parent=1 // pred_fallthru
      _
    // Predicated region
    $region126: #{supcon_cnn_attention_forward.1} parent=1 // pred_check
      _
    $region127: #{supcon_cnn_attention_forward.1} parent=1 // pred_check_branch
      %390 = sbr.rel (0) target = $region129
    $region128: #{supcon_cnn_attention_forward.1} parent=1 // pred_region
      %s392 = ssub.s32 4096, 4096
      %393 = vsyncadd [#allocation44], %s392
      %s394 = sshll.u32 [#allocation45], 4
      %s395 = int_to_ptr.vmem [resolvable:$true] %s394
      %400 = dma.hbm_to_vmem [thread:$0]  %s63, 4096, %s395, [#allocation44], 128, 128, 8
    $region129: #{supcon_cnn_attention_forward.1} parent=1 // pred_fallthru
      _
    // Predicated region
    $region130: #{supcon_cnn_attention_forward.1} parent=1 // pred_check
      _
    $region131: #{supcon_cnn_attention_forward.1} parent=1 // pred_check_branch
      %402 = sbr.rel (0) target = $region133
    $region132: #{supcon_cnn_attention_forward.1} parent=1 // pred_region
      %s404 = ssub.s32 32, 32
      %405 = vsyncadd [#allocation47], %s404
      %s407 = sshll.u32 [#allocation46], 4
      %s408 = int_to_ptr.vmem [resolvable:$true] %s407
      %410 = dma.hbm_to_vmem [thread:$0]  %s65, 32, %s408, [#allocation47]
    $region133: #{supcon_cnn_attention_forward.1} parent=1 // pred_fallthru
      _
    // Predicated region
    $region134: #{supcon_cnn_attention_forward.1} parent=1 // pred_check
      _
    $region135: #{supcon_cnn_attention_forward.1} parent=1 // pred_check_branch
      %412 = sbr.rel (0) target = $region137
    $region136: #{supcon_cnn_attention_forward.1} parent=1 // pred_region
      %s414 = ssub.s32 2048, 2048
      %415 = vsyncadd [#allocation47], %s414
      %s416 = sshll.u32 [#allocation48], 4
      %s417 = int_to_ptr.vmem [resolvable:$true] %s416
      %422 = dma.hbm_to_vmem [thread:$0]  %s67, 2048, %s417, [#allocation47], 64, 64, 4
    $region137: #{supcon_cnn_attention_forward.1} parent=1 // pred_fallthru
      _
    // Predicated region
    $region138: #{supcon_cnn_attention_forward.1} parent=1 // pred_check
      _
    $region139: #{supcon_cnn_attention_forward.1} parent=1 // pred_check_branch
      %424 = sbr.rel (0) target = $region141
    $region140: #{supcon_cnn_attention_forward.1} parent=1 // pred_region
      _
    $region141: #{supcon_cnn_attention_forward.1} parent=1 // pred_fallthru
      _
    // Predicated region
    $region142: #{supcon_cnn_attention_forward.1} parent=1 // pred_check
      _
    $region143: #{supcon_cnn_attention_forward.1} parent=1 // pred_check_branch
      %426 = sbr.rel (0) target = $region145
    $region144: #{supcon_cnn_attention_forward.1} parent=1 // pred_region
      _
    $region145: #{supcon_cnn_attention_forward.1} parent=1 // pred_fallthru
      _
    // Predicated region
    $region146: #{supcon_cnn_attention_forward.1} parent=1 // pred_check
      _
    $region147: #{supcon_cnn_attention_forward.1} parent=1 // pred_check_branch
      %428 = sbr.rel (0) target = $region149
    $region148: #{supcon_cnn_attention_forward.1} parent=1 // pred_region
      %s430 = ssub.s32 16, 16
      %431 = vsyncadd [#allocation50], %s430
      %s433 = sshll.u32 [#allocation49], 4
      %s434 = int_to_ptr.vmem [resolvable:$true] %s433
      %436 = dma.hbm_to_vmem [thread:$0]  %s73, 16, %s434, [#allocation50]
    $region149: #{supcon_cnn_attention_forward.1} parent=1 // pred_fallthru
      _
    // Predicated region
    $region150: #{supcon_cnn_attention_forward.1} parent=1 // pred_check
      _
    $region151: #{supcon_cnn_attention_forward.1} parent=1 // pred_check_branch
      %438 = sbr.rel (0) target = $region153
    $region152: #{supcon_cnn_attention_forward.1} parent=1 // pred_region
      _
    $region153: #{supcon_cnn_attention_forward.1} parent=1 // pred_fallthru
      _
    // Predicated region
    $region154: #{supcon_cnn_attention_forward.1} parent=1 // pred_check
      _
    $region155: #{supcon_cnn_attention_forward.1} parent=1 // pred_check_branch
      %440 = sbr.rel (0) target = $region157
    $region156: #{supcon_cnn_attention_forward.1} parent=1 // pred_region
      %s442 = ssub.s32 16, 16
      %443 = vsyncadd [#allocation50], %s442
      %s445 = sshll.u32 [#allocation51], 4
      %s446 = int_to_ptr.vmem [resolvable:$true] %s445
      %448 = dma.hbm_to_vmem [thread:$0]  %s77, 16, %s446, [#allocation50]
    $region157: #{supcon_cnn_attention_forward.1} parent=1 // pred_fallthru
      _
    // Predicated region
    $region158: #{supcon_cnn_attention_forward.1} parent=1 // pred_check
      _
    $region159: #{supcon_cnn_attention_forward.1} parent=1 // pred_check_branch
      %450 = sbr.rel (0) target = $region161
    $region160: #{supcon_cnn_attention_forward.1} parent=1 // pred_region
      %451 = dma.done [#allocation5], 192
    $region161: #{supcon_cnn_attention_forward.1} parent=1 // pred_fallthru
      _
    // Predicated region
    $region162: #{supcon_cnn_attention_forward.1} parent=1 // pred_check
      _
    $region163: #{supcon_cnn_attention_forward.1} parent=1 // pred_check_branch
      %453 = sbr.rel (0) target = $region165
    $region164: #{supcon_cnn_attention_forward.1} parent=1 // pred_region
      %454 = dma.done [#allocation8], 16
    $region165: #{supcon_cnn_attention_forward.1} parent=1 // pred_fallthru
      _
    // Predicated region
    $region166: #{supcon_cnn_attention_forward.1} parent=1 // pred_check
      _
    $region167: #{supcon_cnn_attention_forward.1} parent=1 // pred_check_branch
      %456 = sbr.rel (0) target = $region169
    $region168: #{supcon_cnn_attention_forward.1} parent=1 // pred_region
      %457 = dma.done [#allocation8], 64
    $region169: #{supcon_cnn_attention_forward.1} parent=1 // pred_fallthru
      _
    // Predicated region
    $region170: #{supcon_cnn_attention_forward.1} parent=1 // pred_check
      _
    $region171: #{supcon_cnn_attention_forward.1} parent=1 // pred_check_branch
      %459 = sbr.rel (0) target = $region173
    $region172: #{supcon_cnn_attention_forward.1} parent=1 // pred_region
      %460 = dma.done [#allocation11], 16
    $region173: #{supcon_cnn_attention_forward.1} parent=1 // pred_fallthru
      _
    // Predicated region
    $region174: #{supcon_cnn_attention_forward.1} parent=1 // pred_check
      _
    $region175: #{supcon_cnn_attention_forward.1} parent=1 // pred_check_branch
      %462 = sbr.rel (0) target = $region177
    $region176: #{supcon_cnn_attention_forward.1} parent=1 // pred_region
      %463 = dma.done [#allocation11], 16
    $region177: #{supcon_cnn_attention_forward.1} parent=1 // pred_fallthru
      _
    // Predicated region
    $region178: #{supcon_cnn_attention_forward.1} parent=1 // pred_check
      _
    $region179: #{supcon_cnn_attention_forward.1} parent=1 // pred_check_branch
      %465 = sbr.rel (0) target = $region181
    $region180: #{supcon_cnn_attention_forward.1} parent=1 // pred_region
      %466 = dma.done [#allocation14], 16
    $region181: #{supcon_cnn_attention_forward.1} parent=1 // pred_fallthru
      _
    // Predicated region
    $region182: #{supcon_cnn_attention_forward.1} parent=1 // pred_check
      _
    $region183: #{supcon_cnn_attention_forward.1} parent=1 // pred_check_branch
      %468 = sbr.rel (0) target = $region185
    $region184: #{supcon_cnn_attention_forward.1} parent=1 // pred_region
      %469 = dma.done [#allocation14], 1536
    $region185: #{supcon_cnn_attention_forward.1} parent=1 // pred_fallthru
      _
    // Predicated region
    $region186: #{supcon_cnn_attention_forward.1} parent=1 // pred_check
      _
    $region187: #{supcon_cnn_attention_forward.1} parent=1 // pred_check_branch
      %471 = sbr.rel (0) target = $region189
    $region188: #{supcon_cnn_attention_forward.1} parent=1 // pred_region
      %472 = dma.done [#allocation17], 16
    $region189: #{supcon_cnn_attention_forward.1} parent=1 // pred_fallthru
      _
    // Predicated region
    $region190: #{supcon_cnn_attention_forward.1} parent=1 // pred_check
      _
    $region191: #{supcon_cnn_attention_forward.1} parent=1 // pred_check_branch
      %474 = sbr.rel (0) target = $region193
    $region192: #{supcon_cnn_attention_forward.1} parent=1 // pred_region
      %475 = dma.done [#allocation17], 3072
    $region193: #{supcon_cnn_attention_forward.1} parent=1 // pred_fallthru
      _
    // Predicated region
    $region194: #{supcon_cnn_attention_forward.1} parent=1 // pred_check
      _
    $region195: #{supcon_cnn_attention_forward.1} parent=1 // pred_check_branch
      %477 = sbr.rel (0) target = $region197
    $region196: #{supcon_cnn_attention_forward.1} parent=1 // pred_region
      %478 = dma.done [#allocation20], 16
    $region197: #{supcon_cnn_attention_forward.1} parent=1 // pred_fallthru
      _
    // Predicated region
    $region198: #{supcon_cnn_attention_forward.1} parent=1 // pred_check
      _
    $region199: #{supcon_cnn_attention_forward.1} parent=1 // pred_check_branch
      %480 = sbr.rel (0) target = $region201
    $region200: #{supcon_cnn_attention_forward.1} parent=1 // pred_region
      %481 = dma.done [#allocation20], 512
    $region201: #{supcon_cnn_attention_forward.1} parent=1 // pred_fallthru
      _
    // Predicated region
    $region202: #{supcon_cnn_attention_forward.1} parent=1 // pred_check
      _
    $region203: #{supcon_cnn_attention_forward.1} parent=1 // pred_check_branch
      %483 = sbr.rel (0) target = $region205
    $region204: #{supcon_cnn_attention_forward.1} parent=1 // pred_region
      %484 = dma.done [#allocation23], 16
    $region205: #{supcon_cnn_attention_forward.1} parent=1 // pred_fallthru
      _
    // Predicated region
    $region206: #{supcon_cnn_attention_forward.1} parent=1 // pred_check
      _
    $region207: #{supcon_cnn_attention_forward.1} parent=1 // pred_check_branch
      %486 = sbr.rel (0) target = $region209
    $region208: #{supcon_cnn_attention_forward.1} parent=1 // pred_region
      %487 = dma.done [#allocation23], 16
    $region209: #{supcon_cnn_attention_forward.1} parent=1 // pred_fallthru
      _
    // Predicated region
    $region210: #{supcon_cnn_attention_forward.1} parent=1 // pred_check
      _
    $region211: #{supcon_cnn_attention_forward.1} parent=1 // pred_check_branch
      %489 = sbr.rel (0) target = $region213
    $region212: #{supcon_cnn_attention_forward.1} parent=1 // pred_region
      %490 = dma.done [#allocation26], 16
    $region213: #{supcon_cnn_attention_forward.1} parent=1 // pred_fallthru
      _
    // Predicated region
    $region214: #{supcon_cnn_attention_forward.1} parent=1 // pred_check
      _
    $region215: #{supcon_cnn_attention_forward.1} parent=1 // pred_check_branch
      %492 = sbr.rel (0) target = $region217
    $region216: #{supcon_cnn_attention_forward.1} parent=1 // pred_region
      %493 = dma.done [#allocation26], 12288
    $region217: #{supcon_cnn_attention_forward.1} parent=1 // pred_fallthru
      _
    // Predicated region
    $region218: #{supcon_cnn_attention_forward.1} parent=1 // pred_check
      _
    $region219: #{supcon_cnn_attention_forward.1} parent=1 // pred_check_branch
      %495 = sbr.rel (0) target = $region221
    $region220: #{supcon_cnn_attention_forward.1} parent=1 // pred_region
      %496 = dma.done [#allocation29], 32
    $region221: #{supcon_cnn_attention_forward.1} parent=1 // pred_fallthru
      _
    // Predicated region
    $region222: #{supcon_cnn_attention_forward.1} parent=1 // pred_check
      _
    $region223: #{supcon_cnn_attention_forward.1} parent=1 // pred_check_branch
      %498 = sbr.rel (0) target = $region225
    $region224: #{supcon_cnn_attention_forward.1} parent=1 // pred_region
      %499 = dma.done [#allocation29], 2048
    $region225: #{supcon_cnn_attention_forward.1} parent=1 // pred_fallthru
      _
    // Predicated region
    $region226: #{supcon_cnn_attention_forward.1} parent=1 // pred_check
      _
    $region227: #{supcon_cnn_attention_forward.1} parent=1 // pred_check_branch
      %501 = sbr.rel (0) target = $region229
    $region228: #{supcon_cnn_attention_forward.1} parent=1 // pred_region
      %502 = dma.done [#allocation32], 32
    $region229: #{supcon_cnn_attention_forward.1} parent=1 // pred_fallthru
      _
    // Predicated region
    $region230: #{supcon_cnn_attention_forward.1} parent=1 // pred_check
      _
    $region231: #{supcon_cnn_attention_forward.1} parent=1 // pred_check_branch
      %504 = sbr.rel (0) target = $region233
    $region232: #{supcon_cnn_attention_forward.1} parent=1 // pred_region
      %505 = dma.done [#allocation32], 32
    $region233: #{supcon_cnn_attention_forward.1} parent=1 // pred_fallthru
      _
    // Predicated region
    $region234: #{supcon_cnn_attention_forward.1} parent=1 // pred_check
      _
    $region235: #{supcon_cnn_attention_forward.1} parent=1 // pred_check_branch
      %507 = sbr.rel (0) target = $region237
    $region236: #{supcon_cnn_attention_forward.1} parent=1 // pred_region
      %508 = dma.done [#allocation35], 32
    $region237: #{supcon_cnn_attention_forward.1} parent=1 // pred_fallthru
      _
    // Predicated region
    $region238: #{supcon_cnn_attention_forward.1} parent=1 // pred_check
      _
    $region239: #{supcon_cnn_attention_forward.1} parent=1 // pred_check_branch
      %510 = sbr.rel (0) target = $region241
    $region240: #{supcon_cnn_attention_forward.1} parent=1 // pred_region
      %511 = dma.done [#allocation35], 12288
    $region241: #{supcon_cnn_attention_forward.1} parent=1 // pred_fallthru
      _
    // Predicated region
    $region242: #{supcon_cnn_attention_forward.1} parent=1 // pred_check
      _
    $region243: #{supcon_cnn_attention_forward.1} parent=1 // pred_check_branch
      %513 = sbr.rel (0) target = $region245
    $region244: #{supcon_cnn_attention_forward.1} parent=1 // pred_region
      %514 = dma.done [#allocation38], 96
    $region245: #{supcon_cnn_attention_forward.1} parent=1 // pred_fallthru
      _
    // Predicated region
    $region246: #{supcon_cnn_attention_forward.1} parent=1 // pred_check
      _
    $region247: #{supcon_cnn_attention_forward.1} parent=1 // pred_check_branch
      %516 = sbr.rel (0) target = $region249
    $region248: #{supcon_cnn_attention_forward.1} parent=1 // pred_region
      %517 = dma.done [#allocation38], 4096
    $region249: #{supcon_cnn_attention_forward.1} parent=1 // pred_fallthru
      _
    // Predicated region
    $region250: #{supcon_cnn_attention_forward.1} parent=1 // pred_check
      _
    $region251: #{supcon_cnn_attention_forward.1} parent=1 // pred_check_branch
      %519 = sbr.rel (0) target = $region253
    $region252: #{supcon_cnn_attention_forward.1} parent=1 // pred_region
      %520 = dma.done [#allocation41], 32
    $region253: #{supcon_cnn_attention_forward.1} parent=1 // pred_fallthru
      _
    // Predicated region
    $region254: #{supcon_cnn_attention_forward.1} parent=1 // pred_check
      _
    $region255: #{supcon_cnn_attention_forward.1} parent=1 // pred_check_branch
      %522 = sbr.rel (0) target = $region257
    $region256: #{supcon_cnn_attention_forward.1} parent=1 // pred_region
      %523 = dma.done [#allocation41], 12288
    $region257: #{supcon_cnn_attention_forward.1} parent=1 // pred_fallthru
      _
    // Predicated region
    $region258: #{supcon_cnn_attention_forward.1} parent=1 // pred_check
      _
    $region259: #{supcon_cnn_attention_forward.1} parent=1 // pred_check_branch
      %525 = sbr.rel (0) target = $region261
    $region260: #{supcon_cnn_attention_forward.1} parent=1 // pred_region
      %526 = dma.done [#allocation44], 96
    $region261: #{supcon_cnn_attention_forward.1} parent=1 // pred_fallthru
      _
    // Predicated region
    $region262: #{supcon_cnn_attention_forward.1} parent=1 // pred_check
      _
    $region263: #{supcon_cnn_attention_forward.1} parent=1 // pred_check_branch
      %528 = sbr.rel (0) target = $region265
    $region264: #{supcon_cnn_attention_forward.1} parent=1 // pred_region
      %529 = dma.done [#allocation44], 4096
    $region265: #{supcon_cnn_attention_forward.1} parent=1 // pred_fallthru
      _
    // Predicated region
    $region266: #{supcon_cnn_attention_forward.1} parent=1 // pred_check
      _
    $region267: #{supcon_cnn_attention_forward.1} parent=1 // pred_check_branch
      %531 = sbr.rel (0) target = $region269
    $region268: #{supcon_cnn_attention_forward.1} parent=1 // pred_region
      %532 = dma.done [#allocation47], 32
    $region269: #{supcon_cnn_attention_forward.1} parent=1 // pred_fallthru
      _
    // Predicated region
    $region270: #{supcon_cnn_attention_forward.1} parent=1 // pred_check
      _
    $region271: #{supcon_cnn_attention_forward.1} parent=1 // pred_check_branch
      %534 = sbr.rel (0) target = $region273
    $region272: #{supcon_cnn_attention_forward.1} parent=1 // pred_region
      %535 = dma.done [#allocation47], 2048
    $region273: #{supcon_cnn_attention_forward.1} parent=1 // pred_fallthru
      _
    // Predicated region
    $region274: #{supcon_cnn_attention_forward.1} parent=1 // pred_check
      _
    $region275: #{supcon_cnn_attention_forward.1} parent=1 // pred_check_branch
      %537 = sbr.rel (0) target = $region277
    $region276: #{supcon_cnn_attention_forward.1} parent=1 // pred_region
      %538 = dma.done [#allocation50], 16
    $region277: #{supcon_cnn_attention_forward.1} parent=1 // pred_fallthru
      _
    // Predicated region
    $region278: #{supcon_cnn_attention_forward.1} parent=1 // pred_check
      _
    $region279: #{supcon_cnn_attention_forward.1} parent=1 // pred_check_branch
      %540 = sbr.rel (0) target = $region281
    $region280: #{supcon_cnn_attention_forward.1} parent=1 // pred_region
      %541 = dma.done [#allocation50], 16
    $region281: #{supcon_cnn_attention_forward.1} parent=1 // pred_fallthru
      _
    %v543 = vlaneseq
    %vm544 = vcmp.ge.s32.totalorder %v543, 0
    %vm545 = vcmp.lt.s32.totalorder %v543, 256
    %vm546 = vmand %vm544, %vm545
    %547 = vst.msk [vmem:[#allocation2] ss:$8 sm:$0x3] %vm546, 0.0
    %548 = vst.msk [vmem:[#allocation2] ss:$8 sm:$0x0] %vm546, 0.0
    %s549 = scalar_lea.vmem [#allocation2], 48
    %550 = vst.msk [vmem:[%s549] ss:$8 sm:$0x3] %vm546, 0.0
    %551 = vst.msk [vmem:[%s549] ss:$8 sm:$0x0] %vm546, 0.0
    %s552 = scalar_lea.vmem [#allocation2], 33
    %553 = vst.msk [vmem:[%s552] ss:$8 sm:$0x3] %vm546, 0.0
    %554 = vst.msk [vmem:[%s552] ss:$8 sm:$0x0] %vm546, 0.0
    %s555 = scalar_lea.vmem [#allocation2], 81
    %556 = vst.msk [vmem:[%s555] ss:$8 sm:$0x3] %vm546, 0.0
    %557 = vst.msk [vmem:[%s555] ss:$8 sm:$0x0] %vm546, 0.0
    %v558 = vld [vmem:[%s1] sm:$0xff]
    %v559 = vld [vmem:[%s1 + $0x8] sm:$0xff]
    %v560 = vld [vmem:[%s1 + $0x10] sm:$0xff]
    %v561 = vld [vmem:[%s1 + $0x18] sm:$0xff]
    %vm566 = vcmask 1040384
    %v567 = vrot.slane %v558, 7
    %v568 = vrot.slane %v559, 7
    %v569 = vsel %vm566, %v567, %v568
    %v570 = vrot.slane %v560, 7
    %v571 = vrot.slane %v561, 7
    %v572 = vsel %vm566, %v570, %v571
    %vm579 = vcmask 64513
    %580 = vst.msk [vmem:[#allocation2] sm:$0xfe] %vm579, %v567
    %vm581 = vcmask 64512
    %582 = vst.msk [vmem:[#allocation2 + $0x10] sm:$0xff] %vm581, %v569
    %vm583 = vcmask 57344
    %584 = vst.msk [vmem:[#allocation2 + $0x20] sm:$0x1] %vm583, %v568
    %585 = vst.msk [vmem:[#allocation2 + $0x30] sm:$0xfe] %vm579, %v570
    %586 = vst.msk [vmem:[#allocation2 + $0x40] sm:$0xff] %vm581, %v572
    %587 = vst.msk [vmem:[#allocation2 + $0x50] sm:$0x1] %vm583, %v571
    %v588 = vld [vmem:[#allocation2] sm:$0xff]
    %v589 = vld [vmem:[#allocation2 + $0x10] sm:$0xff]
    %v590 = vld [vmem:[#allocation2 + $0x30] sm:$0xff]
    %v591 = vld [vmem:[#allocation2 + $0x40] sm:$0xff]
    %v592 = vld [vmem:[#allocation2] sm:$0xfe]
    %v593 = vld [vmem:[#allocation2 + $0x20] sm:$0x1]
    %v594 = vld [vmem:[#allocation2 + $0x30] sm:$0xfe]
    %v595 = vld [vmem:[#allocation2 + $0x50] sm:$0x1]
    %vm602 = vcmask 1046528
    %v603 = vrot.slane %v592, 1
    %v604 = vrot.slane %v589, 1
    %v605 = vsel %vm602, %v603, %v604
    %v606 = vrot.slane %v593, 1
    %v607 = vsel %vm602, %v604, %v606
    %v608 = vrot.slane %v594, 1
    %v609 = vrot.slane %v591, 1
    %v610 = vsel %vm602, %v608, %v609
    %v611 = vrot.slane %v595, 1
    %v612 = vsel %vm602, %v609, %v611
    %v613 = vld [vmem:[#allocation2] sm:$0xfc]
    %v614 = vld [vmem:[#allocation2 + $0x20] sm:$0x3]
    %v615 = vld [vmem:[#allocation2 + $0x30] sm:$0xfc]
    %v616 = vld [vmem:[#allocation2 + $0x50] sm:$0x3]
    %vm621 = vcmask 1045504
    %v622 = vrot.slane %v613, 2
    %v623 = vrot.slane %v589, 2
    %v624 = vsel %vm621, %v622, %v623
    %v625 = vrot.slane %v614, 2
    %v626 = vsel %vm621, %v623, %v625
    %v627 = vrot.slane %v615, 2
    %v628 = vrot.slane %v591, 2
    %v629 = vsel %vm621, %v627, %v628
    %v630 = vrot.slane %v616, 2
    %v631 = vsel %vm621, %v628, %v630
    %632 = vrot.lane.b32.xlu0 %v605, 8
    %v633 = vpop.permute.xlu0 %632
    %634 = vrot.lane.b32.xlu0 %v607, 8
    %v635 = vpop.permute.xlu0 %634
    %636 = vrot.lane.b32.xlu0 %v610, 8
    %v637 = vpop.permute.xlu0 %636
    %638 = vrot.lane.b32.xlu0 %v612, 8
    %v639 = vpop.permute.xlu0 %638
    %644 = vrot.lane.b32.xlu0 %v624, 16
    %v645 = vpop.permute.xlu0 %644
    %646 = vrot.lane.b32.xlu0 %v626, 16
    %v647 = vpop.permute.xlu0 %646
    %648 = vrot.lane.b32.xlu0 %v629, 16
    %v649 = vpop.permute.xlu0 %648
    %650 = vrot.lane.b32.xlu0 %v631, 16
    %v651 = vpop.permute.xlu0 %650
    %v656 = vsel %vm581, %v588, %v633
    %v657 = vsel %vm581, %v589, %v635
    %v658 = vsel %vm581, %v590, %v637
    %v659 = vsel %vm581, %v591, %v639
    %vm660 = vcmask 130048
    %v661 = vsel %vm660, %v656, %v645
    %v662 = vsel %vm660, %v657, %v647
    %v663 = vsel %vm660, %v658, %v649
    %v664 = vsel %vm660, %v659, %v651
    %v665 = vpack.c.bf16 %v662, %v661
    %v666 = vpack.c.bf16 %v664, %v663
    %v667 = vld [vmem:[#allocation4] sm:$0xf]
    %v668 = vld [vmem:[#allocation4 + $0x4] sm:$0xf]
    %v669 = vld [vmem:[#allocation4 + $0x8] sm:$0xf]
    %v670 = vld [vmem:[%s5] sm:$0x1]
    %v672 = vlaneseq
    %v673 = vshrl.u32 %v672, 7
    %v674 = vsub.s32 0, %v673
    %v675 = vrot.slane %v670, %v674
    %v680 = vunpack.c.l.b16 %v667
    %v681 = vunpack.c.l.b16 %v668
    %v682 = vunpack.c.l.b16 %v669
    %v683 = vpack.c.b16 %v681, %v680
    %v684 = vpack.c.b16 %v682, %v682
    %vm686 = vcmask 195584
    %v688 = vsel %vm686, %v665, 0
    %v691 = vsel %vm686, %v666, 0
    %vm693 = vcmask 1043456
    %v695 = vsel %vm693, %v684, 0
    %697 = vmatprep.subr.bf16.mxu0 0
    %698 = vmatpush1.bf16.msra.mxu0 %v683
    %699 = vmatprep.subr.bf16.mxu0 0
    %700 = vmatpush1.bf16.msra.mxu0 %v695
    %701 = vmatprep.subr.bf16.mxu0 0
    %702 = vmatpush1.bf16.msra.mxu0 0
    %703 = vmatprep.subr.bf16.mxu0 0
    %704 = vmatpush1.bf16.msra.mxu0 0
    %705 = vmatprep.subr.bf16.mxu0 0
    %706 = vmatpush1.bf16.msra.mxu0 0
    %707 = vmatprep.subr.bf16.mxu0 0
    %708 = vmatpush1.bf16.msra.mxu0 0
    %709 = vmatprep.subr.bf16.mxu0 0
    %710 = vmatpush1.bf16.msra.mxu0 0
    %711 = vmatprep.subr.bf16.mxu0 0
    %712 = vmatpush1.bf16.msra.mxu0 0
    %713 = vmatprep.subr.bf16.mxu0 0
    %714 = vmatpush1.bf16.msra.mxu0 0
    %715 = vmatprep.subr.bf16.mxu0 0
    %716 = vmatpush1.bf16.msra.mxu0 0
    %717 = vmatprep.subr.bf16.mxu0 0
    %718 = vmatpush1.bf16.msra.mxu0 0
    %719 = vmatprep.subr.bf16.mxu0 0
    %720 = vmatpush1.bf16.msra.mxu0 0
    %721 = vmatprep.subr.bf16.mxu0 0
    %722 = vmatpush1.bf16.msra.mxu0 0
    %723 = vmatprep.subr.bf16.mxu0 0
    %724 = vmatpush1.bf16.msra.mxu0 0
    %725 = vmatprep.subr.bf16.mxu0 0
    %726 = vmatpush1.bf16.msra.mxu0 0
    %727 = vmatprep.subr.bf16.mxu0 0
    %728 = vmatpush1.bf16.msra.mxu0 0
    %729 = vmatprep.mubr.bf16.mxu0 0
    %730 = vmatmul.mubr.bf16.gmra.mrb[0].mxu0 %v688
    %v731 = vpop.f32.mrb[0].mxu0
    %v732 = vadd.f32 %v675, %v731
    %v733 = vpop.f32.mrb[0].mxu0
    %v734 = vpop.f32.mrb[0].mxu0
    %v735 = vadd.f32 %v675, %v734
    %v736 = vpop.f32.mrb[0].mxu0
    %737 = vmatprep.mubr.bf16.mxu0 0
    %738 = vmatmul.mubr.bf16.gmra.mrb[0].mxu0 %v691
    %v739 = vpop.f32.mrb[0].mxu0
    %v740 = vadd.f32 %v675, %v739
    %v741 = vpop.f32.mrb[0].mxu0
    %v742 = vpop.f32.mrb[0].mxu0
    %v743 = vadd.f32 %v675, %v742
    %v744 = vpop.f32.mrb[0].mxu0
    %745 = vdwg.mxu0
    %v746 = vmax.f32 %v732, 0.0
    %v747 = vmax.f32 %v735, 0.0
    %v748 = vmax.f32 %v740, 0.0
    %v749 = vmax.f32 %v743, 0.0
    %v754 = vrot.slane %v746, 7
    %v755 = vrot.slane %v747, 7
    %v756 = vsel %vm566, %v754, %v755
    %v757 = vrot.slane %v748, 7
    %v758 = vrot.slane %v749, 7
    %v759 = vsel %vm566, %v757, %v758
    %vm766 = vcmask 523265
    %767 = vst.msk [vmem:[#allocation2] sm:$0xfe] %vm766, %v754
    %vm768 = vcmask 523264
    %769 = vst.msk [vmem:[#allocation2 + $0x10] sm:$0xff] %vm768, %v756
    %vm770 = vcmask 516096
    %771 = vst.msk [vmem:[#allocation2 + $0x20] sm:$0x1] %vm770, %v755
    %772 = vst.msk [vmem:[#allocation2 + $0x30] sm:$0xfe] %vm766, %v757
    %773 = vst.msk [vmem:[#allocation2 + $0x40] sm:$0xff] %vm768, %v759
    %774 = vst.msk [vmem:[#allocation2 + $0x50] sm:$0x1] %vm770, %v758
    %v775 = vld [vmem:[#allocation2] sm:$0xff]
    %v776 = vld [vmem:[#allocation2 + $0x10] sm:$0xff]
    %v777 = vld [vmem:[#allocation2 + $0x30] sm:$0xff]
    %v778 = vld [vmem:[#allocation2 + $0x40] sm:$0xff]
    %v779 = vld [vmem:[#allocation2] sm:$0xfe]
    %v780 = vld [vmem:[#allocation2 + $0x20] sm:$0x1]
    %v781 = vld [vmem:[#allocation2 + $0x30] sm:$0xfe]
    %v782 = vld [vmem:[#allocation2 + $0x50] sm:$0x1]
    %v789 = vrot.slane %v779, 1
    %v790 = vrot.slane %v776, 1
    %v791 = vsel %vm602, %v789, %v790
    %v792 = vrot.slane %v780, 1
    %v793 = vsel %vm602, %v790, %v792
    %v794 = vrot.slane %v781, 1
    %v795 = vrot.slane %v778, 1
    %v796 = vsel %vm602, %v794, %v795
    %v797 = vrot.slane %v782, 1
    %v798 = vsel %vm602, %v795, %v797
    %v799 = vld [vmem:[#allocation2] sm:$0xfc]
    %v800 = vld [vmem:[#allocation2 + $0x20] sm:$0x3]
    %v801 = vld [vmem:[#allocation2 + $0x30] sm:$0xfc]
    %v802 = vld [vmem:[#allocation2 + $0x50] sm:$0x3]
    %v807 = vrot.slane %v799, 2
    %v808 = vrot.slane %v776, 2
    %v809 = vsel %vm621, %v807, %v808
    %v810 = vrot.slane %v800, 2
    %v811 = vsel %vm621, %v808, %v810
    %v812 = vrot.slane %v801, 2
    %v813 = vrot.slane %v778, 2
    %v814 = vsel %vm621, %v812, %v813
    %v815 = vrot.slane %v802, 2
    %v816 = vsel %vm621, %v813, %v815
    %821 = vrot.lane.b32.xlu0 %v791, 64
    %v822 = vpop.permute.xlu0 %821
    %823 = vrot.lane.b32.xlu0 %v793, 64
    %v824 = vpop.permute.xlu0 %823
    %825 = vrot.lane.b32.xlu0 %v796, 64
    %v826 = vpop.permute.xlu0 %825
    %827 = vrot.lane.b32.xlu0 %v798, 64
    %v828 = vpop.permute.xlu0 %827
    %v833 = vsel %vm768, %v775, %v822
    %v834 = vsel %vm768, %v776, %v824
    %v835 = vsel %vm768, %v777, %v826
    %v836 = vsel %vm768, %v778, %v828
    %v837 = vpack.c.bf16 %v834, %v833
    %v838 = vpack.c.bf16 %v811, %v809
    %v839 = vpack.c.bf16 %v836, %v835
    %v840 = vpack.c.bf16 %v816, %v814
    %v841 = vld [vmem:[%s7] sm:$0xf]
    %v842 = vld [vmem:[%s7 + $0x4] sm:$0xf]
    %v843 = vld [vmem:[%s7 + $0x8] sm:$0xf]
    %v844 = vld [vmem:[%s7 + $0xc] sm:$0xf]
    %v845 = vld [vmem:[%s7 + $0x10] sm:$0xf]
    %v846 = vld [vmem:[%s7 + $0x14] sm:$0xf]
    %v847 = vld [vmem:[%s7 + $0x18] sm:$0xf]
    %v848 = vld [vmem:[%s7 + $0x1c] sm:$0xf]
    %v849 = vld [vmem:[%s7 + $0x20] sm:$0xf]
    %v850 = vld [vmem:[%s7 + $0x24] sm:$0xf]
    %v851 = vld [vmem:[%s7 + $0x28] sm:$0xf]
    %v852 = vld [vmem:[%s7 + $0x2c] sm:$0xf]
    %v853 = vld [vmem:[%s7 + $0x30] sm:$0xf]
    %v854 = vld [vmem:[%s7 + $0x34] sm:$0xf]
    %v855 = vld [vmem:[%s7 + $0x38] sm:$0xf]
    %v856 = vld [vmem:[%s7 + $0x3c] sm:$0xf]
    %v857 = vld [vmem:[%s7 + $0x40] sm:$0xf]
    %v858 = vld [vmem:[%s7 + $0x44] sm:$0xf]
    %v859 = vld [vmem:[%s7 + $0x48] sm:$0xf]
    %v860 = vld [vmem:[%s7 + $0x4c] sm:$0xf]
    %v861 = vld [vmem:[%s7 + $0x50] sm:$0xf]
    %v862 = vld [vmem:[%s7 + $0x54] sm:$0xf]
    %v863 = vld [vmem:[%s7 + $0x58] sm:$0xf]
    %v864 = vld [vmem:[%s7 + $0x5c] sm:$0xf]
    %v865 = vld [vmem:[#allocation7] sm:$0x1]
    %v867 = vlaneseq
    %v868 = vshrl.u32 %v867, 7
    %v869 = vsub.s32 0, %v868
    %v870 = vrot.slane %v865, %v869
    %v896 = vunpack.c.l.b16 %v841
    %v897 = vunpack.c.l.b16 %v842
    %v898 = vunpack.c.l.b16 %v843
    %v899 = vunpack.c.l.b16 %v844
    %v900 = vunpack.c.l.b16 %v845
    %v901 = vunpack.c.l.b16 %v846
    %v902 = vunpack.c.l.b16 %v847
    %v903 = vunpack.c.l.b16 %v848
    %v904 = vunpack.c.l.b16 %v849
    %v905 = vunpack.c.l.b16 %v850
    %v906 = vunpack.c.l.b16 %v851
    %v907 = vunpack.c.l.b16 %v852
    %v908 = vunpack.c.l.b16 %v853
    %v909 = vunpack.c.l.b16 %v854
    %v910 = vunpack.c.l.b16 %v855
    %v911 = vunpack.c.l.b16 %v856
    %v912 = vunpack.c.l.b16 %v857
    %v913 = vunpack.c.l.b16 %v858
    %v914 = vunpack.c.l.b16 %v859
    %v915 = vunpack.c.l.b16 %v860
    %v916 = vunpack.c.l.b16 %v861
    %v917 = vunpack.c.l.b16 %v862
    %v918 = vunpack.c.l.b16 %v863
    %v919 = vunpack.c.l.b16 %v864
    %v920 = vpack.c.b16 %v897, %v896
    %v921 = vpack.c.b16 %v899, %v898
    %v922 = vpack.c.b16 %v901, %v900
    %v923 = vpack.c.b16 %v903, %v902
    %v924 = vpack.c.b16 %v905, %v904
    %v925 = vpack.c.b16 %v907, %v906
    %v926 = vpack.c.b16 %v909, %v908
    %v927 = vpack.c.b16 %v911, %v910
    %v928 = vpack.c.b16 %v913, %v912
    %v929 = vpack.c.b16 %v915, %v914
    %v930 = vpack.c.b16 %v917, %v916
    %v931 = vpack.c.b16 %v919, %v918
    %v945 = vsel %vm768, %v838, 0
    %v948 = vsel %vm768, %v840, 0
    %950 = vmatprep.subr.bf16.mxu0 0
    %951 = vmatpush1.bf16.msra.mxu0 %v920
    %952 = vmatprep.subr.bf16.mxu0 0
    %953 = vmatpush1.bf16.msra.mxu0 %v921
    %954 = vmatprep.subr.bf16.mxu0 0
    %955 = vmatpush1.bf16.msra.mxu0 %v922
    %956 = vmatprep.subr.bf16.mxu0 0
    %957 = vmatpush1.bf16.msra.mxu0 %v923
    %958 = vmatprep.subr.bf16.mxu0 0
    %959 = vmatpush1.bf16.msra.mxu0 %v924
    %960 = vmatprep.subr.bf16.mxu0 0
    %961 = vmatpush1.bf16.msra.mxu0 %v925
    %962 = vmatprep.subr.bf16.mxu0 0
    %963 = vmatpush1.bf16.msra.mxu0 %v926
    %964 = vmatprep.subr.bf16.mxu0 0
    %965 = vmatpush1.bf16.msra.mxu0 %v927
    %966 = vmatprep.subr.bf16.mxu0 0
    %967 = vmatpush1.bf16.msra.mxu0 %v928
    %968 = vmatprep.subr.bf16.mxu0 0
    %969 = vmatpush1.bf16.msra.mxu0 %v929
    %970 = vmatprep.subr.bf16.mxu0 0
    %971 = vmatpush1.bf16.msra.mxu0 %v930
    %972 = vmatprep.subr.bf16.mxu0 0
    %973 = vmatpush1.bf16.msra.mxu0 %v931
    %974 = vmatprep.subr.bf16.mxu0 0
    %975 = vmatpush1.bf16.msra.mxu0 0
    %976 = vmatprep.subr.bf16.mxu0 0
    %977 = vmatpush1.bf16.msra.mxu0 0
    %978 = vmatprep.subr.bf16.mxu0 0
    %979 = vmatpush1.bf16.msra.mxu0 0
    %980 = vmatprep.subr.bf16.mxu0 0
    %981 = vmatpush1.bf16.msra.mxu0 0
    %982 = vmatprep.mubr.bf16.mxu0 %v945
    %983 = vmatmul.mubr.bf16.gmra.mrb[0].mxu0 %v837
    %v984 = vpop.f32.mrb[0].mxu0
    %v985 = vadd.f32 %v870, %v984
    %v986 = vpop.f32.mrb[0].mxu0
    %v987 = vpop.f32.mrb[0].mxu0
    %v988 = vadd.f32 %v870, %v987
    %v989 = vpop.f32.mrb[0].mxu0
    %990 = vmatprep.mubr.bf16.mxu0 %v948
    %991 = vmatmul.mubr.bf16.gmra.mrb[0].mxu0 %v839
    %v992 = vpop.f32.mrb[0].mxu0
    %v993 = vadd.f32 %v870, %v992
    %v994 = vpop.f32.mrb[0].mxu0
    %v995 = vpop.f32.mrb[0].mxu0
    %v996 = vadd.f32 %v870, %v995
    %v997 = vpop.f32.mrb[0].mxu0
    %998 = vdwg.mxu0
    %v999 = vpack.c.bf16 %v559, %v558
    %v1000 = vpack.c.bf16 %v561, %v560
    %v1001 = vld [vmem:[#allocation9] sm:$0xf]
    %v1002 = vld [vmem:[#allocation10] sm:$0x1]
    %v1004 = vlaneseq
    %v1005 = vshrl.u32 %v1004, 7
    %v1006 = vsub.s32 0, %v1005
    %v1007 = vrot.slane %v1002, %v1006
    %v1010 = vsel %vm581, %v999, 0
    %v1013 = vsel %vm581, %v1000, 0
    %v1016 = vsel %vm693, %v1001, 0
    %1018 = vmatprep.subr.bf16.mxu0 0
    %1019 = vmatpush1.bf16.msra.mxu0 %v1016
    %1020 = vmatprep.subr.bf16.mxu0 0
    %1021 = vmatpush1.bf16.msra.mxu0 0
    %1022 = vmatprep.subr.bf16.mxu0 0
    %1023 = vmatpush1.bf16.msra.mxu0 0
    %1024 = vmatprep.subr.bf16.mxu0 0
    %1025 = vmatpush1.bf16.msra.mxu0 0
    %1026 = vmatprep.subr.bf16.mxu0 0
    %1027 = vmatpush1.bf16.msra.mxu0 0
    %1028 = vmatprep.subr.bf16.mxu0 0
    %1029 = vmatpush1.bf16.msra.mxu0 0
    %1030 = vmatprep.subr.bf16.mxu0 0
    %1031 = vmatpush1.bf16.msra.mxu0 0
    %1032 = vmatprep.subr.bf16.mxu0 0
    %1033 = vmatpush1.bf16.msra.mxu0 0
    %1034 = vmatprep.subr.bf16.mxu0 0
    %1035 = vmatpush1.bf16.msra.mxu0 0
    %1036 = vmatprep.subr.bf16.mxu0 0
    %1037 = vmatpush1.bf16.msra.mxu0 0
    %1038 = vmatprep.subr.bf16.mxu0 0
    %1039 = vmatpush1.bf16.msra.mxu0 0
    %1040 = vmatprep.subr.bf16.mxu0 0
    %1041 = vmatpush1.bf16.msra.mxu0 0
    %1042 = vmatprep.subr.bf16.mxu0 0
    %1043 = vmatpush1.bf16.msra.mxu0 0
    %1044 = vmatprep.subr.bf16.mxu0 0
    %1045 = vmatpush1.bf16.msra.mxu0 0
    %1046 = vmatprep.subr.bf16.mxu0 0
    %1047 = vmatpush1.bf16.msra.mxu0 0
    %1048 = vmatprep.subr.bf16.mxu0 0
    %1049 = vmatpush1.bf16.msra.mxu0 0
    %1050 = vmatprep.mubr.bf16.mxu0 0
    %1051 = vmatmul.mubr.bf16.gmra.mrb[0].mxu0 %v1010
    %v1052 = vpop.f32.mrb[0].mxu0
    %v1053 = vadd.f32 %v1007, %v1052
    %v1054 = vpop.f32.mrb[0].mxu0
    %v1055 = vpop.f32.mrb[0].mxu0
    %v1056 = vadd.f32 %v1007, %v1055
    %v1057 = vpop.f32.mrb[0].mxu0
    %1058 = vmatprep.mubr.bf16.mxu0 0
    %1059 = vmatmul.mubr.bf16.gmra.mrb[0].mxu0 %v1013
    %v1060 = vpop.f32.mrb[0].mxu0
    %v1061 = vadd.f32 %v1007, %v1060
    %v1062 = vpop.f32.mrb[0].mxu0
    %v1063 = vpop.f32.mrb[0].mxu0
    %v1064 = vadd.f32 %v1007, %v1063
    %v1065 = vpop.f32.mrb[0].mxu0
    %1066 = vdwg.mxu0
    %v1067 = vadd.f32 %v985, %v1053
    %v1068 = vadd.f32 %v988, %v1056
    %v1069 = vadd.f32 %v993, %v1061
    %v1070 = vadd.f32 %v996, %v1064
    %v1071 = vld [vmem:[#allocation12] sm:$0x1]
    %v1073 = vlaneseq
    %v1074 = vshrl.u32 %v1073, 7
    %v1075 = vsub.s32 0, %v1074
    %v1076 = vrot.slane %v1071, %v1075
    %v1078 = vmul.f32 %v1067, %v1076
    %v1079 = vmul.f32 %v1068, %v1076
    %v1080 = vmul.f32 %v1069, %v1076
    %v1081 = vmul.f32 %v1070, %v1076
    %v1082 = vld [vmem:[#allocation13] sm:$0x1]
    %v1084 = vlaneseq
    %v1085 = vshrl.u32 %v1084, 7
    %v1086 = vsub.s32 0, %v1085
    %v1087 = vrot.slane %v1082, %v1086
    %v1089 = vadd.f32 %v1078, %v1087
    %v1090 = vadd.f32 %v1079, %v1087
    %v1091 = vadd.f32 %v1080, %v1087
    %v1092 = vadd.f32 %v1081, %v1087
    %v1093 = vmax.f32 %v1089, 0.0
    %v1094 = vmax.f32 %v1090, 0.0
    %v1095 = vmax.f32 %v1091, 0.0
    %v1096 = vmax.f32 %v1092, 0.0
    %v1101 = vrot.slane %v1093, 7
    %v1102 = vrot.slane %v1094, 7
    %v1103 = vsel %vm566, %v1101, %v1102
    %v1104 = vrot.slane %v1095, 7
    %v1105 = vrot.slane %v1096, 7
    %v1106 = vsel %vm566, %v1104, %v1105
    %1113 = vst.msk [vmem:[#allocation2] sm:$0xfe] %vm766, %v1101
    %1114 = vst.msk [vmem:[#allocation2 + $0x10] sm:$0xff] %vm768, %v1103
    %1115 = vst.msk [vmem:[#allocation2 + $0x20] sm:$0x1] %vm770, %v1102
    %1116 = vst.msk [vmem:[#allocation2 + $0x30] sm:$0xfe] %vm766, %v1104
    %1117 = vst.msk [vmem:[#allocation2 + $0x40] sm:$0xff] %vm768, %v1106
    %1118 = vst.msk [vmem:[#allocation2 + $0x50] sm:$0x1] %vm770, %v1105
    %v1119 = vld [vmem:[#allocation2] sm:$0xff]
    %v1120 = vld [vmem:[#allocation2 + $0x10] sm:$0xff]
    %v1121 = vld [vmem:[#allocation2 + $0x30] sm:$0xff]
    %v1122 = vld [vmem:[#allocation2 + $0x40] sm:$0xff]
    %v1123 = vld [vmem:[#allocation2] sm:$0xfe]
    %v1124 = vld [vmem:[#allocation2 + $0x20] sm:$0x1]
    %v1125 = vld [vmem:[#allocation2 + $0x30] sm:$0xfe]
    %v1126 = vld [vmem:[#allocation2 + $0x50] sm:$0x1]
    %v1133 = vrot.slane %v1123, 1
    %v1134 = vrot.slane %v1120, 1
    %v1135 = vsel %vm602, %v1133, %v1134
    %v1136 = vrot.slane %v1124, 1
    %v1137 = vsel %vm602, %v1134, %v1136
    %v1138 = vrot.slane %v1125, 1
    %v1139 = vrot.slane %v1122, 1
    %v1140 = vsel %vm602, %v1138, %v1139
    %v1141 = vrot.slane %v1126, 1
    %v1142 = vsel %vm602, %v1139, %v1141
    %v1143 = vld [vmem:[#allocation2] sm:$0xfc]
    %v1144 = vld [vmem:[#allocation2 + $0x20] sm:$0x3]
    %v1145 = vld [vmem:[#allocation2 + $0x30] sm:$0xfc]
    %v1146 = vld [vmem:[#allocation2 + $0x50] sm:$0x3]
    %v1151 = vrot.slane %v1143, 2
    %v1152 = vrot.slane %v1120, 2
    %v1153 = vsel %vm621, %v1151, %v1152
    %v1154 = vrot.slane %v1144, 2
    %v1155 = vsel %vm621, %v1152, %v1154
    %v1156 = vrot.slane %v1145, 2
    %v1157 = vrot.slane %v1122, 2
    %v1158 = vsel %vm621, %v1156, %v1157
    %v1159 = vrot.slane %v1146, 2
    %v1160 = vsel %vm621, %v1157, %v1159
    %1165 = vrot.lane.b32.xlu0 %v1135, 64
    %v1166 = vpop.permute.xlu0 %1165
    %1167 = vrot.lane.b32.xlu0 %v1137, 64
    %v1168 = vpop.permute.xlu0 %1167
    %1169 = vrot.lane.b32.xlu0 %v1140, 64
    %v1170 = vpop.permute.xlu0 %1169
    %1171 = vrot.lane.b32.xlu0 %v1142, 64
    %v1172 = vpop.permute.xlu0 %1171
    %v1177 = vsel %vm768, %v1119, %v1166
    %v1178 = vsel %vm768, %v1120, %v1168
    %v1179 = vsel %vm768, %v1121, %v1170
    %v1180 = vsel %vm768, %v1122, %v1172
    %v1181 = vpack.c.bf16 %v1178, %v1177
    %v1182 = vpack.c.bf16 %v1155, %v1153
    %v1183 = vpack.c.bf16 %v1180, %v1179
    %v1184 = vpack.c.bf16 %v1160, %v1158
    %v1185 = vld [vmem:[#allocation15] sm:$0xf]
    %v1186 = vld [vmem:[#allocation15 + $0x4] sm:$0xf]
    %v1187 = vld [vmem:[#allocation15 + $0x8] sm:$0xf]
    %v1188 = vld [vmem:[#allocation15 + $0xc] sm:$0xf]
    %v1189 = vld [vmem:[#allocation15 + $0x10] sm:$0xf]
    %v1190 = vld [vmem:[#allocation15 + $0x14] sm:$0xf]
    %v1191 = vld [vmem:[#allocation15 + $0x18] sm:$0xf]
    %v1192 = vld [vmem:[#allocation15 + $0x1c] sm:$0xf]
    %v1193 = vld [vmem:[#allocation15 + $0x20] sm:$0xf]
    %v1194 = vld [vmem:[#allocation15 + $0x24] sm:$0xf]
    %v1195 = vld [vmem:[#allocation15 + $0x28] sm:$0xf]
    %v1196 = vld [vmem:[#allocation15 + $0x2c] sm:$0xf]
    %v1197 = vld [vmem:[#allocation15 + $0x30] sm:$0xf]
    %v1198 = vld [vmem:[#allocation15 + $0x34] sm:$0xf]
    %v1199 = vld [vmem:[#allocation15 + $0x38] sm:$0xf]
    %v1200 = vld [vmem:[#allocation15 + $0x3c] sm:$0xf]
    %v1201 = vld [vmem:[#allocation15 + $0x40] sm:$0xf]
    %v1202 = vld [vmem:[#allocation15 + $0x44] sm:$0xf]
    %v1203 = vld [vmem:[#allocation15 + $0x48] sm:$0xf]
    %v1204 = vld [vmem:[#allocation15 + $0x4c] sm:$0xf]
    %v1205 = vld [vmem:[#allocation15 + $0x50] sm:$0xf]
    %v1206 = vld [vmem:[#allocation15 + $0x54] sm:$0xf]
    %v1207 = vld [vmem:[#allocation15 + $0x58] sm:$0xf]
    %v1208 = vld [vmem:[#allocation15 + $0x5c] sm:$0xf]
    %v1209 = vld [vmem:[#allocation16] sm:$0x1]
    %v1211 = vlaneseq
    %v1212 = vshrl.u32 %v1211, 7
    %v1213 = vsub.s32 0, %v1212
    %v1214 = vrot.slane %v1209, %v1213
    %v1240 = vunpack.c.l.b16 %v1185
    %v1241 = vunpack.c.l.b16 %v1186
    %v1242 = vunpack.c.l.b16 %v1187
    %v1243 = vunpack.c.l.b16 %v1188
    %v1244 = vunpack.c.l.b16 %v1189
    %v1245 = vunpack.c.l.b16 %v1190
    %v1246 = vunpack.c.l.b16 %v1191
    %v1247 = vunpack.c.l.b16 %v1192
    %v1248 = vunpack.c.l.b16 %v1193
    %v1249 = vunpack.c.l.b16 %v1194
    %v1250 = vunpack.c.l.b16 %v1195
    %v1251 = vunpack.c.l.b16 %v1196
    %v1252 = vunpack.c.l.b16 %v1197
    %v1253 = vunpack.c.l.b16 %v1198
    %v1254 = vunpack.c.l.b16 %v1199
    %v1255 = vunpack.c.l.b16 %v1200
    %v1256 = vunpack.c.l.b16 %v1201
    %v1257 = vunpack.c.l.b16 %v1202
    %v1258 = vunpack.c.l.b16 %v1203
    %v1259 = vunpack.c.l.b16 %v1204
    %v1260 = vunpack.c.l.b16 %v1205
    %v1261 = vunpack.c.l.b16 %v1206
    %v1262 = vunpack.c.l.b16 %v1207
    %v1263 = vunpack.c.l.b16 %v1208
    %v1264 = vpack.c.b16 %v1241, %v1240
    %v1265 = vpack.c.b16 %v1243, %v1242
    %v1266 = vpack.c.b16 %v1245, %v1244
    %v1267 = vpack.c.b16 %v1247, %v1246
    %v1268 = vpack.c.b16 %v1249, %v1248
    %v1269 = vpack.c.b16 %v1251, %v1250
    %v1270 = vpack.c.b16 %v1253, %v1252
    %v1271 = vpack.c.b16 %v1255, %v1254
    %v1272 = vpack.c.b16 %v1257, %v1256
    %v1273 = vpack.c.b16 %v1259, %v1258
    %v1274 = vpack.c.b16 %v1261, %v1260
    %v1275 = vpack.c.b16 %v1263, %v1262
    %v1289 = vsel %vm768, %v1182, 0
    %v1292 = vsel %vm768, %v1184, 0
    %1294 = vmatprep.subr.bf16.mxu0 0
    %1295 = vmatpush1.bf16.msra.mxu0 %v1264
    %1296 = vmatprep.subr.bf16.mxu0 0
    %1297 = vmatpush1.bf16.msra.mxu0 %v1265
    %1298 = vmatprep.subr.bf16.mxu0 0
    %1299 = vmatpush1.bf16.msra.mxu0 %v1266
    %1300 = vmatprep.subr.bf16.mxu0 0
    %1301 = vmatpush1.bf16.msra.mxu0 %v1267
    %1302 = vmatprep.subr.bf16.mxu0 0
    %1303 = vmatpush1.bf16.msra.mxu0 %v1268
    %1304 = vmatprep.subr.bf16.mxu0 0
    %1305 = vmatpush1.bf16.msra.mxu0 %v1269
    %1306 = vmatprep.subr.bf16.mxu0 0
    %1307 = vmatpush1.bf16.msra.mxu0 %v1270
    %1308 = vmatprep.subr.bf16.mxu0 0
    %1309 = vmatpush1.bf16.msra.mxu0 %v1271
    %1310 = vmatprep.subr.bf16.mxu0 0
    %1311 = vmatpush1.bf16.msra.mxu0 %v1272
    %1312 = vmatprep.subr.bf16.mxu0 0
    %1313 = vmatpush1.bf16.msra.mxu0 %v1273
    %1314 = vmatprep.subr.bf16.mxu0 0
    %1315 = vmatpush1.bf16.msra.mxu0 %v1274
    %1316 = vmatprep.subr.bf16.mxu0 0
    %1317 = vmatpush1.bf16.msra.mxu0 %v1275
    %1318 = vmatprep.subr.bf16.mxu0 0
    %1319 = vmatpush1.bf16.msra.mxu0 0
    %1320 = vmatprep.subr.bf16.mxu0 0
    %1321 = vmatpush1.bf16.msra.mxu0 0
    %1322 = vmatprep.subr.bf16.mxu0 0
    %1323 = vmatpush1.bf16.msra.mxu0 0
    %1324 = vmatprep.subr.bf16.mxu0 0
    %1325 = vmatpush1.bf16.msra.mxu0 0
    %1326 = vmatprep.mubr.bf16.mxu0 %v1289
    %1327 = vmatmul.mubr.bf16.gmra.mrb[0].mxu0 %v1181
    %v1328 = vpop.f32.mrb[0].mxu0
    %v1329 = vadd.f32 %v1214, %v1328
    %v1330 = vpop.f32.mrb[0].mxu0
    %v1331 = vpop.f32.mrb[0].mxu0
    %v1332 = vadd.f32 %v1214, %v1331
    %v1333 = vpop.f32.mrb[0].mxu0
    %1334 = vmatprep.mubr.bf16.mxu0 %v1292
    %1335 = vmatmul.mubr.bf16.gmra.mrb[0].mxu0 %v1183
    %v1336 = vpop.f32.mrb[0].mxu0
    %v1337 = vadd.f32 %v1214, %v1336
    %v1338 = vpop.f32.mrb[0].mxu0
    %v1339 = vpop.f32.mrb[0].mxu0
    %v1340 = vadd.f32 %v1214, %v1339
    %v1341 = vpop.f32.mrb[0].mxu0
    %1342 = vdwg.mxu0
    %v1343 = vmax.f32 %v1329, 0.0
    %v1344 = vmax.f32 %v1332, 0.0
    %v1345 = vmax.f32 %v1337, 0.0
    %v1346 = vmax.f32 %v1340, 0.0
    %v1351 = vrot.slane %v1343, 7
    %v1352 = vrot.slane %v1344, 7
    %v1353 = vsel %vm566, %v1351, %v1352
    %v1354 = vrot.slane %v1345, 7
    %v1355 = vrot.slane %v1346, 7
    %v1356 = vsel %vm566, %v1354, %v1355
    %1363 = vst [vmem:[#allocation2] sm:$0xfe] %v1351
    %1364 = vst [vmem:[#allocation2 + $0x10] sm:$0xff] %v1353
    %1365 = vst [vmem:[#allocation2 + $0x20] sm:$0x1] %v1352
    %1366 = vst [vmem:[#allocation2 + $0x30] sm:$0xfe] %v1354
    %1367 = vst [vmem:[#allocation2 + $0x40] sm:$0xff] %v1356
    %1368 = vst [vmem:[#allocation2 + $0x50] sm:$0x1] %v1355
    %v1369 = vld [vmem:[#allocation2] sm:$0xff]
    %v1370 = vld [vmem:[#allocation2 + $0x10] sm:$0xff]
    %v1371 = vld [vmem:[#allocation2 + $0x30] sm:$0xff]
    %v1372 = vld [vmem:[#allocation2 + $0x40] sm:$0xff]
    %v1373 = vld [vmem:[#allocation2] sm:$0xfe]
    %v1374 = vld [vmem:[#allocation2 + $0x20] sm:$0x1]
    %v1375 = vld [vmem:[#allocation2 + $0x30] sm:$0xfe]
    %v1376 = vld [vmem:[#allocation2 + $0x50] sm:$0x1]
    %v1383 = vrot.slane %v1373, 1
    %v1384 = vrot.slane %v1370, 1
    %v1385 = vsel %vm602, %v1383, %v1384
    %v1386 = vrot.slane %v1374, 1
    %v1387 = vsel %vm602, %v1384, %v1386
    %v1388 = vrot.slane %v1375, 1
    %v1389 = vrot.slane %v1372, 1
    %v1390 = vsel %vm602, %v1388, %v1389
    %v1391 = vrot.slane %v1376, 1
    %v1392 = vsel %vm602, %v1389, %v1391
    %v1397 = vld [vmem:[#allocation2] sm:$0xfc]
    %v1398 = vld [vmem:[#allocation2 + $0x20] sm:$0x3]
    %v1399 = vld [vmem:[#allocation2 + $0x30] sm:$0xfc]
    %v1400 = vld [vmem:[#allocation2 + $0x50] sm:$0x3]
    %v1405 = vrot.slane %v1397, 2
    %v1406 = vrot.slane %v1370, 2
    %v1407 = vsel %vm621, %v1405, %v1406
    %v1408 = vrot.slane %v1398, 2
    %v1409 = vsel %vm621, %v1406, %v1408
    %v1410 = vrot.slane %v1399, 2
    %v1411 = vrot.slane %v1372, 2
    %v1412 = vsel %vm621, %v1410, %v1411
    %v1413 = vrot.slane %v1400, 2
    %v1414 = vsel %vm621, %v1411, %v1413
    %v1419 = vpack.c.bf16 %v1370, %v1369
    %v1420 = vpack.c.bf16 %v1387, %v1385
    %v1421 = vpack.c.bf16 %v1409, %v1407
    %v1422 = vpack.c.bf16 %v1372, %v1371
    %v1423 = vpack.c.bf16 %v1392, %v1390
    %v1424 = vpack.c.bf16 %v1414, %v1412
    %v1425 = vld [vmem:[#allocation18] sm:$0xf]
    %v1426 = vld [vmem:[#allocation18 + $0x4] sm:$0xf]
    %v1427 = vld [vmem:[#allocation18 + $0x8] sm:$0xf]
    %v1428 = vld [vmem:[#allocation18 + $0xc] sm:$0xf]
    %v1429 = vld [vmem:[#allocation18 + $0x10] sm:$0xf]
    %v1430 = vld [vmem:[#allocation18 + $0x14] sm:$0xf]
    %v1431 = vld [vmem:[#allocation18 + $0x18] sm:$0xf]
    %v1432 = vld [vmem:[#allocation18 + $0x1c] sm:$0xf]
    %v1433 = vld [vmem:[#allocation18 + $0x20] sm:$0xf]
    %v1434 = vld [vmem:[#allocation18 + $0x24] sm:$0xf]
    %v1435 = vld [vmem:[#allocation18 + $0x28] sm:$0xf]
    %v1436 = vld [vmem:[#allocation18 + $0x2c] sm:$0xf]
    %v1437 = vld [vmem:[#allocation18 + $0x30] sm:$0xf]
    %v1438 = vld [vmem:[#allocation18 + $0x34] sm:$0xf]
    %v1439 = vld [vmem:[#allocation18 + $0x38] sm:$0xf]
    %v1440 = vld [vmem:[#allocation18 + $0x3c] sm:$0xf]
    %v1441 = vld [vmem:[#allocation18 + $0x40] sm:$0xf]
    %v1442 = vld [vmem:[#allocation18 + $0x44] sm:$0xf]
    %v1443 = vld [vmem:[#allocation18 + $0x48] sm:$0xf]
    %v1444 = vld [vmem:[#allocation18 + $0x4c] sm:$0xf]
    %v1445 = vld [vmem:[#allocation18 + $0x50] sm:$0xf]
    %v1446 = vld [vmem:[#allocation18 + $0x54] sm:$0xf]
    %v1447 = vld [vmem:[#allocation18 + $0x58] sm:$0xf]
    %v1448 = vld [vmem:[#allocation18 + $0x5c] sm:$0xf]
    %v1449 = vld [vmem:[#allocation18 + $0x60] sm:$0xf]
    %v1450 = vld [vmem:[#allocation18 + $0x64] sm:$0xf]
    %v1451 = vld [vmem:[#allocation18 + $0x68] sm:$0xf]
    %v1452 = vld [vmem:[#allocation18 + $0x6c] sm:$0xf]
    %v1453 = vld [vmem:[#allocation18 + $0x70] sm:$0xf]
    %v1454 = vld [vmem:[#allocation18 + $0x74] sm:$0xf]
    %v1455 = vld [vmem:[#allocation18 + $0x78] sm:$0xf]
    %v1456 = vld [vmem:[#allocation18 + $0x7c] sm:$0xf]
    %v1457 = vld [vmem:[#allocation18 + $0x80] sm:$0xf]
    %v1458 = vld [vmem:[#allocation18 + $0x84] sm:$0xf]
    %v1459 = vld [vmem:[#allocation18 + $0x88] sm:$0xf]
    %v1460 = vld [vmem:[#allocation18 + $0x8c] sm:$0xf]
    %v1461 = vld [vmem:[#allocation18 + $0x90] sm:$0xf]
    %v1462 = vld [vmem:[#allocation18 + $0x94] sm:$0xf]
    %v1463 = vld [vmem:[#allocation18 + $0x98] sm:$0xf]
    %v1464 = vld [vmem:[#allocation18 + $0x9c] sm:$0xf]
    %v1465 = vld [vmem:[#allocation18 + $0xa0] sm:$0xf]
    %v1466 = vld [vmem:[#allocation18 + $0xa4] sm:$0xf]
    %v1467 = vld [vmem:[#allocation18 + $0xa8] sm:$0xf]
    %v1468 = vld [vmem:[#allocation18 + $0xac] sm:$0xf]
    %v1469 = vld [vmem:[#allocation18 + $0xb0] sm:$0xf]
    %v1470 = vld [vmem:[#allocation18 + $0xb4] sm:$0xf]
    %v1471 = vld [vmem:[#allocation18 + $0xb8] sm:$0xf]
    %v1472 = vld [vmem:[#allocation18 + $0xbc] sm:$0xf]
    %v1473 = vld [vmem:[#allocation19] sm:$0x1]
    %v1475 = vlaneseq
    %v1476 = vshrl.u32 %v1475, 7
    %v1477 = vsub.s32 0, %v1476
    %v1478 = vrot.slane %v1473, %v1477
    %v1528 = vunpack.c.l.b16 %v1425
    %v1529 = vunpack.c.l.b16 %v1426
    %v1530 = vunpack.c.l.b16 %v1427
    %v1531 = vunpack.c.l.b16 %v1428
    %v1532 = vunpack.c.l.b16 %v1429
    %v1533 = vunpack.c.l.b16 %v1430
    %v1534 = vunpack.c.l.b16 %v1431
    %v1535 = vunpack.c.l.b16 %v1432
    %v1536 = vunpack.c.l.b16 %v1433
    %v1537 = vunpack.c.l.b16 %v1434
    %v1538 = vunpack.c.l.b16 %v1435
    %v1539 = vunpack.c.l.b16 %v1436
    %v1540 = vunpack.c.l.b16 %v1437
    %v1541 = vunpack.c.l.b16 %v1438
    %v1542 = vunpack.c.l.b16 %v1439
    %v1543 = vunpack.c.l.b16 %v1440
    %v1544 = vunpack.c.l.b16 %v1441
    %v1545 = vunpack.c.l.b16 %v1442
    %v1546 = vunpack.c.l.b16 %v1443
    %v1547 = vunpack.c.l.b16 %v1444
    %v1548 = vunpack.c.l.b16 %v1445
    %v1549 = vunpack.c.l.b16 %v1446
    %v1550 = vunpack.c.l.b16 %v1447
    %v1551 = vunpack.c.l.b16 %v1448
    %v1552 = vunpack.c.l.b16 %v1449
    %v1553 = vunpack.c.l.b16 %v1450
    %v1554 = vunpack.c.l.b16 %v1451
    %v1555 = vunpack.c.l.b16 %v1452
    %v1556 = vunpack.c.l.b16 %v1453
    %v1557 = vunpack.c.l.b16 %v1454
    %v1558 = vunpack.c.l.b16 %v1455
    %v1559 = vunpack.c.l.b16 %v1456
    %v1560 = vunpack.c.l.b16 %v1457
    %v1561 = vunpack.c.l.b16 %v1458
    %v1562 = vunpack.c.l.b16 %v1459
    %v1563 = vunpack.c.l.b16 %v1460
    %v1564 = vunpack.c.l.b16 %v1461
    %v1565 = vunpack.c.l.b16 %v1462
    %v1566 = vunpack.c.l.b16 %v1463
    %v1567 = vunpack.c.l.b16 %v1464
    %v1568 = vunpack.c.l.b16 %v1465
    %v1569 = vunpack.c.l.b16 %v1466
    %v1570 = vunpack.c.l.b16 %v1467
    %v1571 = vunpack.c.l.b16 %v1468
    %v1572 = vunpack.c.l.b16 %v1469
    %v1573 = vunpack.c.l.b16 %v1470
    %v1574 = vunpack.c.l.b16 %v1471
    %v1575 = vunpack.c.l.b16 %v1472
    %v1576 = vpack.c.b16 %v1529, %v1528
    %v1577 = vpack.c.b16 %v1531, %v1530
    %v1578 = vpack.c.b16 %v1533, %v1532
    %v1579 = vpack.c.b16 %v1535, %v1534
    %v1580 = vpack.c.b16 %v1537, %v1536
    %v1581 = vpack.c.b16 %v1539, %v1538
    %v1582 = vpack.c.b16 %v1541, %v1540
    %v1583 = vpack.c.b16 %v1543, %v1542
    %v1584 = vpack.c.b16 %v1545, %v1544
    %v1585 = vpack.c.b16 %v1547, %v1546
    %v1586 = vpack.c.b16 %v1549, %v1548
    %v1587 = vpack.c.b16 %v1551, %v1550
    %v1588 = vpack.c.b16 %v1553, %v1552
    %v1589 = vpack.c.b16 %v1555, %v1554
    %v1590 = vpack.c.b16 %v1557, %v1556
    %v1591 = vpack.c.b16 %v1559, %v1558
    %v1592 = vpack.c.b16 %v1561, %v1560
    %v1593 = vpack.c.b16 %v1563, %v1562
    %v1594 = vpack.c.b16 %v1565, %v1564
    %v1595 = vpack.c.b16 %v1567, %v1566
    %v1596 = vpack.c.b16 %v1569, %v1568
    %v1597 = vpack.c.b16 %v1571, %v1570
    %v1598 = vpack.c.b16 %v1573, %v1572
    %v1599 = vpack.c.b16 %v1575, %v1574
    %1624 = vmatprep.subr.bf16.mxu0 0
    %1625 = vmatpush1.bf16.msra.mxu0 %v1576
    %1626 = vmatprep.subr.bf16.mxu0 0
    %1627 = vmatpush1.bf16.msra.mxu0 %v1577
    %1628 = vmatprep.subr.bf16.mxu0 0
    %1629 = vmatpush1.bf16.msra.mxu0 %v1578
    %1630 = vmatprep.subr.bf16.mxu0 0
    %1631 = vmatpush1.bf16.msra.mxu0 %v1579
    %1632 = vmatprep.subr.bf16.mxu0 0
    %1633 = vmatpush1.bf16.msra.mxu0 %v1580
    %1634 = vmatprep.subr.bf16.mxu0 0
    %1635 = vmatpush1.bf16.msra.mxu0 %v1581
    %1636 = vmatprep.subr.bf16.mxu0 0
    %1637 = vmatpush1.bf16.msra.mxu0 %v1582
    %1638 = vmatprep.subr.bf16.mxu0 0
    %1639 = vmatpush1.bf16.msra.mxu0 %v1583
    %1640 = vmatprep.subr.bf16.mxu0 0
    %1641 = vmatpush1.bf16.msra.mxu0 %v1584
    %1642 = vmatprep.subr.bf16.mxu0 0
    %1643 = vmatpush1.bf16.msra.mxu0 %v1585
    %1644 = vmatprep.subr.bf16.mxu0 0
    %1645 = vmatpush1.bf16.msra.mxu0 %v1586
    %1646 = vmatprep.subr.bf16.mxu0 0
    %1647 = vmatpush1.bf16.msra.mxu0 %v1587
    %1648 = vmatprep.subr.bf16.mxu0 0
    %1649 = vmatpush1.bf16.msra.mxu0 %v1588
    %1650 = vmatprep.subr.bf16.mxu0 0
    %1651 = vmatpush1.bf16.msra.mxu0 %v1589
    %1652 = vmatprep.subr.bf16.mxu0 0
    %1653 = vmatpush1.bf16.msra.mxu0 %v1590
    %1654 = vmatprep.subr.bf16.mxu0 0
    %1655 = vmatpush1.bf16.msra.mxu0 %v1591
    %1656 = vmatprep.mubr.bf16.mxu0 %v1420
    %1657 = vmatmul.mubr.bf16.gmra.mrb[0].mxu0 %v1419
    %v1658 = vpop.f32.mrb[0].mxu0
    %v1659 = vadd.f32 %v1478, %v1658
    %v1660 = vpop.f32.mrb[0].mxu0
    %v1661 = vpop.f32.mrb[0].mxu0
    %v1662 = vadd.f32 %v1478, %v1661
    %v1663 = vpop.f32.mrb[0].mxu0
    %1664 = vmatprep.mubr.bf16.mxu0 %v1423
    %1665 = vmatmul.mubr.bf16.gmra.mrb[0].mxu0 %v1422
    %v1666 = vpop.f32.mrb[0].mxu0
    %v1667 = vadd.f32 %v1478, %v1666
    %v1668 = vpop.f32.mrb[0].mxu0
    %v1669 = vpop.f32.mrb[0].mxu0
    %v1670 = vadd.f32 %v1478, %v1669
    %v1671 = vpop.f32.mrb[0].mxu0
    %1672 = vdwg.mxu0
    %1673 = vmatprep.subr.bf16.mxu0 0
    %1674 = vmatpush1.bf16.msra.mxu0 %v1592
    %1675 = vmatprep.subr.bf16.mxu0 0
    %1676 = vmatpush1.bf16.msra.mxu0 %v1593
    %1677 = vmatprep.subr.bf16.mxu0 0
    %1678 = vmatpush1.bf16.msra.mxu0 %v1594
    %1679 = vmatprep.subr.bf16.mxu0 0
    %1680 = vmatpush1.bf16.msra.mxu0 %v1595
    %1681 = vmatprep.subr.bf16.mxu0 0
    %1682 = vmatpush1.bf16.msra.mxu0 %v1596
    %1683 = vmatprep.subr.bf16.mxu0 0
    %1684 = vmatpush1.bf16.msra.mxu0 %v1597
    %1685 = vmatprep.subr.bf16.mxu0 0
    %1686 = vmatpush1.bf16.msra.mxu0 %v1598
    %1687 = vmatprep.subr.bf16.mxu0 0
    %1688 = vmatpush1.bf16.msra.mxu0 %v1599
    %1689 = vmatprep.subr.bf16.mxu0 0
    %1690 = vmatpush1.bf16.msra.mxu0 0
    %1691 = vmatprep.subr.bf16.mxu0 0
    %1692 = vmatpush1.bf16.msra.mxu0 0
    %1693 = vmatprep.subr.bf16.mxu0 0
    %1694 = vmatpush1.bf16.msra.mxu0 0
    %1695 = vmatprep.subr.bf16.mxu0 0
    %1696 = vmatpush1.bf16.msra.mxu0 0
    %1697 = vmatprep.subr.bf16.mxu0 0
    %1698 = vmatpush1.bf16.msra.mxu0 0
    %1699 = vmatprep.subr.bf16.mxu0 0
    %1700 = vmatpush1.bf16.msra.mxu0 0
    %1701 = vmatprep.subr.bf16.mxu0 0
    %1702 = vmatpush1.bf16.msra.mxu0 0
    %1703 = vmatprep.subr.bf16.mxu0 0
    %1704 = vmatpush1.bf16.msra.mxu0 0
    %1705 = vmatprep.mubr.bf16.mxu0 0
    %1706 = vmatmul.mubr.bf16.gmra.mrb[0].mxu0 %v1421
    %v1707 = vpop.f32.mrb[0].mxu0
    %v1708 = vadd.f32 %v1659, %v1707
    %v1709 = vpop.f32.mrb[0].mxu0
    %v1710 = vpop.f32.mrb[0].mxu0
    %v1711 = vadd.f32 %v1662, %v1710
    %v1712 = vpop.f32.mrb[0].mxu0
    %1713 = vmatprep.mubr.bf16.mxu0 0
    %1714 = vmatmul.mubr.bf16.gmra.mrb[0].mxu0 %v1424
    %v1715 = vpop.f32.mrb[0].mxu0
    %v1716 = vadd.f32 %v1667, %v1715
    %v1717 = vpop.f32.mrb[0].mxu0
    %v1718 = vpop.f32.mrb[0].mxu0
    %v1719 = vadd.f32 %v1670, %v1718
    %v1720 = vpop.f32.mrb[0].mxu0
    %1721 = vdwg.mxu0
    %v1722 = vpack.c.bf16 %v1094, %v1093
    %v1723 = vpack.c.bf16 %v1096, %v1095
    %v1724 = vld [vmem:[#allocation21] sm:$0xf]
    %v1725 = vld [vmem:[#allocation21 + $0x4] sm:$0xf]
    %v1726 = vld [vmem:[#allocation21 + $0x8] sm:$0xf]
    %v1727 = vld [vmem:[#allocation21 + $0xc] sm:$0xf]
    %v1728 = vld [vmem:[#allocation21 + $0x10] sm:$0xf]
    %v1729 = vld [vmem:[#allocation21 + $0x14] sm:$0xf]
    %v1730 = vld [vmem:[#allocation21 + $0x18] sm:$0xf]
    %v1731 = vld [vmem:[#allocation21 + $0x1c] sm:$0xf]
    %v1732 = vld [vmem:[#allocation22] sm:$0x1]
    %v1734 = vlaneseq
    %v1735 = vshrl.u32 %v1734, 7
    %v1736 = vsub.s32 0, %v1735
    %v1737 = vrot.slane %v1732, %v1736
    %v1747 = vunpack.c.l.b16 %v1724
    %v1748 = vunpack.c.l.b16 %v1725
    %v1749 = vunpack.c.l.b16 %v1726
    %v1750 = vunpack.c.l.b16 %v1727
    %v1751 = vunpack.c.l.b16 %v1728
    %v1752 = vunpack.c.l.b16 %v1729
    %v1753 = vunpack.c.l.b16 %v1730
    %v1754 = vunpack.c.l.b16 %v1731
    %v1755 = vpack.c.b16 %v1748, %v1747
    %v1756 = vpack.c.b16 %v1750, %v1749
    %v1757 = vpack.c.b16 %v1752, %v1751
    %v1758 = vpack.c.b16 %v1754, %v1753
    %v1764 = vsel %vm768, %v1722, 0
    %v1767 = vsel %vm768, %v1723, 0
    %1769 = vmatprep.subr.bf16.mxu0 0
    %1770 = vmatpush1.bf16.msra.mxu0 %v1755
    %1771 = vmatprep.subr.bf16.mxu0 0
    %1772 = vmatpush1.bf16.msra.mxu0 %v1756
    %1773 = vmatprep.subr.bf16.mxu0 0
    %1774 = vmatpush1.bf16.msra.mxu0 %v1757
    %1775 = vmatprep.subr.bf16.mxu0 0
    %1776 = vmatpush1.bf16.msra.mxu0 %v1758
    %1777 = vmatprep.subr.bf16.mxu0 0
    %1778 = vmatpush1.bf16.msra.mxu0 0
    %1779 = vmatprep.subr.bf16.mxu0 0
    %1780 = vmatpush1.bf16.msra.mxu0 0
    %1781 = vmatprep.subr.bf16.mxu0 0
    %1782 = vmatpush1.bf16.msra.mxu0 0
    %1783 = vmatprep.subr.bf16.mxu0 0
    %1784 = vmatpush1.bf16.msra.mxu0 0
    %1785 = vmatprep.subr.bf16.mxu0 0
    %1786 = vmatpush1.bf16.msra.mxu0 0
    %1787 = vmatprep.subr.bf16.mxu0 0
    %1788 = vmatpush1.bf16.msra.mxu0 0
    %1789 = vmatprep.subr.bf16.mxu0 0
    %1790 = vmatpush1.bf16.msra.mxu0 0
    %1791 = vmatprep.subr.bf16.mxu0 0
    %1792 = vmatpush1.bf16.msra.mxu0 0
    %1793 = vmatprep.subr.bf16.mxu0 0
    %1794 = vmatpush1.bf16.msra.mxu0 0
    %1795 = vmatprep.subr.bf16.mxu0 0
    %1796 = vmatpush1.bf16.msra.mxu0 0
    %1797 = vmatprep.subr.bf16.mxu0 0
    %1798 = vmatpush1.bf16.msra.mxu0 0
    %1799 = vmatprep.subr.bf16.mxu0 0
    %1800 = vmatpush1.bf16.msra.mxu0 0
    %1801 = vmatprep.mubr.bf16.mxu0 0
    %1802 = vmatmul.mubr.bf16.gmra.mrb[0].mxu0 %v1764
    %v1803 = vpop.f32.mrb[0].mxu0
    %v1804 = vadd.f32 %v1737, %v1803
    %v1805 = vpop.f32.mrb[0].mxu0
    %v1806 = vpop.f32.mrb[0].mxu0
    %v1807 = vadd.f32 %v1737, %v1806
    %v1808 = vpop.f32.mrb[0].mxu0
    %1809 = vmatprep.mubr.bf16.mxu0 0
    %1810 = vmatmul.mubr.bf16.gmra.mrb[0].mxu0 %v1767
    %v1811 = vpop.f32.mrb[0].mxu0
    %v1812 = vadd.f32 %v1737, %v1811
    %v1813 = vpop.f32.mrb[0].mxu0
    %v1814 = vpop.f32.mrb[0].mxu0
    %v1815 = vadd.f32 %v1737, %v1814
    %v1816 = vpop.f32.mrb[0].mxu0
    %1817 = vdwg.mxu0
    %v1818 = vadd.f32 %v1708, %v1804
    %v1819 = vadd.f32 %v1711, %v1807
    %v1820 = vadd.f32 %v1716, %v1812
    %v1821 = vadd.f32 %v1719, %v1815
    %v1822 = vld [vmem:[#allocation24] sm:$0x1]
    %v1824 = vlaneseq
    %v1825 = vshrl.u32 %v1824, 7
    %v1826 = vsub.s32 0, %v1825
    %v1827 = vrot.slane %v1822, %v1826
    %v1829 = vmul.f32 %v1818, %v1827
    %v1830 = vmul.f32 %v1819, %v1827
    %v1831 = vmul.f32 %v1820, %v1827
    %v1832 = vmul.f32 %v1821, %v1827
    %v1833 = vld [vmem:[#allocation25] sm:$0x1]
    %v1835 = vlaneseq
    %v1836 = vshrl.u32 %v1835, 7
    %v1837 = vsub.s32 0, %v1836
    %v1838 = vrot.slane %v1833, %v1837
    %v1840 = vadd.f32 %v1829, %v1838
    %v1841 = vadd.f32 %v1830, %v1838
    %v1842 = vadd.f32 %v1831, %v1838
    %v1843 = vadd.f32 %v1832, %v1838
    %v1844 = vmax.f32 %v1840, 0.0
    %v1845 = vmax.f32 %v1841, 0.0
    %v1846 = vmax.f32 %v1842, 0.0
    %v1847 = vmax.f32 %v1843, 0.0
    %v1852 = vrot.slane %v1844, 7
    %v1853 = vrot.slane %v1845, 7
    %v1854 = vsel %vm566, %v1852, %v1853
    %v1855 = vrot.slane %v1846, 7
    %v1856 = vrot.slane %v1847, 7
    %v1857 = vsel %vm566, %v1855, %v1856
    %1864 = vst [vmem:[#allocation2] sm:$0xfe] %v1852
    %1865 = vst [vmem:[#allocation2 + $0x10] sm:$0xff] %v1854
    %1866 = vst [vmem:[#allocation2 + $0x20] sm:$0x1] %v1853
    %1867 = vst [vmem:[#allocation2 + $0x30] sm:$0xfe] %v1855
    %1868 = vst [vmem:[#allocation2 + $0x40] sm:$0xff] %v1857
    %1869 = vst [vmem:[#allocation2 + $0x50] sm:$0x1] %v1856
    %v1870 = vld [vmem:[#allocation2] sm:$0xff]
    %v1871 = vld [vmem:[#allocation2 + $0x10] sm:$0xff]
    %v1872 = vld [vmem:[#allocation2 + $0x30] sm:$0xff]
    %v1873 = vld [vmem:[#allocation2 + $0x40] sm:$0xff]
    %v1874 = vld [vmem:[#allocation2] sm:$0xfe]
    %v1875 = vld [vmem:[#allocation2 + $0x20] sm:$0x1]
    %v1876 = vld [vmem:[#allocation2 + $0x30] sm:$0xfe]
    %v1877 = vld [vmem:[#allocation2 + $0x50] sm:$0x1]
    %v1884 = vrot.slane %v1874, 1
    %v1885 = vrot.slane %v1871, 1
    %v1886 = vsel %vm602, %v1884, %v1885
    %v1887 = vrot.slane %v1875, 1
    %v1888 = vsel %vm602, %v1885, %v1887
    %v1889 = vrot.slane %v1876, 1
    %v1890 = vrot.slane %v1873, 1
    %v1891 = vsel %vm602, %v1889, %v1890
    %v1892 = vrot.slane %v1877, 1
    %v1893 = vsel %vm602, %v1890, %v1892
    %v1898 = vld [vmem:[#allocation2] sm:$0xfc]
    %v1899 = vld [vmem:[#allocation2 + $0x20] sm:$0x3]
    %v1900 = vld [vmem:[#allocation2 + $0x30] sm:$0xfc]
    %v1901 = vld [vmem:[#allocation2 + $0x50] sm:$0x3]
    %v1906 = vrot.slane %v1898, 2
    %v1907 = vrot.slane %v1871, 2
    %v1908 = vsel %vm621, %v1906, %v1907
    %v1909 = vrot.slane %v1899, 2
    %v1910 = vsel %vm621, %v1907, %v1909
    %v1911 = vrot.slane %v1900, 2
    %v1912 = vrot.slane %v1873, 2
    %v1913 = vsel %vm621, %v1911, %v1912
    %v1914 = vrot.slane %v1901, 2
    %v1915 = vsel %vm621, %v1912, %v1914
    %v1920 = vpack.c.bf16 %v1871, %v1870
    %v1921 = vpack.c.bf16 %v1888, %v1886
    %v1922 = vpack.c.bf16 %v1910, %v1908
    %v1923 = vpack.c.bf16 %v1873, %v1872
    %v1924 = vpack.c.bf16 %v1893, %v1891
    %v1925 = vpack.c.bf16 %v1915, %v1913
    %v1926 = vld [vmem:[%s35] sm:$0xff]
    %v1927 = vld [vmem:[%s35 + $0x8] sm:$0xff]
    %v1928 = vld [vmem:[%s35 + $0x10] sm:$0xff]
    %v1929 = vld [vmem:[%s35 + $0x18] sm:$0xff]
    %v1930 = vld [vmem:[%s35 + $0x20] sm:$0xff]
    %v1931 = vld [vmem:[%s35 + $0x28] sm:$0xff]
    %v1932 = vld [vmem:[%s35 + $0x30] sm:$0xff]
    %v1933 = vld [vmem:[%s35 + $0x38] sm:$0xff]
    %v1934 = vld [vmem:[%s35 + $0x40] sm:$0xff]
    %v1935 = vld [vmem:[%s35 + $0x48] sm:$0xff]
    %v1936 = vld [vmem:[%s35 + $0x50] sm:$0xff]
    %v1937 = vld [vmem:[%s35 + $0x58] sm:$0xff]
    %v1938 = vld [vmem:[%s35 + $0x60] sm:$0xff]
    %v1939 = vld [vmem:[%s35 + $0x68] sm:$0xff]
    %v1940 = vld [vmem:[%s35 + $0x70] sm:$0xff]
    %v1941 = vld [vmem:[%s35 + $0x78] sm:$0xff]
    %v1942 = vld [vmem:[%s35 + $0x80] sm:$0xff]
    %v1943 = vld [vmem:[%s35 + $0x88] sm:$0xff]
    %v1944 = vld [vmem:[%s35 + $0x90] sm:$0xff]
    %v1945 = vld [vmem:[%s35 + $0x98] sm:$0xff]
    %v1946 = vld [vmem:[%s35 + $0xa0] sm:$0xff]
    %v1947 = vld [vmem:[%s35 + $0xa8] sm:$0xff]
    %v1948 = vld [vmem:[%s35 + $0xb0] sm:$0xff]
    %v1949 = vld [vmem:[%s35 + $0xb8] sm:$0xff]
    %v1950 = vld [vmem:[%s35 + $0xc0] sm:$0xff]
    %v1951 = vld [vmem:[%s35 + $0xc8] sm:$0xff]
    %v1952 = vld [vmem:[%s35 + $0xd0] sm:$0xff]
    %v1953 = vld [vmem:[%s35 + $0xd8] sm:$0xff]
    %v1954 = vld [vmem:[%s35 + $0xe0] sm:$0xff]
    %v1955 = vld [vmem:[%s35 + $0xe8] sm:$0xff]
    %v1956 = vld [vmem:[%s35 + $0xf0] sm:$0xff]
    %v1957 = vld [vmem:[%s35 + $0xf8] sm:$0xff]
    %v1958 = vld [vmem:[%s35 + $0x100] sm:$0xff]
    %v1959 = vld [vmem:[%s35 + $0x108] sm:$0xff]
    %v1960 = vld [vmem:[%s35 + $0x110] sm:$0xff]
    %v1961 = vld [vmem:[%s35 + $0x118] sm:$0xff]
    %v1962 = vld [vmem:[%s35 + $0x120] sm:$0xff]
    %v1963 = vld [vmem:[%s35 + $0x128] sm:$0xff]
    %v1964 = vld [vmem:[%s35 + $0x130] sm:$0xff]
    %v1965 = vld [vmem:[%s35 + $0x138] sm:$0xff]
    %v1966 = vld [vmem:[%s35 + $0x140] sm:$0xff]
    %v1967 = vld [vmem:[%s35 + $0x148] sm:$0xff]
    %v1968 = vld [vmem:[%s35 + $0x150] sm:$0xff]
    %v1969 = vld [vmem:[%s35 + $0x158] sm:$0xff]
    %v1970 = vld [vmem:[%s35 + $0x160] sm:$0xff]
    %v1971 = vld [vmem:[%s35 + $0x168] sm:$0xff]
    %v1972 = vld [vmem:[%s35 + $0x170] sm:$0xff]
    %v1973 = vld [vmem:[%s35 + $0x178] sm:$0xff]
    %v1974 = vld [vmem:[%s37] sm:$0x3]
    %v1976 = vlaneseq
    %v1977 = vshrl.u32 %v1976, 7
    %v1978 = vsub.s32 0, %v1977
    %v1979 = vrot.slane %v1974, %v1978
    %v1980 = vlaneseq
    %v1981 = vshrl.u32 %v1980, 7
    %v1982 = vsub.s32 1, %v1981
    %v1983 = vrot.slane %v1974, %v1982
    %v2034 = vunpack.c.l.b16 %v1926
    %v2035 = vunpack.c.h.b16 %v1926
    %v2036 = vunpack.c.l.b16 %v1927
    %v2037 = vunpack.c.h.b16 %v1927
    %v2038 = vunpack.c.l.b16 %v1928
    %v2039 = vunpack.c.h.b16 %v1928
    %v2040 = vunpack.c.l.b16 %v1929
    %v2041 = vunpack.c.h.b16 %v1929
    %v2042 = vunpack.c.l.b16 %v1930
    %v2043 = vunpack.c.h.b16 %v1930
    %v2044 = vunpack.c.l.b16 %v1931
    %v2045 = vunpack.c.h.b16 %v1931
    %v2046 = vunpack.c.l.b16 %v1932
    %v2047 = vunpack.c.h.b16 %v1932
    %v2048 = vunpack.c.l.b16 %v1933
    %v2049 = vunpack.c.h.b16 %v1933
    %v2050 = vunpack.c.l.b16 %v1934
    %v2051 = vunpack.c.h.b16 %v1934
    %v2052 = vunpack.c.l.b16 %v1935
    %v2053 = vunpack.c.h.b16 %v1935
    %v2054 = vunpack.c.l.b16 %v1936
    %v2055 = vunpack.c.h.b16 %v1936
    %v2056 = vunpack.c.l.b16 %v1937
    %v2057 = vunpack.c.h.b16 %v1937
    %v2058 = vunpack.c.l.b16 %v1938
    %v2059 = vunpack.c.h.b16 %v1938
    %v2060 = vunpack.c.l.b16 %v1939
    %v2061 = vunpack.c.h.b16 %v1939
    %v2062 = vunpack.c.l.b16 %v1940
    %v2063 = vunpack.c.h.b16 %v1940
    %v2064 = vunpack.c.l.b16 %v1941
    %v2065 = vunpack.c.h.b16 %v1941
    %v2066 = vunpack.c.l.b16 %v1942
    %v2067 = vunpack.c.h.b16 %v1942
    %v2068 = vunpack.c.l.b16 %v1943
    %v2069 = vunpack.c.h.b16 %v1943
    %v2070 = vunpack.c.l.b16 %v1944
    %v2071 = vunpack.c.h.b16 %v1944
    %v2072 = vunpack.c.l.b16 %v1945
    %v2073 = vunpack.c.h.b16 %v1945
    %v2074 = vunpack.c.l.b16 %v1946
    %v2075 = vunpack.c.h.b16 %v1946
    %v2076 = vunpack.c.l.b16 %v1947
    %v2077 = vunpack.c.h.b16 %v1947
    %v2078 = vunpack.c.l.b16 %v1948
    %v2079 = vunpack.c.h.b16 %v1948
    %v2080 = vunpack.c.l.b16 %v1949
    %v2081 = vunpack.c.h.b16 %v1949
    %v2082 = vunpack.c.l.b16 %v1950
    %v2083 = vunpack.c.h.b16 %v1950
    %v2084 = vunpack.c.l.b16 %v1951
    %v2085 = vunpack.c.h.b16 %v1951
    %v2086 = vunpack.c.l.b16 %v1952
    %v2087 = vunpack.c.h.b16 %v1952
    %v2088 = vunpack.c.l.b16 %v1953
    %v2089 = vunpack.c.h.b16 %v1953
    %v2090 = vunpack.c.l.b16 %v1954
    %v2091 = vunpack.c.h.b16 %v1954
    %v2092 = vunpack.c.l.b16 %v1955
    %v2093 = vunpack.c.h.b16 %v1955
    %v2094 = vunpack.c.l.b16 %v1956
    %v2095 = vunpack.c.h.b16 %v1956
    %v2096 = vunpack.c.l.b16 %v1957
    %v2097 = vunpack.c.h.b16 %v1957
    %v2098 = vunpack.c.l.b16 %v1958
    %v2099 = vunpack.c.h.b16 %v1958
    %v2100 = vunpack.c.l.b16 %v1959
    %v2101 = vunpack.c.h.b16 %v1959
    %v2102 = vunpack.c.l.b16 %v1960
    %v2103 = vunpack.c.h.b16 %v1960
    %v2104 = vunpack.c.l.b16 %v1961
    %v2105 = vunpack.c.h.b16 %v1961
    %v2106 = vunpack.c.l.b16 %v1962
    %v2107 = vunpack.c.h.b16 %v1962
    %v2108 = vunpack.c.l.b16 %v1963
    %v2109 = vunpack.c.h.b16 %v1963
    %v2110 = vunpack.c.l.b16 %v1964
    %v2111 = vunpack.c.h.b16 %v1964
    %v2112 = vunpack.c.l.b16 %v1965
    %v2113 = vunpack.c.h.b16 %v1965
    %v2114 = vunpack.c.l.b16 %v1966
    %v2115 = vunpack.c.h.b16 %v1966
    %v2116 = vunpack.c.l.b16 %v1967
    %v2117 = vunpack.c.h.b16 %v1967
    %v2118 = vunpack.c.l.b16 %v1968
    %v2119 = vunpack.c.h.b16 %v1968
    %v2120 = vunpack.c.l.b16 %v1969
    %v2121 = vunpack.c.h.b16 %v1969
    %v2122 = vunpack.c.l.b16 %v1970
    %v2123 = vunpack.c.h.b16 %v1970
    %v2124 = vunpack.c.l.b16 %v1971
    %v2125 = vunpack.c.h.b16 %v1971
    %v2126 = vunpack.c.l.b16 %v1972
    %v2127 = vunpack.c.h.b16 %v1972
    %v2128 = vunpack.c.l.b16 %v1973
    %v2129 = vunpack.c.h.b16 %v1973
    %v2130 = vpack.c.b16 %v2036, %v2034
    %v2131 = vpack.c.b16 %v2037, %v2035
    %v2132 = vpack.c.b16 %v2040, %v2038
    %v2133 = vpack.c.b16 %v2041, %v2039
    %v2134 = vpack.c.b16 %v2044, %v2042
    %v2135 = vpack.c.b16 %v2045, %v2043
    %v2136 = vpack.c.b16 %v2048, %v2046
    %v2137 = vpack.c.b16 %v2049, %v2047
    %v2138 = vpack.c.b16 %v2052, %v2050
    %v2139 = vpack.c.b16 %v2053, %v2051
    %v2140 = vpack.c.b16 %v2056, %v2054
    %v2141 = vpack.c.b16 %v2057, %v2055
    %v2142 = vpack.c.b16 %v2060, %v2058
    %v2143 = vpack.c.b16 %v2061, %v2059
    %v2144 = vpack.c.b16 %v2064, %v2062
    %v2145 = vpack.c.b16 %v2065, %v2063
    %v2146 = vpack.c.b16 %v2068, %v2066
    %v2147 = vpack.c.b16 %v2069, %v2067
    %v2148 = vpack.c.b16 %v2072, %v2070
    %v2149 = vpack.c.b16 %v2073, %v2071
    %v2150 = vpack.c.b16 %v2076, %v2074
    %v2151 = vpack.c.b16 %v2077, %v2075
    %v2152 = vpack.c.b16 %v2080, %v2078
    %v2153 = vpack.c.b16 %v2081, %v2079
    %v2154 = vpack.c.b16 %v2084, %v2082
    %v2155 = vpack.c.b16 %v2085, %v2083
    %v2156 = vpack.c.b16 %v2088, %v2086
    %v2157 = vpack.c.b16 %v2089, %v2087
    %v2158 = vpack.c.b16 %v2092, %v2090
    %v2159 = vpack.c.b16 %v2093, %v2091
    %v2160 = vpack.c.b16 %v2096, %v2094
    %v2161 = vpack.c.b16 %v2097, %v2095
    %v2162 = vpack.c.b16 %v2100, %v2098
    %v2163 = vpack.c.b16 %v2101, %v2099
    %v2164 = vpack.c.b16 %v2104, %v2102
    %v2165 = vpack.c.b16 %v2105, %v2103
    %v2166 = vpack.c.b16 %v2108, %v2106
    %v2167 = vpack.c.b16 %v2109, %v2107
    %v2168 = vpack.c.b16 %v2112, %v2110
    %v2169 = vpack.c.b16 %v2113, %v2111
    %v2170 = vpack.c.b16 %v2116, %v2114
    %v2171 = vpack.c.b16 %v2117, %v2115
    %v2172 = vpack.c.b16 %v2120, %v2118
    %v2173 = vpack.c.b16 %v2121, %v2119
    %v2174 = vpack.c.b16 %v2124, %v2122
    %v2175 = vpack.c.b16 %v2125, %v2123
    %v2176 = vpack.c.b16 %v2128, %v2126
    %v2177 = vpack.c.b16 %v2129, %v2127
    %2226 = vmatprep.subr.bf16.mxu0 %v2131
    %2227 = vmatpush1.bf16.msra.mxu0 %v2130
    %2228 = vmatprep.subr.bf16.mxu0 %v2133
    %2229 = vmatpush1.bf16.msra.mxu0 %v2132
    %2230 = vmatprep.subr.bf16.mxu0 %v2135
    %2231 = vmatpush1.bf16.msra.mxu0 %v2134
    %2232 = vmatprep.subr.bf16.mxu0 %v2137
    %2233 = vmatpush1.bf16.msra.mxu0 %v2136
    %2234 = vmatprep.subr.bf16.mxu0 %v2139
    %2235 = vmatpush1.bf16.msra.mxu0 %v2138
    %2236 = vmatprep.subr.bf16.mxu0 %v2141
    %2237 = vmatpush1.bf16.msra.mxu0 %v2140
    %2238 = vmatprep.subr.bf16.mxu0 %v2143
    %2239 = vmatpush1.bf16.msra.mxu0 %v2142
    %2240 = vmatprep.subr.bf16.mxu0 %v2145
    %2241 = vmatpush1.bf16.msra.mxu0 %v2144
    %2242 = vmatprep.subr.bf16.mxu0 %v2147
    %2243 = vmatpush1.bf16.msra.mxu0 %v2146
    %2244 = vmatprep.subr.bf16.mxu0 %v2149
    %2245 = vmatpush1.bf16.msra.mxu0 %v2148
    %2246 = vmatprep.subr.bf16.mxu0 %v2151
    %2247 = vmatpush1.bf16.msra.mxu0 %v2150
    %2248 = vmatprep.subr.bf16.mxu0 %v2153
    %2249 = vmatpush1.bf16.msra.mxu0 %v2152
    %2250 = vmatprep.subr.bf16.mxu0 %v2155
    %2251 = vmatpush1.bf16.msra.mxu0 %v2154
    %2252 = vmatprep.subr.bf16.mxu0 %v2157
    %2253 = vmatpush1.bf16.msra.mxu0 %v2156
    %2254 = vmatprep.subr.bf16.mxu0 %v2159
    %2255 = vmatpush1.bf16.msra.mxu0 %v2158
    %2256 = vmatprep.subr.bf16.mxu0 %v2161
    %2257 = vmatpush1.bf16.msra.mxu0 %v2160
    %2258 = vmatprep.mubr.bf16.mxu0 %v1921
    %2259 = vmatmul.mubr.bf16.gmra.mrb[0].mxu0 %v1920
    %v2260 = vpop.f32.mrb[0].mxu0
    %v2261 = vadd.f32 %v1979, %v2260
    %v2262 = vpop.f32.mrb[0].mxu0
    %v2263 = vadd.f32 %v1983, %v2262
    %v2264 = vpop.f32.mrb[0].mxu0
    %v2265 = vadd.f32 %v1979, %v2264
    %v2266 = vpop.f32.mrb[0].mxu0
    %v2267 = vadd.f32 %v1983, %v2266
    %2268 = vmatprep.mubr.bf16.mxu0 %v1924
    %2269 = vmatmul.mubr.bf16.gmra.mrb[0].mxu0 %v1923
    %v2270 = vpop.f32.mrb[0].mxu0
    %v2271 = vadd.f32 %v1979, %v2270
    %v2272 = vpop.f32.mrb[0].mxu0
    %v2273 = vadd.f32 %v1983, %v2272
    %v2274 = vpop.f32.mrb[0].mxu0
    %v2275 = vadd.f32 %v1979, %v2274
    %v2276 = vpop.f32.mrb[0].mxu0
    %v2277 = vadd.f32 %v1983, %v2276
    %2278 = vdwg.mxu0
    %2279 = vmatprep.subr.bf16.mxu0 %v2163
    %2280 = vmatpush1.bf16.msra.mxu0 %v2162
    %2281 = vmatprep.subr.bf16.mxu0 %v2165
    %2282 = vmatpush1.bf16.msra.mxu0 %v2164
    %2283 = vmatprep.subr.bf16.mxu0 %v2167
    %2284 = vmatpush1.bf16.msra.mxu0 %v2166
    %2285 = vmatprep.subr.bf16.mxu0 %v2169
    %2286 = vmatpush1.bf16.msra.mxu0 %v2168
    %2287 = vmatprep.subr.bf16.mxu0 %v2171
    %2288 = vmatpush1.bf16.msra.mxu0 %v2170
    %2289 = vmatprep.subr.bf16.mxu0 %v2173
    %2290 = vmatpush1.bf16.msra.mxu0 %v2172
    %2291 = vmatprep.subr.bf16.mxu0 %v2175
    %2292 = vmatpush1.bf16.msra.mxu0 %v2174
    %2293 = vmatprep.subr.bf16.mxu0 %v2177
    %2294 = vmatpush1.bf16.msra.mxu0 %v2176
    %2295 = vmatprep.subr.bf16.mxu0 0
    %2296 = vmatpush1.bf16.msra.mxu0 0
    %2297 = vmatprep.subr.bf16.mxu0 0
    %2298 = vmatpush1.bf16.msra.mxu0 0
    %2299 = vmatprep.subr.bf16.mxu0 0
    %2300 = vmatpush1.bf16.msra.mxu0 0
    %2301 = vmatprep.subr.bf16.mxu0 0
    %2302 = vmatpush1.bf16.msra.mxu0 0
    %2303 = vmatprep.subr.bf16.mxu0 0
    %2304 = vmatpush1.bf16.msra.mxu0 0
    %2305 = vmatprep.subr.bf16.mxu0 0
    %2306 = vmatpush1.bf16.msra.mxu0 0
    %2307 = vmatprep.subr.bf16.mxu0 0
    %2308 = vmatpush1.bf16.msra.mxu0 0
    %2309 = vmatprep.subr.bf16.mxu0 0
    %2310 = vmatpush1.bf16.msra.mxu0 0
    %2311 = vmatprep.mubr.bf16.mxu0 0
    %2312 = vmatmul.mubr.bf16.gmra.mrb[0].mxu0 %v1922
    %v2313 = vpop.f32.mrb[0].mxu0
    %v2314 = vadd.f32 %v2261, %v2313
    %v2315 = vpop.f32.mrb[0].mxu0
    %v2316 = vadd.f32 %v2263, %v2315
    %v2317 = vpop.f32.mrb[0].mxu0
    %v2318 = vadd.f32 %v2265, %v2317
    %v2319 = vpop.f32.mrb[0].mxu0
    %v2320 = vadd.f32 %v2267, %v2319
    %2321 = vmatprep.mubr.bf16.mxu0 0
    %2322 = vmatmul.mubr.bf16.gmra.mrb[0].mxu0 %v1925
    %v2323 = vpop.f32.mrb[0].mxu0
    %v2324 = vadd.f32 %v2271, %v2323
    %v2325 = vpop.f32.mrb[0].mxu0
    %v2326 = vadd.f32 %v2273, %v2325
    %v2327 = vpop.f32.mrb[0].mxu0
    %v2328 = vadd.f32 %v2275, %v2327
    %v2329 = vpop.f32.mrb[0].mxu0
    %v2330 = vadd.f32 %v2277, %v2329
    %2331 = vdwg.mxu0
    %v2332 = vmax.f32 %v2314, 0.0
    %v2333 = vmax.f32 %v2316, 0.0
    %v2334 = vmax.f32 %v2318, 0.0
    %v2335 = vmax.f32 %v2320, 0.0
    %v2336 = vmax.f32 %v2324, 0.0
    %v2337 = vmax.f32 %v2326, 0.0
    %v2338 = vmax.f32 %v2328, 0.0
    %v2339 = vmax.f32 %v2330, 0.0
    %v2348 = vrot.slane %v2332, 7
    %v2349 = vrot.slane %v2333, 7
    %v2350 = vrot.slane %v2334, 7
    %v2351 = vsel %vm566, %v2348, %v2350
    %v2352 = vrot.slane %v2335, 7
    %v2353 = vsel %vm566, %v2349, %v2352
    %v2354 = vrot.slane %v2336, 7
    %v2355 = vrot.slane %v2337, 7
    %v2356 = vrot.slane %v2338, 7
    %v2357 = vsel %vm566, %v2354, %v2356
    %v2358 = vrot.slane %v2339, 7
    %v2359 = vsel %vm566, %v2355, %v2358
    %2372 = vst [vmem:[#allocation2] sm:$0xfe] %v2348
    %2373 = vst [vmem:[#allocation2 + $0x8] sm:$0xfe] %v2349
    %2374 = vst [vmem:[#allocation2 + $0x10] sm:$0xff] %v2351
    %2375 = vst [vmem:[#allocation2 + $0x18] sm:$0xff] %v2353
    %2376 = vst [vmem:[#allocation2 + $0x20] sm:$0x1] %v2350
    %2377 = vst [vmem:[#allocation2 + $0x28] sm:$0x1] %v2352
    %2378 = vst [vmem:[#allocation2 + $0x30] sm:$0xfe] %v2354
    %2379 = vst [vmem:[#allocation2 + $0x38] sm:$0xfe] %v2355
    %2380 = vst [vmem:[#allocation2 + $0x40] sm:$0xff] %v2357
    %2381 = vst [vmem:[#allocation2 + $0x48] sm:$0xff] %v2359
    %2382 = vst [vmem:[#allocation2 + $0x50] sm:$0x1] %v2356
    %2383 = vst [vmem:[#allocation2 + $0x58] sm:$0x1] %v2358
    %v2384 = vld [vmem:[#allocation2] sm:$0xff]
    %v2385 = vld [vmem:[#allocation2 + $0x8] sm:$0xff]
    %v2386 = vld [vmem:[#allocation2 + $0x10] sm:$0xff]
    %v2387 = vld [vmem:[#allocation2 + $0x18] sm:$0xff]
    %v2388 = vld [vmem:[#allocation2 + $0x30] sm:$0xff]
    %v2389 = vld [vmem:[#allocation2 + $0x38] sm:$0xff]
    %v2390 = vld [vmem:[#allocation2 + $0x40] sm:$0xff]
    %v2391 = vld [vmem:[#allocation2 + $0x48] sm:$0xff]
    %v2392 = vld [vmem:[#allocation2] sm:$0xfe]
    %v2393 = vld [vmem:[#allocation2 + $0x8] sm:$0xfe]
    %v2394 = vld [vmem:[#allocation2 + $0x20] sm:$0x1]
    %v2395 = vld [vmem:[#allocation2 + $0x28] sm:$0x1]
    %v2396 = vld [vmem:[#allocation2 + $0x30] sm:$0xfe]
    %v2397 = vld [vmem:[#allocation2 + $0x38] sm:$0xfe]
    %v2398 = vld [vmem:[#allocation2 + $0x50] sm:$0x1]
    %v2399 = vld [vmem:[#allocation2 + $0x58] sm:$0x1]
    %v2412 = vrot.slane %v2392, 1
    %v2413 = vrot.slane %v2386, 1
    %v2414 = vsel %vm602, %v2412, %v2413
    %v2415 = vrot.slane %v2393, 1
    %v2416 = vrot.slane %v2387, 1
    %v2417 = vsel %vm602, %v2415, %v2416
    %v2418 = vrot.slane %v2394, 1
    %v2419 = vsel %vm602, %v2413, %v2418
    %v2420 = vrot.slane %v2395, 1
    %v2421 = vsel %vm602, %v2416, %v2420
    %v2422 = vrot.slane %v2396, 1
    %v2423 = vrot.slane %v2390, 1
    %v2424 = vsel %vm602, %v2422, %v2423
    %v2425 = vrot.slane %v2397, 1
    %v2426 = vrot.slane %v2391, 1
    %v2427 = vsel %vm602, %v2425, %v2426
    %v2428 = vrot.slane %v2398, 1
    %v2429 = vsel %vm602, %v2423, %v2428
    %v2430 = vrot.slane %v2399, 1
    %v2431 = vsel %vm602, %v2426, %v2430
    %v2440 = vld [vmem:[#allocation2] sm:$0xfc]
    %v2441 = vld [vmem:[#allocation2 + $0x8] sm:$0xfc]
    %v2442 = vld [vmem:[#allocation2 + $0x20] sm:$0x3]
    %v2443 = vld [vmem:[#allocation2 + $0x28] sm:$0x3]
    %v2444 = vld [vmem:[#allocation2 + $0x30] sm:$0xfc]
    %v2445 = vld [vmem:[#allocation2 + $0x38] sm:$0xfc]
    %v2446 = vld [vmem:[#allocation2 + $0x50] sm:$0x3]
    %v2447 = vld [vmem:[#allocation2 + $0x58] sm:$0x3]
    %v2456 = vrot.slane %v2440, 2
    %v2457 = vrot.slane %v2386, 2
    %v2458 = vsel %vm621, %v2456, %v2457
    %v2459 = vrot.slane %v2441, 2
    %v2460 = vrot.slane %v2387, 2
    %v2461 = vsel %vm621, %v2459, %v2460
    %v2462 = vrot.slane %v2442, 2
    %v2463 = vsel %vm621, %v2457, %v2462
    %v2464 = vrot.slane %v2443, 2
    %v2465 = vsel %vm621, %v2460, %v2464
    %v2466 = vrot.slane %v2444, 2
    %v2467 = vrot.slane %v2390, 2
    %v2468 = vsel %vm621, %v2466, %v2467
    %v2469 = vrot.slane %v2445, 2
    %v2470 = vrot.slane %v2391, 2
    %v2471 = vsel %vm621, %v2469, %v2470
    %v2472 = vrot.slane %v2446, 2
    %v2473 = vsel %vm621, %v2467, %v2472
    %v2474 = vrot.slane %v2447, 2
    %v2475 = vsel %vm621, %v2470, %v2474
    %v2484 = vpack.c.bf16 %v2386, %v2384
    %v2485 = vpack.c.bf16 %v2387, %v2385
    %v2486 = vpack.c.bf16 %v2419, %v2414
    %v2487 = vpack.c.bf16 %v2421, %v2417
    %v2488 = vpack.c.bf16 %v2463, %v2458
    %v2489 = vpack.c.bf16 %v2465, %v2461
    %v2490 = vpack.c.bf16 %v2390, %v2388
    %v2491 = vpack.c.bf16 %v2391, %v2389
    %v2492 = vpack.c.bf16 %v2429, %v2424
    %v2493 = vpack.c.bf16 %v2431, %v2427
    %v2494 = vpack.c.bf16 %v2473, %v2468
    %v2495 = vpack.c.bf16 %v2475, %v2471
    %v2496 = vld [vmem:[#allocation27] sm:$0xff]
    %v2497 = vld [vmem:[#allocation27 + $0x8] sm:$0xff]
    %v2498 = vld [vmem:[#allocation27 + $0x10] sm:$0xff]
    %v2499 = vld [vmem:[#allocation27 + $0x18] sm:$0xff]
    %v2500 = vld [vmem:[#allocation27 + $0x20] sm:$0xff]
    %v2501 = vld [vmem:[#allocation27 + $0x28] sm:$0xff]
    %v2502 = vld [vmem:[#allocation27 + $0x30] sm:$0xff]
    %v2503 = vld [vmem:[#allocation27 + $0x38] sm:$0xff]
    %v2504 = vld [vmem:[#allocation27 + $0x40] sm:$0xff]
    %v2505 = vld [vmem:[#allocation27 + $0x48] sm:$0xff]
    %v2506 = vld [vmem:[#allocation27 + $0x50] sm:$0xff]
    %v2507 = vld [vmem:[#allocation27 + $0x58] sm:$0xff]
    %v2508 = vld [vmem:[#allocation27 + $0x60] sm:$0xff]
    %v2509 = vld [vmem:[#allocation27 + $0x68] sm:$0xff]
    %v2510 = vld [vmem:[#allocation27 + $0x70] sm:$0xff]
    %v2511 = vld [vmem:[#allocation27 + $0x78] sm:$0xff]
    %v2512 = vld [vmem:[#allocation27 + $0x80] sm:$0xff]
    %v2513 = vld [vmem:[#allocation27 + $0x88] sm:$0xff]
    %v2514 = vld [vmem:[#allocation27 + $0x90] sm:$0xff]
    %v2515 = vld [vmem:[#allocation27 + $0x98] sm:$0xff]
    %v2516 = vld [vmem:[#allocation27 + $0xa0] sm:$0xff]
    %v2517 = vld [vmem:[#allocation27 + $0xa8] sm:$0xff]
    %v2518 = vld [vmem:[#allocation27 + $0xb0] sm:$0xff]
    %v2519 = vld [vmem:[#allocation27 + $0xb8] sm:$0xff]
    %v2520 = vld [vmem:[#allocation27 + $0xc0] sm:$0xff]
    %v2521 = vld [vmem:[#allocation27 + $0xc8] sm:$0xff]
    %v2522 = vld [vmem:[#allocation27 + $0xd0] sm:$0xff]
    %v2523 = vld [vmem:[#allocation27 + $0xd8] sm:$0xff]
    %v2524 = vld [vmem:[#allocation27 + $0xe0] sm:$0xff]
    %v2525 = vld [vmem:[#allocation27 + $0xe8] sm:$0xff]
    %v2526 = vld [vmem:[#allocation27 + $0xf0] sm:$0xff]
    %v2527 = vld [vmem:[#allocation27 + $0xf8] sm:$0xff]
    %v2528 = vld [vmem:[#allocation27 + $0x100] sm:$0xff]
    %v2529 = vld [vmem:[#allocation27 + $0x108] sm:$0xff]
    %v2530 = vld [vmem:[#allocation27 + $0x110] sm:$0xff]
    %v2531 = vld [vmem:[#allocation27 + $0x118] sm:$0xff]
    %v2532 = vld [vmem:[#allocation27 + $0x120] sm:$0xff]
    %v2533 = vld [vmem:[#allocation27 + $0x128] sm:$0xff]
    %v2534 = vld [vmem:[#allocation27 + $0x130] sm:$0xff]
    %v2535 = vld [vmem:[#allocation27 + $0x138] sm:$0xff]
    %v2536 = vld [vmem:[#allocation27 + $0x140] sm:$0xff]
    %v2537 = vld [vmem:[#allocation27 + $0x148] sm:$0xff]
    %v2538 = vld [vmem:[#allocation27 + $0x150] sm:$0xff]
    %v2539 = vld [vmem:[#allocation27 + $0x158] sm:$0xff]
    %v2540 = vld [vmem:[#allocation27 + $0x160] sm:$0xff]
    %v2541 = vld [vmem:[#allocation27 + $0x168] sm:$0xff]
    %v2542 = vld [vmem:[#allocation27 + $0x170] sm:$0xff]
    %v2543 = vld [vmem:[#allocation27 + $0x178] sm:$0xff]
    %v2544 = vld [vmem:[#allocation27 + $0x180] sm:$0xff]
    %v2545 = vld [vmem:[#allocation27 + $0x188] sm:$0xff]
    %v2546 = vld [vmem:[#allocation27 + $0x190] sm:$0xff]
    %v2547 = vld [vmem:[#allocation27 + $0x198] sm:$0xff]
    %v2548 = vld [vmem:[#allocation27 + $0x1a0] sm:$0xff]
    %v2549 = vld [vmem:[#allocation27 + $0x1a8] sm:$0xff]
    %v2550 = vld [vmem:[#allocation27 + $0x1b0] sm:$0xff]
    %v2551 = vld [vmem:[#allocation27 + $0x1b8] sm:$0xff]
    %v2552 = vld [vmem:[#allocation27 + $0x1c0] sm:$0xff]
    %v2553 = vld [vmem:[#allocation27 + $0x1c8] sm:$0xff]
    %v2554 = vld [vmem:[#allocation27 + $0x1d0] sm:$0xff]
    %v2555 = vld [vmem:[#allocation27 + $0x1d8] sm:$0xff]
    %v2556 = vld [vmem:[#allocation27 + $0x1e0] sm:$0xff]
    %v2557 = vld [vmem:[#allocation27 + $0x1e8] sm:$0xff]
    %v2558 = vld [vmem:[#allocation27 + $0x1f0] sm:$0xff]
    %v2559 = vld [vmem:[#allocation27 + $0x1f8] sm:$0xff]
    %v2560 = vld [vmem:[#allocation27 + $0x200] sm:$0xff]
    %v2561 = vld [vmem:[#allocation27 + $0x208] sm:$0xff]
    %v2562 = vld [vmem:[#allocation27 + $0x210] sm:$0xff]
    %v2563 = vld [vmem:[#allocation27 + $0x218] sm:$0xff]
    %v2564 = vld [vmem:[#allocation27 + $0x220] sm:$0xff]
    %v2565 = vld [vmem:[#allocation27 + $0x228] sm:$0xff]
    %v2566 = vld [vmem:[#allocation27 + $0x230] sm:$0xff]
    %v2567 = vld [vmem:[#allocation27 + $0x238] sm:$0xff]
    %v2568 = vld [vmem:[#allocation27 + $0x240] sm:$0xff]
    %v2569 = vld [vmem:[#allocation27 + $0x248] sm:$0xff]
    %v2570 = vld [vmem:[#allocation27 + $0x250] sm:$0xff]
    %v2571 = vld [vmem:[#allocation27 + $0x258] sm:$0xff]
    %v2572 = vld [vmem:[#allocation27 + $0x260] sm:$0xff]
    %v2573 = vld [vmem:[#allocation27 + $0x268] sm:$0xff]
    %v2574 = vld [vmem:[#allocation27 + $0x270] sm:$0xff]
    %v2575 = vld [vmem:[#allocation27 + $0x278] sm:$0xff]
    %v2576 = vld [vmem:[#allocation27 + $0x280] sm:$0xff]
    %v2577 = vld [vmem:[#allocation27 + $0x288] sm:$0xff]
    %v2578 = vld [vmem:[#allocation27 + $0x290] sm:$0xff]
    %v2579 = vld [vmem:[#allocation27 + $0x298] sm:$0xff]
    %v2580 = vld [vmem:[#allocation27 + $0x2a0] sm:$0xff]
    %v2581 = vld [vmem:[#allocation27 + $0x2a8] sm:$0xff]
    %v2582 = vld [vmem:[#allocation27 + $0x2b0] sm:$0xff]
    %v2583 = vld [vmem:[#allocation27 + $0x2b8] sm:$0xff]
    %v2584 = vld [vmem:[#allocation27 + $0x2c0] sm:$0xff]
    %v2585 = vld [vmem:[#allocation27 + $0x2c8] sm:$0xff]
    %v2586 = vld [vmem:[#allocation27 + $0x2d0] sm:$0xff]
    %v2587 = vld [vmem:[#allocation27 + $0x2d8] sm:$0xff]
    %v2588 = vld [vmem:[#allocation27 + $0x2e0] sm:$0xff]
    %v2589 = vld [vmem:[#allocation27 + $0x2e8] sm:$0xff]
    %v2590 = vld [vmem:[#allocation27 + $0x2f0] sm:$0xff]
    %v2591 = vld [vmem:[#allocation27 + $0x2f8] sm:$0xff]
    %v2592 = vld [vmem:[#allocation28] sm:$0x3]
    %v2594 = vlaneseq
    %v2595 = vshrl.u32 %v2594, 7
    %v2596 = vsub.s32 0, %v2595
    %v2597 = vrot.slane %v2592, %v2596
    %v2598 = vlaneseq
    %v2599 = vshrl.u32 %v2598, 7
    %v2600 = vsub.s32 1, %v2599
    %v2601 = vrot.slane %v2592, %v2600
    %v2700 = vunpack.c.l.b16 %v2496
    %v2701 = vunpack.c.h.b16 %v2496
    %v2702 = vunpack.c.l.b16 %v2497
    %v2703 = vunpack.c.h.b16 %v2497
    %v2704 = vunpack.c.l.b16 %v2498
    %v2705 = vunpack.c.h.b16 %v2498
    %v2706 = vunpack.c.l.b16 %v2499
    %v2707 = vunpack.c.h.b16 %v2499
    %v2708 = vunpack.c.l.b16 %v2500
    %v2709 = vunpack.c.h.b16 %v2500
    %v2710 = vunpack.c.l.b16 %v2501
    %v2711 = vunpack.c.h.b16 %v2501
    %v2712 = vunpack.c.l.b16 %v2502
    %v2713 = vunpack.c.h.b16 %v2502
    %v2714 = vunpack.c.l.b16 %v2503
    %v2715 = vunpack.c.h.b16 %v2503
    %v2716 = vunpack.c.l.b16 %v2504
    %v2717 = vunpack.c.h.b16 %v2504
    %v2718 = vunpack.c.l.b16 %v2505
    %v2719 = vunpack.c.h.b16 %v2505
    %v2720 = vunpack.c.l.b16 %v2506
    %v2721 = vunpack.c.h.b16 %v2506
    %v2722 = vunpack.c.l.b16 %v2507
    %v2723 = vunpack.c.h.b16 %v2507
    %v2724 = vunpack.c.l.b16 %v2508
    %v2725 = vunpack.c.h.b16 %v2508
    %v2726 = vunpack.c.l.b16 %v2509
    %v2727 = vunpack.c.h.b16 %v2509
    %v2728 = vunpack.c.l.b16 %v2510
    %v2729 = vunpack.c.h.b16 %v2510
    %v2730 = vunpack.c.l.b16 %v2511
    %v2731 = vunpack.c.h.b16 %v2511
    %v2732 = vunpack.c.l.b16 %v2512
    %v2733 = vunpack.c.h.b16 %v2512
    %v2734 = vunpack.c.l.b16 %v2513
    %v2735 = vunpack.c.h.b16 %v2513
    %v2736 = vunpack.c.l.b16 %v2514
    %v2737 = vunpack.c.h.b16 %v2514
    %v2738 = vunpack.c.l.b16 %v2515
    %v2739 = vunpack.c.h.b16 %v2515
    %v2740 = vunpack.c.l.b16 %v2516
    %v2741 = vunpack.c.h.b16 %v2516
    %v2742 = vunpack.c.l.b16 %v2517
    %v2743 = vunpack.c.h.b16 %v2517
    %v2744 = vunpack.c.l.b16 %v2518
    %v2745 = vunpack.c.h.b16 %v2518
    %v2746 = vunpack.c.l.b16 %v2519
    %v2747 = vunpack.c.h.b16 %v2519
    %v2748 = vunpack.c.l.b16 %v2520
    %v2749 = vunpack.c.h.b16 %v2520
    %v2750 = vunpack.c.l.b16 %v2521
    %v2751 = vunpack.c.h.b16 %v2521
    %v2752 = vunpack.c.l.b16 %v2522
    %v2753 = vunpack.c.h.b16 %v2522
    %v2754 = vunpack.c.l.b16 %v2523
    %v2755 = vunpack.c.h.b16 %v2523
    %v2756 = vunpack.c.l.b16 %v2524
    %v2757 = vunpack.c.h.b16 %v2524
    %v2758 = vunpack.c.l.b16 %v2525
    %v2759 = vunpack.c.h.b16 %v2525
    %v2760 = vunpack.c.l.b16 %v2526
    %v2761 = vunpack.c.h.b16 %v2526
    %v2762 = vunpack.c.l.b16 %v2527
    %v2763 = vunpack.c.h.b16 %v2527
    %v2764 = vunpack.c.l.b16 %v2528
    %v2765 = vunpack.c.h.b16 %v2528
    %v2766 = vunpack.c.l.b16 %v2529
    %v2767 = vunpack.c.h.b16 %v2529
    %v2768 = vunpack.c.l.b16 %v2530
    %v2769 = vunpack.c.h.b16 %v2530
    %v2770 = vunpack.c.l.b16 %v2531
    %v2771 = vunpack.c.h.b16 %v2531
    %v2772 = vunpack.c.l.b16 %v2532
    %v2773 = vunpack.c.h.b16 %v2532
    %v2774 = vunpack.c.l.b16 %v2533
    %v2775 = vunpack.c.h.b16 %v2533
    %v2776 = vunpack.c.l.b16 %v2534
    %v2777 = vunpack.c.h.b16 %v2534
    %v2778 = vunpack.c.l.b16 %v2535
    %v2779 = vunpack.c.h.b16 %v2535
    %v2780 = vunpack.c.l.b16 %v2536
    %v2781 = vunpack.c.h.b16 %v2536
    %v2782 = vunpack.c.l.b16 %v2537
    %v2783 = vunpack.c.h.b16 %v2537
    %v2784 = vunpack.c.l.b16 %v2538
    %v2785 = vunpack.c.h.b16 %v2538
    %v2786 = vunpack.c.l.b16 %v2539
    %v2787 = vunpack.c.h.b16 %v2539
    %v2788 = vunpack.c.l.b16 %v2540
    %v2789 = vunpack.c.h.b16 %v2540
    %v2790 = vunpack.c.l.b16 %v2541
    %v2791 = vunpack.c.h.b16 %v2541
    %v2792 = vunpack.c.l.b16 %v2542
    %v2793 = vunpack.c.h.b16 %v2542
    %v2794 = vunpack.c.l.b16 %v2543
    %v2795 = vunpack.c.h.b16 %v2543
    %v2796 = vunpack.c.l.b16 %v2544
    %v2797 = vunpack.c.h.b16 %v2544
    %v2798 = vunpack.c.l.b16 %v2545
    %v2799 = vunpack.c.h.b16 %v2545
    %v2800 = vunpack.c.l.b16 %v2546
    %v2801 = vunpack.c.h.b16 %v2546
    %v2802 = vunpack.c.l.b16 %v2547
    %v2803 = vunpack.c.h.b16 %v2547
    %v2804 = vunpack.c.l.b16 %v2548
    %v2805 = vunpack.c.h.b16 %v2548
    %v2806 = vunpack.c.l.b16 %v2549
    %v2807 = vunpack.c.h.b16 %v2549
    %v2808 = vunpack.c.l.b16 %v2550
    %v2809 = vunpack.c.h.b16 %v2550
    %v2810 = vunpack.c.l.b16 %v2551
    %v2811 = vunpack.c.h.b16 %v2551
    %v2812 = vunpack.c.l.b16 %v2552
    %v2813 = vunpack.c.h.b16 %v2552
    %v2814 = vunpack.c.l.b16 %v2553
    %v2815 = vunpack.c.h.b16 %v2553
    %v2816 = vunpack.c.l.b16 %v2554
    %v2817 = vunpack.c.h.b16 %v2554
    %v2818 = vunpack.c.l.b16 %v2555
    %v2819 = vunpack.c.h.b16 %v2555
    %v2820 = vunpack.c.l.b16 %v2556
    %v2821 = vunpack.c.h.b16 %v2556
    %v2822 = vunpack.c.l.b16 %v2557
    %v2823 = vunpack.c.h.b16 %v2557
    %v2824 = vunpack.c.l.b16 %v2558
    %v2825 = vunpack.c.h.b16 %v2558
    %v2826 = vunpack.c.l.b16 %v2559
    %v2827 = vunpack.c.h.b16 %v2559
    %v2828 = vunpack.c.l.b16 %v2560
    %v2829 = vunpack.c.h.b16 %v2560
    %v2830 = vunpack.c.l.b16 %v2561
    %v2831 = vunpack.c.h.b16 %v2561
    %v2832 = vunpack.c.l.b16 %v2562
    %v2833 = vunpack.c.h.b16 %v2562
    %v2834 = vunpack.c.l.b16 %v2563
    %v2835 = vunpack.c.h.b16 %v2563
    %v2836 = vunpack.c.l.b16 %v2564
    %v2837 = vunpack.c.h.b16 %v2564
    %v2838 = vunpack.c.l.b16 %v2565
    %v2839 = vunpack.c.h.b16 %v2565
    %v2840 = vunpack.c.l.b16 %v2566
    %v2841 = vunpack.c.h.b16 %v2566
    %v2842 = vunpack.c.l.b16 %v2567
    %v2843 = vunpack.c.h.b16 %v2567
    %v2844 = vunpack.c.l.b16 %v2568
    %v2845 = vunpack.c.h.b16 %v2568
    %v2846 = vunpack.c.l.b16 %v2569
    %v2847 = vunpack.c.h.b16 %v2569
    %v2848 = vunpack.c.l.b16 %v2570
    %v2849 = vunpack.c.h.b16 %v2570
    %v2850 = vunpack.c.l.b16 %v2571
    %v2851 = vunpack.c.h.b16 %v2571
    %v2852 = vunpack.c.l.b16 %v2572
    %v2853 = vunpack.c.h.b16 %v2572
    %v2854 = vunpack.c.l.b16 %v2573
    %v2855 = vunpack.c.h.b16 %v2573
    %v2856 = vunpack.c.l.b16 %v2574
    %v2857 = vunpack.c.h.b16 %v2574
    %v2858 = vunpack.c.l.b16 %v2575
    %v2859 = vunpack.c.h.b16 %v2575
    %v2860 = vunpack.c.l.b16 %v2576
    %v2861 = vunpack.c.h.b16 %v2576
    %v2862 = vunpack.c.l.b16 %v2577
    %v2863 = vunpack.c.h.b16 %v2577
    %v2864 = vunpack.c.l.b16 %v2578
    %v2865 = vunpack.c.h.b16 %v2578
    %v2866 = vunpack.c.l.b16 %v2579
    %v2867 = vunpack.c.h.b16 %v2579
    %v2868 = vunpack.c.l.b16 %v2580
    %v2869 = vunpack.c.h.b16 %v2580
    %v2870 = vunpack.c.l.b16 %v2581
    %v2871 = vunpack.c.h.b16 %v2581
    %v2872 = vunpack.c.l.b16 %v2582
    %v2873 = vunpack.c.h.b16 %v2582
    %v2874 = vunpack.c.l.b16 %v2583
    %v2875 = vunpack.c.h.b16 %v2583
    %v2876 = vunpack.c.l.b16 %v2584
    %v2877 = vunpack.c.h.b16 %v2584
    %v2878 = vunpack.c.l.b16 %v2585
    %v2879 = vunpack.c.h.b16 %v2585
    %v2880 = vunpack.c.l.b16 %v2586
    %v2881 = vunpack.c.h.b16 %v2586
    %v2882 = vunpack.c.l.b16 %v2587
    %v2883 = vunpack.c.h.b16 %v2587
    %v2884 = vunpack.c.l.b16 %v2588
    %v2885 = vunpack.c.h.b16 %v2588
    %v2886 = vunpack.c.l.b16 %v2589
    %v2887 = vunpack.c.h.b16 %v2589
    %v2888 = vunpack.c.l.b16 %v2590
    %v2889 = vunpack.c.h.b16 %v2590
    %v2890 = vunpack.c.l.b16 %v2591
    %v2891 = vunpack.c.h.b16 %v2591
    %v2892 = vpack.c.b16 %v2702, %v2700
    %v2893 = vpack.c.b16 %v2703, %v2701
    %v2894 = vpack.c.b16 %v2706, %v2704
    %v2895 = vpack.c.b16 %v2707, %v2705
    %v2896 = vpack.c.b16 %v2710, %v2708
    %v2897 = vpack.c.b16 %v2711, %v2709
    %v2898 = vpack.c.b16 %v2714, %v2712
    %v2899 = vpack.c.b16 %v2715, %v2713
    %v2900 = vpack.c.b16 %v2718, %v2716
    %v2901 = vpack.c.b16 %v2719, %v2717
    %v2902 = vpack.c.b16 %v2722, %v2720
    %v2903 = vpack.c.b16 %v2723, %v2721
    %v2904 = vpack.c.b16 %v2726, %v2724
    %v2905 = vpack.c.b16 %v2727, %v2725
    %v2906 = vpack.c.b16 %v2730, %v2728
    %v2907 = vpack.c.b16 %v2731, %v2729
    %v2908 = vpack.c.b16 %v2734, %v2732
    %v2909 = vpack.c.b16 %v2735, %v2733
    %v2910 = vpack.c.b16 %v2738, %v2736
    %v2911 = vpack.c.b16 %v2739, %v2737
    %v2912 = vpack.c.b16 %v2742, %v2740
    %v2913 = vpack.c.b16 %v2743, %v2741
    %v2914 = vpack.c.b16 %v2746, %v2744
    %v2915 = vpack.c.b16 %v2747, %v2745
    %v2916 = vpack.c.b16 %v2750, %v2748
    %v2917 = vpack.c.b16 %v2751, %v2749
    %v2918 = vpack.c.b16 %v2754, %v2752
    %v2919 = vpack.c.b16 %v2755, %v2753
    %v2920 = vpack.c.b16 %v2758, %v2756
    %v2921 = vpack.c.b16 %v2759, %v2757
    %v2922 = vpack.c.b16 %v2762, %v2760
    %v2923 = vpack.c.b16 %v2763, %v2761
    %v2924 = vpack.c.b16 %v2766, %v2764
    %v2925 = vpack.c.b16 %v2767, %v2765
    %v2926 = vpack.c.b16 %v2770, %v2768
    %v2927 = vpack.c.b16 %v2771, %v2769
    %v2928 = vpack.c.b16 %v2774, %v2772
    %v2929 = vpack.c.b16 %v2775, %v2773
    %v2930 = vpack.c.b16 %v2778, %v2776
    %v2931 = vpack.c.b16 %v2779, %v2777
    %v2932 = vpack.c.b16 %v2782, %v2780
    %v2933 = vpack.c.b16 %v2783, %v2781
    %v2934 = vpack.c.b16 %v2786, %v2784
    %v2935 = vpack.c.b16 %v2787, %v2785
    %v2936 = vpack.c.b16 %v2790, %v2788
    %v2937 = vpack.c.b16 %v2791, %v2789
    %v2938 = vpack.c.b16 %v2794, %v2792
    %v2939 = vpack.c.b16 %v2795, %v2793
    %v2940 = vpack.c.b16 %v2798, %v2796
    %v2941 = vpack.c.b16 %v2799, %v2797
    %v2942 = vpack.c.b16 %v2802, %v2800
    %v2943 = vpack.c.b16 %v2803, %v2801
    %v2944 = vpack.c.b16 %v2806, %v2804
    %v2945 = vpack.c.b16 %v2807, %v2805
    %v2946 = vpack.c.b16 %v2810, %v2808
    %v2947 = vpack.c.b16 %v2811, %v2809
    %v2948 = vpack.c.b16 %v2814, %v2812
    %v2949 = vpack.c.b16 %v2815, %v2813
    %v2950 = vpack.c.b16 %v2818, %v2816
    %v2951 = vpack.c.b16 %v2819, %v2817
    %v2952 = vpack.c.b16 %v2822, %v2820
    %v2953 = vpack.c.b16 %v2823, %v2821
    %v2954 = vpack.c.b16 %v2826, %v2824
    %v2955 = vpack.c.b16 %v2827, %v2825
    %v2956 = vpack.c.b16 %v2830, %v2828
    %v2957 = vpack.c.b16 %v2831, %v2829
    %v2958 = vpack.c.b16 %v2834, %v2832
    %v2959 = vpack.c.b16 %v2835, %v2833
    %v2960 = vpack.c.b16 %v2838, %v2836
    %v2961 = vpack.c.b16 %v2839, %v2837
    %v2962 = vpack.c.b16 %v2842, %v2840
    %v2963 = vpack.c.b16 %v2843, %v2841
    %v2964 = vpack.c.b16 %v2846, %v2844
    %v2965 = vpack.c.b16 %v2847, %v2845
    %v2966 = vpack.c.b16 %v2850, %v2848
    %v2967 = vpack.c.b16 %v2851, %v2849
    %v2968 = vpack.c.b16 %v2854, %v2852
    %v2969 = vpack.c.b16 %v2855, %v2853
    %v2970 = vpack.c.b16 %v2858, %v2856
    %v2971 = vpack.c.b16 %v2859, %v2857
    %v2972 = vpack.c.b16 %v2862, %v2860
    %v2973 = vpack.c.b16 %v2863, %v2861
    %v2974 = vpack.c.b16 %v2866, %v2864
    %v2975 = vpack.c.b16 %v2867, %v2865
    %v2976 = vpack.c.b16 %v2870, %v2868
    %v2977 = vpack.c.b16 %v2871, %v2869
    %v2978 = vpack.c.b16 %v2874, %v2872
    %v2979 = vpack.c.b16 %v2875, %v2873
    %v2980 = vpack.c.b16 %v2878, %v2876
    %v2981 = vpack.c.b16 %v2879, %v2877
    %v2982 = vpack.c.b16 %v2882, %v2880
    %v2983 = vpack.c.b16 %v2883, %v2881
    %v2984 = vpack.c.b16 %v2886, %v2884
    %v2985 = vpack.c.b16 %v2887, %v2885
    %v2986 = vpack.c.b16 %v2890, %v2888
    %v2987 = vpack.c.b16 %v2891, %v2889
    %3084 = vmatprep.subr.bf16.mxu0 %v2893
    %3085 = vmatpush1.bf16.msra.mxu0 %v2892
    %3086 = vmatprep.subr.bf16.mxu0 %v2895
    %3087 = vmatpush1.bf16.msra.mxu0 %v2894
    %3088 = vmatprep.subr.bf16.mxu0 %v2897
    %3089 = vmatpush1.bf16.msra.mxu0 %v2896
    %3090 = vmatprep.subr.bf16.mxu0 %v2899
    %3091 = vmatpush1.bf16.msra.mxu0 %v2898
    %3092 = vmatprep.subr.bf16.mxu0 %v2901
    %3093 = vmatpush1.bf16.msra.mxu0 %v2900
    %3094 = vmatprep.subr.bf16.mxu0 %v2903
    %3095 = vmatpush1.bf16.msra.mxu0 %v2902
    %3096 = vmatprep.subr.bf16.mxu0 %v2905
    %3097 = vmatpush1.bf16.msra.mxu0 %v2904
    %3098 = vmatprep.subr.bf16.mxu0 %v2907
    %3099 = vmatpush1.bf16.msra.mxu0 %v2906
    %3100 = vmatprep.subr.bf16.mxu0 %v2909
    %3101 = vmatpush1.bf16.msra.mxu0 %v2908
    %3102 = vmatprep.subr.bf16.mxu0 %v2911
    %3103 = vmatpush1.bf16.msra.mxu0 %v2910
    %3104 = vmatprep.subr.bf16.mxu0 %v2913
    %3105 = vmatpush1.bf16.msra.mxu0 %v2912
    %3106 = vmatprep.subr.bf16.mxu0 %v2915
    %3107 = vmatpush1.bf16.msra.mxu0 %v2914
    %3108 = vmatprep.subr.bf16.mxu0 %v2917
    %3109 = vmatpush1.bf16.msra.mxu0 %v2916
    %3110 = vmatprep.subr.bf16.mxu0 %v2919
    %3111 = vmatpush1.bf16.msra.mxu0 %v2918
    %3112 = vmatprep.subr.bf16.mxu0 %v2921
    %3113 = vmatpush1.bf16.msra.mxu0 %v2920
    %3114 = vmatprep.subr.bf16.mxu0 %v2923
    %3115 = vmatpush1.bf16.msra.mxu0 %v2922
    %3116 = vmatprep.mubr.bf16.mxu0 %v2485
    %3117 = vmatmul.mubr.bf16.gmra.mrb[0].mxu0 %v2484
    %v3118 = vpop.f32.mrb[0].mxu0
    %v3119 = vadd.f32 %v2597, %v3118
    %v3120 = vpop.f32.mrb[0].mxu0
    %v3121 = vadd.f32 %v2601, %v3120
    %v3122 = vpop.f32.mrb[0].mxu0
    %v3123 = vadd.f32 %v2597, %v3122
    %v3124 = vpop.f32.mrb[0].mxu0
    %v3125 = vadd.f32 %v2601, %v3124
    %3126 = vmatprep.mubr.bf16.mxu0 %v2491
    %3127 = vmatmul.mubr.bf16.gmra.mrb[0].mxu0 %v2490
    %v3128 = vpop.f32.mrb[0].mxu0
    %v3129 = vadd.f32 %v2597, %v3128
    %v3130 = vpop.f32.mrb[0].mxu0
    %v3131 = vadd.f32 %v2601, %v3130
    %v3132 = vpop.f32.mrb[0].mxu0
    %v3133 = vadd.f32 %v2597, %v3132
    %v3134 = vpop.f32.mrb[0].mxu0
    %v3135 = vadd.f32 %v2601, %v3134
    %3136 = vdwg.mxu0
    %3137 = vmatprep.subr.bf16.mxu0 %v2925
    %3138 = vmatpush1.bf16.msra.mxu0 %v2924
    %3139 = vmatprep.subr.bf16.mxu0 %v2927
    %3140 = vmatpush1.bf16.msra.mxu0 %v2926
    %3141 = vmatprep.subr.bf16.mxu0 %v2929
    %3142 = vmatpush1.bf16.msra.mxu0 %v2928
    %3143 = vmatprep.subr.bf16.mxu0 %v2931
    %3144 = vmatpush1.bf16.msra.mxu0 %v2930
    %3145 = vmatprep.subr.bf16.mxu0 %v2933
    %3146 = vmatpush1.bf16.msra.mxu0 %v2932
    %3147 = vmatprep.subr.bf16.mxu0 %v2935
    %3148 = vmatpush1.bf16.msra.mxu0 %v2934
    %3149 = vmatprep.subr.bf16.mxu0 %v2937
    %3150 = vmatpush1.bf16.msra.mxu0 %v2936
    %3151 = vmatprep.subr.bf16.mxu0 %v2939
    %3152 = vmatpush1.bf16.msra.mxu0 %v2938
    %3153 = vmatprep.subr.bf16.mxu0 %v2941
    %3154 = vmatpush1.bf16.msra.mxu0 %v2940
    %3155 = vmatprep.subr.bf16.mxu0 %v2943
    %3156 = vmatpush1.bf16.msra.mxu0 %v2942
    %3157 = vmatprep.subr.bf16.mxu0 %v2945
    %3158 = vmatpush1.bf16.msra.mxu0 %v2944
    %3159 = vmatprep.subr.bf16.mxu0 %v2947
    %3160 = vmatpush1.bf16.msra.mxu0 %v2946
    %3161 = vmatprep.subr.bf16.mxu0 %v2949
    %3162 = vmatpush1.bf16.msra.mxu0 %v2948
    %3163 = vmatprep.subr.bf16.mxu0 %v2951
    %3164 = vmatpush1.bf16.msra.mxu0 %v2950
    %3165 = vmatprep.subr.bf16.mxu0 %v2953
    %3166 = vmatpush1.bf16.msra.mxu0 %v2952
    %3167 = vmatprep.subr.bf16.mxu0 %v2955
    %3168 = vmatpush1.bf16.msra.mxu0 %v2954
    %3169 = vmatprep.mubr.bf16.mxu0 %v2487
    %3170 = vmatmul.mubr.bf16.gmra.mrb[0].mxu0 %v2486
    %v3171 = vpop.f32.mrb[0].mxu0
    %v3172 = vadd.f32 %v3119, %v3171
    %v3173 = vpop.f32.mrb[0].mxu0
    %v3174 = vadd.f32 %v3121, %v3173
    %v3175 = vpop.f32.mrb[0].mxu0
    %v3176 = vadd.f32 %v3123, %v3175
    %v3177 = vpop.f32.mrb[0].mxu0
    %v3178 = vadd.f32 %v3125, %v3177
    %3179 = vmatprep.mubr.bf16.mxu0 %v2493
    %3180 = vmatmul.mubr.bf16.gmra.mrb[0].mxu0 %v2492
    %v3181 = vpop.f32.mrb[0].mxu0
    %v3182 = vadd.f32 %v3129, %v3181
    %v3183 = vpop.f32.mrb[0].mxu0
    %v3184 = vadd.f32 %v3131, %v3183
    %v3185 = vpop.f32.mrb[0].mxu0
    %v3186 = vadd.f32 %v3133, %v3185
    %v3187 = vpop.f32.mrb[0].mxu0
    %v3188 = vadd.f32 %v3135, %v3187
    %3189 = vdwg.mxu0
    %3190 = vmatprep.subr.bf16.mxu0 %v2957
    %3191 = vmatpush1.bf16.msra.mxu0 %v2956
    %3192 = vmatprep.subr.bf16.mxu0 %v2959
    %3193 = vmatpush1.bf16.msra.mxu0 %v2958
    %3194 = vmatprep.subr.bf16.mxu0 %v2961
    %3195 = vmatpush1.bf16.msra.mxu0 %v2960
    %3196 = vmatprep.subr.bf16.mxu0 %v2963
    %3197 = vmatpush1.bf16.msra.mxu0 %v2962
    %3198 = vmatprep.subr.bf16.mxu0 %v2965
    %3199 = vmatpush1.bf16.msra.mxu0 %v2964
    %3200 = vmatprep.subr.bf16.mxu0 %v2967
    %3201 = vmatpush1.bf16.msra.mxu0 %v2966
    %3202 = vmatprep.subr.bf16.mxu0 %v2969
    %3203 = vmatpush1.bf16.msra.mxu0 %v2968
    %3204 = vmatprep.subr.bf16.mxu0 %v2971
    %3205 = vmatpush1.bf16.msra.mxu0 %v2970
    %3206 = vmatprep.subr.bf16.mxu0 %v2973
    %3207 = vmatpush1.bf16.msra.mxu0 %v2972
    %3208 = vmatprep.subr.bf16.mxu0 %v2975
    %3209 = vmatpush1.bf16.msra.mxu0 %v2974
    %3210 = vmatprep.subr.bf16.mxu0 %v2977
    %3211 = vmatpush1.bf16.msra.mxu0 %v2976
    %3212 = vmatprep.subr.bf16.mxu0 %v2979
    %3213 = vmatpush1.bf16.msra.mxu0 %v2978
    %3214 = vmatprep.subr.bf16.mxu0 %v2981
    %3215 = vmatpush1.bf16.msra.mxu0 %v2980
    %3216 = vmatprep.subr.bf16.mxu0 %v2983
    %3217 = vmatpush1.bf16.msra.mxu0 %v2982
    %3218 = vmatprep.subr.bf16.mxu0 %v2985
    %3219 = vmatpush1.bf16.msra.mxu0 %v2984
    %3220 = vmatprep.subr.bf16.mxu0 %v2987
    %3221 = vmatpush1.bf16.msra.mxu0 %v2986
    %3222 = vmatprep.mubr.bf16.mxu0 %v2489
    %3223 = vmatmul.mubr.bf16.gmra.mrb[0].mxu0 %v2488
    %v3224 = vpop.f32.mrb[0].mxu0
    %v3225 = vadd.f32 %v3172, %v3224
    %v3226 = vpop.f32.mrb[0].mxu0
    %v3227 = vadd.f32 %v3174, %v3226
    %v3228 = vpop.f32.mrb[0].mxu0
    %v3229 = vadd.f32 %v3176, %v3228
    %v3230 = vpop.f32.mrb[0].mxu0
    %v3231 = vadd.f32 %v3178, %v3230
    %3232 = vmatprep.mubr.bf16.mxu0 %v2495
    %3233 = vmatmul.mubr.bf16.gmra.mrb[0].mxu0 %v2494
    %v3234 = vpop.f32.mrb[0].mxu0
    %v3235 = vadd.f32 %v3182, %v3234
    %v3236 = vpop.f32.mrb[0].mxu0
    %v3237 = vadd.f32 %v3184, %v3236
    %v3238 = vpop.f32.mrb[0].mxu0
    %v3239 = vadd.f32 %v3186, %v3238
    %v3240 = vpop.f32.mrb[0].mxu0
    %v3241 = vadd.f32 %v3188, %v3240
    %3242 = vdwg.mxu0
    %v3243 = vpack.c.bf16 %v1845, %v1844
    %v3244 = vpack.c.bf16 %v1847, %v1846
    %v3245 = vld [vmem:[#allocation30] sm:$0xff]
    %v3246 = vld [vmem:[#allocation30 + $0x8] sm:$0xff]
    %v3247 = vld [vmem:[#allocation30 + $0x10] sm:$0xff]
    %v3248 = vld [vmem:[#allocation30 + $0x18] sm:$0xff]
    %v3249 = vld [vmem:[#allocation30 + $0x20] sm:$0xff]
    %v3250 = vld [vmem:[#allocation30 + $0x28] sm:$0xff]
    %v3251 = vld [vmem:[#allocation30 + $0x30] sm:$0xff]
    %v3252 = vld [vmem:[#allocation30 + $0x38] sm:$0xff]
    %v3253 = vld [vmem:[#allocation30 + $0x40] sm:$0xff]
    %v3254 = vld [vmem:[#allocation30 + $0x48] sm:$0xff]
    %v3255 = vld [vmem:[#allocation30 + $0x50] sm:$0xff]
    %v3256 = vld [vmem:[#allocation30 + $0x58] sm:$0xff]
    %v3257 = vld [vmem:[#allocation30 + $0x60] sm:$0xff]
    %v3258 = vld [vmem:[#allocation30 + $0x68] sm:$0xff]
    %v3259 = vld [vmem:[#allocation30 + $0x70] sm:$0xff]
    %v3260 = vld [vmem:[#allocation30 + $0x78] sm:$0xff]
    %v3261 = vld [vmem:[#allocation31] sm:$0x3]
    %v3263 = vlaneseq
    %v3264 = vshrl.u32 %v3263, 7
    %v3265 = vsub.s32 0, %v3264
    %v3266 = vrot.slane %v3261, %v3265
    %v3267 = vlaneseq
    %v3268 = vshrl.u32 %v3267, 7
    %v3269 = vsub.s32 1, %v3268
    %v3270 = vrot.slane %v3261, %v3269
    %v3289 = vunpack.c.l.b16 %v3245
    %v3290 = vunpack.c.h.b16 %v3245
    %v3291 = vunpack.c.l.b16 %v3246
    %v3292 = vunpack.c.h.b16 %v3246
    %v3293 = vunpack.c.l.b16 %v3247
    %v3294 = vunpack.c.h.b16 %v3247
    %v3295 = vunpack.c.l.b16 %v3248
    %v3296 = vunpack.c.h.b16 %v3248
    %v3297 = vunpack.c.l.b16 %v3249
    %v3298 = vunpack.c.h.b16 %v3249
    %v3299 = vunpack.c.l.b16 %v3250
    %v3300 = vunpack.c.h.b16 %v3250
    %v3301 = vunpack.c.l.b16 %v3251
    %v3302 = vunpack.c.h.b16 %v3251
    %v3303 = vunpack.c.l.b16 %v3252
    %v3304 = vunpack.c.h.b16 %v3252
    %v3305 = vunpack.c.l.b16 %v3253
    %v3306 = vunpack.c.h.b16 %v3253
    %v3307 = vunpack.c.l.b16 %v3254
    %v3308 = vunpack.c.h.b16 %v3254
    %v3309 = vunpack.c.l.b16 %v3255
    %v3310 = vunpack.c.h.b16 %v3255
    %v3311 = vunpack.c.l.b16 %v3256
    %v3312 = vunpack.c.h.b16 %v3256
    %v3313 = vunpack.c.l.b16 %v3257
    %v3314 = vunpack.c.h.b16 %v3257
    %v3315 = vunpack.c.l.b16 %v3258
    %v3316 = vunpack.c.h.b16 %v3258
    %v3317 = vunpack.c.l.b16 %v3259
    %v3318 = vunpack.c.h.b16 %v3259
    %v3319 = vunpack.c.l.b16 %v3260
    %v3320 = vunpack.c.h.b16 %v3260
    %v3321 = vpack.c.b16 %v3291, %v3289
    %v3322 = vpack.c.b16 %v3292, %v3290
    %v3323 = vpack.c.b16 %v3295, %v3293
    %v3324 = vpack.c.b16 %v3296, %v3294
    %v3325 = vpack.c.b16 %v3299, %v3297
    %v3326 = vpack.c.b16 %v3300, %v3298
    %v3327 = vpack.c.b16 %v3303, %v3301
    %v3328 = vpack.c.b16 %v3304, %v3302
    %v3329 = vpack.c.b16 %v3307, %v3305
    %v3330 = vpack.c.b16 %v3308, %v3306
    %v3331 = vpack.c.b16 %v3311, %v3309
    %v3332 = vpack.c.b16 %v3312, %v3310
    %v3333 = vpack.c.b16 %v3315, %v3313
    %v3334 = vpack.c.b16 %v3316, %v3314
    %v3335 = vpack.c.b16 %v3319, %v3317
    %v3336 = vpack.c.b16 %v3320, %v3318
    %3353 = vmatprep.subr.bf16.mxu0 %v3322
    %3354 = vmatpush1.bf16.msra.mxu0 %v3321
    %3355 = vmatprep.subr.bf16.mxu0 %v3324
    %3356 = vmatpush1.bf16.msra.mxu0 %v3323
    %3357 = vmatprep.subr.bf16.mxu0 %v3326
    %3358 = vmatpush1.bf16.msra.mxu0 %v3325
    %3359 = vmatprep.subr.bf16.mxu0 %v3328
    %3360 = vmatpush1.bf16.msra.mxu0 %v3327
    %3361 = vmatprep.subr.bf16.mxu0 %v3330
    %3362 = vmatpush1.bf16.msra.mxu0 %v3329
    %3363 = vmatprep.subr.bf16.mxu0 %v3332
    %3364 = vmatpush1.bf16.msra.mxu0 %v3331
    %3365 = vmatprep.subr.bf16.mxu0 %v3334
    %3366 = vmatpush1.bf16.msra.mxu0 %v3333
    %3367 = vmatprep.subr.bf16.mxu0 %v3336
    %3368 = vmatpush1.bf16.msra.mxu0 %v3335
    %3369 = vmatprep.subr.bf16.mxu0 0
    %3370 = vmatpush1.bf16.msra.mxu0 0
    %3371 = vmatprep.subr.bf16.mxu0 0
    %3372 = vmatpush1.bf16.msra.mxu0 0
    %3373 = vmatprep.subr.bf16.mxu0 0
    %3374 = vmatpush1.bf16.msra.mxu0 0
    %3375 = vmatprep.subr.bf16.mxu0 0
    %3376 = vmatpush1.bf16.msra.mxu0 0
    %3377 = vmatprep.subr.bf16.mxu0 0
    %3378 = vmatpush1.bf16.msra.mxu0 0
    %3379 = vmatprep.subr.bf16.mxu0 0
    %3380 = vmatpush1.bf16.msra.mxu0 0
    %3381 = vmatprep.subr.bf16.mxu0 0
    %3382 = vmatpush1.bf16.msra.mxu0 0
    %3383 = vmatprep.subr.bf16.mxu0 0
    %3384 = vmatpush1.bf16.msra.mxu0 0
    %3385 = vmatprep.mubr.bf16.mxu0 0
    %3386 = vmatmul.mubr.bf16.gmra.mrb[0].mxu0 %v3243
    %v3387 = vpop.f32.mrb[0].mxu0
    %v3388 = vadd.f32 %v3266, %v3387
    %v3389 = vpop.f32.mrb[0].mxu0
    %v3390 = vadd.f32 %v3270, %v3389
    %v3391 = vpop.f32.mrb[0].mxu0
    %v3392 = vadd.f32 %v3266, %v3391
    %v3393 = vpop.f32.mrb[0].mxu0
    %v3394 = vadd.f32 %v3270, %v3393
    %3395 = vmatprep.mubr.bf16.mxu0 0
    %3396 = vmatmul.mubr.bf16.gmra.mrb[0].mxu0 %v3244
    %v3397 = vpop.f32.mrb[0].mxu0
    %v3398 = vadd.f32 %v3266, %v3397
    %v3399 = vpop.f32.mrb[0].mxu0
    %v3400 = vadd.f32 %v3270, %v3399
    %v3401 = vpop.f32.mrb[0].mxu0
    %v3402 = vadd.f32 %v3266, %v3401
    %v3403 = vpop.f32.mrb[0].mxu0
    %v3404 = vadd.f32 %v3270, %v3403
    %3405 = vdwg.mxu0
    %v3406 = vadd.f32 %v3225, %v3388
    %v3407 = vadd.f32 %v3227, %v3390
    %v3408 = vadd.f32 %v3229, %v3392
    %v3409 = vadd.f32 %v3231, %v3394
    %v3410 = vadd.f32 %v3235, %v3398
    %v3411 = vadd.f32 %v3237, %v3400
    %v3412 = vadd.f32 %v3239, %v3402
    %v3413 = vadd.f32 %v3241, %v3404
    %v3414 = vld [vmem:[#allocation33] sm:$0x3]
    %v3416 = vlaneseq
    %v3417 = vshrl.u32 %v3416, 7
    %v3418 = vsub.s32 0, %v3417
    %v3419 = vrot.slane %v3414, %v3418
    %v3420 = vlaneseq
    %v3421 = vshrl.u32 %v3420, 7
    %v3422 = vsub.s32 1, %v3421
    %v3423 = vrot.slane %v3414, %v3422
    %v3426 = vmul.f32 %v3406, %v3419
    %v3427 = vmul.f32 %v3407, %v3423
    %v3428 = vmul.f32 %v3408, %v3419
    %v3429 = vmul.f32 %v3409, %v3423
    %v3430 = vmul.f32 %v3410, %v3419
    %v3431 = vmul.f32 %v3411, %v3423
    %v3432 = vmul.f32 %v3412, %v3419
    %v3433 = vmul.f32 %v3413, %v3423
    %v3434 = vld [vmem:[#allocation34] sm:$0x3]
    %v3436 = vlaneseq
    %v3437 = vshrl.u32 %v3436, 7
    %v3438 = vsub.s32 0, %v3437
    %v3439 = vrot.slane %v3434, %v3438
    %v3440 = vlaneseq
    %v3441 = vshrl.u32 %v3440, 7
    %v3442 = vsub.s32 1, %v3441
    %v3443 = vrot.slane %v3434, %v3442
    %v3446 = vadd.f32 %v3426, %v3439
    %v3447 = vadd.f32 %v3427, %v3443
    %v3448 = vadd.f32 %v3428, %v3439
    %v3449 = vadd.f32 %v3429, %v3443
    %v3450 = vadd.f32 %v3430, %v3439
    %v3451 = vadd.f32 %v3431, %v3443
    %v3452 = vadd.f32 %v3432, %v3439
    %v3453 = vadd.f32 %v3433, %v3443
    %v3454 = vmax.f32 %v3446, 0.0
    %v3455 = vmax.f32 %v3447, 0.0
    %v3456 = vmax.f32 %v3448, 0.0
    %v3457 = vmax.f32 %v3449, 0.0
    %v3458 = vmax.f32 %v3450, 0.0
    %v3459 = vmax.f32 %v3451, 0.0
    %v3460 = vmax.f32 %v3452, 0.0
    %v3461 = vmax.f32 %v3453, 0.0
    %v3462 = vpack.c.bf16 %v3456, %v3454
    %v3463 = vpack.c.bf16 %v3457, %v3455
    %v3464 = vpack.c.bf16 %v3460, %v3458
    %v3465 = vpack.c.bf16 %v3461, %v3459
    %v3466 = vld [vmem:[#allocation36] sm:$0xff]
    %v3467 = vld [vmem:[#allocation36 + $0x8] sm:$0xff]
    %v3468 = vld [vmem:[#allocation36 + $0x10] sm:$0xff]
    %v3469 = vld [vmem:[#allocation36 + $0x18] sm:$0xff]
    %v3470 = vld [vmem:[#allocation36 + $0x20] sm:$0xff]
    %v3471 = vld [vmem:[#allocation36 + $0x28] sm:$0xff]
    %v3472 = vld [vmem:[#allocation36 + $0x30] sm:$0xff]
    %v3473 = vld [vmem:[#allocation36 + $0x38] sm:$0xff]
    %v3474 = vld [vmem:[#allocation36 + $0x40] sm:$0xff]
    %v3475 = vld [vmem:[#allocation36 + $0x48] sm:$0xff]
    %v3476 = vld [vmem:[#allocation36 + $0x50] sm:$0xff]
    %v3477 = vld [vmem:[#allocation36 + $0x58] sm:$0xff]
    %v3478 = vld [vmem:[#allocation36 + $0x60] sm:$0xff]
    %v3479 = vld [vmem:[#allocation36 + $0x68] sm:$0xff]
    %v3480 = vld [vmem:[#allocation36 + $0x70] sm:$0xff]
    %v3481 = vld [vmem:[#allocation36 + $0x78] sm:$0xff]
    %v3482 = vld [vmem:[#allocation36 + $0x80] sm:$0xff]
    %v3483 = vld [vmem:[#allocation36 + $0x88] sm:$0xff]
    %v3484 = vld [vmem:[#allocation36 + $0x90] sm:$0xff]
    %v3485 = vld [vmem:[#allocation36 + $0x98] sm:$0xff]
    %v3486 = vld [vmem:[#allocation36 + $0xa0] sm:$0xff]
    %v3487 = vld [vmem:[#allocation36 + $0xa8] sm:$0xff]
    %v3488 = vld [vmem:[#allocation36 + $0xb0] sm:$0xff]
    %v3489 = vld [vmem:[#allocation36 + $0xb8] sm:$0xff]
    %v3490 = vld [vmem:[#allocation36 + $0xc0] sm:$0xff]
    %v3491 = vld [vmem:[#allocation36 + $0xc8] sm:$0xff]
    %v3492 = vld [vmem:[#allocation36 + $0xd0] sm:$0xff]
    %v3493 = vld [vmem:[#allocation36 + $0xd8] sm:$0xff]
    %v3494 = vld [vmem:[#allocation36 + $0xe0] sm:$0xff]
    %v3495 = vld [vmem:[#allocation36 + $0xe8] sm:$0xff]
    %v3496 = vld [vmem:[#allocation36 + $0xf0] sm:$0xff]
    %v3497 = vld [vmem:[#allocation36 + $0xf8] sm:$0xff]
    %v3498 = vld [vmem:[#allocation36 + $0x100] sm:$0xff]
    %v3499 = vld [vmem:[#allocation36 + $0x108] sm:$0xff]
    %v3500 = vld [vmem:[#allocation36 + $0x110] sm:$0xff]
    %v3501 = vld [vmem:[#allocation36 + $0x118] sm:$0xff]
    %v3502 = vld [vmem:[#allocation36 + $0x120] sm:$0xff]
    %v3503 = vld [vmem:[#allocation36 + $0x128] sm:$0xff]
    %v3504 = vld [vmem:[#allocation36 + $0x130] sm:$0xff]
    %v3505 = vld [vmem:[#allocation36 + $0x138] sm:$0xff]
    %v3506 = vld [vmem:[#allocation36 + $0x140] sm:$0xff]
    %v3507 = vld [vmem:[#allocation36 + $0x148] sm:$0xff]
    %v3508 = vld [vmem:[#allocation36 + $0x150] sm:$0xff]
    %v3509 = vld [vmem:[#allocation36 + $0x158] sm:$0xff]
    %v3510 = vld [vmem:[#allocation36 + $0x160] sm:$0xff]
    %v3511 = vld [vmem:[#allocation36 + $0x168] sm:$0xff]
    %v3512 = vld [vmem:[#allocation36 + $0x170] sm:$0xff]
    %v3513 = vld [vmem:[#allocation36 + $0x178] sm:$0xff]
    %v3514 = vld [vmem:[#allocation36 + $0x180] sm:$0xff]
    %v3515 = vld [vmem:[#allocation36 + $0x188] sm:$0xff]
    %v3516 = vld [vmem:[#allocation36 + $0x190] sm:$0xff]
    %v3517 = vld [vmem:[#allocation36 + $0x198] sm:$0xff]
    %v3518 = vld [vmem:[#allocation36 + $0x1a0] sm:$0xff]
    %v3519 = vld [vmem:[#allocation36 + $0x1a8] sm:$0xff]
    %v3520 = vld [vmem:[#allocation36 + $0x1b0] sm:$0xff]
    %v3521 = vld [vmem:[#allocation36 + $0x1b8] sm:$0xff]
    %v3522 = vld [vmem:[#allocation36 + $0x1c0] sm:$0xff]
    %v3523 = vld [vmem:[#allocation36 + $0x1c8] sm:$0xff]
    %v3524 = vld [vmem:[#allocation36 + $0x1d0] sm:$0xff]
    %v3525 = vld [vmem:[#allocation36 + $0x1d8] sm:$0xff]
    %v3526 = vld [vmem:[#allocation36 + $0x1e0] sm:$0xff]
    %v3527 = vld [vmem:[#allocation36 + $0x1e8] sm:$0xff]
    %v3528 = vld [vmem:[#allocation36 + $0x1f0] sm:$0xff]
    %v3529 = vld [vmem:[#allocation36 + $0x1f8] sm:$0xff]
    %v3530 = vld [vmem:[#allocation36 + $0x200] sm:$0xff]
    %v3531 = vld [vmem:[#allocation36 + $0x208] sm:$0xff]
    %v3532 = vld [vmem:[#allocation36 + $0x210] sm:$0xff]
    %v3533 = vld [vmem:[#allocation36 + $0x218] sm:$0xff]
    %v3534 = vld [vmem:[#allocation36 + $0x220] sm:$0xff]
    %v3535 = vld [vmem:[#allocation36 + $0x228] sm:$0xff]
    %v3536 = vld [vmem:[#allocation36 + $0x230] sm:$0xff]
    %v3537 = vld [vmem:[#allocation36 + $0x238] sm:$0xff]
    %v3538 = vld [vmem:[#allocation36 + $0x240] sm:$0xff]
    %v3539 = vld [vmem:[#allocation36 + $0x248] sm:$0xff]
    %v3540 = vld [vmem:[#allocation36 + $0x250] sm:$0xff]
    %v3541 = vld [vmem:[#allocation36 + $0x258] sm:$0xff]
    %v3542 = vld [vmem:[#allocation36 + $0x260] sm:$0xff]
    %v3543 = vld [vmem:[#allocation36 + $0x268] sm:$0xff]
    %v3544 = vld [vmem:[#allocation36 + $0x270] sm:$0xff]
    %v3545 = vld [vmem:[#allocation36 + $0x278] sm:$0xff]
    %v3546 = vld [vmem:[#allocation36 + $0x280] sm:$0xff]
    %v3547 = vld [vmem:[#allocation36 + $0x288] sm:$0xff]
    %v3548 = vld [vmem:[#allocation36 + $0x290] sm:$0xff]
    %v3549 = vld [vmem:[#allocation36 + $0x298] sm:$0xff]
    %v3550 = vld [vmem:[#allocation36 + $0x2a0] sm:$0xff]
    %v3551 = vld [vmem:[#allocation36 + $0x2a8] sm:$0xff]
    %v3552 = vld [vmem:[#allocation36 + $0x2b0] sm:$0xff]
    %v3553 = vld [vmem:[#allocation36 + $0x2b8] sm:$0xff]
    %v3554 = vld [vmem:[#allocation36 + $0x2c0] sm:$0xff]
    %v3555 = vld [vmem:[#allocation36 + $0x2c8] sm:$0xff]
    %v3556 = vld [vmem:[#allocation36 + $0x2d0] sm:$0xff]
    %v3557 = vld [vmem:[#allocation36 + $0x2d8] sm:$0xff]
    %v3558 = vld [vmem:[#allocation36 + $0x2e0] sm:$0xff]
    %v3559 = vld [vmem:[#allocation36 + $0x2e8] sm:$0xff]
    %v3560 = vld [vmem:[#allocation36 + $0x2f0] sm:$0xff]
    %v3561 = vld [vmem:[#allocation36 + $0x2f8] sm:$0xff]
    %v3562 = vld [vmem:[#allocation37] sm:$0x3f]
    %v3564 = vlaneseq
    %v3565 = vshrl.u32 %v3564, 7
    %v3566 = vsub.s32 0, %v3565
    %v3567 = vrot.slane %v3562, %v3566
    %v3568 = vlaneseq
    %v3569 = vshrl.u32 %v3568, 7
    %v3570 = vsub.s32 1, %v3569
    %v3571 = vrot.slane %v3562, %v3570
    %v3572 = vlaneseq
    %v3573 = vshrl.u32 %v3572, 7
    %v3574 = vsub.s32 2, %v3573
    %v3575 = vrot.slane %v3562, %v3574
    %v3576 = vlaneseq
    %v3577 = vshrl.u32 %v3576, 7
    %v3578 = vsub.s32 3, %v3577
    %v3579 = vrot.slane %v3562, %v3578
    %v3580 = vlaneseq
    %v3581 = vshrl.u32 %v3580, 7
    %v3582 = vsub.s32 4, %v3581
    %v3583 = vrot.slane %v3562, %v3582
    %v3584 = vlaneseq
    %v3585 = vshrl.u32 %v3584, 7
    %v3586 = vsub.s32 5, %v3585
    %v3587 = vrot.slane %v3562, %v3586
    %v3690 = vunpack.c.l.b16 %v3466
    %v3691 = vunpack.c.h.b16 %v3466
    %v3692 = vunpack.c.l.b16 %v3467
    %v3693 = vunpack.c.h.b16 %v3467
    %v3694 = vunpack.c.l.b16 %v3468
    %v3695 = vunpack.c.h.b16 %v3468
    %v3696 = vunpack.c.l.b16 %v3469
    %v3697 = vunpack.c.h.b16 %v3469
    %v3698 = vunpack.c.l.b16 %v3470
    %v3699 = vunpack.c.h.b16 %v3470
    %v3700 = vunpack.c.l.b16 %v3471
    %v3701 = vunpack.c.h.b16 %v3471
    %v3702 = vunpack.c.l.b16 %v3472
    %v3703 = vunpack.c.h.b16 %v3472
    %v3704 = vunpack.c.l.b16 %v3473
    %v3705 = vunpack.c.h.b16 %v3473
    %v3706 = vunpack.c.l.b16 %v3474
    %v3707 = vunpack.c.h.b16 %v3474
    %v3708 = vunpack.c.l.b16 %v3475
    %v3709 = vunpack.c.h.b16 %v3475
    %v3710 = vunpack.c.l.b16 %v3476
    %v3711 = vunpack.c.h.b16 %v3476
    %v3712 = vunpack.c.l.b16 %v3477
    %v3713 = vunpack.c.h.b16 %v3477
    %v3714 = vunpack.c.l.b16 %v3478
    %v3715 = vunpack.c.h.b16 %v3478
    %v3716 = vunpack.c.l.b16 %v3479
    %v3717 = vunpack.c.h.b16 %v3479
    %v3718 = vunpack.c.l.b16 %v3480
    %v3719 = vunpack.c.h.b16 %v3480
    %v3720 = vunpack.c.l.b16 %v3481
    %v3721 = vunpack.c.h.b16 %v3481
    %v3722 = vunpack.c.l.b16 %v3482
    %v3723 = vunpack.c.h.b16 %v3482
    %v3724 = vunpack.c.l.b16 %v3483
    %v3725 = vunpack.c.h.b16 %v3483
    %v3726 = vunpack.c.l.b16 %v3484
    %v3727 = vunpack.c.h.b16 %v3484
    %v3728 = vunpack.c.l.b16 %v3485
    %v3729 = vunpack.c.h.b16 %v3485
    %v3730 = vunpack.c.l.b16 %v3486
    %v3731 = vunpack.c.h.b16 %v3486
    %v3732 = vunpack.c.l.b16 %v3487
    %v3733 = vunpack.c.h.b16 %v3487
    %v3734 = vunpack.c.l.b16 %v3488
    %v3735 = vunpack.c.h.b16 %v3488
    %v3736 = vunpack.c.l.b16 %v3489
    %v3737 = vunpack.c.h.b16 %v3489
    %v3738 = vunpack.c.l.b16 %v3490
    %v3739 = vunpack.c.h.b16 %v3490
    %v3740 = vunpack.c.l.b16 %v3491
    %v3741 = vunpack.c.h.b16 %v3491
    %v3742 = vunpack.c.l.b16 %v3492
    %v3743 = vunpack.c.h.b16 %v3492
    %v3744 = vunpack.c.l.b16 %v3493
    %v3745 = vunpack.c.h.b16 %v3493
    %v3746 = vunpack.c.l.b16 %v3494
    %v3747 = vunpack.c.h.b16 %v3494
    %v3748 = vunpack.c.l.b16 %v3495
    %v3749 = vunpack.c.h.b16 %v3495
    %v3750 = vunpack.c.l.b16 %v3496
    %v3751 = vunpack.c.h.b16 %v3496
    %v3752 = vunpack.c.l.b16 %v3497
    %v3753 = vunpack.c.h.b16 %v3497
    %v3754 = vunpack.c.l.b16 %v3498
    %v3755 = vunpack.c.h.b16 %v3498
    %v3756 = vunpack.c.l.b16 %v3499
    %v3757 = vunpack.c.h.b16 %v3499
    %v3758 = vunpack.c.l.b16 %v3500
    %v3759 = vunpack.c.h.b16 %v3500
    %v3760 = vunpack.c.l.b16 %v3501
    %v3761 = vunpack.c.h.b16 %v3501
    %v3762 = vunpack.c.l.b16 %v3502
    %v3763 = vunpack.c.h.b16 %v3502
    %v3764 = vunpack.c.l.b16 %v3503
    %v3765 = vunpack.c.h.b16 %v3503
    %v3766 = vunpack.c.l.b16 %v3504
    %v3767 = vunpack.c.h.b16 %v3504
    %v3768 = vunpack.c.l.b16 %v3505
    %v3769 = vunpack.c.h.b16 %v3505
    %v3770 = vunpack.c.l.b16 %v3506
    %v3771 = vunpack.c.h.b16 %v3506
    %v3772 = vunpack.c.l.b16 %v3507
    %v3773 = vunpack.c.h.b16 %v3507
    %v3774 = vunpack.c.l.b16 %v3508
    %v3775 = vunpack.c.h.b16 %v3508
    %v3776 = vunpack.c.l.b16 %v3509
    %v3777 = vunpack.c.h.b16 %v3509
    %v3778 = vunpack.c.l.b16 %v3510
    %v3779 = vunpack.c.h.b16 %v3510
    %v3780 = vunpack.c.l.b16 %v3511
    %v3781 = vunpack.c.h.b16 %v3511
    %v3782 = vunpack.c.l.b16 %v3512
    %v3783 = vunpack.c.h.b16 %v3512
    %v3784 = vunpack.c.l.b16 %v3513
    %v3785 = vunpack.c.h.b16 %v3513
    %v3786 = vunpack.c.l.b16 %v3514
    %v3787 = vunpack.c.h.b16 %v3514
    %v3788 = vunpack.c.l.b16 %v3515
    %v3789 = vunpack.c.h.b16 %v3515
    %v3790 = vunpack.c.l.b16 %v3516
    %v3791 = vunpack.c.h.b16 %v3516
    %v3792 = vunpack.c.l.b16 %v3517
    %v3793 = vunpack.c.h.b16 %v3517
    %v3794 = vunpack.c.l.b16 %v3518
    %v3795 = vunpack.c.h.b16 %v3518
    %v3796 = vunpack.c.l.b16 %v3519
    %v3797 = vunpack.c.h.b16 %v3519
    %v3798 = vunpack.c.l.b16 %v3520
    %v3799 = vunpack.c.h.b16 %v3520
    %v3800 = vunpack.c.l.b16 %v3521
    %v3801 = vunpack.c.h.b16 %v3521
    %v3802 = vunpack.c.l.b16 %v3522
    %v3803 = vunpack.c.h.b16 %v3522
    %v3804 = vunpack.c.l.b16 %v3523
    %v3805 = vunpack.c.h.b16 %v3523
    %v3806 = vunpack.c.l.b16 %v3524
    %v3807 = vunpack.c.h.b16 %v3524
    %v3808 = vunpack.c.l.b16 %v3525
    %v3809 = vunpack.c.h.b16 %v3525
    %v3810 = vunpack.c.l.b16 %v3526
    %v3811 = vunpack.c.h.b16 %v3526
    %v3812 = vunpack.c.l.b16 %v3527
    %v3813 = vunpack.c.h.b16 %v3527
    %v3814 = vunpack.c.l.b16 %v3528
    %v3815 = vunpack.c.h.b16 %v3528
    %v3816 = vunpack.c.l.b16 %v3529
    %v3817 = vunpack.c.h.b16 %v3529
    %v3818 = vunpack.c.l.b16 %v3530
    %v3819 = vunpack.c.h.b16 %v3530
    %v3820 = vunpack.c.l.b16 %v3531
    %v3821 = vunpack.c.h.b16 %v3531
    %v3822 = vunpack.c.l.b16 %v3532
    %v3823 = vunpack.c.h.b16 %v3532
    %v3824 = vunpack.c.l.b16 %v3533
    %v3825 = vunpack.c.h.b16 %v3533
    %v3826 = vunpack.c.l.b16 %v3534
    %v3827 = vunpack.c.h.b16 %v3534
    %v3828 = vunpack.c.l.b16 %v3535
    %v3829 = vunpack.c.h.b16 %v3535
    %v3830 = vunpack.c.l.b16 %v3536
    %v3831 = vunpack.c.h.b16 %v3536
    %v3832 = vunpack.c.l.b16 %v3537
    %v3833 = vunpack.c.h.b16 %v3537
    %v3834 = vunpack.c.l.b16 %v3538
    %v3835 = vunpack.c.h.b16 %v3538
    %v3836 = vunpack.c.l.b16 %v3539
    %v3837 = vunpack.c.h.b16 %v3539
    %v3838 = vunpack.c.l.b16 %v3540
    %v3839 = vunpack.c.h.b16 %v3540
    %v3840 = vunpack.c.l.b16 %v3541
    %v3841 = vunpack.c.h.b16 %v3541
    %v3842 = vunpack.c.l.b16 %v3542
    %v3843 = vunpack.c.h.b16 %v3542
    %v3844 = vunpack.c.l.b16 %v3543
    %v3845 = vunpack.c.h.b16 %v3543
    %v3846 = vunpack.c.l.b16 %v3544
    %v3847 = vunpack.c.h.b16 %v3544
    %v3848 = vunpack.c.l.b16 %v3545
    %v3849 = vunpack.c.h.b16 %v3545
    %v3850 = vunpack.c.l.b16 %v3546
    %v3851 = vunpack.c.h.b16 %v3546
    %v3852 = vunpack.c.l.b16 %v3547
    %v3853 = vunpack.c.h.b16 %v3547
    %v3854 = vunpack.c.l.b16 %v3548
    %v3855 = vunpack.c.h.b16 %v3548
    %v3856 = vunpack.c.l.b16 %v3549
    %v3857 = vunpack.c.h.b16 %v3549
    %v3858 = vunpack.c.l.b16 %v3550
    %v3859 = vunpack.c.h.b16 %v3550
    %v3860 = vunpack.c.l.b16 %v3551
    %v3861 = vunpack.c.h.b16 %v3551
    %v3862 = vunpack.c.l.b16 %v3552
    %v3863 = vunpack.c.h.b16 %v3552
    %v3864 = vunpack.c.l.b16 %v3553
    %v3865 = vunpack.c.h.b16 %v3553
    %v3866 = vunpack.c.l.b16 %v3554
    %v3867 = vunpack.c.h.b16 %v3554
    %v3868 = vunpack.c.l.b16 %v3555
    %v3869 = vunpack.c.h.b16 %v3555
    %v3870 = vunpack.c.l.b16 %v3556
    %v3871 = vunpack.c.h.b16 %v3556
    %v3872 = vunpack.c.l.b16 %v3557
    %v3873 = vunpack.c.h.b16 %v3557
    %v3874 = vunpack.c.l.b16 %v3558
    %v3875 = vunpack.c.h.b16 %v3558
    %v3876 = vunpack.c.l.b16 %v3559
    %v3877 = vunpack.c.h.b16 %v3559
    %v3878 = vunpack.c.l.b16 %v3560
    %v3879 = vunpack.c.h.b16 %v3560
    %v3880 = vunpack.c.l.b16 %v3561
    %v3881 = vunpack.c.h.b16 %v3561
    %v3882 = vpack.c.b16 %v3696, %v3690
    %v3883 = vpack.c.b16 %v3697, %v3691
    %v3884 = vpack.c.b16 %v3698, %v3692
    %v3885 = vpack.c.b16 %v3699, %v3693
    %v3886 = vpack.c.b16 %v3700, %v3694
    %v3887 = vpack.c.b16 %v3701, %v3695
    %v3888 = vpack.c.b16 %v3708, %v3702
    %v3889 = vpack.c.b16 %v3709, %v3703
    %v3890 = vpack.c.b16 %v3710, %v3704
    %v3891 = vpack.c.b16 %v3711, %v3705
    %v3892 = vpack.c.b16 %v3712, %v3706
    %v3893 = vpack.c.b16 %v3713, %v3707
    %v3894 = vpack.c.b16 %v3720, %v3714
    %v3895 = vpack.c.b16 %v3721, %v3715
    %v3896 = vpack.c.b16 %v3722, %v3716
    %v3897 = vpack.c.b16 %v3723, %v3717
    %v3898 = vpack.c.b16 %v3724, %v3718
    %v3899 = vpack.c.b16 %v3725, %v3719
    %v3900 = vpack.c.b16 %v3732, %v3726
    %v3901 = vpack.c.b16 %v3733, %v3727
    %v3902 = vpack.c.b16 %v3734, %v3728
    %v3903 = vpack.c.b16 %v3735, %v3729
    %v3904 = vpack.c.b16 %v3736, %v3730
    %v3905 = vpack.c.b16 %v3737, %v3731
    %v3906 = vpack.c.b16 %v3744, %v3738
    %v3907 = vpack.c.b16 %v3745, %v3739
    %v3908 = vpack.c.b16 %v3746, %v3740
    %v3909 = vpack.c.b16 %v3747, %v3741
    %v3910 = vpack.c.b16 %v3748, %v3742
    %v3911 = vpack.c.b16 %v3749, %v3743
    %v3912 = vpack.c.b16 %v3756, %v3750
    %v3913 = vpack.c.b16 %v3757, %v3751
    %v3914 = vpack.c.b16 %v3758, %v3752
    %v3915 = vpack.c.b16 %v3759, %v3753
    %v3916 = vpack.c.b16 %v3760, %v3754
    %v3917 = vpack.c.b16 %v3761, %v3755
    %v3918 = vpack.c.b16 %v3768, %v3762
    %v3919 = vpack.c.b16 %v3769, %v3763
    %v3920 = vpack.c.b16 %v3770, %v3764
    %v3921 = vpack.c.b16 %v3771, %v3765
    %v3922 = vpack.c.b16 %v3772, %v3766
    %v3923 = vpack.c.b16 %v3773, %v3767
    %v3924 = vpack.c.b16 %v3780, %v3774
    %v3925 = vpack.c.b16 %v3781, %v3775
    %v3926 = vpack.c.b16 %v3782, %v3776
    %v3927 = vpack.c.b16 %v3783, %v3777
    %v3928 = vpack.c.b16 %v3784, %v3778
    %v3929 = vpack.c.b16 %v3785, %v3779
    %v3930 = vpack.c.b16 %v3792, %v3786
    %v3931 = vpack.c.b16 %v3793, %v3787
    %v3932 = vpack.c.b16 %v3794, %v3788
    %v3933 = vpack.c.b16 %v3795, %v3789
    %v3934 = vpack.c.b16 %v3796, %v3790
    %v3935 = vpack.c.b16 %v3797, %v3791
    %v3936 = vpack.c.b16 %v3804, %v3798
    %v3937 = vpack.c.b16 %v3805, %v3799
    %v3938 = vpack.c.b16 %v3806, %v3800
    %v3939 = vpack.c.b16 %v3807, %v3801
    %v3940 = vpack.c.b16 %v3808, %v3802
    %v3941 = vpack.c.b16 %v3809, %v3803
    %v3942 = vpack.c.b16 %v3816, %v3810
    %v3943 = vpack.c.b16 %v3817, %v3811
    %v3944 = vpack.c.b16 %v3818, %v3812
    %v3945 = vpack.c.b16 %v3819, %v3813
    %v3946 = vpack.c.b16 %v3820, %v3814
    %v3947 = vpack.c.b16 %v3821, %v3815
    %v3948 = vpack.c.b16 %v3828, %v3822
    %v3949 = vpack.c.b16 %v3829, %v3823
    %v3950 = vpack.c.b16 %v3830, %v3824
    %v3951 = vpack.c.b16 %v3831, %v3825
    %v3952 = vpack.c.b16 %v3832, %v3826
    %v3953 = vpack.c.b16 %v3833, %v3827
    %v3954 = vpack.c.b16 %v3840, %v3834
    %v3955 = vpack.c.b16 %v3841, %v3835
    %v3956 = vpack.c.b16 %v3842, %v3836
    %v3957 = vpack.c.b16 %v3843, %v3837
    %v3958 = vpack.c.b16 %v3844, %v3838
    %v3959 = vpack.c.b16 %v3845, %v3839
    %v3960 = vpack.c.b16 %v3852, %v3846
    %v3961 = vpack.c.b16 %v3853, %v3847
    %v3962 = vpack.c.b16 %v3854, %v3848
    %v3963 = vpack.c.b16 %v3855, %v3849
    %v3964 = vpack.c.b16 %v3856, %v3850
    %v3965 = vpack.c.b16 %v3857, %v3851
    %v3966 = vpack.c.b16 %v3864, %v3858
    %v3967 = vpack.c.b16 %v3865, %v3859
    %v3968 = vpack.c.b16 %v3866, %v3860
    %v3969 = vpack.c.b16 %v3867, %v3861
    %v3970 = vpack.c.b16 %v3868, %v3862
    %v3971 = vpack.c.b16 %v3869, %v3863
    %v3972 = vpack.c.b16 %v3876, %v3870
    %v3973 = vpack.c.b16 %v3877, %v3871
    %v3974 = vpack.c.b16 %v3878, %v3872
    %v3975 = vpack.c.b16 %v3879, %v3873
    %v3976 = vpack.c.b16 %v3880, %v3874
    %v3977 = vpack.c.b16 %v3881, %v3875
    %4074 = vmatprep.subr.bf16.mxu0 %v3883
    %4075 = vmatpush1.bf16.msra.mxu0 %v3882
    %4076 = vmatprep.subr.bf16.mxu0 %v3889
    %4077 = vmatpush1.bf16.msra.mxu0 %v3888
    %4078 = vmatprep.subr.bf16.mxu0 %v3895
    %4079 = vmatpush1.bf16.msra.mxu0 %v3894
    %4080 = vmatprep.subr.bf16.mxu0 %v3901
    %4081 = vmatpush1.bf16.msra.mxu0 %v3900
    %4082 = vmatprep.subr.bf16.mxu0 %v3907
    %4083 = vmatpush1.bf16.msra.mxu0 %v3906
    %4084 = vmatprep.subr.bf16.mxu0 %v3913
    %4085 = vmatpush1.bf16.msra.mxu0 %v3912
    %4086 = vmatprep.subr.bf16.mxu0 %v3919
    %4087 = vmatpush1.bf16.msra.mxu0 %v3918
    %4088 = vmatprep.subr.bf16.mxu0 %v3925
    %4089 = vmatpush1.bf16.msra.mxu0 %v3924
    %4090 = vmatprep.subr.bf16.mxu0 %v3931
    %4091 = vmatpush1.bf16.msra.mxu0 %v3930
    %4092 = vmatprep.subr.bf16.mxu0 %v3937
    %4093 = vmatpush1.bf16.msra.mxu0 %v3936
    %4094 = vmatprep.subr.bf16.mxu0 %v3943
    %4095 = vmatpush1.bf16.msra.mxu0 %v3942
    %4096 = vmatprep.subr.bf16.mxu0 %v3949
    %4097 = vmatpush1.bf16.msra.mxu0 %v3948
    %4098 = vmatprep.subr.bf16.mxu0 %v3955
    %4099 = vmatpush1.bf16.msra.mxu0 %v3954
    %4100 = vmatprep.subr.bf16.mxu0 %v3961
    %4101 = vmatpush1.bf16.msra.mxu0 %v3960
    %4102 = vmatprep.subr.bf16.mxu0 %v3967
    %4103 = vmatpush1.bf16.msra.mxu0 %v3966
    %4104 = vmatprep.subr.bf16.mxu0 %v3973
    %4105 = vmatpush1.bf16.msra.mxu0 %v3972
    %4106 = vmatprep.mubr.bf16.mxu0 %v3463
    %4107 = vmatmul.mubr.bf16.gmra.mrb[0].mxu0 %v3462
    %v4108 = vpop.f32.mrb[0].mxu0
    %v4109 = vadd.f32 %v3567, %v4108
    %v4110 = vpop.f32.mrb[0].mxu0
    %v4111 = vadd.f32 %v3571, %v4110
    %v4112 = vpop.f32.mrb[0].mxu0
    %v4113 = vadd.f32 %v3567, %v4112
    %v4114 = vpop.f32.mrb[0].mxu0
    %v4115 = vadd.f32 %v3571, %v4114
    %4116 = vmatprep.mubr.bf16.mxu0 %v3465
    %4117 = vmatmul.mubr.bf16.gmra.mrb[0].mxu0 %v3464
    %v4118 = vpop.f32.mrb[0].mxu0
    %v4119 = vadd.f32 %v3567, %v4118
    %v4120 = vpop.f32.mrb[0].mxu0
    %v4121 = vadd.f32 %v3571, %v4120
    %v4122 = vpop.f32.mrb[0].mxu0
    %v4123 = vadd.f32 %v3567, %v4122
    %v4124 = vpop.f32.mrb[0].mxu0
    %v4125 = vadd.f32 %v3571, %v4124
    %4126 = vdwg.mxu0
    %4127 = vmatprep.subr.bf16.mxu0 %v3885
    %4128 = vmatpush1.bf16.msra.mxu0 %v3884
    %4129 = vmatprep.subr.bf16.mxu0 %v3891
    %4130 = vmatpush1.bf16.msra.mxu0 %v3890
    %4131 = vmatprep.subr.bf16.mxu0 %v3897
    %4132 = vmatpush1.bf16.msra.mxu0 %v3896
    %4133 = vmatprep.subr.bf16.mxu0 %v3903
    %4134 = vmatpush1.bf16.msra.mxu0 %v3902
    %4135 = vmatprep.subr.bf16.mxu0 %v3909
    %4136 = vmatpush1.bf16.msra.mxu0 %v3908
    %4137 = vmatprep.subr.bf16.mxu0 %v3915
    %4138 = vmatpush1.bf16.msra.mxu0 %v3914
    %4139 = vmatprep.subr.bf16.mxu0 %v3921
    %4140 = vmatpush1.bf16.msra.mxu0 %v3920
    %4141 = vmatprep.subr.bf16.mxu0 %v3927
    %4142 = vmatpush1.bf16.msra.mxu0 %v3926
    %4143 = vmatprep.subr.bf16.mxu0 %v3933
    %4144 = vmatpush1.bf16.msra.mxu0 %v3932
    %4145 = vmatprep.subr.bf16.mxu0 %v3939
    %4146 = vmatpush1.bf16.msra.mxu0 %v3938
    %4147 = vmatprep.subr.bf16.mxu0 %v3945
    %4148 = vmatpush1.bf16.msra.mxu0 %v3944
    %4149 = vmatprep.subr.bf16.mxu0 %v3951
    %4150 = vmatpush1.bf16.msra.mxu0 %v3950
    %4151 = vmatprep.subr.bf16.mxu0 %v3957
    %4152 = vmatpush1.bf16.msra.mxu0 %v3956
    %4153 = vmatprep.subr.bf16.mxu0 %v3963
    %4154 = vmatpush1.bf16.msra.mxu0 %v3962
    %4155 = vmatprep.subr.bf16.mxu0 %v3969
    %4156 = vmatpush1.bf16.msra.mxu0 %v3968
    %4157 = vmatprep.subr.bf16.mxu0 %v3975
    %4158 = vmatpush1.bf16.msra.mxu0 %v3974
    %4159 = vmatprep.mubr.bf16.mxu0 %v3463
    %4160 = vmatmul.mubr.bf16.gmra.mrb[0].mxu0 %v3462
    %v4161 = vpop.f32.mrb[0].mxu0
    %v4162 = vadd.f32 %v3575, %v4161
    %v4163 = vpop.f32.mrb[0].mxu0
    %v4164 = vadd.f32 %v3579, %v4163
    %v4165 = vpop.f32.mrb[0].mxu0
    %v4166 = vadd.f32 %v3575, %v4165
    %v4167 = vpop.f32.mrb[0].mxu0
    %v4168 = vadd.f32 %v3579, %v4167
    %4169 = vmatprep.mubr.bf16.mxu0 %v3465
    %4170 = vmatmul.mubr.bf16.gmra.mrb[0].mxu0 %v3464
    %v4171 = vpop.f32.mrb[0].mxu0
    %v4172 = vadd.f32 %v3575, %v4171
    %v4173 = vpop.f32.mrb[0].mxu0
    %v4174 = vadd.f32 %v3579, %v4173
    %v4175 = vpop.f32.mrb[0].mxu0
    %v4176 = vadd.f32 %v3575, %v4175
    %v4177 = vpop.f32.mrb[0].mxu0
    %v4178 = vadd.f32 %v3579, %v4177
    %4179 = vdwg.mxu0
    %4180 = vmatprep.subr.bf16.mxu0 %v3887
    %4181 = vmatpush1.bf16.msra.mxu0 %v3886
    %4182 = vmatprep.subr.bf16.mxu0 %v3893
    %4183 = vmatpush1.bf16.msra.mxu0 %v3892
    %4184 = vmatprep.subr.bf16.mxu0 %v3899
    %4185 = vmatpush1.bf16.msra.mxu0 %v3898
    %4186 = vmatprep.subr.bf16.mxu0 %v3905
    %4187 = vmatpush1.bf16.msra.mxu0 %v3904
    %4188 = vmatprep.subr.bf16.mxu0 %v3911
    %4189 = vmatpush1.bf16.msra.mxu0 %v3910
    %4190 = vmatprep.subr.bf16.mxu0 %v3917
    %4191 = vmatpush1.bf16.msra.mxu0 %v3916
    %4192 = vmatprep.subr.bf16.mxu0 %v3923
    %4193 = vmatpush1.bf16.msra.mxu0 %v3922
    %4194 = vmatprep.subr.bf16.mxu0 %v3929
    %4195 = vmatpush1.bf16.msra.mxu0 %v3928
    %4196 = vmatprep.subr.bf16.mxu0 %v3935
    %4197 = vmatpush1.bf16.msra.mxu0 %v3934
    %4198 = vmatprep.subr.bf16.mxu0 %v3941
    %4199 = vmatpush1.bf16.msra.mxu0 %v3940
    %4200 = vmatprep.subr.bf16.mxu0 %v3947
    %4201 = vmatpush1.bf16.msra.mxu0 %v3946
    %4202 = vmatprep.subr.bf16.mxu0 %v3953
    %4203 = vmatpush1.bf16.msra.mxu0 %v3952
    %4204 = vmatprep.subr.bf16.mxu0 %v3959
    %4205 = vmatpush1.bf16.msra.mxu0 %v3958
    %4206 = vmatprep.subr.bf16.mxu0 %v3965
    %4207 = vmatpush1.bf16.msra.mxu0 %v3964
    %4208 = vmatprep.subr.bf16.mxu0 %v3971
    %4209 = vmatpush1.bf16.msra.mxu0 %v3970
    %4210 = vmatprep.subr.bf16.mxu0 %v3977
    %4211 = vmatpush1.bf16.msra.mxu0 %v3976
    %4212 = vmatprep.mubr.bf16.mxu0 %v3463
    %4213 = vmatmul.mubr.bf16.gmra.mrb[0].mxu0 %v3462
    %v4214 = vpop.f32.mrb[0].mxu0
    %v4215 = vadd.f32 %v3583, %v4214
    %v4216 = vpop.f32.mrb[0].mxu0
    %v4217 = vadd.f32 %v3587, %v4216
    %v4218 = vpop.f32.mrb[0].mxu0
    %v4219 = vadd.f32 %v3583, %v4218
    %v4220 = vpop.f32.mrb[0].mxu0
    %v4221 = vadd.f32 %v3587, %v4220
    %4222 = vmatprep.mubr.bf16.mxu0 %v3465
    %4223 = vmatmul.mubr.bf16.gmra.mrb[0].mxu0 %v3464
    %v4224 = vpop.f32.mrb[0].mxu0
    %v4225 = vadd.f32 %v3583, %v4224
    %v4226 = vpop.f32.mrb[0].mxu0
    %v4227 = vadd.f32 %v3587, %v4226
    %v4228 = vpop.f32.mrb[0].mxu0
    %v4229 = vadd.f32 %v3583, %v4228
    %v4230 = vpop.f32.mrb[0].mxu0
    %v4231 = vadd.f32 %v3587, %v4230
    %4232 = vdwg.mxu0
    %v4233 = vpack.c.bf16 %v4113, %v4109
    %v4234 = vpack.c.bf16 %v4123, %v4119
    %v4235 = vpack.c.bf16 %v4166, %v4162
    %v4236 = vpack.c.bf16 %v4176, %v4172
    %vm4237 = vcmask 261120
    %v4239 = vsel %vm4237, %v4233, 0
    %v4242 = vsel %vm4237, %v4235, 0
    %4244 = vmatprep.subr.bf16.mxu0 0
    %4245 = vmatpush1.bf16.xpose.msra.mxu0 %v4242
    %4246 = vmatprep.subr.bf16.mxu0 0
    %4247 = vmatpush1.bf16.xpose.msra.mxu0 0
    %4248 = vmatprep.subr.bf16.mxu0 0
    %4249 = vmatpush1.bf16.xpose.msra.mxu0 0
    %4250 = vmatprep.subr.bf16.mxu0 0
    %4251 = vmatpush1.bf16.xpose.msra.mxu0 0
    %4252 = vmatprep.subr.bf16.mxu0 0
    %4253 = vmatpush1.bf16.xpose.msra.mxu0 0
    %4254 = vmatprep.subr.bf16.mxu0 0
    %4255 = vmatpush1.bf16.xpose.msra.mxu0 0
    %4256 = vmatprep.subr.bf16.mxu0 0
    %4257 = vmatpush1.bf16.xpose.msra.mxu0 0
    %4258 = vmatprep.subr.bf16.mxu0 0
    %4259 = vmatpush1.bf16.xpose.msra.mxu0 0
    %4260 = vmatprep.subr.bf16.mxu0 0
    %4261 = vmatpush1.bf16.xpose.msra.mxu0 0
    %4262 = vmatprep.subr.bf16.mxu0 0
    %4263 = vmatpush1.bf16.xpose.msra.mxu0 0
    %4264 = vmatprep.subr.bf16.mxu0 0
    %4265 = vmatpush1.bf16.xpose.msra.mxu0 0
    %4266 = vmatprep.subr.bf16.mxu0 0
    %4267 = vmatpush1.bf16.xpose.msra.mxu0 0
    %4268 = vmatprep.subr.bf16.mxu0 0
    %4269 = vmatpush1.bf16.xpose.msra.mxu0 0
    %4270 = vmatprep.subr.bf16.mxu0 0
    %4271 = vmatpush1.bf16.xpose.msra.mxu0 0
    %4272 = vmatprep.subr.bf16.mxu0 0
    %4273 = vmatpush1.bf16.xpose.msra.mxu0 0
    %4274 = vmatprep.subr.bf16.mxu0 0
    %4275 = vmatpush1.bf16.xpose.msra.mxu0 0
    %4276 = vmatprep.mubr.bf16.mxu0 0
    %4277 = vmatmul.mubr.bf16.gmra.mrb[0].mxu0 %v4239
    %v4278 = vpop.f32.mrb[0].mxu0
    %v4279 = vadd.f32 0.0, %v4278
    %v4280 = vpop.f32.mrb[0].mxu0
    %v4281 = vpop.f32.mrb[0].mxu0
    %v4282 = vadd.f32 0.0, %v4281
    %v4283 = vpop.f32.mrb[0].mxu0
    %4284 = vdwg.mxu0
    %v4286 = vsel %vm4237, %v4234, 0
    %v4289 = vsel %vm4237, %v4236, 0
    %4291 = vmatprep.subr.bf16.mxu0 0
    %4292 = vmatpush1.bf16.xpose.msra.mxu0 %v4289
    %4293 = vmatprep.subr.bf16.mxu0 0
    %4294 = vmatpush1.bf16.xpose.msra.mxu0 0
    %4295 = vmatprep.subr.bf16.mxu0 0
    %4296 = vmatpush1.bf16.xpose.msra.mxu0 0
    %4297 = vmatprep.subr.bf16.mxu0 0
    %4298 = vmatpush1.bf16.xpose.msra.mxu0 0
    %4299 = vmatprep.subr.bf16.mxu0 0
    %4300 = vmatpush1.bf16.xpose.msra.mxu0 0
    %4301 = vmatprep.subr.bf16.mxu0 0
    %4302 = vmatpush1.bf16.xpose.msra.mxu0 0
    %4303 = vmatprep.subr.bf16.mxu0 0
    %4304 = vmatpush1.bf16.xpose.msra.mxu0 0
    %4305 = vmatprep.subr.bf16.mxu0 0
    %4306 = vmatpush1.bf16.xpose.msra.mxu0 0
    %4307 = vmatprep.subr.bf16.mxu0 0
    %4308 = vmatpush1.bf16.xpose.msra.mxu0 0
    %4309 = vmatprep.subr.bf16.mxu0 0
    %4310 = vmatpush1.bf16.xpose.msra.mxu0 0
    %4311 = vmatprep.subr.bf16.mxu0 0
    %4312 = vmatpush1.bf16.xpose.msra.mxu0 0
    %4313 = vmatprep.subr.bf16.mxu0 0
    %4314 = vmatpush1.bf16.xpose.msra.mxu0 0
    %4315 = vmatprep.subr.bf16.mxu0 0
    %4316 = vmatpush1.bf16.xpose.msra.mxu0 0
    %4317 = vmatprep.subr.bf16.mxu0 0
    %4318 = vmatpush1.bf16.xpose.msra.mxu0 0
    %4319 = vmatprep.subr.bf16.mxu0 0
    %4320 = vmatpush1.bf16.xpose.msra.mxu0 0
    %4321 = vmatprep.subr.bf16.mxu0 0
    %4322 = vmatpush1.bf16.xpose.msra.mxu0 0
    %4323 = vmatprep.mubr.bf16.mxu0 0
    %4324 = vmatmul.mubr.bf16.gmra.mrb[0].mxu0 %v4286
    %v4325 = vpop.f32.mrb[0].mxu0
    %v4326 = vadd.f32 0.0, %v4325
    %v4327 = vpop.f32.mrb[0].mxu0
    %v4328 = vpop.f32.mrb[0].mxu0
    %v4329 = vadd.f32 0.0, %v4328
    %v4330 = vpop.f32.mrb[0].mxu0
    %4331 = vdwg.mxu0
    %v4332 = vsel %vm660, %v4279, -inf
    %4333 = vmax.xlane.f32.xlu0 %v4332
    %v4334 = vpop.xlane.xlu0 %4333
    %v4335 = vsel %vm660, %v4282, -inf
    %4336 = vmax.xlane.f32.xlu0 %v4335
    %v4337 = vpop.xlane.xlu0 %4336
    %v4338 = vsel %vm660, %v4326, -inf
    %4339 = vmax.xlane.f32.xlu0 %v4338
    %v4340 = vpop.xlane.xlu0 %4339
    %v4341 = vsel %vm660, %v4329, -inf
    %4342 = vmax.xlane.f32.xlu0 %v4341
    %v4343 = vpop.xlane.xlu0 %4342
    %v4344 = vsub.f32 %v4279, %v4334
    %v4345 = vsub.f32 %v4282, %v4337
    %v4346 = vsub.f32 %v4326, %v4340
    %v4347 = vsub.f32 %v4329, %v4343
    %v4348 = vmul.f32 %v4344, 1.442695
    %v4349 = vpow.pop %v4348
    %v4350 = vmul.f32 %v4345, 1.442695
    %v4351 = vpow.pop %v4350
    %v4352 = vmul.f32 %v4346, 1.442695
    %v4353 = vpow.pop %v4352
    %v4354 = vmul.f32 %v4347, 1.442695
    %v4355 = vpow.pop %v4354
    %v4356 = vsel %vm660, %v4349, 0.0
    %4357 = vadd.xlane.f32.xlu0 %v4356
    %v4358 = vpop.xlane.xlu0 %4357
    %v4359 = vsel %vm660, %v4351, 0.0
    %4360 = vadd.xlane.f32.xlu0 %v4359
    %v4361 = vpop.xlane.xlu0 %4360
    %v4362 = vsel %vm660, %v4353, 0.0
    %4363 = vadd.xlane.f32.xlu0 %v4362
    %v4364 = vpop.xlane.xlu0 %4363
    %v4365 = vsel %vm660, %v4355, 0.0
    %4366 = vadd.xlane.f32.xlu0 %v4365
    %v4367 = vpop.xlane.xlu0 %4366
    %v4368 = vrcp.pop %v4358
    %v4369 = vrcp.pop %v4361
    %v4370 = vrcp.pop %v4364
    %v4371 = vrcp.pop %v4367
    %v4372 = vmul.f32 %v4349, %v4368
    %v4373 = vmul.f32 %v4351, %v4369
    %v4374 = vmul.f32 %v4353, %v4370
    %v4375 = vmul.f32 %v4355, %v4371
    %v4376 = vpack.c.bf16 %v4373, %v4372
    %v4377 = vpack.c.bf16 %v4375, %v4374
    %v4378 = vpack.c.bf16 %v4219, %v4215
    %v4379 = vpack.c.bf16 %v4229, %v4225
    %v4381 = vsel %vm660, %v4376, 0
    %4383 = vmatprep.subr.bf16.mxu0 0
    %4384 = vmatpush1.bf16.msra.mxu0 %v4378
    %4385 = vmatprep.subr.bf16.mxu0 0
    %4386 = vmatpush1.bf16.msra.mxu0 0
    %4387 = vmatprep.subr.bf16.mxu0 0
    %4388 = vmatpush1.bf16.msra.mxu0 0
    %4389 = vmatprep.subr.bf16.mxu0 0
    %4390 = vmatpush1.bf16.msra.mxu0 0
    %4391 = vmatprep.subr.bf16.mxu0 0
    %4392 = vmatpush1.bf16.msra.mxu0 0
    %4393 = vmatprep.subr.bf16.mxu0 0
    %4394 = vmatpush1.bf16.msra.mxu0 0
    %4395 = vmatprep.subr.bf16.mxu0 0
    %4396 = vmatpush1.bf16.msra.mxu0 0
    %4397 = vmatprep.subr.bf16.mxu0 0
    %4398 = vmatpush1.bf16.msra.mxu0 0
    %4399 = vmatprep.subr.bf16.mxu0 0
    %4400 = vmatpush1.bf16.msra.mxu0 0
    %4401 = vmatprep.subr.bf16.mxu0 0
    %4402 = vmatpush1.bf16.msra.mxu0 0
    %4403 = vmatprep.subr.bf16.mxu0 0
    %4404 = vmatpush1.bf16.msra.mxu0 0
    %4405 = vmatprep.subr.bf16.mxu0 0
    %4406 = vmatpush1.bf16.msra.mxu0 0
    %4407 = vmatprep.subr.bf16.mxu0 0
    %4408 = vmatpush1.bf16.msra.mxu0 0
    %4409 = vmatprep.subr.bf16.mxu0 0
    %4410 = vmatpush1.bf16.msra.mxu0 0
    %4411 = vmatprep.subr.bf16.mxu0 0
    %4412 = vmatpush1.bf16.msra.mxu0 0
    %4413 = vmatprep.subr.bf16.mxu0 0
    %4414 = vmatpush1.bf16.msra.mxu0 0
    %4415 = vmatprep.mubr.bf16.mxu0 0
    %4416 = vmatmul.mubr.bf16.gmra.mrb[0].mxu0 %v4381
    %v4417 = vpop.f32.mrb[0].mxu0
    %v4418 = vadd.f32 0.0, %v4417
    %v4419 = vpop.f32.mrb[0].mxu0
    %v4420 = vpop.f32.mrb[0].mxu0
    %v4421 = vadd.f32 0.0, %v4420
    %v4422 = vpop.f32.mrb[0].mxu0
    %4423 = vdwg.mxu0
    %v4425 = vsel %vm660, %v4377, 0
    %4427 = vmatprep.subr.bf16.mxu0 0
    %4428 = vmatpush1.bf16.msra.mxu0 %v4379
    %4429 = vmatprep.subr.bf16.mxu0 0
    %4430 = vmatpush1.bf16.msra.mxu0 0
    %4431 = vmatprep.subr.bf16.mxu0 0
    %4432 = vmatpush1.bf16.msra.mxu0 0
    %4433 = vmatprep.subr.bf16.mxu0 0
    %4434 = vmatpush1.bf16.msra.mxu0 0
    %4435 = vmatprep.subr.bf16.mxu0 0
    %4436 = vmatpush1.bf16.msra.mxu0 0
    %4437 = vmatprep.subr.bf16.mxu0 0
    %4438 = vmatpush1.bf16.msra.mxu0 0
    %4439 = vmatprep.subr.bf16.mxu0 0
    %4440 = vmatpush1.bf16.msra.mxu0 0
    %4441 = vmatprep.subr.bf16.mxu0 0
    %4442 = vmatpush1.bf16.msra.mxu0 0
    %4443 = vmatprep.subr.bf16.mxu0 0
    %4444 = vmatpush1.bf16.msra.mxu0 0
    %4445 = vmatprep.subr.bf16.mxu0 0
    %4446 = vmatpush1.bf16.msra.mxu0 0
    %4447 = vmatprep.subr.bf16.mxu0 0
    %4448 = vmatpush1.bf16.msra.mxu0 0
    %4449 = vmatprep.subr.bf16.mxu0 0
    %4450 = vmatpush1.bf16.msra.mxu0 0
    %4451 = vmatprep.subr.bf16.mxu0 0
    %4452 = vmatpush1.bf16.msra.mxu0 0
    %4453 = vmatprep.subr.bf16.mxu0 0
    %4454 = vmatpush1.bf16.msra.mxu0 0
    %4455 = vmatprep.subr.bf16.mxu0 0
    %4456 = vmatpush1.bf16.msra.mxu0 0
    %4457 = vmatprep.subr.bf16.mxu0 0
    %4458 = vmatpush1.bf16.msra.mxu0 0
    %4459 = vmatprep.mubr.bf16.mxu0 0
    %4460 = vmatmul.mubr.bf16.gmra.mrb[0].mxu0 %v4425
    %v4461 = vpop.f32.mrb[0].mxu0
    %v4462 = vadd.f32 0.0, %v4461
    %v4463 = vpop.f32.mrb[0].mxu0
    %v4464 = vpop.f32.mrb[0].mxu0
    %v4465 = vadd.f32 0.0, %v4464
    %v4466 = vpop.f32.mrb[0].mxu0
    %4467 = vdwg.mxu0
    %4468 = vst.msk [vmem:[#allocation3] sm:$0xff] %vm4237, %v4418
    %4469 = vst.msk [vmem:[#allocation3 + $0x10] sm:$0xff] %vm4237, %v4421
    %4470 = vst.msk [vmem:[#allocation3 + $0x20] sm:$0xff] %vm4237, %v4462
    %4471 = vst.msk [vmem:[#allocation3 + $0x30] sm:$0xff] %vm4237, %v4465
    %4473 = vrot.lane.b32.xlu0 %v4233, 96
    %v4474 = vpop.permute.xlu0 %4473
    %4476 = vrot.lane.b32.xlu0 %v4235, 96
    %v4477 = vpop.permute.xlu0 %4476
    %v4479 = vsel %vm4237, %v4474, 0
    %v4482 = vsel %vm4237, %v4477, 0
    %4484 = vmatprep.subr.bf16.mxu0 0
    %4485 = vmatpush1.bf16.xpose.msra.mxu0 %v4482
    %4486 = vmatprep.subr.bf16.mxu0 0
    %4487 = vmatpush1.bf16.xpose.msra.mxu0 0
    %4488 = vmatprep.subr.bf16.mxu0 0
    %4489 = vmatpush1.bf16.xpose.msra.mxu0 0
    %4490 = vmatprep.subr.bf16.mxu0 0
    %4491 = vmatpush1.bf16.xpose.msra.mxu0 0
    %4492 = vmatprep.subr.bf16.mxu0 0
    %4493 = vmatpush1.bf16.xpose.msra.mxu0 0
    %4494 = vmatprep.subr.bf16.mxu0 0
    %4495 = vmatpush1.bf16.xpose.msra.mxu0 0
    %4496 = vmatprep.subr.bf16.mxu0 0
    %4497 = vmatpush1.bf16.xpose.msra.mxu0 0
    %4498 = vmatprep.subr.bf16.mxu0 0
    %4499 = vmatpush1.bf16.xpose.msra.mxu0 0
    %4500 = vmatprep.subr.bf16.mxu0 0
    %4501 = vmatpush1.bf16.xpose.msra.mxu0 0
    %4502 = vmatprep.subr.bf16.mxu0 0
    %4503 = vmatpush1.bf16.xpose.msra.mxu0 0
    %4504 = vmatprep.subr.bf16.mxu0 0
    %4505 = vmatpush1.bf16.xpose.msra.mxu0 0
    %4506 = vmatprep.subr.bf16.mxu0 0
    %4507 = vmatpush1.bf16.xpose.msra.mxu0 0
    %4508 = vmatprep.subr.bf16.mxu0 0
    %4509 = vmatpush1.bf16.xpose.msra.mxu0 0
    %4510 = vmatprep.subr.bf16.mxu0 0
    %4511 = vmatpush1.bf16.xpose.msra.mxu0 0
    %4512 = vmatprep.subr.bf16.mxu0 0
    %4513 = vmatpush1.bf16.xpose.msra.mxu0 0
    %4514 = vmatprep.subr.bf16.mxu0 0
    %4515 = vmatpush1.bf16.xpose.msra.mxu0 0
    %4516 = vmatprep.mubr.bf16.mxu0 0
    %4517 = vmatmul.mubr.bf16.gmra.mrb[0].mxu0 %v4479
    %v4518 = vpop.f32.mrb[0].mxu0
    %v4519 = vadd.f32 0.0, %v4518
    %v4520 = vpop.f32.mrb[0].mxu0
    %v4521 = vpop.f32.mrb[0].mxu0
    %v4522 = vadd.f32 0.0, %v4521
    %v4523 = vpop.f32.mrb[0].mxu0
    %4524 = vdwg.mxu0
    %4526 = vrot.lane.b32.xlu0 %v4234, 96
    %v4527 = vpop.permute.xlu0 %4526
    %4529 = vrot.lane.b32.xlu0 %v4236, 96
    %v4530 = vpop.permute.xlu0 %4529
    %v4532 = vsel %vm4237, %v4527, 0
    %v4535 = vsel %vm4237, %v4530, 0
    %4537 = vmatprep.subr.bf16.mxu0 0
    %4538 = vmatpush1.bf16.xpose.msra.mxu0 %v4535
    %4539 = vmatprep.subr.bf16.mxu0 0
    %4540 = vmatpush1.bf16.xpose.msra.mxu0 0
    %4541 = vmatprep.subr.bf16.mxu0 0
    %4542 = vmatpush1.bf16.xpose.msra.mxu0 0
    %4543 = vmatprep.subr.bf16.mxu0 0
    %4544 = vmatpush1.bf16.xpose.msra.mxu0 0
    %4545 = vmatprep.subr.bf16.mxu0 0
    %4546 = vmatpush1.bf16.xpose.msra.mxu0 0
    %4547 = vmatprep.subr.bf16.mxu0 0
    %4548 = vmatpush1.bf16.xpose.msra.mxu0 0
    %4549 = vmatprep.subr.bf16.mxu0 0
    %4550 = vmatpush1.bf16.xpose.msra.mxu0 0
    %4551 = vmatprep.subr.bf16.mxu0 0
    %4552 = vmatpush1.bf16.xpose.msra.mxu0 0
    %4553 = vmatprep.subr.bf16.mxu0 0
    %4554 = vmatpush1.bf16.xpose.msra.mxu0 0
    %4555 = vmatprep.subr.bf16.mxu0 0
    %4556 = vmatpush1.bf16.xpose.msra.mxu0 0
    %4557 = vmatprep.subr.bf16.mxu0 0
    %4558 = vmatpush1.bf16.xpose.msra.mxu0 0
    %4559 = vmatprep.subr.bf16.mxu0 0
    %4560 = vmatpush1.bf16.xpose.msra.mxu0 0
    %4561 = vmatprep.subr.bf16.mxu0 0
    %4562 = vmatpush1.bf16.xpose.msra.mxu0 0
    %4563 = vmatprep.subr.bf16.mxu0 0
    %4564 = vmatpush1.bf16.xpose.msra.mxu0 0
    %4565 = vmatprep.subr.bf16.mxu0 0
    %4566 = vmatpush1.bf16.xpose.msra.mxu0 0
    %4567 = vmatprep.subr.bf16.mxu0 0
    %4568 = vmatpush1.bf16.xpose.msra.mxu0 0
    %4569 = vmatprep.mubr.bf16.mxu0 0
    %4570 = vmatmul.mubr.bf16.gmra.mrb[0].mxu0 %v4532
    %v4571 = vpop.f32.mrb[0].mxu0
    %v4572 = vadd.f32 0.0, %v4571
    %v4573 = vpop.f32.mrb[0].mxu0
    %v4574 = vpop.f32.mrb[0].mxu0
    %v4575 = vadd.f32 0.0, %v4574
    %v4576 = vpop.f32.mrb[0].mxu0
    %4577 = vdwg.mxu0
    %v4578 = vsel %vm660, %v4519, -inf
    %4579 = vmax.xlane.f32.xlu0 %v4578
    %v4580 = vpop.xlane.xlu0 %4579
    %v4581 = vsel %vm660, %v4522, -inf
    %4582 = vmax.xlane.f32.xlu0 %v4581
    %v4583 = vpop.xlane.xlu0 %4582
    %v4584 = vsel %vm660, %v4572, -inf
    %4585 = vmax.xlane.f32.xlu0 %v4584
    %v4586 = vpop.xlane.xlu0 %4585
    %v4587 = vsel %vm660, %v4575, -inf
    %4588 = vmax.xlane.f32.xlu0 %v4587
    %v4589 = vpop.xlane.xlu0 %4588
    %v4590 = vsub.f32 %v4519, %v4580
    %v4591 = vsub.f32 %v4522, %v4583
    %v4592 = vsub.f32 %v4572, %v4586
    %v4593 = vsub.f32 %v4575, %v4589
    %v4594 = vmul.f32 %v4590, 1.442695
    %v4595 = vpow.pop %v4594
    %v4596 = vmul.f32 %v4591, 1.442695
    %v4597 = vpow.pop %v4596
    %v4598 = vmul.f32 %v4592, 1.442695
    %v4599 = vpow.pop %v4598
    %v4600 = vmul.f32 %v4593, 1.442695
    %v4601 = vpow.pop %v4600
    %v4602 = vsel %vm660, %v4595, 0.0
    %4603 = vadd.xlane.f32.xlu0 %v4602
    %v4604 = vpop.xlane.xlu0 %4603
    %v4605 = vsel %vm660, %v4597, 0.0
    %4606 = vadd.xlane.f32.xlu0 %v4605
    %v4607 = vpop.xlane.xlu0 %4606
    %v4608 = vsel %vm660, %v4599, 0.0
    %4609 = vadd.xlane.f32.xlu0 %v4608
    %v4610 = vpop.xlane.xlu0 %4609
    %v4611 = vsel %vm660, %v4601, 0.0
    %4612 = vadd.xlane.f32.xlu0 %v4611
    %v4613 = vpop.xlane.xlu0 %4612
    %v4614 = vrcp.pop %v4604
    %v4615 = vrcp.pop %v4607
    %v4616 = vrcp.pop %v4610
    %v4617 = vrcp.pop %v4613
    %v4618 = vmul.f32 %v4595, %v4614
    %v4619 = vmul.f32 %v4597, %v4615
    %v4620 = vmul.f32 %v4599, %v4616
    %v4621 = vmul.f32 %v4601, %v4617
    %v4622 = vpack.c.bf16 %v4619, %v4618
    %v4623 = vpack.c.bf16 %v4621, %v4620
    %4625 = vrot.lane.b32.xlu0 %v4378, 96
    %v4626 = vpop.permute.xlu0 %4625
    %v4629 = vsel %vm660, %v4622, 0
    %4631 = vmatprep.subr.bf16.mxu0 0
    %4632 = vmatpush1.bf16.msra.mxu0 %v4626
    %4633 = vmatprep.subr.bf16.mxu0 0
    %4634 = vmatpush1.bf16.msra.mxu0 0
    %4635 = vmatprep.subr.bf16.mxu0 0
    %4636 = vmatpush1.bf16.msra.mxu0 0
    %4637 = vmatprep.subr.bf16.mxu0 0
    %4638 = vmatpush1.bf16.msra.mxu0 0
    %4639 = vmatprep.subr.bf16.mxu0 0
    %4640 = vmatpush1.bf16.msra.mxu0 0
    %4641 = vmatprep.subr.bf16.mxu0 0
    %4642 = vmatpush1.bf16.msra.mxu0 0
    %4643 = vmatprep.subr.bf16.mxu0 0
    %4644 = vmatpush1.bf16.msra.mxu0 0
    %4645 = vmatprep.subr.bf16.mxu0 0
    %4646 = vmatpush1.bf16.msra.mxu0 0
    %4647 = vmatprep.subr.bf16.mxu0 0
    %4648 = vmatpush1.bf16.msra.mxu0 0
    %4649 = vmatprep.subr.bf16.mxu0 0
    %4650 = vmatpush1.bf16.msra.mxu0 0
    %4651 = vmatprep.subr.bf16.mxu0 0
    %4652 = vmatpush1.bf16.msra.mxu0 0
    %4653 = vmatprep.subr.bf16.mxu0 0
    %4654 = vmatpush1.bf16.msra.mxu0 0
    %4655 = vmatprep.subr.bf16.mxu0 0
    %4656 = vmatpush1.bf16.msra.mxu0 0
    %4657 = vmatprep.subr.bf16.mxu0 0
    %4658 = vmatpush1.bf16.msra.mxu0 0
    %4659 = vmatprep.subr.bf16.mxu0 0
    %4660 = vmatpush1.bf16.msra.mxu0 0
    %4661 = vmatprep.subr.bf16.mxu0 0
    %4662 = vmatpush1.bf16.msra.mxu0 0
    %4663 = vmatprep.mubr.bf16.mxu0 0
    %4664 = vmatmul.mubr.bf16.gmra.mrb[0].mxu0 %v4629
    %v4665 = vpop.f32.mrb[0].mxu0
    %v4666 = vadd.f32 0.0, %v4665
    %v4667 = vpop.f32.mrb[0].mxu0
    %v4668 = vpop.f32.mrb[0].mxu0
    %v4669 = vadd.f32 0.0, %v4668
    %v4670 = vpop.f32.mrb[0].mxu0
    %4671 = vdwg.mxu0
    %4673 = vrot.lane.b32.xlu0 %v4379, 96
    %v4674 = vpop.permute.xlu0 %4673
    %v4677 = vsel %vm660, %v4623, 0
    %4679 = vmatprep.subr.bf16.mxu0 0
    %4680 = vmatpush1.bf16.msra.mxu0 %v4674
    %4681 = vmatprep.subr.bf16.mxu0 0
    %4682 = vmatpush1.bf16.msra.mxu0 0
    %4683 = vmatprep.subr.bf16.mxu0 0
    %4684 = vmatpush1.bf16.msra.mxu0 0
    %4685 = vmatprep.subr.bf16.mxu0 0
    %4686 = vmatpush1.bf16.msra.mxu0 0
    %4687 = vmatprep.subr.bf16.mxu0 0
    %4688 = vmatpush1.bf16.msra.mxu0 0
    %4689 = vmatprep.subr.bf16.mxu0 0
    %4690 = vmatpush1.bf16.msra.mxu0 0
    %4691 = vmatprep.subr.bf16.mxu0 0
    %4692 = vmatpush1.bf16.msra.mxu0 0
    %4693 = vmatprep.subr.bf16.mxu0 0
    %4694 = vmatpush1.bf16.msra.mxu0 0
    %4695 = vmatprep.subr.bf16.mxu0 0
    %4696 = vmatpush1.bf16.msra.mxu0 0
    %4697 = vmatprep.subr.bf16.mxu0 0
    %4698 = vmatpush1.bf16.msra.mxu0 0
    %4699 = vmatprep.subr.bf16.mxu0 0
    %4700 = vmatpush1.bf16.msra.mxu0 0
    %4701 = vmatprep.subr.bf16.mxu0 0
    %4702 = vmatpush1.bf16.msra.mxu0 0
    %4703 = vmatprep.subr.bf16.mxu0 0
    %4704 = vmatpush1.bf16.msra.mxu0 0
    %4705 = vmatprep.subr.bf16.mxu0 0
    %4706 = vmatpush1.bf16.msra.mxu0 0
    %4707 = vmatprep.subr.bf16.mxu0 0
    %4708 = vmatpush1.bf16.msra.mxu0 0
    %4709 = vmatprep.subr.bf16.mxu0 0
    %4710 = vmatpush1.bf16.msra.mxu0 0
    %4711 = vmatprep.mubr.bf16.mxu0 0
    %4712 = vmatmul.mubr.bf16.gmra.mrb[0].mxu0 %v4677
    %v4713 = vpop.f32.mrb[0].mxu0
    %v4714 = vadd.f32 0.0, %v4713
    %v4715 = vpop.f32.mrb[0].mxu0
    %v4716 = vpop.f32.mrb[0].mxu0
    %v4717 = vadd.f32 0.0, %v4716
    %v4718 = vpop.f32.mrb[0].mxu0
    %4719 = vdwg.mxu0
    %4724 = vrot.lane.b32.xlu0 %v4666, 32
    %v4725 = vpop.permute.xlu0 %4724
    %4726 = vrot.lane.b32.xlu0 %v4669, 32
    %v4727 = vpop.permute.xlu0 %4726
    %4728 = vrot.lane.b32.xlu0 %v4714, 32
    %v4729 = vpop.permute.xlu0 %4728
    %4730 = vrot.lane.b32.xlu0 %v4717, 32
    %v4731 = vpop.permute.xlu0 %4730
    %vm4736 = vcmask 523520
    %4737 = vst.msk [vmem:[#allocation3] sm:$0xff] %vm4736, %v4725
    %4738 = vst.msk [vmem:[#allocation3 + $0x10] sm:$0xff] %vm4736, %v4727
    %4739 = vst.msk [vmem:[#allocation3 + $0x20] sm:$0xff] %vm4736, %v4729
    %4740 = vst.msk [vmem:[#allocation3 + $0x30] sm:$0xff] %vm4736, %v4731
    %4741 = vrot.lane.b32.xlu0 %v4233, 64
    %v4742 = vpop.permute.xlu0 %4741
    %4743 = vrot.lane.b32.xlu0 %v4235, 64
    %v4744 = vpop.permute.xlu0 %4743
    %v4746 = vsel %vm4237, %v4742, 0
    %v4749 = vsel %vm4237, %v4744, 0
    %4751 = vmatprep.subr.bf16.mxu0 0
    %4752 = vmatpush1.bf16.xpose.msra.mxu0 %v4749
    %4753 = vmatprep.subr.bf16.mxu0 0
    %4754 = vmatpush1.bf16.xpose.msra.mxu0 0
    %4755 = vmatprep.subr.bf16.mxu0 0
    %4756 = vmatpush1.bf16.xpose.msra.mxu0 0
    %4757 = vmatprep.subr.bf16.mxu0 0
    %4758 = vmatpush1.bf16.xpose.msra.mxu0 0
    %4759 = vmatprep.subr.bf16.mxu0 0
    %4760 = vmatpush1.bf16.xpose.msra.mxu0 0
    %4761 = vmatprep.subr.bf16.mxu0 0
    %4762 = vmatpush1.bf16.xpose.msra.mxu0 0
    %4763 = vmatprep.subr.bf16.mxu0 0
    %4764 = vmatpush1.bf16.xpose.msra.mxu0 0
    %4765 = vmatprep.subr.bf16.mxu0 0
    %4766 = vmatpush1.bf16.xpose.msra.mxu0 0
    %4767 = vmatprep.subr.bf16.mxu0 0
    %4768 = vmatpush1.bf16.xpose.msra.mxu0 0
    %4769 = vmatprep.subr.bf16.mxu0 0
    %4770 = vmatpush1.bf16.xpose.msra.mxu0 0
    %4771 = vmatprep.subr.bf16.mxu0 0
    %4772 = vmatpush1.bf16.xpose.msra.mxu0 0
    %4773 = vmatprep.subr.bf16.mxu0 0
    %4774 = vmatpush1.bf16.xpose.msra.mxu0 0
    %4775 = vmatprep.subr.bf16.mxu0 0
    %4776 = vmatpush1.bf16.xpose.msra.mxu0 0
    %4777 = vmatprep.subr.bf16.mxu0 0
    %4778 = vmatpush1.bf16.xpose.msra.mxu0 0
    %4779 = vmatprep.subr.bf16.mxu0 0
    %4780 = vmatpush1.bf16.xpose.msra.mxu0 0
    %4781 = vmatprep.subr.bf16.mxu0 0
    %4782 = vmatpush1.bf16.xpose.msra.mxu0 0
    %4783 = vmatprep.mubr.bf16.mxu0 0
    %4784 = vmatmul.mubr.bf16.gmra.mrb[0].mxu0 %v4746
    %v4785 = vpop.f32.mrb[0].mxu0
    %v4786 = vadd.f32 0.0, %v4785
    %v4787 = vpop.f32.mrb[0].mxu0
    %v4788 = vpop.f32.mrb[0].mxu0
    %v4789 = vadd.f32 0.0, %v4788
    %v4790 = vpop.f32.mrb[0].mxu0
    %4791 = vdwg.mxu0
    %4792 = vrot.lane.b32.xlu0 %v4234, 64
    %v4793 = vpop.permute.xlu0 %4792
    %4794 = vrot.lane.b32.xlu0 %v4236, 64
    %v4795 = vpop.permute.xlu0 %4794
    %v4797 = vsel %vm4237, %v4793, 0
    %v4800 = vsel %vm4237, %v4795, 0
    %4802 = vmatprep.subr.bf16.mxu0 0
    %4803 = vmatpush1.bf16.xpose.msra.mxu0 %v4800
    %4804 = vmatprep.subr.bf16.mxu0 0
    %4805 = vmatpush1.bf16.xpose.msra.mxu0 0
    %4806 = vmatprep.subr.bf16.mxu0 0
    %4807 = vmatpush1.bf16.xpose.msra.mxu0 0
    %4808 = vmatprep.subr.bf16.mxu0 0
    %4809 = vmatpush1.bf16.xpose.msra.mxu0 0
    %4810 = vmatprep.subr.bf16.mxu0 0
    %4811 = vmatpush1.bf16.xpose.msra.mxu0 0
    %4812 = vmatprep.subr.bf16.mxu0 0
    %4813 = vmatpush1.bf16.xpose.msra.mxu0 0
    %4814 = vmatprep.subr.bf16.mxu0 0
    %4815 = vmatpush1.bf16.xpose.msra.mxu0 0
    %4816 = vmatprep.subr.bf16.mxu0 0
    %4817 = vmatpush1.bf16.xpose.msra.mxu0 0
    %4818 = vmatprep.subr.bf16.mxu0 0
    %4819 = vmatpush1.bf16.xpose.msra.mxu0 0
    %4820 = vmatprep.subr.bf16.mxu0 0
    %4821 = vmatpush1.bf16.xpose.msra.mxu0 0
    %4822 = vmatprep.subr.bf16.mxu0 0
    %4823 = vmatpush1.bf16.xpose.msra.mxu0 0
    %4824 = vmatprep.subr.bf16.mxu0 0
    %4825 = vmatpush1.bf16.xpose.msra.mxu0 0
    %4826 = vmatprep.subr.bf16.mxu0 0
    %4827 = vmatpush1.bf16.xpose.msra.mxu0 0
    %4828 = vmatprep.subr.bf16.mxu0 0
    %4829 = vmatpush1.bf16.xpose.msra.mxu0 0
    %4830 = vmatprep.subr.bf16.mxu0 0
    %4831 = vmatpush1.bf16.xpose.msra.mxu0 0
    %4832 = vmatprep.subr.bf16.mxu0 0
    %4833 = vmatpush1.bf16.xpose.msra.mxu0 0
    %4834 = vmatprep.mubr.bf16.mxu0 0
    %4835 = vmatmul.mubr.bf16.gmra.mrb[0].mxu0 %v4797
    %v4836 = vpop.f32.mrb[0].mxu0
    %v4837 = vadd.f32 0.0, %v4836
    %v4838 = vpop.f32.mrb[0].mxu0
    %v4839 = vpop.f32.mrb[0].mxu0
    %v4840 = vadd.f32 0.0, %v4839
    %v4841 = vpop.f32.mrb[0].mxu0
    %4842 = vdwg.mxu0
    %v4843 = vsel %vm660, %v4786, -inf
    %4844 = vmax.xlane.f32.xlu0 %v4843
    %v4845 = vpop.xlane.xlu0 %4844
    %v4846 = vsel %vm660, %v4789, -inf
    %4847 = vmax.xlane.f32.xlu0 %v4846
    %v4848 = vpop.xlane.xlu0 %4847
    %v4849 = vsel %vm660, %v4837, -inf
    %4850 = vmax.xlane.f32.xlu0 %v4849
    %v4851 = vpop.xlane.xlu0 %4850
    %v4852 = vsel %vm660, %v4840, -inf
    %4853 = vmax.xlane.f32.xlu0 %v4852
    %v4854 = vpop.xlane.xlu0 %4853
    %v4855 = vsub.f32 %v4786, %v4845
    %v4856 = vsub.f32 %v4789, %v4848
    %v4857 = vsub.f32 %v4837, %v4851
    %v4858 = vsub.f32 %v4840, %v4854
    %v4859 = vmul.f32 %v4855, 1.442695
    %v4860 = vpow.pop %v4859
    %v4861 = vmul.f32 %v4856, 1.442695
    %v4862 = vpow.pop %v4861
    %v4863 = vmul.f32 %v4857, 1.442695
    %v4864 = vpow.pop %v4863
    %v4865 = vmul.f32 %v4858, 1.442695
    %v4866 = vpow.pop %v4865
    %v4867 = vsel %vm660, %v4860, 0.0
    %4868 = vadd.xlane.f32.xlu0 %v4867
    %v4869 = vpop.xlane.xlu0 %4868
    %v4870 = vsel %vm660, %v4862, 0.0
    %4871 = vadd.xlane.f32.xlu0 %v4870
    %v4872 = vpop.xlane.xlu0 %4871
    %v4873 = vsel %vm660, %v4864, 0.0
    %4874 = vadd.xlane.f32.xlu0 %v4873
    %v4875 = vpop.xlane.xlu0 %4874
    %v4876 = vsel %vm660, %v4866, 0.0
    %4877 = vadd.xlane.f32.xlu0 %v4876
    %v4878 = vpop.xlane.xlu0 %4877
    %v4879 = vrcp.pop %v4869
    %v4880 = vrcp.pop %v4872
    %v4881 = vrcp.pop %v4875
    %v4882 = vrcp.pop %v4878
    %v4883 = vmul.f32 %v4860, %v4879
    %v4884 = vmul.f32 %v4862, %v4880
    %v4885 = vmul.f32 %v4864, %v4881
    %v4886 = vmul.f32 %v4866, %v4882
    %v4887 = vpack.c.bf16 %v4884, %v4883
    %v4888 = vpack.c.bf16 %v4886, %v4885
    %4889 = vrot.lane.b32.xlu0 %v4378, 64
    %v4890 = vpop.permute.xlu0 %4889
    %v4893 = vsel %vm660, %v4887, 0
    %4895 = vmatprep.subr.bf16.mxu0 0
    %4896 = vmatpush1.bf16.msra.mxu0 %v4890
    %4897 = vmatprep.subr.bf16.mxu0 0
    %4898 = vmatpush1.bf16.msra.mxu0 0
    %4899 = vmatprep.subr.bf16.mxu0 0
    %4900 = vmatpush1.bf16.msra.mxu0 0
    %4901 = vmatprep.subr.bf16.mxu0 0
    %4902 = vmatpush1.bf16.msra.mxu0 0
    %4903 = vmatprep.subr.bf16.mxu0 0
    %4904 = vmatpush1.bf16.msra.mxu0 0
    %4905 = vmatprep.subr.bf16.mxu0 0
    %4906 = vmatpush1.bf16.msra.mxu0 0
    %4907 = vmatprep.subr.bf16.mxu0 0
    %4908 = vmatpush1.bf16.msra.mxu0 0
    %4909 = vmatprep.subr.bf16.mxu0 0
    %4910 = vmatpush1.bf16.msra.mxu0 0
    %4911 = vmatprep.subr.bf16.mxu0 0
    %4912 = vmatpush1.bf16.msra.mxu0 0
    %4913 = vmatprep.subr.bf16.mxu0 0
    %4914 = vmatpush1.bf16.msra.mxu0 0
    %4915 = vmatprep.subr.bf16.mxu0 0
    %4916 = vmatpush1.bf16.msra.mxu0 0
    %4917 = vmatprep.subr.bf16.mxu0 0
    %4918 = vmatpush1.bf16.msra.mxu0 0
    %4919 = vmatprep.subr.bf16.mxu0 0
    %4920 = vmatpush1.bf16.msra.mxu0 0
    %4921 = vmatprep.subr.bf16.mxu0 0
    %4922 = vmatpush1.bf16.msra.mxu0 0
    %4923 = vmatprep.subr.bf16.mxu0 0
    %4924 = vmatpush1.bf16.msra.mxu0 0
    %4925 = vmatprep.subr.bf16.mxu0 0
    %4926 = vmatpush1.bf16.msra.mxu0 0
    %4927 = vmatprep.mubr.bf16.mxu0 0
    %4928 = vmatmul.mubr.bf16.gmra.mrb[0].mxu0 %v4893
    %v4929 = vpop.f32.mrb[0].mxu0
    %v4930 = vadd.f32 0.0, %v4929
    %v4931 = vpop.f32.mrb[0].mxu0
    %v4932 = vpop.f32.mrb[0].mxu0
    %v4933 = vadd.f32 0.0, %v4932
    %v4934 = vpop.f32.mrb[0].mxu0
    %4935 = vdwg.mxu0
    %4936 = vrot.lane.b32.xlu0 %v4379, 64
    %v4937 = vpop.permute.xlu0 %4936
    %v4940 = vsel %vm660, %v4888, 0
    %4942 = vmatprep.subr.bf16.mxu0 0
    %4943 = vmatpush1.bf16.msra.mxu0 %v4937
    %4944 = vmatprep.subr.bf16.mxu0 0
    %4945 = vmatpush1.bf16.msra.mxu0 0
    %4946 = vmatprep.subr.bf16.mxu0 0
    %4947 = vmatpush1.bf16.msra.mxu0 0
    %4948 = vmatprep.subr.bf16.mxu0 0
    %4949 = vmatpush1.bf16.msra.mxu0 0
    %4950 = vmatprep.subr.bf16.mxu0 0
    %4951 = vmatpush1.bf16.msra.mxu0 0
    %4952 = vmatprep.subr.bf16.mxu0 0
    %4953 = vmatpush1.bf16.msra.mxu0 0
    %4954 = vmatprep.subr.bf16.mxu0 0
    %4955 = vmatpush1.bf16.msra.mxu0 0
    %4956 = vmatprep.subr.bf16.mxu0 0
    %4957 = vmatpush1.bf16.msra.mxu0 0
    %4958 = vmatprep.subr.bf16.mxu0 0
    %4959 = vmatpush1.bf16.msra.mxu0 0
    %4960 = vmatprep.subr.bf16.mxu0 0
    %4961 = vmatpush1.bf16.msra.mxu0 0
    %4962 = vmatprep.subr.bf16.mxu0 0
    %4963 = vmatpush1.bf16.msra.mxu0 0
    %4964 = vmatprep.subr.bf16.mxu0 0
    %4965 = vmatpush1.bf16.msra.mxu0 0
    %4966 = vmatprep.subr.bf16.mxu0 0
    %4967 = vmatpush1.bf16.msra.mxu0 0
    %4968 = vmatprep.subr.bf16.mxu0 0
    %4969 = vmatpush1.bf16.msra.mxu0 0
    %4970 = vmatprep.subr.bf16.mxu0 0
    %4971 = vmatpush1.bf16.msra.mxu0 0
    %4972 = vmatprep.subr.bf16.mxu0 0
    %4973 = vmatpush1.bf16.msra.mxu0 0
    %4974 = vmatprep.mubr.bf16.mxu0 0
    %4975 = vmatmul.mubr.bf16.gmra.mrb[0].mxu0 %v4940
    %v4976 = vpop.f32.mrb[0].mxu0
    %v4977 = vadd.f32 0.0, %v4976
    %v4978 = vpop.f32.mrb[0].mxu0
    %v4979 = vpop.f32.mrb[0].mxu0
    %v4980 = vadd.f32 0.0, %v4979
    %v4981 = vpop.f32.mrb[0].mxu0
    %4982 = vdwg.mxu0
    %4987 = vrot.lane.b32.xlu0 %v4930, 64
    %v4988 = vpop.permute.xlu0 %4987
    %4989 = vrot.lane.b32.xlu0 %v4933, 64
    %v4990 = vpop.permute.xlu0 %4989
    %4991 = vrot.lane.b32.xlu0 %v4977, 64
    %v4992 = vpop.permute.xlu0 %4991
    %4993 = vrot.lane.b32.xlu0 %v4980, 64
    %v4994 = vpop.permute.xlu0 %4993
    %vm4999 = vcmask 785920
    %5000 = vst.msk [vmem:[#allocation3] sm:$0xff] %vm4999, %v4988
    %5001 = vst.msk [vmem:[#allocation3 + $0x10] sm:$0xff] %vm4999, %v4990
    %5002 = vst.msk [vmem:[#allocation3 + $0x20] sm:$0xff] %vm4999, %v4992
    %5003 = vst.msk [vmem:[#allocation3 + $0x30] sm:$0xff] %vm4999, %v4994
    %5004 = vrot.lane.b32.xlu0 %v4233, 32
    %v5005 = vpop.permute.xlu0 %5004
    %5006 = vrot.lane.b32.xlu0 %v4235, 32
    %v5007 = vpop.permute.xlu0 %5006
    %v5009 = vsel %vm4237, %v5005, 0
    %v5012 = vsel %vm4237, %v5007, 0
    %5014 = vmatprep.subr.bf16.mxu0 0
    %5015 = vmatpush1.bf16.xpose.msra.mxu0 %v5012
    %5016 = vmatprep.subr.bf16.mxu0 0
    %5017 = vmatpush1.bf16.xpose.msra.mxu0 0
    %5018 = vmatprep.subr.bf16.mxu0 0
    %5019 = vmatpush1.bf16.xpose.msra.mxu0 0
    %5020 = vmatprep.subr.bf16.mxu0 0
    %5021 = vmatpush1.bf16.xpose.msra.mxu0 0
    %5022 = vmatprep.subr.bf16.mxu0 0
    %5023 = vmatpush1.bf16.xpose.msra.mxu0 0
    %5024 = vmatprep.subr.bf16.mxu0 0
    %5025 = vmatpush1.bf16.xpose.msra.mxu0 0
    %5026 = vmatprep.subr.bf16.mxu0 0
    %5027 = vmatpush1.bf16.xpose.msra.mxu0 0
    %5028 = vmatprep.subr.bf16.mxu0 0
    %5029 = vmatpush1.bf16.xpose.msra.mxu0 0
    %5030 = vmatprep.subr.bf16.mxu0 0
    %5031 = vmatpush1.bf16.xpose.msra.mxu0 0
    %5032 = vmatprep.subr.bf16.mxu0 0
    %5033 = vmatpush1.bf16.xpose.msra.mxu0 0
    %5034 = vmatprep.subr.bf16.mxu0 0
    %5035 = vmatpush1.bf16.xpose.msra.mxu0 0
    %5036 = vmatprep.subr.bf16.mxu0 0
    %5037 = vmatpush1.bf16.xpose.msra.mxu0 0
    %5038 = vmatprep.subr.bf16.mxu0 0
    %5039 = vmatpush1.bf16.xpose.msra.mxu0 0
    %5040 = vmatprep.subr.bf16.mxu0 0
    %5041 = vmatpush1.bf16.xpose.msra.mxu0 0
    %5042 = vmatprep.subr.bf16.mxu0 0
    %5043 = vmatpush1.bf16.xpose.msra.mxu0 0
    %5044 = vmatprep.subr.bf16.mxu0 0
    %5045 = vmatpush1.bf16.xpose.msra.mxu0 0
    %5046 = vmatprep.mubr.bf16.mxu0 0
    %5047 = vmatmul.mubr.bf16.gmra.mrb[0].mxu0 %v5009
    %v5048 = vpop.f32.mrb[0].mxu0
    %v5049 = vadd.f32 0.0, %v5048
    %v5050 = vpop.f32.mrb[0].mxu0
    %v5051 = vpop.f32.mrb[0].mxu0
    %v5052 = vadd.f32 0.0, %v5051
    %v5053 = vpop.f32.mrb[0].mxu0
    %5054 = vdwg.mxu0
    %5055 = vrot.lane.b32.xlu0 %v4234, 32
    %v5056 = vpop.permute.xlu0 %5055
    %5057 = vrot.lane.b32.xlu0 %v4236, 32
    %v5058 = vpop.permute.xlu0 %5057
    %v5060 = vsel %vm4237, %v5056, 0
    %v5063 = vsel %vm4237, %v5058, 0
    %5065 = vmatprep.subr.bf16.mxu0 0
    %5066 = vmatpush1.bf16.xpose.msra.mxu0 %v5063
    %5067 = vmatprep.subr.bf16.mxu0 0
    %5068 = vmatpush1.bf16.xpose.msra.mxu0 0
    %5069 = vmatprep.subr.bf16.mxu0 0
    %5070 = vmatpush1.bf16.xpose.msra.mxu0 0
    %5071 = vmatprep.subr.bf16.mxu0 0
    %5072 = vmatpush1.bf16.xpose.msra.mxu0 0
    %5073 = vmatprep.subr.bf16.mxu0 0
    %5074 = vmatpush1.bf16.xpose.msra.mxu0 0
    %5075 = vmatprep.subr.bf16.mxu0 0
    %5076 = vmatpush1.bf16.xpose.msra.mxu0 0
    %5077 = vmatprep.subr.bf16.mxu0 0
    %5078 = vmatpush1.bf16.xpose.msra.mxu0 0
    %5079 = vmatprep.subr.bf16.mxu0 0
    %5080 = vmatpush1.bf16.xpose.msra.mxu0 0
    %5081 = vmatprep.subr.bf16.mxu0 0
    %5082 = vmatpush1.bf16.xpose.msra.mxu0 0
    %5083 = vmatprep.subr.bf16.mxu0 0
    %5084 = vmatpush1.bf16.xpose.msra.mxu0 0
    %5085 = vmatprep.subr.bf16.mxu0 0
    %5086 = vmatpush1.bf16.xpose.msra.mxu0 0
    %5087 = vmatprep.subr.bf16.mxu0 0
    %5088 = vmatpush1.bf16.xpose.msra.mxu0 0
    %5089 = vmatprep.subr.bf16.mxu0 0
    %5090 = vmatpush1.bf16.xpose.msra.mxu0 0
    %5091 = vmatprep.subr.bf16.mxu0 0
    %5092 = vmatpush1.bf16.xpose.msra.mxu0 0
    %5093 = vmatprep.subr.bf16.mxu0 0
    %5094 = vmatpush1.bf16.xpose.msra.mxu0 0
    %5095 = vmatprep.subr.bf16.mxu0 0
    %5096 = vmatpush1.bf16.xpose.msra.mxu0 0
    %5097 = vmatprep.mubr.bf16.mxu0 0
    %5098 = vmatmul.mubr.bf16.gmra.mrb[0].mxu0 %v5060
    %v5099 = vpop.f32.mrb[0].mxu0
    %v5100 = vadd.f32 0.0, %v5099
    %v5101 = vpop.f32.mrb[0].mxu0
    %v5102 = vpop.f32.mrb[0].mxu0
    %v5103 = vadd.f32 0.0, %v5102
    %v5104 = vpop.f32.mrb[0].mxu0
    %5105 = vdwg.mxu0
    %v5106 = vsel %vm660, %v5049, -inf
    %5107 = vmax.xlane.f32.xlu0 %v5106
    %v5108 = vpop.xlane.xlu0 %5107
    %v5109 = vsel %vm660, %v5052, -inf
    %5110 = vmax.xlane.f32.xlu0 %v5109
    %v5111 = vpop.xlane.xlu0 %5110
    %v5112 = vsel %vm660, %v5100, -inf
    %5113 = vmax.xlane.f32.xlu0 %v5112
    %v5114 = vpop.xlane.xlu0 %5113
    %v5115 = vsel %vm660, %v5103, -inf
    %5116 = vmax.xlane.f32.xlu0 %v5115
    %v5117 = vpop.xlane.xlu0 %5116
    %v5118 = vsub.f32 %v5049, %v5108
    %v5119 = vsub.f32 %v5052, %v5111
    %v5120 = vsub.f32 %v5100, %v5114
    %v5121 = vsub.f32 %v5103, %v5117
    %v5122 = vmul.f32 %v5118, 1.442695
    %v5123 = vpow.pop %v5122
    %v5124 = vmul.f32 %v5119, 1.442695
    %v5125 = vpow.pop %v5124
    %v5126 = vmul.f32 %v5120, 1.442695
    %v5127 = vpow.pop %v5126
    %v5128 = vmul.f32 %v5121, 1.442695
    %v5129 = vpow.pop %v5128
    %v5130 = vsel %vm660, %v5123, 0.0
    %5131 = vadd.xlane.f32.xlu0 %v5130
    %v5132 = vpop.xlane.xlu0 %5131
    %v5133 = vsel %vm660, %v5125, 0.0
    %5134 = vadd.xlane.f32.xlu0 %v5133
    %v5135 = vpop.xlane.xlu0 %5134
    %v5136 = vsel %vm660, %v5127, 0.0
    %5137 = vadd.xlane.f32.xlu0 %v5136
    %v5138 = vpop.xlane.xlu0 %5137
    %v5139 = vsel %vm660, %v5129, 0.0
    %5140 = vadd.xlane.f32.xlu0 %v5139
    %v5141 = vpop.xlane.xlu0 %5140
    %v5142 = vrcp.pop %v5132
    %v5143 = vrcp.pop %v5135
    %v5144 = vrcp.pop %v5138
    %v5145 = vrcp.pop %v5141
    %v5146 = vmul.f32 %v5123, %v5142
    %v5147 = vmul.f32 %v5125, %v5143
    %v5148 = vmul.f32 %v5127, %v5144
    %v5149 = vmul.f32 %v5129, %v5145
    %v5150 = vpack.c.bf16 %v5147, %v5146
    %v5151 = vpack.c.bf16 %v5149, %v5148
    %5152 = vrot.lane.b32.xlu0 %v4378, 32
    %v5153 = vpop.permute.xlu0 %5152
    %v5156 = vsel %vm660, %v5150, 0
    %5158 = vmatprep.subr.bf16.mxu0 0
    %5159 = vmatpush1.bf16.msra.mxu0 %v5153
    %5160 = vmatprep.subr.bf16.mxu0 0
    %5161 = vmatpush1.bf16.msra.mxu0 0
    %5162 = vmatprep.subr.bf16.mxu0 0
    %5163 = vmatpush1.bf16.msra.mxu0 0
    %5164 = vmatprep.subr.bf16.mxu0 0
    %5165 = vmatpush1.bf16.msra.mxu0 0
    %5166 = vmatprep.subr.bf16.mxu0 0
    %5167 = vmatpush1.bf16.msra.mxu0 0
    %5168 = vmatprep.subr.bf16.mxu0 0
    %5169 = vmatpush1.bf16.msra.mxu0 0
    %5170 = vmatprep.subr.bf16.mxu0 0
    %5171 = vmatpush1.bf16.msra.mxu0 0
    %5172 = vmatprep.subr.bf16.mxu0 0
    %5173 = vmatpush1.bf16.msra.mxu0 0
    %5174 = vmatprep.subr.bf16.mxu0 0
    %5175 = vmatpush1.bf16.msra.mxu0 0
    %5176 = vmatprep.subr.bf16.mxu0 0
    %5177 = vmatpush1.bf16.msra.mxu0 0
    %5178 = vmatprep.subr.bf16.mxu0 0
    %5179 = vmatpush1.bf16.msra.mxu0 0
    %5180 = vmatprep.subr.bf16.mxu0 0
    %5181 = vmatpush1.bf16.msra.mxu0 0
    %5182 = vmatprep.subr.bf16.mxu0 0
    %5183 = vmatpush1.bf16.msra.mxu0 0
    %5184 = vmatprep.subr.bf16.mxu0 0
    %5185 = vmatpush1.bf16.msra.mxu0 0
    %5186 = vmatprep.subr.bf16.mxu0 0
    %5187 = vmatpush1.bf16.msra.mxu0 0
    %5188 = vmatprep.subr.bf16.mxu0 0
    %5189 = vmatpush1.bf16.msra.mxu0 0
    %5190 = vmatprep.mubr.bf16.mxu0 0
    %5191 = vmatmul.mubr.bf16.gmra.mrb[0].mxu0 %v5156
    %v5192 = vpop.f32.mrb[0].mxu0
    %v5193 = vadd.f32 0.0, %v5192
    %v5194 = vpop.f32.mrb[0].mxu0
    %v5195 = vpop.f32.mrb[0].mxu0
    %v5196 = vadd.f32 0.0, %v5195
    %v5197 = vpop.f32.mrb[0].mxu0
    %5198 = vdwg.mxu0
    %5199 = vrot.lane.b32.xlu0 %v4379, 32
    %v5200 = vpop.permute.xlu0 %5199
    %v5203 = vsel %vm660, %v5151, 0
    %5205 = vmatprep.subr.bf16.mxu0 0
    %5206 = vmatpush1.bf16.msra.mxu0 %v5200
    %5207 = vmatprep.subr.bf16.mxu0 0
    %5208 = vmatpush1.bf16.msra.mxu0 0
    %5209 = vmatprep.subr.bf16.mxu0 0
    %5210 = vmatpush1.bf16.msra.mxu0 0
    %5211 = vmatprep.subr.bf16.mxu0 0
    %5212 = vmatpush1.bf16.msra.mxu0 0
    %5213 = vmatprep.subr.bf16.mxu0 0
    %5214 = vmatpush1.bf16.msra.mxu0 0
    %5215 = vmatprep.subr.bf16.mxu0 0
    %5216 = vmatpush1.bf16.msra.mxu0 0
    %5217 = vmatprep.subr.bf16.mxu0 0
    %5218 = vmatpush1.bf16.msra.mxu0 0
    %5219 = vmatprep.subr.bf16.mxu0 0
    %5220 = vmatpush1.bf16.msra.mxu0 0
    %5221 = vmatprep.subr.bf16.mxu0 0
    %5222 = vmatpush1.bf16.msra.mxu0 0
    %5223 = vmatprep.subr.bf16.mxu0 0
    %5224 = vmatpush1.bf16.msra.mxu0 0
    %5225 = vmatprep.subr.bf16.mxu0 0
    %5226 = vmatpush1.bf16.msra.mxu0 0
    %5227 = vmatprep.subr.bf16.mxu0 0
    %5228 = vmatpush1.bf16.msra.mxu0 0
    %5229 = vmatprep.subr.bf16.mxu0 0
    %5230 = vmatpush1.bf16.msra.mxu0 0
    %5231 = vmatprep.subr.bf16.mxu0 0
    %5232 = vmatpush1.bf16.msra.mxu0 0
    %5233 = vmatprep.subr.bf16.mxu0 0
    %5234 = vmatpush1.bf16.msra.mxu0 0
    %5235 = vmatprep.subr.bf16.mxu0 0
    %5236 = vmatpush1.bf16.msra.mxu0 0
    %5237 = vmatprep.mubr.bf16.mxu0 0
    %5238 = vmatmul.mubr.bf16.gmra.mrb[0].mxu0 %v5203
    %v5239 = vpop.f32.mrb[0].mxu0
    %v5240 = vadd.f32 0.0, %v5239
    %v5241 = vpop.f32.mrb[0].mxu0
    %v5242 = vpop.f32.mrb[0].mxu0
    %v5243 = vadd.f32 0.0, %v5242
    %v5244 = vpop.f32.mrb[0].mxu0
    %5245 = vdwg.mxu0
    %5250 = vrot.lane.b32.xlu0 %v5193, 96
    %v5251 = vpop.permute.xlu0 %5250
    %5252 = vrot.lane.b32.xlu0 %v5196, 96
    %v5253 = vpop.permute.xlu0 %5252
    %5254 = vrot.lane.b32.xlu0 %v5240, 96
    %v5255 = vpop.permute.xlu0 %5254
    %5256 = vrot.lane.b32.xlu0 %v5243, 96
    %v5257 = vpop.permute.xlu0 %5256
    %vm5262 = vcmask 1048320
    %5263 = vst.msk [vmem:[#allocation3] sm:$0xff] %vm5262, %v5251
    %5264 = vst.msk [vmem:[#allocation3 + $0x10] sm:$0xff] %vm5262, %v5253
    %5265 = vst.msk [vmem:[#allocation3 + $0x20] sm:$0xff] %vm5262, %v5255
    %5266 = vst.msk [vmem:[#allocation3 + $0x30] sm:$0xff] %vm5262, %v5257
    %v5267 = vpack.c.bf16 %v4115, %v4111
    %v5268 = vpack.c.bf16 %v4125, %v4121
    %v5269 = vpack.c.bf16 %v4168, %v4164
    %v5270 = vpack.c.bf16 %v4178, %v4174
    %v5272 = vsel %vm4237, %v5267, 0
    %v5275 = vsel %vm4237, %v5269, 0
    %5277 = vmatprep.subr.bf16.mxu0 0
    %5278 = vmatpush1.bf16.xpose.msra.mxu0 %v5275
    %5279 = vmatprep.subr.bf16.mxu0 0
    %5280 = vmatpush1.bf16.xpose.msra.mxu0 0
    %5281 = vmatprep.subr.bf16.mxu0 0
    %5282 = vmatpush1.bf16.xpose.msra.mxu0 0
    %5283 = vmatprep.subr.bf16.mxu0 0
    %5284 = vmatpush1.bf16.xpose.msra.mxu0 0
    %5285 = vmatprep.subr.bf16.mxu0 0
    %5286 = vmatpush1.bf16.xpose.msra.mxu0 0
    %5287 = vmatprep.subr.bf16.mxu0 0
    %5288 = vmatpush1.bf16.xpose.msra.mxu0 0
    %5289 = vmatprep.subr.bf16.mxu0 0
    %5290 = vmatpush1.bf16.xpose.msra.mxu0 0
    %5291 = vmatprep.subr.bf16.mxu0 0
    %5292 = vmatpush1.bf16.xpose.msra.mxu0 0
    %5293 = vmatprep.subr.bf16.mxu0 0
    %5294 = vmatpush1.bf16.xpose.msra.mxu0 0
    %5295 = vmatprep.subr.bf16.mxu0 0
    %5296 = vmatpush1.bf16.xpose.msra.mxu0 0
    %5297 = vmatprep.subr.bf16.mxu0 0
    %5298 = vmatpush1.bf16.xpose.msra.mxu0 0
    %5299 = vmatprep.subr.bf16.mxu0 0
    %5300 = vmatpush1.bf16.xpose.msra.mxu0 0
    %5301 = vmatprep.subr.bf16.mxu0 0
    %5302 = vmatpush1.bf16.xpose.msra.mxu0 0
    %5303 = vmatprep.subr.bf16.mxu0 0
    %5304 = vmatpush1.bf16.xpose.msra.mxu0 0
    %5305 = vmatprep.subr.bf16.mxu0 0
    %5306 = vmatpush1.bf16.xpose.msra.mxu0 0
    %5307 = vmatprep.subr.bf16.mxu0 0
    %5308 = vmatpush1.bf16.xpose.msra.mxu0 0
    %5309 = vmatprep.mubr.bf16.mxu0 0
    %5310 = vmatmul.mubr.bf16.gmra.mrb[0].mxu0 %v5272
    %v5311 = vpop.f32.mrb[0].mxu0
    %v5312 = vadd.f32 0.0, %v5311
    %v5313 = vpop.f32.mrb[0].mxu0
    %v5314 = vpop.f32.mrb[0].mxu0
    %v5315 = vadd.f32 0.0, %v5314
    %v5316 = vpop.f32.mrb[0].mxu0
    %5317 = vdwg.mxu0
    %v5319 = vsel %vm4237, %v5268, 0
    %v5322 = vsel %vm4237, %v5270, 0
    %5324 = vmatprep.subr.bf16.mxu0 0
    %5325 = vmatpush1.bf16.xpose.msra.mxu0 %v5322
    %5326 = vmatprep.subr.bf16.mxu0 0
    %5327 = vmatpush1.bf16.xpose.msra.mxu0 0
    %5328 = vmatprep.subr.bf16.mxu0 0
    %5329 = vmatpush1.bf16.xpose.msra.mxu0 0
    %5330 = vmatprep.subr.bf16.mxu0 0
    %5331 = vmatpush1.bf16.xpose.msra.mxu0 0
    %5332 = vmatprep.subr.bf16.mxu0 0
    %5333 = vmatpush1.bf16.xpose.msra.mxu0 0
    %5334 = vmatprep.subr.bf16.mxu0 0
    %5335 = vmatpush1.bf16.xpose.msra.mxu0 0
    %5336 = vmatprep.subr.bf16.mxu0 0
    %5337 = vmatpush1.bf16.xpose.msra.mxu0 0
    %5338 = vmatprep.subr.bf16.mxu0 0
    %5339 = vmatpush1.bf16.xpose.msra.mxu0 0
    %5340 = vmatprep.subr.bf16.mxu0 0
    %5341 = vmatpush1.bf16.xpose.msra.mxu0 0
    %5342 = vmatprep.subr.bf16.mxu0 0
    %5343 = vmatpush1.bf16.xpose.msra.mxu0 0
    %5344 = vmatprep.subr.bf16.mxu0 0
    %5345 = vmatpush1.bf16.xpose.msra.mxu0 0
    %5346 = vmatprep.subr.bf16.mxu0 0
    %5347 = vmatpush1.bf16.xpose.msra.mxu0 0
    %5348 = vmatprep.subr.bf16.mxu0 0
    %5349 = vmatpush1.bf16.xpose.msra.mxu0 0
    %5350 = vmatprep.subr.bf16.mxu0 0
    %5351 = vmatpush1.bf16.xpose.msra.mxu0 0
    %5352 = vmatprep.subr.bf16.mxu0 0
    %5353 = vmatpush1.bf16.xpose.msra.mxu0 0
    %5354 = vmatprep.subr.bf16.mxu0 0
    %5355 = vmatpush1.bf16.xpose.msra.mxu0 0
    %5356 = vmatprep.mubr.bf16.mxu0 0
    %5357 = vmatmul.mubr.bf16.gmra.mrb[0].mxu0 %v5319
    %v5358 = vpop.f32.mrb[0].mxu0
    %v5359 = vadd.f32 0.0, %v5358
    %v5360 = vpop.f32.mrb[0].mxu0
    %v5361 = vpop.f32.mrb[0].mxu0
    %v5362 = vadd.f32 0.0, %v5361
    %v5363 = vpop.f32.mrb[0].mxu0
    %5364 = vdwg.mxu0
    %v5365 = vsel %vm660, %v5312, -inf
    %5366 = vmax.xlane.f32.xlu0 %v5365
    %v5367 = vpop.xlane.xlu0 %5366
    %v5368 = vsel %vm660, %v5315, -inf
    %5369 = vmax.xlane.f32.xlu0 %v5368
    %v5370 = vpop.xlane.xlu0 %5369
    %v5371 = vsel %vm660, %v5359, -inf
    %5372 = vmax.xlane.f32.xlu0 %v5371
    %v5373 = vpop.xlane.xlu0 %5372
    %v5374 = vsel %vm660, %v5362, -inf
    %5375 = vmax.xlane.f32.xlu0 %v5374
    %v5376 = vpop.xlane.xlu0 %5375
    %v5377 = vsub.f32 %v5312, %v5367
    %v5378 = vsub.f32 %v5315, %v5370
    %v5379 = vsub.f32 %v5359, %v5373
    %v5380 = vsub.f32 %v5362, %v5376
    %v5381 = vmul.f32 %v5377, 1.442695
    %v5382 = vpow.pop %v5381
    %v5383 = vmul.f32 %v5378, 1.442695
    %v5384 = vpow.pop %v5383
    %v5385 = vmul.f32 %v5379, 1.442695
    %v5386 = vpow.pop %v5385
    %v5387 = vmul.f32 %v5380, 1.442695
    %v5388 = vpow.pop %v5387
    %v5389 = vsel %vm660, %v5382, 0.0
    %5390 = vadd.xlane.f32.xlu0 %v5389
    %v5391 = vpop.xlane.xlu0 %5390
    %v5392 = vsel %vm660, %v5384, 0.0
    %5393 = vadd.xlane.f32.xlu0 %v5392
    %v5394 = vpop.xlane.xlu0 %5393
    %v5395 = vsel %vm660, %v5386, 0.0
    %5396 = vadd.xlane.f32.xlu0 %v5395
    %v5397 = vpop.xlane.xlu0 %5396
    %v5398 = vsel %vm660, %v5388, 0.0
    %5399 = vadd.xlane.f32.xlu0 %v5398
    %v5400 = vpop.xlane.xlu0 %5399
    %v5401 = vrcp.pop %v5391
    %v5402 = vrcp.pop %v5394
    %v5403 = vrcp.pop %v5397
    %v5404 = vrcp.pop %v5400
    %v5405 = vmul.f32 %v5382, %v5401
    %v5406 = vmul.f32 %v5384, %v5402
    %v5407 = vmul.f32 %v5386, %v5403
    %v5408 = vmul.f32 %v5388, %v5404
    %v5409 = vpack.c.bf16 %v5406, %v5405
    %v5410 = vpack.c.bf16 %v5408, %v5407
    %v5411 = vpack.c.bf16 %v4221, %v4217
    %v5412 = vpack.c.bf16 %v4231, %v4227
    %v5414 = vsel %vm660, %v5409, 0
    %5416 = vmatprep.subr.bf16.mxu0 0
    %5417 = vmatpush1.bf16.msra.mxu0 %v5411
    %5418 = vmatprep.subr.bf16.mxu0 0
    %5419 = vmatpush1.bf16.msra.mxu0 0
    %5420 = vmatprep.subr.bf16.mxu0 0
    %5421 = vmatpush1.bf16.msra.mxu0 0
    %5422 = vmatprep.subr.bf16.mxu0 0
    %5423 = vmatpush1.bf16.msra.mxu0 0
    %5424 = vmatprep.subr.bf16.mxu0 0
    %5425 = vmatpush1.bf16.msra.mxu0 0
    %5426 = vmatprep.subr.bf16.mxu0 0
    %5427 = vmatpush1.bf16.msra.mxu0 0
    %5428 = vmatprep.subr.bf16.mxu0 0
    %5429 = vmatpush1.bf16.msra.mxu0 0
    %5430 = vmatprep.subr.bf16.mxu0 0
    %5431 = vmatpush1.bf16.msra.mxu0 0
    %5432 = vmatprep.subr.bf16.mxu0 0
    %5433 = vmatpush1.bf16.msra.mxu0 0
    %5434 = vmatprep.subr.bf16.mxu0 0
    %5435 = vmatpush1.bf16.msra.mxu0 0
    %5436 = vmatprep.subr.bf16.mxu0 0
    %5437 = vmatpush1.bf16.msra.mxu0 0
    %5438 = vmatprep.subr.bf16.mxu0 0
    %5439 = vmatpush1.bf16.msra.mxu0 0
    %5440 = vmatprep.subr.bf16.mxu0 0
    %5441 = vmatpush1.bf16.msra.mxu0 0
    %5442 = vmatprep.subr.bf16.mxu0 0
    %5443 = vmatpush1.bf16.msra.mxu0 0
    %5444 = vmatprep.subr.bf16.mxu0 0
    %5445 = vmatpush1.bf16.msra.mxu0 0
    %5446 = vmatprep.subr.bf16.mxu0 0
    %5447 = vmatpush1.bf16.msra.mxu0 0
    %5448 = vmatprep.mubr.bf16.mxu0 0
    %5449 = vmatmul.mubr.bf16.gmra.mrb[0].mxu0 %v5414
    %v5450 = vpop.f32.mrb[0].mxu0
    %v5451 = vadd.f32 0.0, %v5450
    %v5452 = vpop.f32.mrb[0].mxu0
    %v5453 = vpop.f32.mrb[0].mxu0
    %v5454 = vadd.f32 0.0, %v5453
    %v5455 = vpop.f32.mrb[0].mxu0
    %5456 = vdwg.mxu0
    %v5458 = vsel %vm660, %v5410, 0
    %5460 = vmatprep.subr.bf16.mxu0 0
    %5461 = vmatpush1.bf16.msra.mxu0 %v5412
    %5462 = vmatprep.subr.bf16.mxu0 0
    %5463 = vmatpush1.bf16.msra.mxu0 0
    %5464 = vmatprep.subr.bf16.mxu0 0
    %5465 = vmatpush1.bf16.msra.mxu0 0
    %5466 = vmatprep.subr.bf16.mxu0 0
    %5467 = vmatpush1.bf16.msra.mxu0 0
    %5468 = vmatprep.subr.bf16.mxu0 0
    %5469 = vmatpush1.bf16.msra.mxu0 0
    %5470 = vmatprep.subr.bf16.mxu0 0
    %5471 = vmatpush1.bf16.msra.mxu0 0
    %5472 = vmatprep.subr.bf16.mxu0 0
    %5473 = vmatpush1.bf16.msra.mxu0 0
    %5474 = vmatprep.subr.bf16.mxu0 0
    %5475 = vmatpush1.bf16.msra.mxu0 0
    %5476 = vmatprep.subr.bf16.mxu0 0
    %5477 = vmatpush1.bf16.msra.mxu0 0
    %5478 = vmatprep.subr.bf16.mxu0 0
    %5479 = vmatpush1.bf16.msra.mxu0 0
    %5480 = vmatprep.subr.bf16.mxu0 0
    %5481 = vmatpush1.bf16.msra.mxu0 0
    %5482 = vmatprep.subr.bf16.mxu0 0
    %5483 = vmatpush1.bf16.msra.mxu0 0
    %5484 = vmatprep.subr.bf16.mxu0 0
    %5485 = vmatpush1.bf16.msra.mxu0 0
    %5486 = vmatprep.subr.bf16.mxu0 0
    %5487 = vmatpush1.bf16.msra.mxu0 0
    %5488 = vmatprep.subr.bf16.mxu0 0
    %5489 = vmatpush1.bf16.msra.mxu0 0
    %5490 = vmatprep.subr.bf16.mxu0 0
    %5491 = vmatpush1.bf16.msra.mxu0 0
    %5492 = vmatprep.mubr.bf16.mxu0 0
    %5493 = vmatmul.mubr.bf16.gmra.mrb[0].mxu0 %v5458
    %v5494 = vpop.f32.mrb[0].mxu0
    %v5495 = vadd.f32 0.0, %v5494
    %v5496 = vpop.f32.mrb[0].mxu0
    %v5497 = vpop.f32.mrb[0].mxu0
    %v5498 = vadd.f32 0.0, %v5497
    %v5499 = vpop.f32.mrb[0].mxu0
    %5500 = vdwg.mxu0
    %5501 = vst.msk [vmem:[#allocation3 + $0x8] sm:$0xff] %vm4237, %v5451
    %5502 = vst.msk [vmem:[#allocation3 + $0x18] sm:$0xff] %vm4237, %v5454
    %5503 = vst.msk [vmem:[#allocation3 + $0x28] sm:$0xff] %vm4237, %v5495
    %5504 = vst.msk [vmem:[#allocation3 + $0x38] sm:$0xff] %vm4237, %v5498
    %5506 = vrot.lane.b32.xlu0 %v5267, 96
    %v5507 = vpop.permute.xlu0 %5506
    %5509 = vrot.lane.b32.xlu0 %v5269, 96
    %v5510 = vpop.permute.xlu0 %5509
    %v5512 = vsel %vm4237, %v5507, 0
    %v5515 = vsel %vm4237, %v5510, 0
    %5517 = vmatprep.subr.bf16.mxu0 0
    %5518 = vmatpush1.bf16.xpose.msra.mxu0 %v5515
    %5519 = vmatprep.subr.bf16.mxu0 0
    %5520 = vmatpush1.bf16.xpose.msra.mxu0 0
    %5521 = vmatprep.subr.bf16.mxu0 0
    %5522 = vmatpush1.bf16.xpose.msra.mxu0 0
    %5523 = vmatprep.subr.bf16.mxu0 0
    %5524 = vmatpush1.bf16.xpose.msra.mxu0 0
    %5525 = vmatprep.subr.bf16.mxu0 0
    %5526 = vmatpush1.bf16.xpose.msra.mxu0 0
    %5527 = vmatprep.subr.bf16.mxu0 0
    %5528 = vmatpush1.bf16.xpose.msra.mxu0 0
    %5529 = vmatprep.subr.bf16.mxu0 0
    %5530 = vmatpush1.bf16.xpose.msra.mxu0 0
    %5531 = vmatprep.subr.bf16.mxu0 0
    %5532 = vmatpush1.bf16.xpose.msra.mxu0 0
    %5533 = vmatprep.subr.bf16.mxu0 0
    %5534 = vmatpush1.bf16.xpose.msra.mxu0 0
    %5535 = vmatprep.subr.bf16.mxu0 0
    %5536 = vmatpush1.bf16.xpose.msra.mxu0 0
    %5537 = vmatprep.subr.bf16.mxu0 0
    %5538 = vmatpush1.bf16.xpose.msra.mxu0 0
    %5539 = vmatprep.subr.bf16.mxu0 0
    %5540 = vmatpush1.bf16.xpose.msra.mxu0 0
    %5541 = vmatprep.subr.bf16.mxu0 0
    %5542 = vmatpush1.bf16.xpose.msra.mxu0 0
    %5543 = vmatprep.subr.bf16.mxu0 0
    %5544 = vmatpush1.bf16.xpose.msra.mxu0 0
    %5545 = vmatprep.subr.bf16.mxu0 0
    %5546 = vmatpush1.bf16.xpose.msra.mxu0 0
    %5547 = vmatprep.subr.bf16.mxu0 0
    %5548 = vmatpush1.bf16.xpose.msra.mxu0 0
    %5549 = vmatprep.mubr.bf16.mxu0 0
    %5550 = vmatmul.mubr.bf16.gmra.mrb[0].mxu0 %v5512
    %v5551 = vpop.f32.mrb[0].mxu0
    %v5552 = vadd.f32 0.0, %v5551
    %v5553 = vpop.f32.mrb[0].mxu0
    %v5554 = vpop.f32.mrb[0].mxu0
    %v5555 = vadd.f32 0.0, %v5554
    %v5556 = vpop.f32.mrb[0].mxu0
    %5557 = vdwg.mxu0
    %5559 = vrot.lane.b32.xlu0 %v5268, 96
    %v5560 = vpop.permute.xlu0 %5559
    %5562 = vrot.lane.b32.xlu0 %v5270, 96
    %v5563 = vpop.permute.xlu0 %5562
    %v5565 = vsel %vm4237, %v5560, 0
    %v5568 = vsel %vm4237, %v5563, 0
    %5570 = vmatprep.subr.bf16.mxu0 0
    %5571 = vmatpush1.bf16.xpose.msra.mxu0 %v5568
    %5572 = vmatprep.subr.bf16.mxu0 0
    %5573 = vmatpush1.bf16.xpose.msra.mxu0 0
    %5574 = vmatprep.subr.bf16.mxu0 0
    %5575 = vmatpush1.bf16.xpose.msra.mxu0 0
    %5576 = vmatprep.subr.bf16.mxu0 0
    %5577 = vmatpush1.bf16.xpose.msra.mxu0 0
    %5578 = vmatprep.subr.bf16.mxu0 0
    %5579 = vmatpush1.bf16.xpose.msra.mxu0 0
    %5580 = vmatprep.subr.bf16.mxu0 0
    %5581 = vmatpush1.bf16.xpose.msra.mxu0 0
    %5582 = vmatprep.subr.bf16.mxu0 0
    %5583 = vmatpush1.bf16.xpose.msra.mxu0 0
    %5584 = vmatprep.subr.bf16.mxu0 0
    %5585 = vmatpush1.bf16.xpose.msra.mxu0 0
    %5586 = vmatprep.subr.bf16.mxu0 0
    %5587 = vmatpush1.bf16.xpose.msra.mxu0 0
    %5588 = vmatprep.subr.bf16.mxu0 0
    %5589 = vmatpush1.bf16.xpose.msra.mxu0 0
    %5590 = vmatprep.subr.bf16.mxu0 0
    %5591 = vmatpush1.bf16.xpose.msra.mxu0 0
    %5592 = vmatprep.subr.bf16.mxu0 0
    %5593 = vmatpush1.bf16.xpose.msra.mxu0 0
    %5594 = vmatprep.subr.bf16.mxu0 0
    %5595 = vmatpush1.bf16.xpose.msra.mxu0 0
    %5596 = vmatprep.subr.bf16.mxu0 0
    %5597 = vmatpush1.bf16.xpose.msra.mxu0 0
    %5598 = vmatprep.subr.bf16.mxu0 0
    %5599 = vmatpush1.bf16.xpose.msra.mxu0 0
    %5600 = vmatprep.subr.bf16.mxu0 0
    %5601 = vmatpush1.bf16.xpose.msra.mxu0 0
    %5602 = vmatprep.mubr.bf16.mxu0 0
    %5603 = vmatmul.mubr.bf16.gmra.mrb[0].mxu0 %v5565
    %v5604 = vpop.f32.mrb[0].mxu0
    %v5605 = vadd.f32 0.0, %v5604
    %v5606 = vpop.f32.mrb[0].mxu0
    %v5607 = vpop.f32.mrb[0].mxu0
    %v5608 = vadd.f32 0.0, %v5607
    %v5609 = vpop.f32.mrb[0].mxu0
    %5610 = vdwg.mxu0
    %v5611 = vsel %vm660, %v5552, -inf
    %5612 = vmax.xlane.f32.xlu0 %v5611
    %v5613 = vpop.xlane.xlu0 %5612
    %v5614 = vsel %vm660, %v5555, -inf
    %5615 = vmax.xlane.f32.xlu0 %v5614
    %v5616 = vpop.xlane.xlu0 %5615
    %v5617 = vsel %vm660, %v5605, -inf
    %5618 = vmax.xlane.f32.xlu0 %v5617
    %v5619 = vpop.xlane.xlu0 %5618
    %v5620 = vsel %vm660, %v5608, -inf
    %5621 = vmax.xlane.f32.xlu0 %v5620
    %v5622 = vpop.xlane.xlu0 %5621
    %v5623 = vsub.f32 %v5552, %v5613
    %v5624 = vsub.f32 %v5555, %v5616
    %v5625 = vsub.f32 %v5605, %v5619
    %v5626 = vsub.f32 %v5608, %v5622
    %v5627 = vmul.f32 %v5623, 1.442695
    %v5628 = vpow.pop %v5627
    %v5629 = vmul.f32 %v5624, 1.442695
    %v5630 = vpow.pop %v5629
    %v5631 = vmul.f32 %v5625, 1.442695
    %v5632 = vpow.pop %v5631
    %v5633 = vmul.f32 %v5626, 1.442695
    %v5634 = vpow.pop %v5633
    %v5635 = vsel %vm660, %v5628, 0.0
    %5636 = vadd.xlane.f32.xlu0 %v5635
    %v5637 = vpop.xlane.xlu0 %5636
    %v5638 = vsel %vm660, %v5630, 0.0
    %5639 = vadd.xlane.f32.xlu0 %v5638
    %v5640 = vpop.xlane.xlu0 %5639
    %v5641 = vsel %vm660, %v5632, 0.0
    %5642 = vadd.xlane.f32.xlu0 %v5641
    %v5643 = vpop.xlane.xlu0 %5642
    %v5644 = vsel %vm660, %v5634, 0.0
    %5645 = vadd.xlane.f32.xlu0 %v5644
    %v5646 = vpop.xlane.xlu0 %5645
    %v5647 = vrcp.pop %v5637
    %v5648 = vrcp.pop %v5640
    %v5649 = vrcp.pop %v5643
    %v5650 = vrcp.pop %v5646
    %v5651 = vmul.f32 %v5628, %v5647
    %v5652 = vmul.f32 %v5630, %v5648
    %v5653 = vmul.f32 %v5632, %v5649
    %v5654 = vmul.f32 %v5634, %v5650
    %v5655 = vpack.c.bf16 %v5652, %v5651
    %v5656 = vpack.c.bf16 %v5654, %v5653
    %5658 = vrot.lane.b32.xlu0 %v5411, 96
    %v5659 = vpop.permute.xlu0 %5658
    %v5662 = vsel %vm660, %v5655, 0
    %5664 = vmatprep.subr.bf16.mxu0 0
    %5665 = vmatpush1.bf16.msra.mxu0 %v5659
    %5666 = vmatprep.subr.bf16.mxu0 0
    %5667 = vmatpush1.bf16.msra.mxu0 0
    %5668 = vmatprep.subr.bf16.mxu0 0
    %5669 = vmatpush1.bf16.msra.mxu0 0
    %5670 = vmatprep.subr.bf16.mxu0 0
    %5671 = vmatpush1.bf16.msra.mxu0 0
    %5672 = vmatprep.subr.bf16.mxu0 0
    %5673 = vmatpush1.bf16.msra.mxu0 0
    %5674 = vmatprep.subr.bf16.mxu0 0
    %5675 = vmatpush1.bf16.msra.mxu0 0
    %5676 = vmatprep.subr.bf16.mxu0 0
    %5677 = vmatpush1.bf16.msra.mxu0 0
    %5678 = vmatprep.subr.bf16.mxu0 0
    %5679 = vmatpush1.bf16.msra.mxu0 0
    %5680 = vmatprep.subr.bf16.mxu0 0
    %5681 = vmatpush1.bf16.msra.mxu0 0
    %5682 = vmatprep.subr.bf16.mxu0 0
    %5683 = vmatpush1.bf16.msra.mxu0 0
    %5684 = vmatprep.subr.bf16.mxu0 0
    %5685 = vmatpush1.bf16.msra.mxu0 0
    %5686 = vmatprep.subr.bf16.mxu0 0
    %5687 = vmatpush1.bf16.msra.mxu0 0
    %5688 = vmatprep.subr.bf16.mxu0 0
    %5689 = vmatpush1.bf16.msra.mxu0 0
    %5690 = vmatprep.subr.bf16.mxu0 0
    %5691 = vmatpush1.bf16.msra.mxu0 0
    %5692 = vmatprep.subr.bf16.mxu0 0
    %5693 = vmatpush1.bf16.msra.mxu0 0
    %5694 = vmatprep.subr.bf16.mxu0 0
    %5695 = vmatpush1.bf16.msra.mxu0 0
    %5696 = vmatprep.mubr.bf16.mxu0 0
    %5697 = vmatmul.mubr.bf16.gmra.mrb[0].mxu0 %v5662
    %v5698 = vpop.f32.mrb[0].mxu0
    %v5699 = vadd.f32 0.0, %v5698
    %v5700 = vpop.f32.mrb[0].mxu0
    %v5701 = vpop.f32.mrb[0].mxu0
    %v5702 = vadd.f32 0.0, %v5701
    %v5703 = vpop.f32.mrb[0].mxu0
    %5704 = vdwg.mxu0
    %5706 = vrot.lane.b32.xlu0 %v5412, 96
    %v5707 = vpop.permute.xlu0 %5706
    %v5710 = vsel %vm660, %v5656, 0
    %5712 = vmatprep.subr.bf16.mxu0 0
    %5713 = vmatpush1.bf16.msra.mxu0 %v5707
    %5714 = vmatprep.subr.bf16.mxu0 0
    %5715 = vmatpush1.bf16.msra.mxu0 0
    %5716 = vmatprep.subr.bf16.mxu0 0
    %5717 = vmatpush1.bf16.msra.mxu0 0
    %5718 = vmatprep.subr.bf16.mxu0 0
    %5719 = vmatpush1.bf16.msra.mxu0 0
    %5720 = vmatprep.subr.bf16.mxu0 0
    %5721 = vmatpush1.bf16.msra.mxu0 0
    %5722 = vmatprep.subr.bf16.mxu0 0
    %5723 = vmatpush1.bf16.msra.mxu0 0
    %5724 = vmatprep.subr.bf16.mxu0 0
    %5725 = vmatpush1.bf16.msra.mxu0 0
    %5726 = vmatprep.subr.bf16.mxu0 0
    %5727 = vmatpush1.bf16.msra.mxu0 0
    %5728 = vmatprep.subr.bf16.mxu0 0
    %5729 = vmatpush1.bf16.msra.mxu0 0
    %5730 = vmatprep.subr.bf16.mxu0 0
    %5731 = vmatpush1.bf16.msra.mxu0 0
    %5732 = vmatprep.subr.bf16.mxu0 0
    %5733 = vmatpush1.bf16.msra.mxu0 0
    %5734 = vmatprep.subr.bf16.mxu0 0
    %5735 = vmatpush1.bf16.msra.mxu0 0
    %5736 = vmatprep.subr.bf16.mxu0 0
    %5737 = vmatpush1.bf16.msra.mxu0 0
    %5738 = vmatprep.subr.bf16.mxu0 0
    %5739 = vmatpush1.bf16.msra.mxu0 0
    %5740 = vmatprep.subr.bf16.mxu0 0
    %5741 = vmatpush1.bf16.msra.mxu0 0
    %5742 = vmatprep.subr.bf16.mxu0 0
    %5743 = vmatpush1.bf16.msra.mxu0 0
    %5744 = vmatprep.mubr.bf16.mxu0 0
    %5745 = vmatmul.mubr.bf16.gmra.mrb[0].mxu0 %v5710
    %v5746 = vpop.f32.mrb[0].mxu0
    %v5747 = vadd.f32 0.0, %v5746
    %v5748 = vpop.f32.mrb[0].mxu0
    %v5749 = vpop.f32.mrb[0].mxu0
    %v5750 = vadd.f32 0.0, %v5749
    %v5751 = vpop.f32.mrb[0].mxu0
    %5752 = vdwg.mxu0
    %5757 = vrot.lane.b32.xlu0 %v5699, 32
    %v5758 = vpop.permute.xlu0 %5757
    %5759 = vrot.lane.b32.xlu0 %v5702, 32
    %v5760 = vpop.permute.xlu0 %5759
    %5761 = vrot.lane.b32.xlu0 %v5747, 32
    %v5762 = vpop.permute.xlu0 %5761
    %5763 = vrot.lane.b32.xlu0 %v5750, 32
    %v5764 = vpop.permute.xlu0 %5763
    %5769 = vst.msk [vmem:[#allocation3 + $0x8] sm:$0xff] %vm4736, %v5758
    %5770 = vst.msk [vmem:[#allocation3 + $0x18] sm:$0xff] %vm4736, %v5760
    %5771 = vst.msk [vmem:[#allocation3 + $0x28] sm:$0xff] %vm4736, %v5762
    %5772 = vst.msk [vmem:[#allocation3 + $0x38] sm:$0xff] %vm4736, %v5764
    %5773 = vrot.lane.b32.xlu0 %v5267, 64
    %v5774 = vpop.permute.xlu0 %5773
    %5775 = vrot.lane.b32.xlu0 %v5269, 64
    %v5776 = vpop.permute.xlu0 %5775
    %v5778 = vsel %vm4237, %v5774, 0
    %v5781 = vsel %vm4237, %v5776, 0
    %5783 = vmatprep.subr.bf16.mxu0 0
    %5784 = vmatpush1.bf16.xpose.msra.mxu0 %v5781
    %5785 = vmatprep.subr.bf16.mxu0 0
    %5786 = vmatpush1.bf16.xpose.msra.mxu0 0
    %5787 = vmatprep.subr.bf16.mxu0 0
    %5788 = vmatpush1.bf16.xpose.msra.mxu0 0
    %5789 = vmatprep.subr.bf16.mxu0 0
    %5790 = vmatpush1.bf16.xpose.msra.mxu0 0
    %5791 = vmatprep.subr.bf16.mxu0 0
    %5792 = vmatpush1.bf16.xpose.msra.mxu0 0
    %5793 = vmatprep.subr.bf16.mxu0 0
    %5794 = vmatpush1.bf16.xpose.msra.mxu0 0
    %5795 = vmatprep.subr.bf16.mxu0 0
    %5796 = vmatpush1.bf16.xpose.msra.mxu0 0
    %5797 = vmatprep.subr.bf16.mxu0 0
    %5798 = vmatpush1.bf16.xpose.msra.mxu0 0
    %5799 = vmatprep.subr.bf16.mxu0 0
    %5800 = vmatpush1.bf16.xpose.msra.mxu0 0
    %5801 = vmatprep.subr.bf16.mxu0 0
    %5802 = vmatpush1.bf16.xpose.msra.mxu0 0
    %5803 = vmatprep.subr.bf16.mxu0 0
    %5804 = vmatpush1.bf16.xpose.msra.mxu0 0
    %5805 = vmatprep.subr.bf16.mxu0 0
    %5806 = vmatpush1.bf16.xpose.msra.mxu0 0
    %5807 = vmatprep.subr.bf16.mxu0 0
    %5808 = vmatpush1.bf16.xpose.msra.mxu0 0
    %5809 = vmatprep.subr.bf16.mxu0 0
    %5810 = vmatpush1.bf16.xpose.msra.mxu0 0
    %5811 = vmatprep.subr.bf16.mxu0 0
    %5812 = vmatpush1.bf16.xpose.msra.mxu0 0
    %5813 = vmatprep.subr.bf16.mxu0 0
    %5814 = vmatpush1.bf16.xpose.msra.mxu0 0
    %5815 = vmatprep.mubr.bf16.mxu0 0
    %5816 = vmatmul.mubr.bf16.gmra.mrb[0].mxu0 %v5778
    %v5817 = vpop.f32.mrb[0].mxu0
    %v5818 = vadd.f32 0.0, %v5817
    %v5819 = vpop.f32.mrb[0].mxu0
    %v5820 = vpop.f32.mrb[0].mxu0
    %v5821 = vadd.f32 0.0, %v5820
    %v5822 = vpop.f32.mrb[0].mxu0
    %5823 = vdwg.mxu0
    %5824 = vrot.lane.b32.xlu0 %v5268, 64
    %v5825 = vpop.permute.xlu0 %5824
    %5826 = vrot.lane.b32.xlu0 %v5270, 64
    %v5827 = vpop.permute.xlu0 %5826
    %v5829 = vsel %vm4237, %v5825, 0
    %v5832 = vsel %vm4237, %v5827, 0
    %5834 = vmatprep.subr.bf16.mxu0 0
    %5835 = vmatpush1.bf16.xpose.msra.mxu0 %v5832
    %5836 = vmatprep.subr.bf16.mxu0 0
    %5837 = vmatpush1.bf16.xpose.msra.mxu0 0
    %5838 = vmatprep.subr.bf16.mxu0 0
    %5839 = vmatpush1.bf16.xpose.msra.mxu0 0
    %5840 = vmatprep.subr.bf16.mxu0 0
    %5841 = vmatpush1.bf16.xpose.msra.mxu0 0
    %5842 = vmatprep.subr.bf16.mxu0 0
    %5843 = vmatpush1.bf16.xpose.msra.mxu0 0
    %5844 = vmatprep.subr.bf16.mxu0 0
    %5845 = vmatpush1.bf16.xpose.msra.mxu0 0
    %5846 = vmatprep.subr.bf16.mxu0 0
    %5847 = vmatpush1.bf16.xpose.msra.mxu0 0
    %5848 = vmatprep.subr.bf16.mxu0 0
    %5849 = vmatpush1.bf16.xpose.msra.mxu0 0
    %5850 = vmatprep.subr.bf16.mxu0 0
    %5851 = vmatpush1.bf16.xpose.msra.mxu0 0
    %5852 = vmatprep.subr.bf16.mxu0 0
    %5853 = vmatpush1.bf16.xpose.msra.mxu0 0
    %5854 = vmatprep.subr.bf16.mxu0 0
    %5855 = vmatpush1.bf16.xpose.msra.mxu0 0
    %5856 = vmatprep.subr.bf16.mxu0 0
    %5857 = vmatpush1.bf16.xpose.msra.mxu0 0
    %5858 = vmatprep.subr.bf16.mxu0 0
    %5859 = vmatpush1.bf16.xpose.msra.mxu0 0
    %5860 = vmatprep.subr.bf16.mxu0 0
    %5861 = vmatpush1.bf16.xpose.msra.mxu0 0
    %5862 = vmatprep.subr.bf16.mxu0 0
    %5863 = vmatpush1.bf16.xpose.msra.mxu0 0
    %5864 = vmatprep.subr.bf16.mxu0 0
    %5865 = vmatpush1.bf16.xpose.msra.mxu0 0
    %5866 = vmatprep.mubr.bf16.mxu0 0
    %5867 = vmatmul.mubr.bf16.gmra.mrb[0].mxu0 %v5829
    %v5868 = vpop.f32.mrb[0].mxu0
    %v5869 = vadd.f32 0.0, %v5868
    %v5870 = vpop.f32.mrb[0].mxu0
    %v5871 = vpop.f32.mrb[0].mxu0
    %v5872 = vadd.f32 0.0, %v5871
    %v5873 = vpop.f32.mrb[0].mxu0
    %5874 = vdwg.mxu0
    %v5875 = vsel %vm660, %v5818, -inf
    %5876 = vmax.xlane.f32.xlu0 %v5875
    %v5877 = vpop.xlane.xlu0 %5876
    %v5878 = vsel %vm660, %v5821, -inf
    %5879 = vmax.xlane.f32.xlu0 %v5878
    %v5880 = vpop.xlane.xlu0 %5879
    %v5881 = vsel %vm660, %v5869, -inf
    %5882 = vmax.xlane.f32.xlu0 %v5881
    %v5883 = vpop.xlane.xlu0 %5882
    %v5884 = vsel %vm660, %v5872, -inf
    %5885 = vmax.xlane.f32.xlu0 %v5884
    %v5886 = vpop.xlane.xlu0 %5885
    %v5887 = vsub.f32 %v5818, %v5877
    %v5888 = vsub.f32 %v5821, %v5880
    %v5889 = vsub.f32 %v5869, %v5883
    %v5890 = vsub.f32 %v5872, %v5886
    %v5891 = vmul.f32 %v5887, 1.442695
    %v5892 = vpow.pop %v5891
    %v5893 = vmul.f32 %v5888, 1.442695
    %v5894 = vpow.pop %v5893
    %v5895 = vmul.f32 %v5889, 1.442695
    %v5896 = vpow.pop %v5895
    %v5897 = vmul.f32 %v5890, 1.442695
    %v5898 = vpow.pop %v5897
    %v5899 = vsel %vm660, %v5892, 0.0
    %5900 = vadd.xlane.f32.xlu0 %v5899
    %v5901 = vpop.xlane.xlu0 %5900
    %v5902 = vsel %vm660, %v5894, 0.0
    %5903 = vadd.xlane.f32.xlu0 %v5902
    %v5904 = vpop.xlane.xlu0 %5903
    %v5905 = vsel %vm660, %v5896, 0.0
    %5906 = vadd.xlane.f32.xlu0 %v5905
    %v5907 = vpop.xlane.xlu0 %5906
    %v5908 = vsel %vm660, %v5898, 0.0
    %5909 = vadd.xlane.f32.xlu0 %v5908
    %v5910 = vpop.xlane.xlu0 %5909
    %v5911 = vrcp.pop %v5901
    %v5912 = vrcp.pop %v5904
    %v5913 = vrcp.pop %v5907
    %v5914 = vrcp.pop %v5910
    %v5915 = vmul.f32 %v5892, %v5911
    %v5916 = vmul.f32 %v5894, %v5912
    %v5917 = vmul.f32 %v5896, %v5913
    %v5918 = vmul.f32 %v5898, %v5914
    %v5919 = vpack.c.bf16 %v5916, %v5915
    %v5920 = vpack.c.bf16 %v5918, %v5917
    %5921 = vrot.lane.b32.xlu0 %v5411, 64
    %v5922 = vpop.permute.xlu0 %5921
    %v5925 = vsel %vm660, %v5919, 0
    %5927 = vmatprep.subr.bf16.mxu0 0
    %5928 = vmatpush1.bf16.msra.mxu0 %v5922
    %5929 = vmatprep.subr.bf16.mxu0 0
    %5930 = vmatpush1.bf16.msra.mxu0 0
    %5931 = vmatprep.subr.bf16.mxu0 0
    %5932 = vmatpush1.bf16.msra.mxu0 0
    %5933 = vmatprep.subr.bf16.mxu0 0
    %5934 = vmatpush1.bf16.msra.mxu0 0
    %5935 = vmatprep.subr.bf16.mxu0 0
    %5936 = vmatpush1.bf16.msra.mxu0 0
    %5937 = vmatprep.subr.bf16.mxu0 0
    %5938 = vmatpush1.bf16.msra.mxu0 0
    %5939 = vmatprep.subr.bf16.mxu0 0
    %5940 = vmatpush1.bf16.msra.mxu0 0
    %5941 = vmatprep.subr.bf16.mxu0 0
    %5942 = vmatpush1.bf16.msra.mxu0 0
    %5943 = vmatprep.subr.bf16.mxu0 0
    %5944 = vmatpush1.bf16.msra.mxu0 0
    %5945 = vmatprep.subr.bf16.mxu0 0
    %5946 = vmatpush1.bf16.msra.mxu0 0
    %5947 = vmatprep.subr.bf16.mxu0 0
    %5948 = vmatpush1.bf16.msra.mxu0 0
    %5949 = vmatprep.subr.bf16.mxu0 0
    %5950 = vmatpush1.bf16.msra.mxu0 0
    %5951 = vmatprep.subr.bf16.mxu0 0
    %5952 = vmatpush1.bf16.msra.mxu0 0
    %5953 = vmatprep.subr.bf16.mxu0 0
    %5954 = vmatpush1.bf16.msra.mxu0 0
    %5955 = vmatprep.subr.bf16.mxu0 0
    %5956 = vmatpush1.bf16.msra.mxu0 0
    %5957 = vmatprep.subr.bf16.mxu0 0
    %5958 = vmatpush1.bf16.msra.mxu0 0
    %5959 = vmatprep.mubr.bf16.mxu0 0
    %5960 = vmatmul.mubr.bf16.gmra.mrb[0].mxu0 %v5925
    %v5961 = vpop.f32.mrb[0].mxu0
    %v5962 = vadd.f32 0.0, %v5961
    %v5963 = vpop.f32.mrb[0].mxu0
    %v5964 = vpop.f32.mrb[0].mxu0
    %v5965 = vadd.f32 0.0, %v5964
    %v5966 = vpop.f32.mrb[0].mxu0
    %5967 = vdwg.mxu0
    %5968 = vrot.lane.b32.xlu0 %v5412, 64
    %v5969 = vpop.permute.xlu0 %5968
    %v5972 = vsel %vm660, %v5920, 0
    %5974 = vmatprep.subr.bf16.mxu0 0
    %5975 = vmatpush1.bf16.msra.mxu0 %v5969
    %5976 = vmatprep.subr.bf16.mxu0 0
    %5977 = vmatpush1.bf16.msra.mxu0 0
    %5978 = vmatprep.subr.bf16.mxu0 0
    %5979 = vmatpush1.bf16.msra.mxu0 0
    %5980 = vmatprep.subr.bf16.mxu0 0
    %5981 = vmatpush1.bf16.msra.mxu0 0
    %5982 = vmatprep.subr.bf16.mxu0 0
    %5983 = vmatpush1.bf16.msra.mxu0 0
    %5984 = vmatprep.subr.bf16.mxu0 0
    %5985 = vmatpush1.bf16.msra.mxu0 0
    %5986 = vmatprep.subr.bf16.mxu0 0
    %5987 = vmatpush1.bf16.msra.mxu0 0
    %5988 = vmatprep.subr.bf16.mxu0 0
    %5989 = vmatpush1.bf16.msra.mxu0 0
    %5990 = vmatprep.subr.bf16.mxu0 0
    %5991 = vmatpush1.bf16.msra.mxu0 0
    %5992 = vmatprep.subr.bf16.mxu0 0
    %5993 = vmatpush1.bf16.msra.mxu0 0
    %5994 = vmatprep.subr.bf16.mxu0 0
    %5995 = vmatpush1.bf16.msra.mxu0 0
    %5996 = vmatprep.subr.bf16.mxu0 0
    %5997 = vmatpush1.bf16.msra.mxu0 0
    %5998 = vmatprep.subr.bf16.mxu0 0
    %5999 = vmatpush1.bf16.msra.mxu0 0
    %6000 = vmatprep.subr.bf16.mxu0 0
    %6001 = vmatpush1.bf16.msra.mxu0 0
    %6002 = vmatprep.subr.bf16.mxu0 0
    %6003 = vmatpush1.bf16.msra.mxu0 0
    %6004 = vmatprep.subr.bf16.mxu0 0
    %6005 = vmatpush1.bf16.msra.mxu0 0
    %6006 = vmatprep.mubr.bf16.mxu0 0
    %6007 = vmatmul.mubr.bf16.gmra.mrb[0].mxu0 %v5972
    %v6008 = vpop.f32.mrb[0].mxu0
    %v6009 = vadd.f32 0.0, %v6008
    %v6010 = vpop.f32.mrb[0].mxu0
    %v6011 = vpop.f32.mrb[0].mxu0
    %v6012 = vadd.f32 0.0, %v6011
    %v6013 = vpop.f32.mrb[0].mxu0
    %6014 = vdwg.mxu0
    %6019 = vrot.lane.b32.xlu0 %v5962, 64
    %v6020 = vpop.permute.xlu0 %6019
    %6021 = vrot.lane.b32.xlu0 %v5965, 64
    %v6022 = vpop.permute.xlu0 %6021
    %6023 = vrot.lane.b32.xlu0 %v6009, 64
    %v6024 = vpop.permute.xlu0 %6023
    %6025 = vrot.lane.b32.xlu0 %v6012, 64
    %v6026 = vpop.permute.xlu0 %6025
    %6031 = vst.msk [vmem:[#allocation3 + $0x8] sm:$0xff] %vm4999, %v6020
    %6032 = vst.msk [vmem:[#allocation3 + $0x18] sm:$0xff] %vm4999, %v6022
    %6033 = vst.msk [vmem:[#allocation3 + $0x28] sm:$0xff] %vm4999, %v6024
    %6034 = vst.msk [vmem:[#allocation3 + $0x38] sm:$0xff] %vm4999, %v6026
    %6035 = vrot.lane.b32.xlu0 %v5267, 32
    %v6036 = vpop.permute.xlu0 %6035
    %6037 = vrot.lane.b32.xlu0 %v5269, 32
    %v6038 = vpop.permute.xlu0 %6037
    %v6040 = vsel %vm4237, %v6036, 0
    %v6043 = vsel %vm4237, %v6038, 0
    %6045 = vmatprep.subr.bf16.mxu0 0
    %6046 = vmatpush1.bf16.xpose.msra.mxu0 %v6043
    %6047 = vmatprep.subr.bf16.mxu0 0
    %6048 = vmatpush1.bf16.xpose.msra.mxu0 0
    %6049 = vmatprep.subr.bf16.mxu0 0
    %6050 = vmatpush1.bf16.xpose.msra.mxu0 0
    %6051 = vmatprep.subr.bf16.mxu0 0
    %6052 = vmatpush1.bf16.xpose.msra.mxu0 0
    %6053 = vmatprep.subr.bf16.mxu0 0
    %6054 = vmatpush1.bf16.xpose.msra.mxu0 0
    %6055 = vmatprep.subr.bf16.mxu0 0
    %6056 = vmatpush1.bf16.xpose.msra.mxu0 0
    %6057 = vmatprep.subr.bf16.mxu0 0
    %6058 = vmatpush1.bf16.xpose.msra.mxu0 0
    %6059 = vmatprep.subr.bf16.mxu0 0
    %6060 = vmatpush1.bf16.xpose.msra.mxu0 0
    %6061 = vmatprep.subr.bf16.mxu0 0
    %6062 = vmatpush1.bf16.xpose.msra.mxu0 0
    %6063 = vmatprep.subr.bf16.mxu0 0
    %6064 = vmatpush1.bf16.xpose.msra.mxu0 0
    %6065 = vmatprep.subr.bf16.mxu0 0
    %6066 = vmatpush1.bf16.xpose.msra.mxu0 0
    %6067 = vmatprep.subr.bf16.mxu0 0
    %6068 = vmatpush1.bf16.xpose.msra.mxu0 0
    %6069 = vmatprep.subr.bf16.mxu0 0
    %6070 = vmatpush1.bf16.xpose.msra.mxu0 0
    %6071 = vmatprep.subr.bf16.mxu0 0
    %6072 = vmatpush1.bf16.xpose.msra.mxu0 0
    %6073 = vmatprep.subr.bf16.mxu0 0
    %6074 = vmatpush1.bf16.xpose.msra.mxu0 0
    %6075 = vmatprep.subr.bf16.mxu0 0
    %6076 = vmatpush1.bf16.xpose.msra.mxu0 0
    %6077 = vmatprep.mubr.bf16.mxu0 0
    %6078 = vmatmul.mubr.bf16.gmra.mrb[0].mxu0 %v6040
    %v6079 = vpop.f32.mrb[0].mxu0
    %v6080 = vadd.f32 0.0, %v6079
    %v6081 = vpop.f32.mrb[0].mxu0
    %v6082 = vpop.f32.mrb[0].mxu0
    %v6083 = vadd.f32 0.0, %v6082
    %v6084 = vpop.f32.mrb[0].mxu0
    %6085 = vdwg.mxu0
    %6086 = vrot.lane.b32.xlu0 %v5268, 32
    %v6087 = vpop.permute.xlu0 %6086
    %6088 = vrot.lane.b32.xlu0 %v5270, 32
    %v6089 = vpop.permute.xlu0 %6088
    %v6091 = vsel %vm4237, %v6087, 0
    %v6094 = vsel %vm4237, %v6089, 0
    %6096 = vmatprep.subr.bf16.mxu0 0
    %6097 = vmatpush1.bf16.xpose.msra.mxu0 %v6094
    %6098 = vmatprep.subr.bf16.mxu0 0
    %6099 = vmatpush1.bf16.xpose.msra.mxu0 0
    %6100 = vmatprep.subr.bf16.mxu0 0
    %6101 = vmatpush1.bf16.xpose.msra.mxu0 0
    %6102 = vmatprep.subr.bf16.mxu0 0
    %6103 = vmatpush1.bf16.xpose.msra.mxu0 0
    %6104 = vmatprep.subr.bf16.mxu0 0
    %6105 = vmatpush1.bf16.xpose.msra.mxu0 0
    %6106 = vmatprep.subr.bf16.mxu0 0
    %6107 = vmatpush1.bf16.xpose.msra.mxu0 0
    %6108 = vmatprep.subr.bf16.mxu0 0
    %6109 = vmatpush1.bf16.xpose.msra.mxu0 0
    %6110 = vmatprep.subr.bf16.mxu0 0
    %6111 = vmatpush1.bf16.xpose.msra.mxu0 0
    %6112 = vmatprep.subr.bf16.mxu0 0
    %6113 = vmatpush1.bf16.xpose.msra.mxu0 0
    %6114 = vmatprep.subr.bf16.mxu0 0
    %6115 = vmatpush1.bf16.xpose.msra.mxu0 0
    %6116 = vmatprep.subr.bf16.mxu0 0
    %6117 = vmatpush1.bf16.xpose.msra.mxu0 0
    %6118 = vmatprep.subr.bf16.mxu0 0
    %6119 = vmatpush1.bf16.xpose.msra.mxu0 0
    %6120 = vmatprep.subr.bf16.mxu0 0
    %6121 = vmatpush1.bf16.xpose.msra.mxu0 0
    %6122 = vmatprep.subr.bf16.mxu0 0
    %6123 = vmatpush1.bf16.xpose.msra.mxu0 0
    %6124 = vmatprep.subr.bf16.mxu0 0
    %6125 = vmatpush1.bf16.xpose.msra.mxu0 0
    %6126 = vmatprep.subr.bf16.mxu0 0
    %6127 = vmatpush1.bf16.xpose.msra.mxu0 0
    %6128 = vmatprep.mubr.bf16.mxu0 0
    %6129 = vmatmul.mubr.bf16.gmra.mrb[0].mxu0 %v6091
    %v6130 = vpop.f32.mrb[0].mxu0
    %v6131 = vadd.f32 0.0, %v6130
    %v6132 = vpop.f32.mrb[0].mxu0
    %v6133 = vpop.f32.mrb[0].mxu0
    %v6134 = vadd.f32 0.0, %v6133
    %v6135 = vpop.f32.mrb[0].mxu0
    %6136 = vdwg.mxu0
    %v6137 = vsel %vm660, %v6080, -inf
    %6138 = vmax.xlane.f32.xlu0 %v6137
    %v6139 = vpop.xlane.xlu0 %6138
    %v6140 = vsel %vm660, %v6083, -inf
    %6141 = vmax.xlane.f32.xlu0 %v6140
    %v6142 = vpop.xlane.xlu0 %6141
    %v6143 = vsel %vm660, %v6131, -inf
    %6144 = vmax.xlane.f32.xlu0 %v6143
    %v6145 = vpop.xlane.xlu0 %6144
    %v6146 = vsel %vm660, %v6134, -inf
    %6147 = vmax.xlane.f32.xlu0 %v6146
    %v6148 = vpop.xlane.xlu0 %6147
    %v6149 = vsub.f32 %v6080, %v6139
    %v6150 = vsub.f32 %v6083, %v6142
    %v6151 = vsub.f32 %v6131, %v6145
    %v6152 = vsub.f32 %v6134, %v6148
    %v6153 = vmul.f32 %v6149, 1.442695
    %v6154 = vpow.pop %v6153
    %v6155 = vmul.f32 %v6150, 1.442695
    %v6156 = vpow.pop %v6155
    %v6157 = vmul.f32 %v6151, 1.442695
    %v6158 = vpow.pop %v6157
    %v6159 = vmul.f32 %v6152, 1.442695
    %v6160 = vpow.pop %v6159
    %v6161 = vsel %vm660, %v6154, 0.0
    %6162 = vadd.xlane.f32.xlu0 %v6161
    %v6163 = vpop.xlane.xlu0 %6162
    %v6164 = vsel %vm660, %v6156, 0.0
    %6165 = vadd.xlane.f32.xlu0 %v6164
    %v6166 = vpop.xlane.xlu0 %6165
    %v6167 = vsel %vm660, %v6158, 0.0
    %6168 = vadd.xlane.f32.xlu0 %v6167
    %v6169 = vpop.xlane.xlu0 %6168
    %v6170 = vsel %vm660, %v6160, 0.0
    %6171 = vadd.xlane.f32.xlu0 %v6170
    %v6172 = vpop.xlane.xlu0 %6171
    %v6173 = vrcp.pop %v6163
    %v6174 = vrcp.pop %v6166
    %v6175 = vrcp.pop %v6169
    %v6176 = vrcp.pop %v6172
    %v6177 = vmul.f32 %v6154, %v6173
    %v6178 = vmul.f32 %v6156, %v6174
    %v6179 = vmul.f32 %v6158, %v6175
    %v6180 = vmul.f32 %v6160, %v6176
    %v6181 = vpack.c.bf16 %v6178, %v6177
    %v6182 = vpack.c.bf16 %v6180, %v6179
    %6183 = vrot.lane.b32.xlu0 %v5411, 32
    %v6184 = vpop.permute.xlu0 %6183
    %v6187 = vsel %vm660, %v6181, 0
    %6189 = vmatprep.subr.bf16.mxu0 0
    %6190 = vmatpush1.bf16.msra.mxu0 %v6184
    %6191 = vmatprep.subr.bf16.mxu0 0
    %6192 = vmatpush1.bf16.msra.mxu0 0
    %6193 = vmatprep.subr.bf16.mxu0 0
    %6194 = vmatpush1.bf16.msra.mxu0 0
    %6195 = vmatprep.subr.bf16.mxu0 0
    %6196 = vmatpush1.bf16.msra.mxu0 0
    %6197 = vmatprep.subr.bf16.mxu0 0
    %6198 = vmatpush1.bf16.msra.mxu0 0
    %6199 = vmatprep.subr.bf16.mxu0 0
    %6200 = vmatpush1.bf16.msra.mxu0 0
    %6201 = vmatprep.subr.bf16.mxu0 0
    %6202 = vmatpush1.bf16.msra.mxu0 0
    %6203 = vmatprep.subr.bf16.mxu0 0
    %6204 = vmatpush1.bf16.msra.mxu0 0
    %6205 = vmatprep.subr.bf16.mxu0 0
    %6206 = vmatpush1.bf16.msra.mxu0 0
    %6207 = vmatprep.subr.bf16.mxu0 0
    %6208 = vmatpush1.bf16.msra.mxu0 0
    %6209 = vmatprep.subr.bf16.mxu0 0
    %6210 = vmatpush1.bf16.msra.mxu0 0
    %6211 = vmatprep.subr.bf16.mxu0 0
    %6212 = vmatpush1.bf16.msra.mxu0 0
    %6213 = vmatprep.subr.bf16.mxu0 0
    %6214 = vmatpush1.bf16.msra.mxu0 0
    %6215 = vmatprep.subr.bf16.mxu0 0
    %6216 = vmatpush1.bf16.msra.mxu0 0
    %6217 = vmatprep.subr.bf16.mxu0 0
    %6218 = vmatpush1.bf16.msra.mxu0 0
    %6219 = vmatprep.subr.bf16.mxu0 0
    %6220 = vmatpush1.bf16.msra.mxu0 0
    %6221 = vmatprep.mubr.bf16.mxu0 0
    %6222 = vmatmul.mubr.bf16.gmra.mrb[0].mxu0 %v6187
    %v6223 = vpop.f32.mrb[0].mxu0
    %v6224 = vadd.f32 0.0, %v6223
    %v6225 = vpop.f32.mrb[0].mxu0
    %v6226 = vpop.f32.mrb[0].mxu0
    %v6227 = vadd.f32 0.0, %v6226
    %v6228 = vpop.f32.mrb[0].mxu0
    %6229 = vdwg.mxu0
    %6230 = vrot.lane.b32.xlu0 %v5412, 32
    %v6231 = vpop.permute.xlu0 %6230
    %v6234 = vsel %vm660, %v6182, 0
    %6236 = vmatprep.subr.bf16.mxu0 0
    %6237 = vmatpush1.bf16.msra.mxu0 %v6231
    %6238 = vmatprep.subr.bf16.mxu0 0
    %6239 = vmatpush1.bf16.msra.mxu0 0
    %6240 = vmatprep.subr.bf16.mxu0 0
    %6241 = vmatpush1.bf16.msra.mxu0 0
    %6242 = vmatprep.subr.bf16.mxu0 0
    %6243 = vmatpush1.bf16.msra.mxu0 0
    %6244 = vmatprep.subr.bf16.mxu0 0
    %6245 = vmatpush1.bf16.msra.mxu0 0
    %6246 = vmatprep.subr.bf16.mxu0 0
    %6247 = vmatpush1.bf16.msra.mxu0 0
    %6248 = vmatprep.subr.bf16.mxu0 0
    %6249 = vmatpush1.bf16.msra.mxu0 0
    %6250 = vmatprep.subr.bf16.mxu0 0
    %6251 = vmatpush1.bf16.msra.mxu0 0
    %6252 = vmatprep.subr.bf16.mxu0 0
    %6253 = vmatpush1.bf16.msra.mxu0 0
    %6254 = vmatprep.subr.bf16.mxu0 0
    %6255 = vmatpush1.bf16.msra.mxu0 0
    %6256 = vmatprep.subr.bf16.mxu0 0
    %6257 = vmatpush1.bf16.msra.mxu0 0
    %6258 = vmatprep.subr.bf16.mxu0 0
    %6259 = vmatpush1.bf16.msra.mxu0 0
    %6260 = vmatprep.subr.bf16.mxu0 0
    %6261 = vmatpush1.bf16.msra.mxu0 0
    %6262 = vmatprep.subr.bf16.mxu0 0
    %6263 = vmatpush1.bf16.msra.mxu0 0
    %6264 = vmatprep.subr.bf16.mxu0 0
    %6265 = vmatpush1.bf16.msra.mxu0 0
    %6266 = vmatprep.subr.bf16.mxu0 0
    %6267 = vmatpush1.bf16.msra.mxu0 0
    %6268 = vmatprep.mubr.bf16.mxu0 0
    %6269 = vmatmul.mubr.bf16.gmra.mrb[0].mxu0 %v6234
    %v6270 = vpop.f32.mrb[0].mxu0
    %v6271 = vadd.f32 0.0, %v6270
    %v6272 = vpop.f32.mrb[0].mxu0
    %v6273 = vpop.f32.mrb[0].mxu0
    %v6274 = vadd.f32 0.0, %v6273
    %v6275 = vpop.f32.mrb[0].mxu0
    %6276 = vdwg.mxu0
    %6281 = vrot.lane.b32.xlu0 %v6224, 96
    %v6282 = vpop.permute.xlu0 %6281
    %6283 = vrot.lane.b32.xlu0 %v6227, 96
    %v6284 = vpop.permute.xlu0 %6283
    %6285 = vrot.lane.b32.xlu0 %v6271, 96
    %v6286 = vpop.permute.xlu0 %6285
    %6287 = vrot.lane.b32.xlu0 %v6274, 96
    %v6288 = vpop.permute.xlu0 %6287
    %6293 = vst.msk [vmem:[#allocation3 + $0x8] sm:$0xff] %vm5262, %v6282
    %6294 = vst.msk [vmem:[#allocation3 + $0x18] sm:$0xff] %vm5262, %v6284
    %6295 = vst.msk [vmem:[#allocation3 + $0x28] sm:$0xff] %vm5262, %v6286
    %6296 = vst.msk [vmem:[#allocation3 + $0x38] sm:$0xff] %vm5262, %v6288
    %v6297 = vld [vmem:[#allocation3] sm:$0xff]
    %v6298 = vld [vmem:[#allocation3 + $0x8] sm:$0xff]
    %v6299 = vld [vmem:[#allocation3 + $0x10] sm:$0xff]
    %v6300 = vld [vmem:[#allocation3 + $0x18] sm:$0xff]
    %v6301 = vld [vmem:[#allocation3 + $0x20] sm:$0xff]
    %v6302 = vld [vmem:[#allocation3 + $0x28] sm:$0xff]
    %v6303 = vld [vmem:[#allocation3 + $0x30] sm:$0xff]
    %v6304 = vld [vmem:[#allocation3 + $0x38] sm:$0xff]
    %v6305 = vpack.c.bf16 %v6299, %v6297
    %v6306 = vpack.c.bf16 %v6300, %v6298
    %v6307 = vpack.c.bf16 %v6303, %v6301
    %v6308 = vpack.c.bf16 %v6304, %v6302
    %v6309 = vld [vmem:[#allocation39] sm:$0xff]
    %v6310 = vld [vmem:[#allocation39 + $0x8] sm:$0xff]
    %v6311 = vld [vmem:[#allocation39 + $0x10] sm:$0xff]
    %v6312 = vld [vmem:[#allocation39 + $0x18] sm:$0xff]
    %v6313 = vld [vmem:[#allocation39 + $0x20] sm:$0xff]
    %v6314 = vld [vmem:[#allocation39 + $0x28] sm:$0xff]
    %v6315 = vld [vmem:[#allocation39 + $0x30] sm:$0xff]
    %v6316 = vld [vmem:[#allocation39 + $0x38] sm:$0xff]
    %v6317 = vld [vmem:[#allocation39 + $0x40] sm:$0xff]
    %v6318 = vld [vmem:[#allocation39 + $0x48] sm:$0xff]
    %v6319 = vld [vmem:[#allocation39 + $0x50] sm:$0xff]
    %v6320 = vld [vmem:[#allocation39 + $0x58] sm:$0xff]
    %v6321 = vld [vmem:[#allocation39 + $0x60] sm:$0xff]
    %v6322 = vld [vmem:[#allocation39 + $0x68] sm:$0xff]
    %v6323 = vld [vmem:[#allocation39 + $0x70] sm:$0xff]
    %v6324 = vld [vmem:[#allocation39 + $0x78] sm:$0xff]
    %v6325 = vld [vmem:[#allocation39 + $0x80] sm:$0xff]
    %v6326 = vld [vmem:[#allocation39 + $0x88] sm:$0xff]
    %v6327 = vld [vmem:[#allocation39 + $0x90] sm:$0xff]
    %v6328 = vld [vmem:[#allocation39 + $0x98] sm:$0xff]
    %v6329 = vld [vmem:[#allocation39 + $0xa0] sm:$0xff]
    %v6330 = vld [vmem:[#allocation39 + $0xa8] sm:$0xff]
    %v6331 = vld [vmem:[#allocation39 + $0xb0] sm:$0xff]
    %v6332 = vld [vmem:[#allocation39 + $0xb8] sm:$0xff]
    %v6333 = vld [vmem:[#allocation39 + $0xc0] sm:$0xff]
    %v6334 = vld [vmem:[#allocation39 + $0xc8] sm:$0xff]
    %v6335 = vld [vmem:[#allocation39 + $0xd0] sm:$0xff]
    %v6336 = vld [vmem:[#allocation39 + $0xd8] sm:$0xff]
    %v6337 = vld [vmem:[#allocation39 + $0xe0] sm:$0xff]
    %v6338 = vld [vmem:[#allocation39 + $0xe8] sm:$0xff]
    %v6339 = vld [vmem:[#allocation39 + $0xf0] sm:$0xff]
    %v6340 = vld [vmem:[#allocation39 + $0xf8] sm:$0xff]
    %v6341 = vld [vmem:[#allocation40] sm:$0x3]
    %v6343 = vlaneseq
    %v6344 = vshrl.u32 %v6343, 7
    %v6345 = vsub.s32 0, %v6344
    %v6346 = vrot.slane %v6341, %v6345
    %v6347 = vlaneseq
    %v6348 = vshrl.u32 %v6347, 7
    %v6349 = vsub.s32 1, %v6348
    %v6350 = vrot.slane %v6341, %v6349
    %v6385 = vunpack.c.l.b16 %v6309
    %v6386 = vunpack.c.h.b16 %v6309
    %v6387 = vunpack.c.l.b16 %v6310
    %v6388 = vunpack.c.h.b16 %v6310
    %v6389 = vunpack.c.l.b16 %v6311
    %v6390 = vunpack.c.h.b16 %v6311
    %v6391 = vunpack.c.l.b16 %v6312
    %v6392 = vunpack.c.h.b16 %v6312
    %v6393 = vunpack.c.l.b16 %v6313
    %v6394 = vunpack.c.h.b16 %v6313
    %v6395 = vunpack.c.l.b16 %v6314
    %v6396 = vunpack.c.h.b16 %v6314
    %v6397 = vunpack.c.l.b16 %v6315
    %v6398 = vunpack.c.h.b16 %v6315
    %v6399 = vunpack.c.l.b16 %v6316
    %v6400 = vunpack.c.h.b16 %v6316
    %v6401 = vunpack.c.l.b16 %v6317
    %v6402 = vunpack.c.h.b16 %v6317
    %v6403 = vunpack.c.l.b16 %v6318
    %v6404 = vunpack.c.h.b16 %v6318
    %v6405 = vunpack.c.l.b16 %v6319
    %v6406 = vunpack.c.h.b16 %v6319
    %v6407 = vunpack.c.l.b16 %v6320
    %v6408 = vunpack.c.h.b16 %v6320
    %v6409 = vunpack.c.l.b16 %v6321
    %v6410 = vunpack.c.h.b16 %v6321
    %v6411 = vunpack.c.l.b16 %v6322
    %v6412 = vunpack.c.h.b16 %v6322
    %v6413 = vunpack.c.l.b16 %v6323
    %v6414 = vunpack.c.h.b16 %v6323
    %v6415 = vunpack.c.l.b16 %v6324
    %v6416 = vunpack.c.h.b16 %v6324
    %v6417 = vunpack.c.l.b16 %v6325
    %v6418 = vunpack.c.h.b16 %v6325
    %v6419 = vunpack.c.l.b16 %v6326
    %v6420 = vunpack.c.h.b16 %v6326
    %v6421 = vunpack.c.l.b16 %v6327
    %v6422 = vunpack.c.h.b16 %v6327
    %v6423 = vunpack.c.l.b16 %v6328
    %v6424 = vunpack.c.h.b16 %v6328
    %v6425 = vunpack.c.l.b16 %v6329
    %v6426 = vunpack.c.h.b16 %v6329
    %v6427 = vunpack.c.l.b16 %v6330
    %v6428 = vunpack.c.h.b16 %v6330
    %v6429 = vunpack.c.l.b16 %v6331
    %v6430 = vunpack.c.h.b16 %v6331
    %v6431 = vunpack.c.l.b16 %v6332
    %v6432 = vunpack.c.h.b16 %v6332
    %v6433 = vunpack.c.l.b16 %v6333
    %v6434 = vunpack.c.h.b16 %v6333
    %v6435 = vunpack.c.l.b16 %v6334
    %v6436 = vunpack.c.h.b16 %v6334
    %v6437 = vunpack.c.l.b16 %v6335
    %v6438 = vunpack.c.h.b16 %v6335
    %v6439 = vunpack.c.l.b16 %v6336
    %v6440 = vunpack.c.h.b16 %v6336
    %v6441 = vunpack.c.l.b16 %v6337
    %v6442 = vunpack.c.h.b16 %v6337
    %v6443 = vunpack.c.l.b16 %v6338
    %v6444 = vunpack.c.h.b16 %v6338
    %v6445 = vunpack.c.l.b16 %v6339
    %v6446 = vunpack.c.h.b16 %v6339
    %v6447 = vunpack.c.l.b16 %v6340
    %v6448 = vunpack.c.h.b16 %v6340
    %v6449 = vpack.c.b16 %v6387, %v6385
    %v6450 = vpack.c.b16 %v6388, %v6386
    %v6451 = vpack.c.b16 %v6391, %v6389
    %v6452 = vpack.c.b16 %v6392, %v6390
    %v6453 = vpack.c.b16 %v6395, %v6393
    %v6454 = vpack.c.b16 %v6396, %v6394
    %v6455 = vpack.c.b16 %v6399, %v6397
    %v6456 = vpack.c.b16 %v6400, %v6398
    %v6457 = vpack.c.b16 %v6403, %v6401
    %v6458 = vpack.c.b16 %v6404, %v6402
    %v6459 = vpack.c.b16 %v6407, %v6405
    %v6460 = vpack.c.b16 %v6408, %v6406
    %v6461 = vpack.c.b16 %v6411, %v6409
    %v6462 = vpack.c.b16 %v6412, %v6410
    %v6463 = vpack.c.b16 %v6415, %v6413
    %v6464 = vpack.c.b16 %v6416, %v6414
    %v6465 = vpack.c.b16 %v6419, %v6417
    %v6466 = vpack.c.b16 %v6420, %v6418
    %v6467 = vpack.c.b16 %v6423, %v6421
    %v6468 = vpack.c.b16 %v6424, %v6422
    %v6469 = vpack.c.b16 %v6427, %v6425
    %v6470 = vpack.c.b16 %v6428, %v6426
    %v6471 = vpack.c.b16 %v6431, %v6429
    %v6472 = vpack.c.b16 %v6432, %v6430
    %v6473 = vpack.c.b16 %v6435, %v6433
    %v6474 = vpack.c.b16 %v6436, %v6434
    %v6475 = vpack.c.b16 %v6439, %v6437
    %v6476 = vpack.c.b16 %v6440, %v6438
    %v6477 = vpack.c.b16 %v6443, %v6441
    %v6478 = vpack.c.b16 %v6444, %v6442
    %v6479 = vpack.c.b16 %v6447, %v6445
    %v6480 = vpack.c.b16 %v6448, %v6446
    %6513 = vmatprep.subr.bf16.mxu0 %v6450
    %6514 = vmatpush1.bf16.msra.mxu0 %v6449
    %6515 = vmatprep.subr.bf16.mxu0 %v6452
    %6516 = vmatpush1.bf16.msra.mxu0 %v6451
    %6517 = vmatprep.subr.bf16.mxu0 %v6454
    %6518 = vmatpush1.bf16.msra.mxu0 %v6453
    %6519 = vmatprep.subr.bf16.mxu0 %v6456
    %6520 = vmatpush1.bf16.msra.mxu0 %v6455
    %6521 = vmatprep.subr.bf16.mxu0 %v6458
    %6522 = vmatpush1.bf16.msra.mxu0 %v6457
    %6523 = vmatprep.subr.bf16.mxu0 %v6460
    %6524 = vmatpush1.bf16.msra.mxu0 %v6459
    %6525 = vmatprep.subr.bf16.mxu0 %v6462
    %6526 = vmatpush1.bf16.msra.mxu0 %v6461
    %6527 = vmatprep.subr.bf16.mxu0 %v6464
    %6528 = vmatpush1.bf16.msra.mxu0 %v6463
    %6529 = vmatprep.subr.bf16.mxu0 %v6466
    %6530 = vmatpush1.bf16.msra.mxu0 %v6465
    %6531 = vmatprep.subr.bf16.mxu0 %v6468
    %6532 = vmatpush1.bf16.msra.mxu0 %v6467
    %6533 = vmatprep.subr.bf16.mxu0 %v6470
    %6534 = vmatpush1.bf16.msra.mxu0 %v6469
    %6535 = vmatprep.subr.bf16.mxu0 %v6472
    %6536 = vmatpush1.bf16.msra.mxu0 %v6471
    %6537 = vmatprep.subr.bf16.mxu0 %v6474
    %6538 = vmatpush1.bf16.msra.mxu0 %v6473
    %6539 = vmatprep.subr.bf16.mxu0 %v6476
    %6540 = vmatpush1.bf16.msra.mxu0 %v6475
    %6541 = vmatprep.subr.bf16.mxu0 %v6478
    %6542 = vmatpush1.bf16.msra.mxu0 %v6477
    %6543 = vmatprep.subr.bf16.mxu0 %v6480
    %6544 = vmatpush1.bf16.msra.mxu0 %v6479
    %6545 = vmatprep.mubr.bf16.mxu0 %v6306
    %6546 = vmatmul.mubr.bf16.gmra.mrb[0].mxu0 %v6305
    %v6547 = vpop.f32.mrb[0].mxu0
    %v6548 = vadd.f32 %v6346, %v6547
    %v6549 = vpop.f32.mrb[0].mxu0
    %v6550 = vadd.f32 %v6350, %v6549
    %v6551 = vpop.f32.mrb[0].mxu0
    %v6552 = vadd.f32 %v6346, %v6551
    %v6553 = vpop.f32.mrb[0].mxu0
    %v6554 = vadd.f32 %v6350, %v6553
    %6555 = vmatprep.mubr.bf16.mxu0 %v6308
    %6556 = vmatmul.mubr.bf16.gmra.mrb[0].mxu0 %v6307
    %v6557 = vpop.f32.mrb[0].mxu0
    %v6558 = vadd.f32 %v6346, %v6557
    %v6559 = vpop.f32.mrb[0].mxu0
    %v6560 = vadd.f32 %v6350, %v6559
    %v6561 = vpop.f32.mrb[0].mxu0
    %v6562 = vadd.f32 %v6346, %v6561
    %v6563 = vpop.f32.mrb[0].mxu0
    %v6564 = vadd.f32 %v6350, %v6563
    %6565 = vdwg.mxu0
    %v6566 = vadd.f32 %v6548, %v3454
    %v6567 = vadd.f32 %v6550, %v3455
    %v6568 = vadd.f32 %v6552, %v3456
    %v6569 = vadd.f32 %v6554, %v3457
    %v6570 = vadd.f32 %v6558, %v3458
    %v6571 = vadd.f32 %v6560, %v3459
    %v6572 = vadd.f32 %v6562, %v3460
    %v6573 = vadd.f32 %v6564, %v3461
    %v6574 = vmax.f32 %v6566, 0.0
    %v6575 = vmax.f32 %v6567, 0.0
    %v6576 = vmax.f32 %v6568, 0.0
    %v6577 = vmax.f32 %v6569, 0.0
    %v6578 = vmax.f32 %v6570, 0.0
    %v6579 = vmax.f32 %v6571, 0.0
    %v6580 = vmax.f32 %v6572, 0.0
    %v6581 = vmax.f32 %v6573, 0.0
    %v6582 = vpack.c.bf16 %v6576, %v6574
    %v6583 = vpack.c.bf16 %v6577, %v6575
    %v6584 = vpack.c.bf16 %v6580, %v6578
    %v6585 = vpack.c.bf16 %v6581, %v6579
    %v6586 = vld [vmem:[#allocation42] sm:$0xff]
    %v6587 = vld [vmem:[#allocation42 + $0x8] sm:$0xff]
    %v6588 = vld [vmem:[#allocation42 + $0x10] sm:$0xff]
    %v6589 = vld [vmem:[#allocation42 + $0x18] sm:$0xff]
    %v6590 = vld [vmem:[#allocation42 + $0x20] sm:$0xff]
    %v6591 = vld [vmem:[#allocation42 + $0x28] sm:$0xff]
    %v6592 = vld [vmem:[#allocation42 + $0x30] sm:$0xff]
    %v6593 = vld [vmem:[#allocation42 + $0x38] sm:$0xff]
    %v6594 = vld [vmem:[#allocation42 + $0x40] sm:$0xff]
    %v6595 = vld [vmem:[#allocation42 + $0x48] sm:$0xff]
    %v6596 = vld [vmem:[#allocation42 + $0x50] sm:$0xff]
    %v6597 = vld [vmem:[#allocation42 + $0x58] sm:$0xff]
    %v6598 = vld [vmem:[#allocation42 + $0x60] sm:$0xff]
    %v6599 = vld [vmem:[#allocation42 + $0x68] sm:$0xff]
    %v6600 = vld [vmem:[#allocation42 + $0x70] sm:$0xff]
    %v6601 = vld [vmem:[#allocation42 + $0x78] sm:$0xff]
    %v6602 = vld [vmem:[#allocation42 + $0x80] sm:$0xff]
    %v6603 = vld [vmem:[#allocation42 + $0x88] sm:$0xff]
    %v6604 = vld [vmem:[#allocation42 + $0x90] sm:$0xff]
    %v6605 = vld [vmem:[#allocation42 + $0x98] sm:$0xff]
    %v6606 = vld [vmem:[#allocation42 + $0xa0] sm:$0xff]
    %v6607 = vld [vmem:[#allocation42 + $0xa8] sm:$0xff]
    %v6608 = vld [vmem:[#allocation42 + $0xb0] sm:$0xff]
    %v6609 = vld [vmem:[#allocation42 + $0xb8] sm:$0xff]
    %v6610 = vld [vmem:[#allocation42 + $0xc0] sm:$0xff]
    %v6611 = vld [vmem:[#allocation42 + $0xc8] sm:$0xff]
    %v6612 = vld [vmem:[#allocation42 + $0xd0] sm:$0xff]
    %v6613 = vld [vmem:[#allocation42 + $0xd8] sm:$0xff]
    %v6614 = vld [vmem:[#allocation42 + $0xe0] sm:$0xff]
    %v6615 = vld [vmem:[#allocation42 + $0xe8] sm:$0xff]
    %v6616 = vld [vmem:[#allocation42 + $0xf0] sm:$0xff]
    %v6617 = vld [vmem:[#allocation42 + $0xf8] sm:$0xff]
    %v6618 = vld [vmem:[#allocation42 + $0x100] sm:$0xff]
    %v6619 = vld [vmem:[#allocation42 + $0x108] sm:$0xff]
    %v6620 = vld [vmem:[#allocation42 + $0x110] sm:$0xff]
    %v6621 = vld [vmem:[#allocation42 + $0x118] sm:$0xff]
    %v6622 = vld [vmem:[#allocation42 + $0x120] sm:$0xff]
    %v6623 = vld [vmem:[#allocation42 + $0x128] sm:$0xff]
    %v6624 = vld [vmem:[#allocation42 + $0x130] sm:$0xff]
    %v6625 = vld [vmem:[#allocation42 + $0x138] sm:$0xff]
    %v6626 = vld [vmem:[#allocation42 + $0x140] sm:$0xff]
    %v6627 = vld [vmem:[#allocation42 + $0x148] sm:$0xff]
    %v6628 = vld [vmem:[#allocation42 + $0x150] sm:$0xff]
    %v6629 = vld [vmem:[#allocation42 + $0x158] sm:$0xff]
    %v6630 = vld [vmem:[#allocation42 + $0x160] sm:$0xff]
    %v6631 = vld [vmem:[#allocation42 + $0x168] sm:$0xff]
    %v6632 = vld [vmem:[#allocation42 + $0x170] sm:$0xff]
    %v6633 = vld [vmem:[#allocation42 + $0x178] sm:$0xff]
    %v6634 = vld [vmem:[#allocation42 + $0x180] sm:$0xff]
    %v6635 = vld [vmem:[#allocation42 + $0x188] sm:$0xff]
    %v6636 = vld [vmem:[#allocation42 + $0x190] sm:$0xff]
    %v6637 = vld [vmem:[#allocation42 + $0x198] sm:$0xff]
    %v6638 = vld [vmem:[#allocation42 + $0x1a0] sm:$0xff]
    %v6639 = vld [vmem:[#allocation42 + $0x1a8] sm:$0xff]
    %v6640 = vld [vmem:[#allocation42 + $0x1b0] sm:$0xff]
    %v6641 = vld [vmem:[#allocation42 + $0x1b8] sm:$0xff]
    %v6642 = vld [vmem:[#allocation42 + $0x1c0] sm:$0xff]
    %v6643 = vld [vmem:[#allocation42 + $0x1c8] sm:$0xff]
    %v6644 = vld [vmem:[#allocation42 + $0x1d0] sm:$0xff]
    %v6645 = vld [vmem:[#allocation42 + $0x1d8] sm:$0xff]
    %v6646 = vld [vmem:[#allocation42 + $0x1e0] sm:$0xff]
    %v6647 = vld [vmem:[#allocation42 + $0x1e8] sm:$0xff]
    %v6648 = vld [vmem:[#allocation42 + $0x1f0] sm:$0xff]
    %v6649 = vld [vmem:[#allocation42 + $0x1f8] sm:$0xff]
    %v6650 = vld [vmem:[#allocation42 + $0x200] sm:$0xff]
    %v6651 = vld [vmem:[#allocation42 + $0x208] sm:$0xff]
    %v6652 = vld [vmem:[#allocation42 + $0x210] sm:$0xff]
    %v6653 = vld [vmem:[#allocation42 + $0x218] sm:$0xff]
    %v6654 = vld [vmem:[#allocation42 + $0x220] sm:$0xff]
    %v6655 = vld [vmem:[#allocation42 + $0x228] sm:$0xff]
    %v6656 = vld [vmem:[#allocation42 + $0x230] sm:$0xff]
    %v6657 = vld [vmem:[#allocation42 + $0x238] sm:$0xff]
    %v6658 = vld [vmem:[#allocation42 + $0x240] sm:$0xff]
    %v6659 = vld [vmem:[#allocation42 + $0x248] sm:$0xff]
    %v6660 = vld [vmem:[#allocation42 + $0x250] sm:$0xff]
    %v6661 = vld [vmem:[#allocation42 + $0x258] sm:$0xff]
    %v6662 = vld [vmem:[#allocation42 + $0x260] sm:$0xff]
    %v6663 = vld [vmem:[#allocation42 + $0x268] sm:$0xff]
    %v6664 = vld [vmem:[#allocation42 + $0x270] sm:$0xff]
    %v6665 = vld [vmem:[#allocation42 + $0x278] sm:$0xff]
    %v6666 = vld [vmem:[#allocation42 + $0x280] sm:$0xff]
    %v6667 = vld [vmem:[#allocation42 + $0x288] sm:$0xff]
    %v6668 = vld [vmem:[#allocation42 + $0x290] sm:$0xff]
    %v6669 = vld [vmem:[#allocation42 + $0x298] sm:$0xff]
    %v6670 = vld [vmem:[#allocation42 + $0x2a0] sm:$0xff]
    %v6671 = vld [vmem:[#allocation42 + $0x2a8] sm:$0xff]
    %v6672 = vld [vmem:[#allocation42 + $0x2b0] sm:$0xff]
    %v6673 = vld [vmem:[#allocation42 + $0x2b8] sm:$0xff]
    %v6674 = vld [vmem:[#allocation42 + $0x2c0] sm:$0xff]
    %v6675 = vld [vmem:[#allocation42 + $0x2c8] sm:$0xff]
    %v6676 = vld [vmem:[#allocation42 + $0x2d0] sm:$0xff]
    %v6677 = vld [vmem:[#allocation42 + $0x2d8] sm:$0xff]
    %v6678 = vld [vmem:[#allocation42 + $0x2e0] sm:$0xff]
    %v6679 = vld [vmem:[#allocation42 + $0x2e8] sm:$0xff]
    %v6680 = vld [vmem:[#allocation42 + $0x2f0] sm:$0xff]
    %v6681 = vld [vmem:[#allocation42 + $0x2f8] sm:$0xff]
    %v6682 = vld [vmem:[#allocation43] sm:$0x3f]
    %v6684 = vlaneseq
    %v6685 = vshrl.u32 %v6684, 7
    %v6686 = vsub.s32 0, %v6685
    %v6687 = vrot.slane %v6682, %v6686
    %v6688 = vlaneseq
    %v6689 = vshrl.u32 %v6688, 7
    %v6690 = vsub.s32 1, %v6689
    %v6691 = vrot.slane %v6682, %v6690
    %v6692 = vlaneseq
    %v6693 = vshrl.u32 %v6692, 7
    %v6694 = vsub.s32 2, %v6693
    %v6695 = vrot.slane %v6682, %v6694
    %v6696 = vlaneseq
    %v6697 = vshrl.u32 %v6696, 7
    %v6698 = vsub.s32 3, %v6697
    %v6699 = vrot.slane %v6682, %v6698
    %v6700 = vlaneseq
    %v6701 = vshrl.u32 %v6700, 7
    %v6702 = vsub.s32 4, %v6701
    %v6703 = vrot.slane %v6682, %v6702
    %v6704 = vlaneseq
    %v6705 = vshrl.u32 %v6704, 7
    %v6706 = vsub.s32 5, %v6705
    %v6707 = vrot.slane %v6682, %v6706
    %v6810 = vunpack.c.l.b16 %v6586
    %v6811 = vunpack.c.h.b16 %v6586
    %v6812 = vunpack.c.l.b16 %v6587
    %v6813 = vunpack.c.h.b16 %v6587
    %v6814 = vunpack.c.l.b16 %v6588
    %v6815 = vunpack.c.h.b16 %v6588
    %v6816 = vunpack.c.l.b16 %v6589
    %v6817 = vunpack.c.h.b16 %v6589
    %v6818 = vunpack.c.l.b16 %v6590
    %v6819 = vunpack.c.h.b16 %v6590
    %v6820 = vunpack.c.l.b16 %v6591
    %v6821 = vunpack.c.h.b16 %v6591
    %v6822 = vunpack.c.l.b16 %v6592
    %v6823 = vunpack.c.h.b16 %v6592
    %v6824 = vunpack.c.l.b16 %v6593
    %v6825 = vunpack.c.h.b16 %v6593
    %v6826 = vunpack.c.l.b16 %v6594
    %v6827 = vunpack.c.h.b16 %v6594
    %v6828 = vunpack.c.l.b16 %v6595
    %v6829 = vunpack.c.h.b16 %v6595
    %v6830 = vunpack.c.l.b16 %v6596
    %v6831 = vunpack.c.h.b16 %v6596
    %v6832 = vunpack.c.l.b16 %v6597
    %v6833 = vunpack.c.h.b16 %v6597
    %v6834 = vunpack.c.l.b16 %v6598
    %v6835 = vunpack.c.h.b16 %v6598
    %v6836 = vunpack.c.l.b16 %v6599
    %v6837 = vunpack.c.h.b16 %v6599
    %v6838 = vunpack.c.l.b16 %v6600
    %v6839 = vunpack.c.h.b16 %v6600
    %v6840 = vunpack.c.l.b16 %v6601
    %v6841 = vunpack.c.h.b16 %v6601
    %v6842 = vunpack.c.l.b16 %v6602
    %v6843 = vunpack.c.h.b16 %v6602
    %v6844 = vunpack.c.l.b16 %v6603
    %v6845 = vunpack.c.h.b16 %v6603
    %v6846 = vunpack.c.l.b16 %v6604
    %v6847 = vunpack.c.h.b16 %v6604
    %v6848 = vunpack.c.l.b16 %v6605
    %v6849 = vunpack.c.h.b16 %v6605
    %v6850 = vunpack.c.l.b16 %v6606
    %v6851 = vunpack.c.h.b16 %v6606
    %v6852 = vunpack.c.l.b16 %v6607
    %v6853 = vunpack.c.h.b16 %v6607
    %v6854 = vunpack.c.l.b16 %v6608
    %v6855 = vunpack.c.h.b16 %v6608
    %v6856 = vunpack.c.l.b16 %v6609
    %v6857 = vunpack.c.h.b16 %v6609
    %v6858 = vunpack.c.l.b16 %v6610
    %v6859 = vunpack.c.h.b16 %v6610
    %v6860 = vunpack.c.l.b16 %v6611
    %v6861 = vunpack.c.h.b16 %v6611
    %v6862 = vunpack.c.l.b16 %v6612
    %v6863 = vunpack.c.h.b16 %v6612
    %v6864 = vunpack.c.l.b16 %v6613
    %v6865 = vunpack.c.h.b16 %v6613
    %v6866 = vunpack.c.l.b16 %v6614
    %v6867 = vunpack.c.h.b16 %v6614
    %v6868 = vunpack.c.l.b16 %v6615
    %v6869 = vunpack.c.h.b16 %v6615
    %v6870 = vunpack.c.l.b16 %v6616
    %v6871 = vunpack.c.h.b16 %v6616
    %v6872 = vunpack.c.l.b16 %v6617
    %v6873 = vunpack.c.h.b16 %v6617
    %v6874 = vunpack.c.l.b16 %v6618
    %v6875 = vunpack.c.h.b16 %v6618
    %v6876 = vunpack.c.l.b16 %v6619
    %v6877 = vunpack.c.h.b16 %v6619
    %v6878 = vunpack.c.l.b16 %v6620
    %v6879 = vunpack.c.h.b16 %v6620
    %v6880 = vunpack.c.l.b16 %v6621
    %v6881 = vunpack.c.h.b16 %v6621
    %v6882 = vunpack.c.l.b16 %v6622
    %v6883 = vunpack.c.h.b16 %v6622
    %v6884 = vunpack.c.l.b16 %v6623
    %v6885 = vunpack.c.h.b16 %v6623
    %v6886 = vunpack.c.l.b16 %v6624
    %v6887 = vunpack.c.h.b16 %v6624
    %v6888 = vunpack.c.l.b16 %v6625
    %v6889 = vunpack.c.h.b16 %v6625
    %v6890 = vunpack.c.l.b16 %v6626
    %v6891 = vunpack.c.h.b16 %v6626
    %v6892 = vunpack.c.l.b16 %v6627
    %v6893 = vunpack.c.h.b16 %v6627
    %v6894 = vunpack.c.l.b16 %v6628
    %v6895 = vunpack.c.h.b16 %v6628
    %v6896 = vunpack.c.l.b16 %v6629
    %v6897 = vunpack.c.h.b16 %v6629
    %v6898 = vunpack.c.l.b16 %v6630
    %v6899 = vunpack.c.h.b16 %v6630
    %v6900 = vunpack.c.l.b16 %v6631
    %v6901 = vunpack.c.h.b16 %v6631
    %v6902 = vunpack.c.l.b16 %v6632
    %v6903 = vunpack.c.h.b16 %v6632
    %v6904 = vunpack.c.l.b16 %v6633
    %v6905 = vunpack.c.h.b16 %v6633
    %v6906 = vunpack.c.l.b16 %v6634
    %v6907 = vunpack.c.h.b16 %v6634
    %v6908 = vunpack.c.l.b16 %v6635
    %v6909 = vunpack.c.h.b16 %v6635
    %v6910 = vunpack.c.l.b16 %v6636
    %v6911 = vunpack.c.h.b16 %v6636
    %v6912 = vunpack.c.l.b16 %v6637
    %v6913 = vunpack.c.h.b16 %v6637
    %v6914 = vunpack.c.l.b16 %v6638
    %v6915 = vunpack.c.h.b16 %v6638
    %v6916 = vunpack.c.l.b16 %v6639
    %v6917 = vunpack.c.h.b16 %v6639
    %v6918 = vunpack.c.l.b16 %v6640
    %v6919 = vunpack.c.h.b16 %v6640
    %v6920 = vunpack.c.l.b16 %v6641
    %v6921 = vunpack.c.h.b16 %v6641
    %v6922 = vunpack.c.l.b16 %v6642
    %v6923 = vunpack.c.h.b16 %v6642
    %v6924 = vunpack.c.l.b16 %v6643
    %v6925 = vunpack.c.h.b16 %v6643
    %v6926 = vunpack.c.l.b16 %v6644
    %v6927 = vunpack.c.h.b16 %v6644
    %v6928 = vunpack.c.l.b16 %v6645
    %v6929 = vunpack.c.h.b16 %v6645
    %v6930 = vunpack.c.l.b16 %v6646
    %v6931 = vunpack.c.h.b16 %v6646
    %v6932 = vunpack.c.l.b16 %v6647
    %v6933 = vunpack.c.h.b16 %v6647
    %v6934 = vunpack.c.l.b16 %v6648
    %v6935 = vunpack.c.h.b16 %v6648
    %v6936 = vunpack.c.l.b16 %v6649
    %v6937 = vunpack.c.h.b16 %v6649
    %v6938 = vunpack.c.l.b16 %v6650
    %v6939 = vunpack.c.h.b16 %v6650
    %v6940 = vunpack.c.l.b16 %v6651
    %v6941 = vunpack.c.h.b16 %v6651
    %v6942 = vunpack.c.l.b16 %v6652
    %v6943 = vunpack.c.h.b16 %v6652
    %v6944 = vunpack.c.l.b16 %v6653
    %v6945 = vunpack.c.h.b16 %v6653
    %v6946 = vunpack.c.l.b16 %v6654
    %v6947 = vunpack.c.h.b16 %v6654
    %v6948 = vunpack.c.l.b16 %v6655
    %v6949 = vunpack.c.h.b16 %v6655
    %v6950 = vunpack.c.l.b16 %v6656
    %v6951 = vunpack.c.h.b16 %v6656
    %v6952 = vunpack.c.l.b16 %v6657
    %v6953 = vunpack.c.h.b16 %v6657
    %v6954 = vunpack.c.l.b16 %v6658
    %v6955 = vunpack.c.h.b16 %v6658
    %v6956 = vunpack.c.l.b16 %v6659
    %v6957 = vunpack.c.h.b16 %v6659
    %v6958 = vunpack.c.l.b16 %v6660
    %v6959 = vunpack.c.h.b16 %v6660
    %v6960 = vunpack.c.l.b16 %v6661
    %v6961 = vunpack.c.h.b16 %v6661
    %v6962 = vunpack.c.l.b16 %v6662
    %v6963 = vunpack.c.h.b16 %v6662
    %v6964 = vunpack.c.l.b16 %v6663
    %v6965 = vunpack.c.h.b16 %v6663
    %v6966 = vunpack.c.l.b16 %v6664
    %v6967 = vunpack.c.h.b16 %v6664
    %v6968 = vunpack.c.l.b16 %v6665
    %v6969 = vunpack.c.h.b16 %v6665
    %v6970 = vunpack.c.l.b16 %v6666
    %v6971 = vunpack.c.h.b16 %v6666
    %v6972 = vunpack.c.l.b16 %v6667
    %v6973 = vunpack.c.h.b16 %v6667
    %v6974 = vunpack.c.l.b16 %v6668
    %v6975 = vunpack.c.h.b16 %v6668
    %v6976 = vunpack.c.l.b16 %v6669
    %v6977 = vunpack.c.h.b16 %v6669
    %v6978 = vunpack.c.l.b16 %v6670
    %v6979 = vunpack.c.h.b16 %v6670
    %v6980 = vunpack.c.l.b16 %v6671
    %v6981 = vunpack.c.h.b16 %v6671
    %v6982 = vunpack.c.l.b16 %v6672
    %v6983 = vunpack.c.h.b16 %v6672
    %v6984 = vunpack.c.l.b16 %v6673
    %v6985 = vunpack.c.h.b16 %v6673
    %v6986 = vunpack.c.l.b16 %v6674
    %v6987 = vunpack.c.h.b16 %v6674
    %v6988 = vunpack.c.l.b16 %v6675
    %v6989 = vunpack.c.h.b16 %v6675
    %v6990 = vunpack.c.l.b16 %v6676
    %v6991 = vunpack.c.h.b16 %v6676
    %v6992 = vunpack.c.l.b16 %v6677
    %v6993 = vunpack.c.h.b16 %v6677
    %v6994 = vunpack.c.l.b16 %v6678
    %v6995 = vunpack.c.h.b16 %v6678
    %v6996 = vunpack.c.l.b16 %v6679
    %v6997 = vunpack.c.h.b16 %v6679
    %v6998 = vunpack.c.l.b16 %v6680
    %v6999 = vunpack.c.h.b16 %v6680
    %v7000 = vunpack.c.l.b16 %v6681
    %v7001 = vunpack.c.h.b16 %v6681
    %v7002 = vpack.c.b16 %v6816, %v6810
    %v7003 = vpack.c.b16 %v6817, %v6811
    %v7004 = vpack.c.b16 %v6818, %v6812
    %v7005 = vpack.c.b16 %v6819, %v6813
    %v7006 = vpack.c.b16 %v6820, %v6814
    %v7007 = vpack.c.b16 %v6821, %v6815
    %v7008 = vpack.c.b16 %v6828, %v6822
    %v7009 = vpack.c.b16 %v6829, %v6823
    %v7010 = vpack.c.b16 %v6830, %v6824
    %v7011 = vpack.c.b16 %v6831, %v6825
    %v7012 = vpack.c.b16 %v6832, %v6826
    %v7013 = vpack.c.b16 %v6833, %v6827
    %v7014 = vpack.c.b16 %v6840, %v6834
    %v7015 = vpack.c.b16 %v6841, %v6835
    %v7016 = vpack.c.b16 %v6842, %v6836
    %v7017 = vpack.c.b16 %v6843, %v6837
    %v7018 = vpack.c.b16 %v6844, %v6838
    %v7019 = vpack.c.b16 %v6845, %v6839
    %v7020 = vpack.c.b16 %v6852, %v6846
    %v7021 = vpack.c.b16 %v6853, %v6847
    %v7022 = vpack.c.b16 %v6854, %v6848
    %v7023 = vpack.c.b16 %v6855, %v6849
    %v7024 = vpack.c.b16 %v6856, %v6850
    %v7025 = vpack.c.b16 %v6857, %v6851
    %v7026 = vpack.c.b16 %v6864, %v6858
    %v7027 = vpack.c.b16 %v6865, %v6859
    %v7028 = vpack.c.b16 %v6866, %v6860
    %v7029 = vpack.c.b16 %v6867, %v6861
    %v7030 = vpack.c.b16 %v6868, %v6862
    %v7031 = vpack.c.b16 %v6869, %v6863
    %v7032 = vpack.c.b16 %v6876, %v6870
    %v7033 = vpack.c.b16 %v6877, %v6871
    %v7034 = vpack.c.b16 %v6878, %v6872
    %v7035 = vpack.c.b16 %v6879, %v6873
    %v7036 = vpack.c.b16 %v6880, %v6874
    %v7037 = vpack.c.b16 %v6881, %v6875
    %v7038 = vpack.c.b16 %v6888, %v6882
    %v7039 = vpack.c.b16 %v6889, %v6883
    %v7040 = vpack.c.b16 %v6890, %v6884
    %v7041 = vpack.c.b16 %v6891, %v6885
    %v7042 = vpack.c.b16 %v6892, %v6886
    %v7043 = vpack.c.b16 %v6893, %v6887
    %v7044 = vpack.c.b16 %v6900, %v6894
    %v7045 = vpack.c.b16 %v6901, %v6895
    %v7046 = vpack.c.b16 %v6902, %v6896
    %v7047 = vpack.c.b16 %v6903, %v6897
    %v7048 = vpack.c.b16 %v6904, %v6898
    %v7049 = vpack.c.b16 %v6905, %v6899
    %v7050 = vpack.c.b16 %v6912, %v6906
    %v7051 = vpack.c.b16 %v6913, %v6907
    %v7052 = vpack.c.b16 %v6914, %v6908
    %v7053 = vpack.c.b16 %v6915, %v6909
    %v7054 = vpack.c.b16 %v6916, %v6910
    %v7055 = vpack.c.b16 %v6917, %v6911
    %v7056 = vpack.c.b16 %v6924, %v6918
    %v7057 = vpack.c.b16 %v6925, %v6919
    %v7058 = vpack.c.b16 %v6926, %v6920
    %v7059 = vpack.c.b16 %v6927, %v6921
    %v7060 = vpack.c.b16 %v6928, %v6922
    %v7061 = vpack.c.b16 %v6929, %v6923
    %v7062 = vpack.c.b16 %v6936, %v6930
    %v7063 = vpack.c.b16 %v6937, %v6931
    %v7064 = vpack.c.b16 %v6938, %v6932
    %v7065 = vpack.c.b16 %v6939, %v6933
    %v7066 = vpack.c.b16 %v6940, %v6934
    %v7067 = vpack.c.b16 %v6941, %v6935
    %v7068 = vpack.c.b16 %v6948, %v6942
    %v7069 = vpack.c.b16 %v6949, %v6943
    %v7070 = vpack.c.b16 %v6950, %v6944
    %v7071 = vpack.c.b16 %v6951, %v6945
    %v7072 = vpack.c.b16 %v6952, %v6946
    %v7073 = vpack.c.b16 %v6953, %v6947
    %v7074 = vpack.c.b16 %v6960, %v6954
    %v7075 = vpack.c.b16 %v6961, %v6955
    %v7076 = vpack.c.b16 %v6962, %v6956
    %v7077 = vpack.c.b16 %v6963, %v6957
    %v7078 = vpack.c.b16 %v6964, %v6958
    %v7079 = vpack.c.b16 %v6965, %v6959
    %v7080 = vpack.c.b16 %v6972, %v6966
    %v7081 = vpack.c.b16 %v6973, %v6967
    %v7082 = vpack.c.b16 %v6974, %v6968
    %v7083 = vpack.c.b16 %v6975, %v6969
    %v7084 = vpack.c.b16 %v6976, %v6970
    %v7085 = vpack.c.b16 %v6977, %v6971
    %v7086 = vpack.c.b16 %v6984, %v6978
    %v7087 = vpack.c.b16 %v6985, %v6979
    %v7088 = vpack.c.b16 %v6986, %v6980
    %v7089 = vpack.c.b16 %v6987, %v6981
    %v7090 = vpack.c.b16 %v6988, %v6982
    %v7091 = vpack.c.b16 %v6989, %v6983
    %v7092 = vpack.c.b16 %v6996, %v6990
    %v7093 = vpack.c.b16 %v6997, %v6991
    %v7094 = vpack.c.b16 %v6998, %v6992
    %v7095 = vpack.c.b16 %v6999, %v6993
    %v7096 = vpack.c.b16 %v7000, %v6994
    %v7097 = vpack.c.b16 %v7001, %v6995
    %7194 = vmatprep.subr.bf16.mxu0 %v7003
    %7195 = vmatpush1.bf16.msra.mxu0 %v7002
    %7196 = vmatprep.subr.bf16.mxu0 %v7009
    %7197 = vmatpush1.bf16.msra.mxu0 %v7008
    %7198 = vmatprep.subr.bf16.mxu0 %v7015
    %7199 = vmatpush1.bf16.msra.mxu0 %v7014
    %7200 = vmatprep.subr.bf16.mxu0 %v7021
    %7201 = vmatpush1.bf16.msra.mxu0 %v7020
    %7202 = vmatprep.subr.bf16.mxu0 %v7027
    %7203 = vmatpush1.bf16.msra.mxu0 %v7026
    %7204 = vmatprep.subr.bf16.mxu0 %v7033
    %7205 = vmatpush1.bf16.msra.mxu0 %v7032
    %7206 = vmatprep.subr.bf16.mxu0 %v7039
    %7207 = vmatpush1.bf16.msra.mxu0 %v7038
    %7208 = vmatprep.subr.bf16.mxu0 %v7045
    %7209 = vmatpush1.bf16.msra.mxu0 %v7044
    %7210 = vmatprep.subr.bf16.mxu0 %v7051
    %7211 = vmatpush1.bf16.msra.mxu0 %v7050
    %7212 = vmatprep.subr.bf16.mxu0 %v7057
    %7213 = vmatpush1.bf16.msra.mxu0 %v7056
    %7214 = vmatprep.subr.bf16.mxu0 %v7063
    %7215 = vmatpush1.bf16.msra.mxu0 %v7062
    %7216 = vmatprep.subr.bf16.mxu0 %v7069
    %7217 = vmatpush1.bf16.msra.mxu0 %v7068
    %7218 = vmatprep.subr.bf16.mxu0 %v7075
    %7219 = vmatpush1.bf16.msra.mxu0 %v7074
    %7220 = vmatprep.subr.bf16.mxu0 %v7081
    %7221 = vmatpush1.bf16.msra.mxu0 %v7080
    %7222 = vmatprep.subr.bf16.mxu0 %v7087
    %7223 = vmatpush1.bf16.msra.mxu0 %v7086
    %7224 = vmatprep.subr.bf16.mxu0 %v7093
    %7225 = vmatpush1.bf16.msra.mxu0 %v7092
    %7226 = vmatprep.mubr.bf16.mxu0 %v6583
    %7227 = vmatmul.mubr.bf16.gmra.mrb[0].mxu0 %v6582
    %v7228 = vpop.f32.mrb[0].mxu0
    %v7229 = vadd.f32 %v6687, %v7228
    %v7230 = vpop.f32.mrb[0].mxu0
    %v7231 = vadd.f32 %v6691, %v7230
    %v7232 = vpop.f32.mrb[0].mxu0
    %v7233 = vadd.f32 %v6687, %v7232
    %v7234 = vpop.f32.mrb[0].mxu0
    %v7235 = vadd.f32 %v6691, %v7234
    %7236 = vmatprep.mubr.bf16.mxu0 %v6585
    %7237 = vmatmul.mubr.bf16.gmra.mrb[0].mxu0 %v6584
    %v7238 = vpop.f32.mrb[0].mxu0
    %v7239 = vadd.f32 %v6687, %v7238
    %v7240 = vpop.f32.mrb[0].mxu0
    %v7241 = vadd.f32 %v6691, %v7240
    %v7242 = vpop.f32.mrb[0].mxu0
    %v7243 = vadd.f32 %v6687, %v7242
    %v7244 = vpop.f32.mrb[0].mxu0
    %v7245 = vadd.f32 %v6691, %v7244
    %7246 = vdwg.mxu0
    %7247 = vmatprep.subr.bf16.mxu0 %v7005
    %7248 = vmatpush1.bf16.msra.mxu0 %v7004
    %7249 = vmatprep.subr.bf16.mxu0 %v7011
    %7250 = vmatpush1.bf16.msra.mxu0 %v7010
    %7251 = vmatprep.subr.bf16.mxu0 %v7017
    %7252 = vmatpush1.bf16.msra.mxu0 %v7016
    %7253 = vmatprep.subr.bf16.mxu0 %v7023
    %7254 = vmatpush1.bf16.msra.mxu0 %v7022
    %7255 = vmatprep.subr.bf16.mxu0 %v7029
    %7256 = vmatpush1.bf16.msra.mxu0 %v7028
    %7257 = vmatprep.subr.bf16.mxu0 %v7035
    %7258 = vmatpush1.bf16.msra.mxu0 %v7034
    %7259 = vmatprep.subr.bf16.mxu0 %v7041
    %7260 = vmatpush1.bf16.msra.mxu0 %v7040
    %7261 = vmatprep.subr.bf16.mxu0 %v7047
    %7262 = vmatpush1.bf16.msra.mxu0 %v7046
    %7263 = vmatprep.subr.bf16.mxu0 %v7053
    %7264 = vmatpush1.bf16.msra.mxu0 %v7052
    %7265 = vmatprep.subr.bf16.mxu0 %v7059
    %7266 = vmatpush1.bf16.msra.mxu0 %v7058
    %7267 = vmatprep.subr.bf16.mxu0 %v7065
    %7268 = vmatpush1.bf16.msra.mxu0 %v7064
    %7269 = vmatprep.subr.bf16.mxu0 %v7071
    %7270 = vmatpush1.bf16.msra.mxu0 %v7070
    %7271 = vmatprep.subr.bf16.mxu0 %v7077
    %7272 = vmatpush1.bf16.msra.mxu0 %v7076
    %7273 = vmatprep.subr.bf16.mxu0 %v7083
    %7274 = vmatpush1.bf16.msra.mxu0 %v7082
    %7275 = vmatprep.subr.bf16.mxu0 %v7089
    %7276 = vmatpush1.bf16.msra.mxu0 %v7088
    %7277 = vmatprep.subr.bf16.mxu0 %v7095
    %7278 = vmatpush1.bf16.msra.mxu0 %v7094
    %7279 = vmatprep.mubr.bf16.mxu0 %v6583
    %7280 = vmatmul.mubr.bf16.gmra.mrb[0].mxu0 %v6582
    %v7281 = vpop.f32.mrb[0].mxu0
    %v7282 = vadd.f32 %v6695, %v7281
    %v7283 = vpop.f32.mrb[0].mxu0
    %v7284 = vadd.f32 %v6699, %v7283
    %v7285 = vpop.f32.mrb[0].mxu0
    %v7286 = vadd.f32 %v6695, %v7285
    %v7287 = vpop.f32.mrb[0].mxu0
    %v7288 = vadd.f32 %v6699, %v7287
    %7289 = vmatprep.mubr.bf16.mxu0 %v6585
    %7290 = vmatmul.mubr.bf16.gmra.mrb[0].mxu0 %v6584
    %v7291 = vpop.f32.mrb[0].mxu0
    %v7292 = vadd.f32 %v6695, %v7291
    %v7293 = vpop.f32.mrb[0].mxu0
    %v7294 = vadd.f32 %v6699, %v7293
    %v7295 = vpop.f32.mrb[0].mxu0
    %v7296 = vadd.f32 %v6695, %v7295
    %v7297 = vpop.f32.mrb[0].mxu0
    %v7298 = vadd.f32 %v6699, %v7297
    %7299 = vdwg.mxu0
    %7300 = vmatprep.subr.bf16.mxu0 %v7007
    %7301 = vmatpush1.bf16.msra.mxu0 %v7006
    %7302 = vmatprep.subr.bf16.mxu0 %v7013
    %7303 = vmatpush1.bf16.msra.mxu0 %v7012
    %7304 = vmatprep.subr.bf16.mxu0 %v7019
    %7305 = vmatpush1.bf16.msra.mxu0 %v7018
    %7306 = vmatprep.subr.bf16.mxu0 %v7025
    %7307 = vmatpush1.bf16.msra.mxu0 %v7024
    %7308 = vmatprep.subr.bf16.mxu0 %v7031
    %7309 = vmatpush1.bf16.msra.mxu0 %v7030
    %7310 = vmatprep.subr.bf16.mxu0 %v7037
    %7311 = vmatpush1.bf16.msra.mxu0 %v7036
    %7312 = vmatprep.subr.bf16.mxu0 %v7043
    %7313 = vmatpush1.bf16.msra.mxu0 %v7042
    %7314 = vmatprep.subr.bf16.mxu0 %v7049
    %7315 = vmatpush1.bf16.msra.mxu0 %v7048
    %7316 = vmatprep.subr.bf16.mxu0 %v7055
    %7317 = vmatpush1.bf16.msra.mxu0 %v7054
    %7318 = vmatprep.subr.bf16.mxu0 %v7061
    %7319 = vmatpush1.bf16.msra.mxu0 %v7060
    %7320 = vmatprep.subr.bf16.mxu0 %v7067
    %7321 = vmatpush1.bf16.msra.mxu0 %v7066
    %7322 = vmatprep.subr.bf16.mxu0 %v7073
    %7323 = vmatpush1.bf16.msra.mxu0 %v7072
    %7324 = vmatprep.subr.bf16.mxu0 %v7079
    %7325 = vmatpush1.bf16.msra.mxu0 %v7078
    %7326 = vmatprep.subr.bf16.mxu0 %v7085
    %7327 = vmatpush1.bf16.msra.mxu0 %v7084
    %7328 = vmatprep.subr.bf16.mxu0 %v7091
    %7329 = vmatpush1.bf16.msra.mxu0 %v7090
    %7330 = vmatprep.subr.bf16.mxu0 %v7097
    %7331 = vmatpush1.bf16.msra.mxu0 %v7096
    %7332 = vmatprep.mubr.bf16.mxu0 %v6583
    %7333 = vmatmul.mubr.bf16.gmra.mrb[0].mxu0 %v6582
    %v7334 = vpop.f32.mrb[0].mxu0
    %v7335 = vadd.f32 %v6703, %v7334
    %v7336 = vpop.f32.mrb[0].mxu0
    %v7337 = vadd.f32 %v6707, %v7336
    %v7338 = vpop.f32.mrb[0].mxu0
    %v7339 = vadd.f32 %v6703, %v7338
    %v7340 = vpop.f32.mrb[0].mxu0
    %v7341 = vadd.f32 %v6707, %v7340
    %7342 = vmatprep.mubr.bf16.mxu0 %v6585
    %7343 = vmatmul.mubr.bf16.gmra.mrb[0].mxu0 %v6584
    %v7344 = vpop.f32.mrb[0].mxu0
    %v7345 = vadd.f32 %v6703, %v7344
    %v7346 = vpop.f32.mrb[0].mxu0
    %v7347 = vadd.f32 %v6707, %v7346
    %v7348 = vpop.f32.mrb[0].mxu0
    %v7349 = vadd.f32 %v6703, %v7348
    %v7350 = vpop.f32.mrb[0].mxu0
    %v7351 = vadd.f32 %v6707, %v7350
    %7352 = vdwg.mxu0
    %v7353 = vpack.c.bf16 %v7233, %v7229
    %v7354 = vpack.c.bf16 %v7243, %v7239
    %v7355 = vpack.c.bf16 %v7286, %v7282
    %v7356 = vpack.c.bf16 %v7296, %v7292
    %v7358 = vsel %vm4237, %v7353, 0
    %v7361 = vsel %vm4237, %v7355, 0
    %7363 = vmatprep.subr.bf16.mxu0 0
    %7364 = vmatpush1.bf16.xpose.msra.mxu0 %v7361
    %7365 = vmatprep.subr.bf16.mxu0 0
    %7366 = vmatpush1.bf16.xpose.msra.mxu0 0
    %7367 = vmatprep.subr.bf16.mxu0 0
    %7368 = vmatpush1.bf16.xpose.msra.mxu0 0
    %7369 = vmatprep.subr.bf16.mxu0 0
    %7370 = vmatpush1.bf16.xpose.msra.mxu0 0
    %7371 = vmatprep.subr.bf16.mxu0 0
    %7372 = vmatpush1.bf16.xpose.msra.mxu0 0
    %7373 = vmatprep.subr.bf16.mxu0 0
    %7374 = vmatpush1.bf16.xpose.msra.mxu0 0
    %7375 = vmatprep.subr.bf16.mxu0 0
    %7376 = vmatpush1.bf16.xpose.msra.mxu0 0
    %7377 = vmatprep.subr.bf16.mxu0 0
    %7378 = vmatpush1.bf16.xpose.msra.mxu0 0
    %7379 = vmatprep.subr.bf16.mxu0 0
    %7380 = vmatpush1.bf16.xpose.msra.mxu0 0
    %7381 = vmatprep.subr.bf16.mxu0 0
    %7382 = vmatpush1.bf16.xpose.msra.mxu0 0
    %7383 = vmatprep.subr.bf16.mxu0 0
    %7384 = vmatpush1.bf16.xpose.msra.mxu0 0
    %7385 = vmatprep.subr.bf16.mxu0 0
    %7386 = vmatpush1.bf16.xpose.msra.mxu0 0
    %7387 = vmatprep.subr.bf16.mxu0 0
    %7388 = vmatpush1.bf16.xpose.msra.mxu0 0
    %7389 = vmatprep.subr.bf16.mxu0 0
    %7390 = vmatpush1.bf16.xpose.msra.mxu0 0
    %7391 = vmatprep.subr.bf16.mxu0 0
    %7392 = vmatpush1.bf16.xpose.msra.mxu0 0
    %7393 = vmatprep.subr.bf16.mxu0 0
    %7394 = vmatpush1.bf16.xpose.msra.mxu0 0
    %7395 = vmatprep.mubr.bf16.mxu0 0
    %7396 = vmatmul.mubr.bf16.gmra.mrb[0].mxu0 %v7358
    %v7397 = vpop.f32.mrb[0].mxu0
    %v7398 = vadd.f32 0.0, %v7397
    %v7399 = vpop.f32.mrb[0].mxu0
    %v7400 = vpop.f32.mrb[0].mxu0
    %v7401 = vadd.f32 0.0, %v7400
    %v7402 = vpop.f32.mrb[0].mxu0
    %7403 = vdwg.mxu0
    %v7405 = vsel %vm4237, %v7354, 0
    %v7408 = vsel %vm4237, %v7356, 0
    %7410 = vmatprep.subr.bf16.mxu0 0
    %7411 = vmatpush1.bf16.xpose.msra.mxu0 %v7408
    %7412 = vmatprep.subr.bf16.mxu0 0
    %7413 = vmatpush1.bf16.xpose.msra.mxu0 0
    %7414 = vmatprep.subr.bf16.mxu0 0
    %7415 = vmatpush1.bf16.xpose.msra.mxu0 0
    %7416 = vmatprep.subr.bf16.mxu0 0
    %7417 = vmatpush1.bf16.xpose.msra.mxu0 0
    %7418 = vmatprep.subr.bf16.mxu0 0
    %7419 = vmatpush1.bf16.xpose.msra.mxu0 0
    %7420 = vmatprep.subr.bf16.mxu0 0
    %7421 = vmatpush1.bf16.xpose.msra.mxu0 0
    %7422 = vmatprep.subr.bf16.mxu0 0
    %7423 = vmatpush1.bf16.xpose.msra.mxu0 0
    %7424 = vmatprep.subr.bf16.mxu0 0
    %7425 = vmatpush1.bf16.xpose.msra.mxu0 0
    %7426 = vmatprep.subr.bf16.mxu0 0
    %7427 = vmatpush1.bf16.xpose.msra.mxu0 0
    %7428 = vmatprep.subr.bf16.mxu0 0
    %7429 = vmatpush1.bf16.xpose.msra.mxu0 0
    %7430 = vmatprep.subr.bf16.mxu0 0
    %7431 = vmatpush1.bf16.xpose.msra.mxu0 0
    %7432 = vmatprep.subr.bf16.mxu0 0
    %7433 = vmatpush1.bf16.xpose.msra.mxu0 0
    %7434 = vmatprep.subr.bf16.mxu0 0
    %7435 = vmatpush1.bf16.xpose.msra.mxu0 0
    %7436 = vmatprep.subr.bf16.mxu0 0
    %7437 = vmatpush1.bf16.xpose.msra.mxu0 0
    %7438 = vmatprep.subr.bf16.mxu0 0
    %7439 = vmatpush1.bf16.xpose.msra.mxu0 0
    %7440 = vmatprep.subr.bf16.mxu0 0
    %7441 = vmatpush1.bf16.xpose.msra.mxu0 0
    %7442 = vmatprep.mubr.bf16.mxu0 0
    %7443 = vmatmul.mubr.bf16.gmra.mrb[0].mxu0 %v7405
    %v7444 = vpop.f32.mrb[0].mxu0
    %v7445 = vadd.f32 0.0, %v7444
    %v7446 = vpop.f32.mrb[0].mxu0
    %v7447 = vpop.f32.mrb[0].mxu0
    %v7448 = vadd.f32 0.0, %v7447
    %v7449 = vpop.f32.mrb[0].mxu0
    %7450 = vdwg.mxu0
    %v7451 = vsel %vm660, %v7398, -inf
    %7452 = vmax.xlane.f32.xlu0 %v7451
    %v7453 = vpop.xlane.xlu0 %7452
    %v7454 = vsel %vm660, %v7401, -inf
    %7455 = vmax.xlane.f32.xlu0 %v7454
    %v7456 = vpop.xlane.xlu0 %7455
    %v7457 = vsel %vm660, %v7445, -inf
    %7458 = vmax.xlane.f32.xlu0 %v7457
    %v7459 = vpop.xlane.xlu0 %7458
    %v7460 = vsel %vm660, %v7448, -inf
    %7461 = vmax.xlane.f32.xlu0 %v7460
    %v7462 = vpop.xlane.xlu0 %7461
    %v7463 = vsub.f32 %v7398, %v7453
    %v7464 = vsub.f32 %v7401, %v7456
    %v7465 = vsub.f32 %v7445, %v7459
    %v7466 = vsub.f32 %v7448, %v7462
    %v7467 = vmul.f32 %v7463, 1.442695
    %v7468 = vpow.pop %v7467
    %v7469 = vmul.f32 %v7464, 1.442695
    %v7470 = vpow.pop %v7469
    %v7471 = vmul.f32 %v7465, 1.442695
    %v7472 = vpow.pop %v7471
    %v7473 = vmul.f32 %v7466, 1.442695
    %v7474 = vpow.pop %v7473
    %v7475 = vsel %vm660, %v7468, 0.0
    %7476 = vadd.xlane.f32.xlu0 %v7475
    %v7477 = vpop.xlane.xlu0 %7476
    %v7478 = vsel %vm660, %v7470, 0.0
    %7479 = vadd.xlane.f32.xlu0 %v7478
    %v7480 = vpop.xlane.xlu0 %7479
    %v7481 = vsel %vm660, %v7472, 0.0
    %7482 = vadd.xlane.f32.xlu0 %v7481
    %v7483 = vpop.xlane.xlu0 %7482
    %v7484 = vsel %vm660, %v7474, 0.0
    %7485 = vadd.xlane.f32.xlu0 %v7484
    %v7486 = vpop.xlane.xlu0 %7485
    %v7487 = vrcp.pop %v7477
    %v7488 = vrcp.pop %v7480
    %v7489 = vrcp.pop %v7483
    %v7490 = vrcp.pop %v7486
    %v7491 = vmul.f32 %v7468, %v7487
    %v7492 = vmul.f32 %v7470, %v7488
    %v7493 = vmul.f32 %v7472, %v7489
    %v7494 = vmul.f32 %v7474, %v7490
    %v7495 = vpack.c.bf16 %v7492, %v7491
    %v7496 = vpack.c.bf16 %v7494, %v7493
    %v7497 = vpack.c.bf16 %v7339, %v7335
    %v7498 = vpack.c.bf16 %v7349, %v7345
    %v7500 = vsel %vm660, %v7495, 0
    %7502 = vmatprep.subr.bf16.mxu0 0
    %7503 = vmatpush1.bf16.msra.mxu0 %v7497
    %7504 = vmatprep.subr.bf16.mxu0 0
    %7505 = vmatpush1.bf16.msra.mxu0 0
    %7506 = vmatprep.subr.bf16.mxu0 0
    %7507 = vmatpush1.bf16.msra.mxu0 0
    %7508 = vmatprep.subr.bf16.mxu0 0
    %7509 = vmatpush1.bf16.msra.mxu0 0
    %7510 = vmatprep.subr.bf16.mxu0 0
    %7511 = vmatpush1.bf16.msra.mxu0 0
    %7512 = vmatprep.subr.bf16.mxu0 0
    %7513 = vmatpush1.bf16.msra.mxu0 0
    %7514 = vmatprep.subr.bf16.mxu0 0
    %7515 = vmatpush1.bf16.msra.mxu0 0
    %7516 = vmatprep.subr.bf16.mxu0 0
    %7517 = vmatpush1.bf16.msra.mxu0 0
    %7518 = vmatprep.subr.bf16.mxu0 0
    %7519 = vmatpush1.bf16.msra.mxu0 0
    %7520 = vmatprep.subr.bf16.mxu0 0
    %7521 = vmatpush1.bf16.msra.mxu0 0
    %7522 = vmatprep.subr.bf16.mxu0 0
    %7523 = vmatpush1.bf16.msra.mxu0 0
    %7524 = vmatprep.subr.bf16.mxu0 0
    %7525 = vmatpush1.bf16.msra.mxu0 0
    %7526 = vmatprep.subr.bf16.mxu0 0
    %7527 = vmatpush1.bf16.msra.mxu0 0
    %7528 = vmatprep.subr.bf16.mxu0 0
    %7529 = vmatpush1.bf16.msra.mxu0 0
    %7530 = vmatprep.subr.bf16.mxu0 0
    %7531 = vmatpush1.bf16.msra.mxu0 0
    %7532 = vmatprep.subr.bf16.mxu0 0
    %7533 = vmatpush1.bf16.msra.mxu0 0
    %7534 = vmatprep.mubr.bf16.mxu0 0
    %7535 = vmatmul.mubr.bf16.gmra.mrb[0].mxu0 %v7500
    %v7536 = vpop.f32.mrb[0].mxu0
    %v7537 = vadd.f32 0.0, %v7536
    %v7538 = vpop.f32.mrb[0].mxu0
    %v7539 = vpop.f32.mrb[0].mxu0
    %v7540 = vadd.f32 0.0, %v7539
    %v7541 = vpop.f32.mrb[0].mxu0
    %7542 = vdwg.mxu0
    %v7544 = vsel %vm660, %v7496, 0
    %7546 = vmatprep.subr.bf16.mxu0 0
    %7547 = vmatpush1.bf16.msra.mxu0 %v7498
    %7548 = vmatprep.subr.bf16.mxu0 0
    %7549 = vmatpush1.bf16.msra.mxu0 0
    %7550 = vmatprep.subr.bf16.mxu0 0
    %7551 = vmatpush1.bf16.msra.mxu0 0
    %7552 = vmatprep.subr.bf16.mxu0 0
    %7553 = vmatpush1.bf16.msra.mxu0 0
    %7554 = vmatprep.subr.bf16.mxu0 0
    %7555 = vmatpush1.bf16.msra.mxu0 0
    %7556 = vmatprep.subr.bf16.mxu0 0
    %7557 = vmatpush1.bf16.msra.mxu0 0
    %7558 = vmatprep.subr.bf16.mxu0 0
    %7559 = vmatpush1.bf16.msra.mxu0 0
    %7560 = vmatprep.subr.bf16.mxu0 0
    %7561 = vmatpush1.bf16.msra.mxu0 0
    %7562 = vmatprep.subr.bf16.mxu0 0
    %7563 = vmatpush1.bf16.msra.mxu0 0
    %7564 = vmatprep.subr.bf16.mxu0 0
    %7565 = vmatpush1.bf16.msra.mxu0 0
    %7566 = vmatprep.subr.bf16.mxu0 0
    %7567 = vmatpush1.bf16.msra.mxu0 0
    %7568 = vmatprep.subr.bf16.mxu0 0
    %7569 = vmatpush1.bf16.msra.mxu0 0
    %7570 = vmatprep.subr.bf16.mxu0 0
    %7571 = vmatpush1.bf16.msra.mxu0 0
    %7572 = vmatprep.subr.bf16.mxu0 0
    %7573 = vmatpush1.bf16.msra.mxu0 0
    %7574 = vmatprep.subr.bf16.mxu0 0
    %7575 = vmatpush1.bf16.msra.mxu0 0
    %7576 = vmatprep.subr.bf16.mxu0 0
    %7577 = vmatpush1.bf16.msra.mxu0 0
    %7578 = vmatprep.mubr.bf16.mxu0 0
    %7579 = vmatmul.mubr.bf16.gmra.mrb[0].mxu0 %v7544
    %v7580 = vpop.f32.mrb[0].mxu0
    %v7581 = vadd.f32 0.0, %v7580
    %v7582 = vpop.f32.mrb[0].mxu0
    %v7583 = vpop.f32.mrb[0].mxu0
    %v7584 = vadd.f32 0.0, %v7583
    %v7585 = vpop.f32.mrb[0].mxu0
    %7586 = vdwg.mxu0
    %7587 = vst.msk [vmem:[#allocation3] sm:$0xff] %vm4237, %v7537
    %7588 = vst.msk [vmem:[#allocation3 + $0x10] sm:$0xff] %vm4237, %v7540
    %7589 = vst.msk [vmem:[#allocation3 + $0x20] sm:$0xff] %vm4237, %v7581
    %7590 = vst.msk [vmem:[#allocation3 + $0x30] sm:$0xff] %vm4237, %v7584
    %7592 = vrot.lane.b32.xlu0 %v7353, 96
    %v7593 = vpop.permute.xlu0 %7592
    %7595 = vrot.lane.b32.xlu0 %v7355, 96
    %v7596 = vpop.permute.xlu0 %7595
    %v7598 = vsel %vm4237, %v7593, 0
    %v7601 = vsel %vm4237, %v7596, 0
    %7603 = vmatprep.subr.bf16.mxu0 0
    %7604 = vmatpush1.bf16.xpose.msra.mxu0 %v7601
    %7605 = vmatprep.subr.bf16.mxu0 0
    %7606 = vmatpush1.bf16.xpose.msra.mxu0 0
    %7607 = vmatprep.subr.bf16.mxu0 0
    %7608 = vmatpush1.bf16.xpose.msra.mxu0 0
    %7609 = vmatprep.subr.bf16.mxu0 0
    %7610 = vmatpush1.bf16.xpose.msra.mxu0 0
    %7611 = vmatprep.subr.bf16.mxu0 0
    %7612 = vmatpush1.bf16.xpose.msra.mxu0 0
    %7613 = vmatprep.subr.bf16.mxu0 0
    %7614 = vmatpush1.bf16.xpose.msra.mxu0 0
    %7615 = vmatprep.subr.bf16.mxu0 0
    %7616 = vmatpush1.bf16.xpose.msra.mxu0 0
    %7617 = vmatprep.subr.bf16.mxu0 0
    %7618 = vmatpush1.bf16.xpose.msra.mxu0 0
    %7619 = vmatprep.subr.bf16.mxu0 0
    %7620 = vmatpush1.bf16.xpose.msra.mxu0 0
    %7621 = vmatprep.subr.bf16.mxu0 0
    %7622 = vmatpush1.bf16.xpose.msra.mxu0 0
    %7623 = vmatprep.subr.bf16.mxu0 0
    %7624 = vmatpush1.bf16.xpose.msra.mxu0 0
    %7625 = vmatprep.subr.bf16.mxu0 0
    %7626 = vmatpush1.bf16.xpose.msra.mxu0 0
    %7627 = vmatprep.subr.bf16.mxu0 0
    %7628 = vmatpush1.bf16.xpose.msra.mxu0 0
    %7629 = vmatprep.subr.bf16.mxu0 0
    %7630 = vmatpush1.bf16.xpose.msra.mxu0 0
    %7631 = vmatprep.subr.bf16.mxu0 0
    %7632 = vmatpush1.bf16.xpose.msra.mxu0 0
    %7633 = vmatprep.subr.bf16.mxu0 0
    %7634 = vmatpush1.bf16.xpose.msra.mxu0 0
    %7635 = vmatprep.mubr.bf16.mxu0 0
    %7636 = vmatmul.mubr.bf16.gmra.mrb[0].mxu0 %v7598
    %v7637 = vpop.f32.mrb[0].mxu0
    %v7638 = vadd.f32 0.0, %v7637
    %v7639 = vpop.f32.mrb[0].mxu0
    %v7640 = vpop.f32.mrb[0].mxu0
    %v7641 = vadd.f32 0.0, %v7640
    %v7642 = vpop.f32.mrb[0].mxu0
    %7643 = vdwg.mxu0
    %7645 = vrot.lane.b32.xlu0 %v7354, 96
    %v7646 = vpop.permute.xlu0 %7645
    %7648 = vrot.lane.b32.xlu0 %v7356, 96
    %v7649 = vpop.permute.xlu0 %7648
    %v7651 = vsel %vm4237, %v7646, 0
    %v7654 = vsel %vm4237, %v7649, 0
    %7656 = vmatprep.subr.bf16.mxu0 0
    %7657 = vmatpush1.bf16.xpose.msra.mxu0 %v7654
    %7658 = vmatprep.subr.bf16.mxu0 0
    %7659 = vmatpush1.bf16.xpose.msra.mxu0 0
    %7660 = vmatprep.subr.bf16.mxu0 0
    %7661 = vmatpush1.bf16.xpose.msra.mxu0 0
    %7662 = vmatprep.subr.bf16.mxu0 0
    %7663 = vmatpush1.bf16.xpose.msra.mxu0 0
    %7664 = vmatprep.subr.bf16.mxu0 0
    %7665 = vmatpush1.bf16.xpose.msra.mxu0 0
    %7666 = vmatprep.subr.bf16.mxu0 0
    %7667 = vmatpush1.bf16.xpose.msra.mxu0 0
    %7668 = vmatprep.subr.bf16.mxu0 0
    %7669 = vmatpush1.bf16.xpose.msra.mxu0 0
    %7670 = vmatprep.subr.bf16.mxu0 0
    %7671 = vmatpush1.bf16.xpose.msra.mxu0 0
    %7672 = vmatprep.subr.bf16.mxu0 0
    %7673 = vmatpush1.bf16.xpose.msra.mxu0 0
    %7674 = vmatprep.subr.bf16.mxu0 0
    %7675 = vmatpush1.bf16.xpose.msra.mxu0 0
    %7676 = vmatprep.subr.bf16.mxu0 0
    %7677 = vmatpush1.bf16.xpose.msra.mxu0 0
    %7678 = vmatprep.subr.bf16.mxu0 0
    %7679 = vmatpush1.bf16.xpose.msra.mxu0 0
    %7680 = vmatprep.subr.bf16.mxu0 0
    %7681 = vmatpush1.bf16.xpose.msra.mxu0 0
    %7682 = vmatprep.subr.bf16.mxu0 0
    %7683 = vmatpush1.bf16.xpose.msra.mxu0 0
    %7684 = vmatprep.subr.bf16.mxu0 0
    %7685 = vmatpush1.bf16.xpose.msra.mxu0 0
    %7686 = vmatprep.subr.bf16.mxu0 0
    %7687 = vmatpush1.bf16.xpose.msra.mxu0 0
    %7688 = vmatprep.mubr.bf16.mxu0 0
    %7689 = vmatmul.mubr.bf16.gmra.mrb[0].mxu0 %v7651
    %v7690 = vpop.f32.mrb[0].mxu0
    %v7691 = vadd.f32 0.0, %v7690
    %v7692 = vpop.f32.mrb[0].mxu0
    %v7693 = vpop.f32.mrb[0].mxu0
    %v7694 = vadd.f32 0.0, %v7693
    %v7695 = vpop.f32.mrb[0].mxu0
    %7696 = vdwg.mxu0
    %v7697 = vsel %vm660, %v7638, -inf
    %7698 = vmax.xlane.f32.xlu0 %v7697
    %v7699 = vpop.xlane.xlu0 %7698
    %v7700 = vsel %vm660, %v7641, -inf
    %7701 = vmax.xlane.f32.xlu0 %v7700
    %v7702 = vpop.xlane.xlu0 %7701
    %v7703 = vsel %vm660, %v7691, -inf
    %7704 = vmax.xlane.f32.xlu0 %v7703
    %v7705 = vpop.xlane.xlu0 %7704
    %v7706 = vsel %vm660, %v7694, -inf
    %7707 = vmax.xlane.f32.xlu0 %v7706
    %v7708 = vpop.xlane.xlu0 %7707
    %v7709 = vsub.f32 %v7638, %v7699
    %v7710 = vsub.f32 %v7641, %v7702
    %v7711 = vsub.f32 %v7691, %v7705
    %v7712 = vsub.f32 %v7694, %v7708
    %v7713 = vmul.f32 %v7709, 1.442695
    %v7714 = vpow.pop %v7713
    %v7715 = vmul.f32 %v7710, 1.442695
    %v7716 = vpow.pop %v7715
    %v7717 = vmul.f32 %v7711, 1.442695
    %v7718 = vpow.pop %v7717
    %v7719 = vmul.f32 %v7712, 1.442695
    %v7720 = vpow.pop %v7719
    %v7721 = vsel %vm660, %v7714, 0.0
    %7722 = vadd.xlane.f32.xlu0 %v7721
    %v7723 = vpop.xlane.xlu0 %7722
    %v7724 = vsel %vm660, %v7716, 0.0
    %7725 = vadd.xlane.f32.xlu0 %v7724
    %v7726 = vpop.xlane.xlu0 %7725
    %v7727 = vsel %vm660, %v7718, 0.0
    %7728 = vadd.xlane.f32.xlu0 %v7727
    %v7729 = vpop.xlane.xlu0 %7728
    %v7730 = vsel %vm660, %v7720, 0.0
    %7731 = vadd.xlane.f32.xlu0 %v7730
    %v7732 = vpop.xlane.xlu0 %7731
    %v7733 = vrcp.pop %v7723
    %v7734 = vrcp.pop %v7726
    %v7735 = vrcp.pop %v7729
    %v7736 = vrcp.pop %v7732
    %v7737 = vmul.f32 %v7714, %v7733
    %v7738 = vmul.f32 %v7716, %v7734
    %v7739 = vmul.f32 %v7718, %v7735
    %v7740 = vmul.f32 %v7720, %v7736
    %v7741 = vpack.c.bf16 %v7738, %v7737
    %v7742 = vpack.c.bf16 %v7740, %v7739
    %7744 = vrot.lane.b32.xlu0 %v7497, 96
    %v7745 = vpop.permute.xlu0 %7744
    %v7748 = vsel %vm660, %v7741, 0
    %7750 = vmatprep.subr.bf16.mxu0 0
    %7751 = vmatpush1.bf16.msra.mxu0 %v7745
    %7752 = vmatprep.subr.bf16.mxu0 0
    %7753 = vmatpush1.bf16.msra.mxu0 0
    %7754 = vmatprep.subr.bf16.mxu0 0
    %7755 = vmatpush1.bf16.msra.mxu0 0
    %7756 = vmatprep.subr.bf16.mxu0 0
    %7757 = vmatpush1.bf16.msra.mxu0 0
    %7758 = vmatprep.subr.bf16.mxu0 0
    %7759 = vmatpush1.bf16.msra.mxu0 0
    %7760 = vmatprep.subr.bf16.mxu0 0
    %7761 = vmatpush1.bf16.msra.mxu0 0
    %7762 = vmatprep.subr.bf16.mxu0 0
    %7763 = vmatpush1.bf16.msra.mxu0 0
    %7764 = vmatprep.subr.bf16.mxu0 0
    %7765 = vmatpush1.bf16.msra.mxu0 0
    %7766 = vmatprep.subr.bf16.mxu0 0
    %7767 = vmatpush1.bf16.msra.mxu0 0
    %7768 = vmatprep.subr.bf16.mxu0 0
    %7769 = vmatpush1.bf16.msra.mxu0 0
    %7770 = vmatprep.subr.bf16.mxu0 0
    %7771 = vmatpush1.bf16.msra.mxu0 0
    %7772 = vmatprep.subr.bf16.mxu0 0
    %7773 = vmatpush1.bf16.msra.mxu0 0
    %7774 = vmatprep.subr.bf16.mxu0 0
    %7775 = vmatpush1.bf16.msra.mxu0 0
    %7776 = vmatprep.subr.bf16.mxu0 0
    %7777 = vmatpush1.bf16.msra.mxu0 0
    %7778 = vmatprep.subr.bf16.mxu0 0
    %7779 = vmatpush1.bf16.msra.mxu0 0
    %7780 = vmatprep.subr.bf16.mxu0 0
    %7781 = vmatpush1.bf16.msra.mxu0 0
    %7782 = vmatprep.mubr.bf16.mxu0 0
    %7783 = vmatmul.mubr.bf16.gmra.mrb[0].mxu0 %v7748
    %v7784 = vpop.f32.mrb[0].mxu0
    %v7785 = vadd.f32 0.0, %v7784
    %v7786 = vpop.f32.mrb[0].mxu0
    %v7787 = vpop.f32.mrb[0].mxu0
    %v7788 = vadd.f32 0.0, %v7787
    %v7789 = vpop.f32.mrb[0].mxu0
    %7790 = vdwg.mxu0
    %7792 = vrot.lane.b32.xlu0 %v7498, 96
    %v7793 = vpop.permute.xlu0 %7792
    %v7796 = vsel %vm660, %v7742, 0
    %7798 = vmatprep.subr.bf16.mxu0 0
    %7799 = vmatpush1.bf16.msra.mxu0 %v7793
    %7800 = vmatprep.subr.bf16.mxu0 0
    %7801 = vmatpush1.bf16.msra.mxu0 0
    %7802 = vmatprep.subr.bf16.mxu0 0
    %7803 = vmatpush1.bf16.msra.mxu0 0
    %7804 = vmatprep.subr.bf16.mxu0 0
    %7805 = vmatpush1.bf16.msra.mxu0 0
    %7806 = vmatprep.subr.bf16.mxu0 0
    %7807 = vmatpush1.bf16.msra.mxu0 0
    %7808 = vmatprep.subr.bf16.mxu0 0
    %7809 = vmatpush1.bf16.msra.mxu0 0
    %7810 = vmatprep.subr.bf16.mxu0 0
    %7811 = vmatpush1.bf16.msra.mxu0 0
    %7812 = vmatprep.subr.bf16.mxu0 0
    %7813 = vmatpush1.bf16.msra.mxu0 0
    %7814 = vmatprep.subr.bf16.mxu0 0
    %7815 = vmatpush1.bf16.msra.mxu0 0
    %7816 = vmatprep.subr.bf16.mxu0 0
    %7817 = vmatpush1.bf16.msra.mxu0 0
    %7818 = vmatprep.subr.bf16.mxu0 0
    %7819 = vmatpush1.bf16.msra.mxu0 0
    %7820 = vmatprep.subr.bf16.mxu0 0
    %7821 = vmatpush1.bf16.msra.mxu0 0
    %7822 = vmatprep.subr.bf16.mxu0 0
    %7823 = vmatpush1.bf16.msra.mxu0 0
    %7824 = vmatprep.subr.bf16.mxu0 0
    %7825 = vmatpush1.bf16.msra.mxu0 0
    %7826 = vmatprep.subr.bf16.mxu0 0
    %7827 = vmatpush1.bf16.msra.mxu0 0
    %7828 = vmatprep.subr.bf16.mxu0 0
    %7829 = vmatpush1.bf16.msra.mxu0 0
    %7830 = vmatprep.mubr.bf16.mxu0 0
    %7831 = vmatmul.mubr.bf16.gmra.mrb[0].mxu0 %v7796
    %v7832 = vpop.f32.mrb[0].mxu0
    %v7833 = vadd.f32 0.0, %v7832
    %v7834 = vpop.f32.mrb[0].mxu0
    %v7835 = vpop.f32.mrb[0].mxu0
    %v7836 = vadd.f32 0.0, %v7835
    %v7837 = vpop.f32.mrb[0].mxu0
    %7838 = vdwg.mxu0
    %7843 = vrot.lane.b32.xlu0 %v7785, 32
    %v7844 = vpop.permute.xlu0 %7843
    %7845 = vrot.lane.b32.xlu0 %v7788, 32
    %v7846 = vpop.permute.xlu0 %7845
    %7847 = vrot.lane.b32.xlu0 %v7833, 32
    %v7848 = vpop.permute.xlu0 %7847
    %7849 = vrot.lane.b32.xlu0 %v7836, 32
    %v7850 = vpop.permute.xlu0 %7849
    %7855 = vst.msk [vmem:[#allocation3] sm:$0xff] %vm4736, %v7844
    %7856 = vst.msk [vmem:[#allocation3 + $0x10] sm:$0xff] %vm4736, %v7846
    %7857 = vst.msk [vmem:[#allocation3 + $0x20] sm:$0xff] %vm4736, %v7848
    %7858 = vst.msk [vmem:[#allocation3 + $0x30] sm:$0xff] %vm4736, %v7850
    %7859 = vrot.lane.b32.xlu0 %v7353, 64
    %v7860 = vpop.permute.xlu0 %7859
    %7861 = vrot.lane.b32.xlu0 %v7355, 64
    %v7862 = vpop.permute.xlu0 %7861
    %v7864 = vsel %vm4237, %v7860, 0
    %v7867 = vsel %vm4237, %v7862, 0
    %7869 = vmatprep.subr.bf16.mxu0 0
    %7870 = vmatpush1.bf16.xpose.msra.mxu0 %v7867
    %7871 = vmatprep.subr.bf16.mxu0 0
    %7872 = vmatpush1.bf16.xpose.msra.mxu0 0
    %7873 = vmatprep.subr.bf16.mxu0 0
    %7874 = vmatpush1.bf16.xpose.msra.mxu0 0
    %7875 = vmatprep.subr.bf16.mxu0 0
    %7876 = vmatpush1.bf16.xpose.msra.mxu0 0
    %7877 = vmatprep.subr.bf16.mxu0 0
    %7878 = vmatpush1.bf16.xpose.msra.mxu0 0
    %7879 = vmatprep.subr.bf16.mxu0 0
    %7880 = vmatpush1.bf16.xpose.msra.mxu0 0
    %7881 = vmatprep.subr.bf16.mxu0 0
    %7882 = vmatpush1.bf16.xpose.msra.mxu0 0
    %7883 = vmatprep.subr.bf16.mxu0 0
    %7884 = vmatpush1.bf16.xpose.msra.mxu0 0
    %7885 = vmatprep.subr.bf16.mxu0 0
    %7886 = vmatpush1.bf16.xpose.msra.mxu0 0
    %7887 = vmatprep.subr.bf16.mxu0 0
    %7888 = vmatpush1.bf16.xpose.msra.mxu0 0
    %7889 = vmatprep.subr.bf16.mxu0 0
    %7890 = vmatpush1.bf16.xpose.msra.mxu0 0
    %7891 = vmatprep.subr.bf16.mxu0 0
    %7892 = vmatpush1.bf16.xpose.msra.mxu0 0
    %7893 = vmatprep.subr.bf16.mxu0 0
    %7894 = vmatpush1.bf16.xpose.msra.mxu0 0
    %7895 = vmatprep.subr.bf16.mxu0 0
    %7896 = vmatpush1.bf16.xpose.msra.mxu0 0
    %7897 = vmatprep.subr.bf16.mxu0 0
    %7898 = vmatpush1.bf16.xpose.msra.mxu0 0
    %7899 = vmatprep.subr.bf16.mxu0 0
    %7900 = vmatpush1.bf16.xpose.msra.mxu0 0
    %7901 = vmatprep.mubr.bf16.mxu0 0
    %7902 = vmatmul.mubr.bf16.gmra.mrb[0].mxu0 %v7864
    %v7903 = vpop.f32.mrb[0].mxu0
    %v7904 = vadd.f32 0.0, %v7903
    %v7905 = vpop.f32.mrb[0].mxu0
    %v7906 = vpop.f32.mrb[0].mxu0
    %v7907 = vadd.f32 0.0, %v7906
    %v7908 = vpop.f32.mrb[0].mxu0
    %7909 = vdwg.mxu0
    %7910 = vrot.lane.b32.xlu0 %v7354, 64
    %v7911 = vpop.permute.xlu0 %7910
    %7912 = vrot.lane.b32.xlu0 %v7356, 64
    %v7913 = vpop.permute.xlu0 %7912
    %v7915 = vsel %vm4237, %v7911, 0
    %v7918 = vsel %vm4237, %v7913, 0
    %7920 = vmatprep.subr.bf16.mxu0 0
    %7921 = vmatpush1.bf16.xpose.msra.mxu0 %v7918
    %7922 = vmatprep.subr.bf16.mxu0 0
    %7923 = vmatpush1.bf16.xpose.msra.mxu0 0
    %7924 = vmatprep.subr.bf16.mxu0 0
    %7925 = vmatpush1.bf16.xpose.msra.mxu0 0
    %7926 = vmatprep.subr.bf16.mxu0 0
    %7927 = vmatpush1.bf16.xpose.msra.mxu0 0
    %7928 = vmatprep.subr.bf16.mxu0 0
    %7929 = vmatpush1.bf16.xpose.msra.mxu0 0
    %7930 = vmatprep.subr.bf16.mxu0 0
    %7931 = vmatpush1.bf16.xpose.msra.mxu0 0
    %7932 = vmatprep.subr.bf16.mxu0 0
    %7933 = vmatpush1.bf16.xpose.msra.mxu0 0
    %7934 = vmatprep.subr.bf16.mxu0 0
    %7935 = vmatpush1.bf16.xpose.msra.mxu0 0
    %7936 = vmatprep.subr.bf16.mxu0 0
    %7937 = vmatpush1.bf16.xpose.msra.mxu0 0
    %7938 = vmatprep.subr.bf16.mxu0 0
    %7939 = vmatpush1.bf16.xpose.msra.mxu0 0
    %7940 = vmatprep.subr.bf16.mxu0 0
    %7941 = vmatpush1.bf16.xpose.msra.mxu0 0
    %7942 = vmatprep.subr.bf16.mxu0 0
    %7943 = vmatpush1.bf16.xpose.msra.mxu0 0
    %7944 = vmatprep.subr.bf16.mxu0 0
    %7945 = vmatpush1.bf16.xpose.msra.mxu0 0
    %7946 = vmatprep.subr.bf16.mxu0 0
    %7947 = vmatpush1.bf16.xpose.msra.mxu0 0
    %7948 = vmatprep.subr.bf16.mxu0 0
    %7949 = vmatpush1.bf16.xpose.msra.mxu0 0
    %7950 = vmatprep.subr.bf16.mxu0 0
    %7951 = vmatpush1.bf16.xpose.msra.mxu0 0
    %7952 = vmatprep.mubr.bf16.mxu0 0
    %7953 = vmatmul.mubr.bf16.gmra.mrb[0].mxu0 %v7915
    %v7954 = vpop.f32.mrb[0].mxu0
    %v7955 = vadd.f32 0.0, %v7954
    %v7956 = vpop.f32.mrb[0].mxu0
    %v7957 = vpop.f32.mrb[0].mxu0
    %v7958 = vadd.f32 0.0, %v7957
    %v7959 = vpop.f32.mrb[0].mxu0
    %7960 = vdwg.mxu0
    %v7961 = vsel %vm660, %v7904, -inf
    %7962 = vmax.xlane.f32.xlu0 %v7961
    %v7963 = vpop.xlane.xlu0 %7962
    %v7964 = vsel %vm660, %v7907, -inf
    %7965 = vmax.xlane.f32.xlu0 %v7964
    %v7966 = vpop.xlane.xlu0 %7965
    %v7967 = vsel %vm660, %v7955, -inf
    %7968 = vmax.xlane.f32.xlu0 %v7967
    %v7969 = vpop.xlane.xlu0 %7968
    %v7970 = vsel %vm660, %v7958, -inf
    %7971 = vmax.xlane.f32.xlu0 %v7970
    %v7972 = vpop.xlane.xlu0 %7971
    %v7973 = vsub.f32 %v7904, %v7963
    %v7974 = vsub.f32 %v7907, %v7966
    %v7975 = vsub.f32 %v7955, %v7969
    %v7976 = vsub.f32 %v7958, %v7972
    %v7977 = vmul.f32 %v7973, 1.442695
    %v7978 = vpow.pop %v7977
    %v7979 = vmul.f32 %v7974, 1.442695
    %v7980 = vpow.pop %v7979
    %v7981 = vmul.f32 %v7975, 1.442695
    %v7982 = vpow.pop %v7981
    %v7983 = vmul.f32 %v7976, 1.442695
    %v7984 = vpow.pop %v7983
    %v7985 = vsel %vm660, %v7978, 0.0
    %7986 = vadd.xlane.f32.xlu0 %v7985
    %v7987 = vpop.xlane.xlu0 %7986
    %v7988 = vsel %vm660, %v7980, 0.0
    %7989 = vadd.xlane.f32.xlu0 %v7988
    %v7990 = vpop.xlane.xlu0 %7989
    %v7991 = vsel %vm660, %v7982, 0.0
    %7992 = vadd.xlane.f32.xlu0 %v7991
    %v7993 = vpop.xlane.xlu0 %7992
    %v7994 = vsel %vm660, %v7984, 0.0
    %7995 = vadd.xlane.f32.xlu0 %v7994
    %v7996 = vpop.xlane.xlu0 %7995
    %v7997 = vrcp.pop %v7987
    %v7998 = vrcp.pop %v7990
    %v7999 = vrcp.pop %v7993
    %v8000 = vrcp.pop %v7996
    %v8001 = vmul.f32 %v7978, %v7997
    %v8002 = vmul.f32 %v7980, %v7998
    %v8003 = vmul.f32 %v7982, %v7999
    %v8004 = vmul.f32 %v7984, %v8000
    %v8005 = vpack.c.bf16 %v8002, %v8001
    %v8006 = vpack.c.bf16 %v8004, %v8003
    %8007 = vrot.lane.b32.xlu0 %v7497, 64
    %v8008 = vpop.permute.xlu0 %8007
    %v8011 = vsel %vm660, %v8005, 0
    %8013 = vmatprep.subr.bf16.mxu0 0
    %8014 = vmatpush1.bf16.msra.mxu0 %v8008
    %8015 = vmatprep.subr.bf16.mxu0 0
    %8016 = vmatpush1.bf16.msra.mxu0 0
    %8017 = vmatprep.subr.bf16.mxu0 0
    %8018 = vmatpush1.bf16.msra.mxu0 0
    %8019 = vmatprep.subr.bf16.mxu0 0
    %8020 = vmatpush1.bf16.msra.mxu0 0
    %8021 = vmatprep.subr.bf16.mxu0 0
    %8022 = vmatpush1.bf16.msra.mxu0 0
    %8023 = vmatprep.subr.bf16.mxu0 0
    %8024 = vmatpush1.bf16.msra.mxu0 0
    %8025 = vmatprep.subr.bf16.mxu0 0
    %8026 = vmatpush1.bf16.msra.mxu0 0
    %8027 = vmatprep.subr.bf16.mxu0 0
    %8028 = vmatpush1.bf16.msra.mxu0 0
    %8029 = vmatprep.subr.bf16.mxu0 0
    %8030 = vmatpush1.bf16.msra.mxu0 0
    %8031 = vmatprep.subr.bf16.mxu0 0
    %8032 = vmatpush1.bf16.msra.mxu0 0
    %8033 = vmatprep.subr.bf16.mxu0 0
    %8034 = vmatpush1.bf16.msra.mxu0 0
    %8035 = vmatprep.subr.bf16.mxu0 0
    %8036 = vmatpush1.bf16.msra.mxu0 0
    %8037 = vmatprep.subr.bf16.mxu0 0
    %8038 = vmatpush1.bf16.msra.mxu0 0
    %8039 = vmatprep.subr.bf16.mxu0 0
    %8040 = vmatpush1.bf16.msra.mxu0 0
    %8041 = vmatprep.subr.bf16.mxu0 0
    %8042 = vmatpush1.bf16.msra.mxu0 0
    %8043 = vmatprep.subr.bf16.mxu0 0
    %8044 = vmatpush1.bf16.msra.mxu0 0
    %8045 = vmatprep.mubr.bf16.mxu0 0
    %8046 = vmatmul.mubr.bf16.gmra.mrb[0].mxu0 %v8011
    %v8047 = vpop.f32.mrb[0].mxu0
    %v8048 = vadd.f32 0.0, %v8047
    %v8049 = vpop.f32.mrb[0].mxu0
    %v8050 = vpop.f32.mrb[0].mxu0
    %v8051 = vadd.f32 0.0, %v8050
    %v8052 = vpop.f32.mrb[0].mxu0
    %8053 = vdwg.mxu0
    %8054 = vrot.lane.b32.xlu0 %v7498, 64
    %v8055 = vpop.permute.xlu0 %8054
    %v8058 = vsel %vm660, %v8006, 0
    %8060 = vmatprep.subr.bf16.mxu0 0
    %8061 = vmatpush1.bf16.msra.mxu0 %v8055
    %8062 = vmatprep.subr.bf16.mxu0 0
    %8063 = vmatpush1.bf16.msra.mxu0 0
    %8064 = vmatprep.subr.bf16.mxu0 0
    %8065 = vmatpush1.bf16.msra.mxu0 0
    %8066 = vmatprep.subr.bf16.mxu0 0
    %8067 = vmatpush1.bf16.msra.mxu0 0
    %8068 = vmatprep.subr.bf16.mxu0 0
    %8069 = vmatpush1.bf16.msra.mxu0 0
    %8070 = vmatprep.subr.bf16.mxu0 0
    %8071 = vmatpush1.bf16.msra.mxu0 0
    %8072 = vmatprep.subr.bf16.mxu0 0
    %8073 = vmatpush1.bf16.msra.mxu0 0
    %8074 = vmatprep.subr.bf16.mxu0 0
    %8075 = vmatpush1.bf16.msra.mxu0 0
    %8076 = vmatprep.subr.bf16.mxu0 0
    %8077 = vmatpush1.bf16.msra.mxu0 0
    %8078 = vmatprep.subr.bf16.mxu0 0
    %8079 = vmatpush1.bf16.msra.mxu0 0
    %8080 = vmatprep.subr.bf16.mxu0 0
    %8081 = vmatpush1.bf16.msra.mxu0 0
    %8082 = vmatprep.subr.bf16.mxu0 0
    %8083 = vmatpush1.bf16.msra.mxu0 0
    %8084 = vmatprep.subr.bf16.mxu0 0
    %8085 = vmatpush1.bf16.msra.mxu0 0
    %8086 = vmatprep.subr.bf16.mxu0 0
    %8087 = vmatpush1.bf16.msra.mxu0 0
    %8088 = vmatprep.subr.bf16.mxu0 0
    %8089 = vmatpush1.bf16.msra.mxu0 0
    %8090 = vmatprep.subr.bf16.mxu0 0
    %8091 = vmatpush1.bf16.msra.mxu0 0
    %8092 = vmatprep.mubr.bf16.mxu0 0
    %8093 = vmatmul.mubr.bf16.gmra.mrb[0].mxu0 %v8058
    %v8094 = vpop.f32.mrb[0].mxu0
    %v8095 = vadd.f32 0.0, %v8094
    %v8096 = vpop.f32.mrb[0].mxu0
    %v8097 = vpop.f32.mrb[0].mxu0
    %v8098 = vadd.f32 0.0, %v8097
    %v8099 = vpop.f32.mrb[0].mxu0
    %8100 = vdwg.mxu0
    %8105 = vrot.lane.b32.xlu0 %v8048, 64
    %v8106 = vpop.permute.xlu0 %8105
    %8107 = vrot.lane.b32.xlu0 %v8051, 64
    %v8108 = vpop.permute.xlu0 %8107
    %8109 = vrot.lane.b32.xlu0 %v8095, 64
    %v8110 = vpop.permute.xlu0 %8109
    %8111 = vrot.lane.b32.xlu0 %v8098, 64
    %v8112 = vpop.permute.xlu0 %8111
    %8117 = vst.msk [vmem:[#allocation3] sm:$0xff] %vm4999, %v8106
    %8118 = vst.msk [vmem:[#allocation3 + $0x10] sm:$0xff] %vm4999, %v8108
    %8119 = vst.msk [vmem:[#allocation3 + $0x20] sm:$0xff] %vm4999, %v8110
    %8120 = vst.msk [vmem:[#allocation3 + $0x30] sm:$0xff] %vm4999, %v8112
    %8121 = vrot.lane.b32.xlu0 %v7353, 32
    %v8122 = vpop.permute.xlu0 %8121
    %8123 = vrot.lane.b32.xlu0 %v7355, 32
    %v8124 = vpop.permute.xlu0 %8123
    %v8126 = vsel %vm4237, %v8122, 0
    %v8129 = vsel %vm4237, %v8124, 0
    %8131 = vmatprep.subr.bf16.mxu0 0
    %8132 = vmatpush1.bf16.xpose.msra.mxu0 %v8129
    %8133 = vmatprep.subr.bf16.mxu0 0
    %8134 = vmatpush1.bf16.xpose.msra.mxu0 0
    %8135 = vmatprep.subr.bf16.mxu0 0
    %8136 = vmatpush1.bf16.xpose.msra.mxu0 0
    %8137 = vmatprep.subr.bf16.mxu0 0
    %8138 = vmatpush1.bf16.xpose.msra.mxu0 0
    %8139 = vmatprep.subr.bf16.mxu0 0
    %8140 = vmatpush1.bf16.xpose.msra.mxu0 0
    %8141 = vmatprep.subr.bf16.mxu0 0
    %8142 = vmatpush1.bf16.xpose.msra.mxu0 0
    %8143 = vmatprep.subr.bf16.mxu0 0
    %8144 = vmatpush1.bf16.xpose.msra.mxu0 0
    %8145 = vmatprep.subr.bf16.mxu0 0
    %8146 = vmatpush1.bf16.xpose.msra.mxu0 0
    %8147 = vmatprep.subr.bf16.mxu0 0
    %8148 = vmatpush1.bf16.xpose.msra.mxu0 0
    %8149 = vmatprep.subr.bf16.mxu0 0
    %8150 = vmatpush1.bf16.xpose.msra.mxu0 0
    %8151 = vmatprep.subr.bf16.mxu0 0
    %8152 = vmatpush1.bf16.xpose.msra.mxu0 0
    %8153 = vmatprep.subr.bf16.mxu0 0
    %8154 = vmatpush1.bf16.xpose.msra.mxu0 0
    %8155 = vmatprep.subr.bf16.mxu0 0
    %8156 = vmatpush1.bf16.xpose.msra.mxu0 0
    %8157 = vmatprep.subr.bf16.mxu0 0
    %8158 = vmatpush1.bf16.xpose.msra.mxu0 0
    %8159 = vmatprep.subr.bf16.mxu0 0
    %8160 = vmatpush1.bf16.xpose.msra.mxu0 0
    %8161 = vmatprep.subr.bf16.mxu0 0
    %8162 = vmatpush1.bf16.xpose.msra.mxu0 0
    %8163 = vmatprep.mubr.bf16.mxu0 0
    %8164 = vmatmul.mubr.bf16.gmra.mrb[0].mxu0 %v8126
    %v8165 = vpop.f32.mrb[0].mxu0
    %v8166 = vadd.f32 0.0, %v8165
    %v8167 = vpop.f32.mrb[0].mxu0
    %v8168 = vpop.f32.mrb[0].mxu0
    %v8169 = vadd.f32 0.0, %v8168
    %v8170 = vpop.f32.mrb[0].mxu0
    %8171 = vdwg.mxu0
    %8172 = vrot.lane.b32.xlu0 %v7354, 32
    %v8173 = vpop.permute.xlu0 %8172
    %8174 = vrot.lane.b32.xlu0 %v7356, 32
    %v8175 = vpop.permute.xlu0 %8174
    %v8177 = vsel %vm4237, %v8173, 0
    %v8180 = vsel %vm4237, %v8175, 0
    %8182 = vmatprep.subr.bf16.mxu0 0
    %8183 = vmatpush1.bf16.xpose.msra.mxu0 %v8180
    %8184 = vmatprep.subr.bf16.mxu0 0
    %8185 = vmatpush1.bf16.xpose.msra.mxu0 0
    %8186 = vmatprep.subr.bf16.mxu0 0
    %8187 = vmatpush1.bf16.xpose.msra.mxu0 0
    %8188 = vmatprep.subr.bf16.mxu0 0
    %8189 = vmatpush1.bf16.xpose.msra.mxu0 0
    %8190 = vmatprep.subr.bf16.mxu0 0
    %8191 = vmatpush1.bf16.xpose.msra.mxu0 0
    %8192 = vmatprep.subr.bf16.mxu0 0
    %8193 = vmatpush1.bf16.xpose.msra.mxu0 0
    %8194 = vmatprep.subr.bf16.mxu0 0
    %8195 = vmatpush1.bf16.xpose.msra.mxu0 0
    %8196 = vmatprep.subr.bf16.mxu0 0
    %8197 = vmatpush1.bf16.xpose.msra.mxu0 0
    %8198 = vmatprep.subr.bf16.mxu0 0
    %8199 = vmatpush1.bf16.xpose.msra.mxu0 0
    %8200 = vmatprep.subr.bf16.mxu0 0
    %8201 = vmatpush1.bf16.xpose.msra.mxu0 0
    %8202 = vmatprep.subr.bf16.mxu0 0
    %8203 = vmatpush1.bf16.xpose.msra.mxu0 0
    %8204 = vmatprep.subr.bf16.mxu0 0
    %8205 = vmatpush1.bf16.xpose.msra.mxu0 0
    %8206 = vmatprep.subr.bf16.mxu0 0
    %8207 = vmatpush1.bf16.xpose.msra.mxu0 0
    %8208 = vmatprep.subr.bf16.mxu0 0
    %8209 = vmatpush1.bf16.xpose.msra.mxu0 0
    %8210 = vmatprep.subr.bf16.mxu0 0
    %8211 = vmatpush1.bf16.xpose.msra.mxu0 0
    %8212 = vmatprep.subr.bf16.mxu0 0
    %8213 = vmatpush1.bf16.xpose.msra.mxu0 0
    %8214 = vmatprep.mubr.bf16.mxu0 0
    %8215 = vmatmul.mubr.bf16.gmra.mrb[0].mxu0 %v8177
    %v8216 = vpop.f32.mrb[0].mxu0
    %v8217 = vadd.f32 0.0, %v8216
    %v8218 = vpop.f32.mrb[0].mxu0
    %v8219 = vpop.f32.mrb[0].mxu0
    %v8220 = vadd.f32 0.0, %v8219
    %v8221 = vpop.f32.mrb[0].mxu0
    %8222 = vdwg.mxu0
    %v8223 = vsel %vm660, %v8166, -inf
    %8224 = vmax.xlane.f32.xlu0 %v8223
    %v8225 = vpop.xlane.xlu0 %8224
    %v8226 = vsel %vm660, %v8169, -inf
    %8227 = vmax.xlane.f32.xlu0 %v8226
    %v8228 = vpop.xlane.xlu0 %8227
    %v8229 = vsel %vm660, %v8217, -inf
    %8230 = vmax.xlane.f32.xlu0 %v8229
    %v8231 = vpop.xlane.xlu0 %8230
    %v8232 = vsel %vm660, %v8220, -inf
    %8233 = vmax.xlane.f32.xlu0 %v8232
    %v8234 = vpop.xlane.xlu0 %8233
    %v8235 = vsub.f32 %v8166, %v8225
    %v8236 = vsub.f32 %v8169, %v8228
    %v8237 = vsub.f32 %v8217, %v8231
    %v8238 = vsub.f32 %v8220, %v8234
    %v8239 = vmul.f32 %v8235, 1.442695
    %v8240 = vpow.pop %v8239
    %v8241 = vmul.f32 %v8236, 1.442695
    %v8242 = vpow.pop %v8241
    %v8243 = vmul.f32 %v8237, 1.442695
    %v8244 = vpow.pop %v8243
    %v8245 = vmul.f32 %v8238, 1.442695
    %v8246 = vpow.pop %v8245
    %v8247 = vsel %vm660, %v8240, 0.0
    %8248 = vadd.xlane.f32.xlu0 %v8247
    %v8249 = vpop.xlane.xlu0 %8248
    %v8250 = vsel %vm660, %v8242, 0.0
    %8251 = vadd.xlane.f32.xlu0 %v8250
    %v8252 = vpop.xlane.xlu0 %8251
    %v8253 = vsel %vm660, %v8244, 0.0
    %8254 = vadd.xlane.f32.xlu0 %v8253
    %v8255 = vpop.xlane.xlu0 %8254
    %v8256 = vsel %vm660, %v8246, 0.0
    %8257 = vadd.xlane.f32.xlu0 %v8256
    %v8258 = vpop.xlane.xlu0 %8257
    %v8259 = vrcp.pop %v8249
    %v8260 = vrcp.pop %v8252
    %v8261 = vrcp.pop %v8255
    %v8262 = vrcp.pop %v8258
    %v8263 = vmul.f32 %v8240, %v8259
    %v8264 = vmul.f32 %v8242, %v8260
    %v8265 = vmul.f32 %v8244, %v8261
    %v8266 = vmul.f32 %v8246, %v8262
    %v8267 = vpack.c.bf16 %v8264, %v8263
    %v8268 = vpack.c.bf16 %v8266, %v8265
    %8269 = vrot.lane.b32.xlu0 %v7497, 32
    %v8270 = vpop.permute.xlu0 %8269
    %v8273 = vsel %vm660, %v8267, 0
    %8275 = vmatprep.subr.bf16.mxu0 0
    %8276 = vmatpush1.bf16.msra.mxu0 %v8270
    %8277 = vmatprep.subr.bf16.mxu0 0
    %8278 = vmatpush1.bf16.msra.mxu0 0
    %8279 = vmatprep.subr.bf16.mxu0 0
    %8280 = vmatpush1.bf16.msra.mxu0 0
    %8281 = vmatprep.subr.bf16.mxu0 0
    %8282 = vmatpush1.bf16.msra.mxu0 0
    %8283 = vmatprep.subr.bf16.mxu0 0
    %8284 = vmatpush1.bf16.msra.mxu0 0
    %8285 = vmatprep.subr.bf16.mxu0 0
    %8286 = vmatpush1.bf16.msra.mxu0 0
    %8287 = vmatprep.subr.bf16.mxu0 0
    %8288 = vmatpush1.bf16.msra.mxu0 0
    %8289 = vmatprep.subr.bf16.mxu0 0
    %8290 = vmatpush1.bf16.msra.mxu0 0
    %8291 = vmatprep.subr.bf16.mxu0 0
    %8292 = vmatpush1.bf16.msra.mxu0 0
    %8293 = vmatprep.subr.bf16.mxu0 0
    %8294 = vmatpush1.bf16.msra.mxu0 0
    %8295 = vmatprep.subr.bf16.mxu0 0
    %8296 = vmatpush1.bf16.msra.mxu0 0
    %8297 = vmatprep.subr.bf16.mxu0 0
    %8298 = vmatpush1.bf16.msra.mxu0 0
    %8299 = vmatprep.subr.bf16.mxu0 0
    %8300 = vmatpush1.bf16.msra.mxu0 0
    %8301 = vmatprep.subr.bf16.mxu0 0
    %8302 = vmatpush1.bf16.msra.mxu0 0
    %8303 = vmatprep.subr.bf16.mxu0 0
    %8304 = vmatpush1.bf16.msra.mxu0 0
    %8305 = vmatprep.subr.bf16.mxu0 0
    %8306 = vmatpush1.bf16.msra.mxu0 0
    %8307 = vmatprep.mubr.bf16.mxu0 0
    %8308 = vmatmul.mubr.bf16.gmra.mrb[0].mxu0 %v8273
    %v8309 = vpop.f32.mrb[0].mxu0
    %v8310 = vadd.f32 0.0, %v8309
    %v8311 = vpop.f32.mrb[0].mxu0
    %v8312 = vpop.f32.mrb[0].mxu0
    %v8313 = vadd.f32 0.0, %v8312
    %v8314 = vpop.f32.mrb[0].mxu0
    %8315 = vdwg.mxu0
    %8316 = vrot.lane.b32.xlu0 %v7498, 32
    %v8317 = vpop.permute.xlu0 %8316
    %v8320 = vsel %vm660, %v8268, 0
    %8322 = vmatprep.subr.bf16.mxu0 0
    %8323 = vmatpush1.bf16.msra.mxu0 %v8317
    %8324 = vmatprep.subr.bf16.mxu0 0
    %8325 = vmatpush1.bf16.msra.mxu0 0
    %8326 = vmatprep.subr.bf16.mxu0 0
    %8327 = vmatpush1.bf16.msra.mxu0 0
    %8328 = vmatprep.subr.bf16.mxu0 0
    %8329 = vmatpush1.bf16.msra.mxu0 0
    %8330 = vmatprep.subr.bf16.mxu0 0
    %8331 = vmatpush1.bf16.msra.mxu0 0
    %8332 = vmatprep.subr.bf16.mxu0 0
    %8333 = vmatpush1.bf16.msra.mxu0 0
    %8334 = vmatprep.subr.bf16.mxu0 0
    %8335 = vmatpush1.bf16.msra.mxu0 0
    %8336 = vmatprep.subr.bf16.mxu0 0
    %8337 = vmatpush1.bf16.msra.mxu0 0
    %8338 = vmatprep.subr.bf16.mxu0 0
    %8339 = vmatpush1.bf16.msra.mxu0 0
    %8340 = vmatprep.subr.bf16.mxu0 0
    %8341 = vmatpush1.bf16.msra.mxu0 0
    %8342 = vmatprep.subr.bf16.mxu0 0
    %8343 = vmatpush1.bf16.msra.mxu0 0
    %8344 = vmatprep.subr.bf16.mxu0 0
    %8345 = vmatpush1.bf16.msra.mxu0 0
    %8346 = vmatprep.subr.bf16.mxu0 0
    %8347 = vmatpush1.bf16.msra.mxu0 0
    %8348 = vmatprep.subr.bf16.mxu0 0
    %8349 = vmatpush1.bf16.msra.mxu0 0
    %8350 = vmatprep.subr.bf16.mxu0 0
    %8351 = vmatpush1.bf16.msra.mxu0 0
    %8352 = vmatprep.subr.bf16.mxu0 0
    %8353 = vmatpush1.bf16.msra.mxu0 0
    %8354 = vmatprep.mubr.bf16.mxu0 0
    %8355 = vmatmul.mubr.bf16.gmra.mrb[0].mxu0 %v8320
    %v8356 = vpop.f32.mrb[0].mxu0
    %v8357 = vadd.f32 0.0, %v8356
    %v8358 = vpop.f32.mrb[0].mxu0
    %v8359 = vpop.f32.mrb[0].mxu0
    %v8360 = vadd.f32 0.0, %v8359
    %v8361 = vpop.f32.mrb[0].mxu0
    %8362 = vdwg.mxu0
    %8367 = vrot.lane.b32.xlu0 %v8310, 96
    %v8368 = vpop.permute.xlu0 %8367
    %8369 = vrot.lane.b32.xlu0 %v8313, 96
    %v8370 = vpop.permute.xlu0 %8369
    %8371 = vrot.lane.b32.xlu0 %v8357, 96
    %v8372 = vpop.permute.xlu0 %8371
    %8373 = vrot.lane.b32.xlu0 %v8360, 96
    %v8374 = vpop.permute.xlu0 %8373
    %8379 = vst.msk [vmem:[#allocation3] sm:$0xff] %vm5262, %v8368
    %8380 = vst.msk [vmem:[#allocation3 + $0x10] sm:$0xff] %vm5262, %v8370
    %8381 = vst.msk [vmem:[#allocation3 + $0x20] sm:$0xff] %vm5262, %v8372
    %8382 = vst.msk [vmem:[#allocation3 + $0x30] sm:$0xff] %vm5262, %v8374
    %v8383 = vpack.c.bf16 %v7235, %v7231
    %v8384 = vpack.c.bf16 %v7245, %v7241
    %v8385 = vpack.c.bf16 %v7288, %v7284
    %v8386 = vpack.c.bf16 %v7298, %v7294
    %v8388 = vsel %vm4237, %v8383, 0
    %v8391 = vsel %vm4237, %v8385, 0
    %8393 = vmatprep.subr.bf16.mxu0 0
    %8394 = vmatpush1.bf16.xpose.msra.mxu0 %v8391
    %8395 = vmatprep.subr.bf16.mxu0 0
    %8396 = vmatpush1.bf16.xpose.msra.mxu0 0
    %8397 = vmatprep.subr.bf16.mxu0 0
    %8398 = vmatpush1.bf16.xpose.msra.mxu0 0
    %8399 = vmatprep.subr.bf16.mxu0 0
    %8400 = vmatpush1.bf16.xpose.msra.mxu0 0
    %8401 = vmatprep.subr.bf16.mxu0 0
    %8402 = vmatpush1.bf16.xpose.msra.mxu0 0
    %8403 = vmatprep.subr.bf16.mxu0 0
    %8404 = vmatpush1.bf16.xpose.msra.mxu0 0
    %8405 = vmatprep.subr.bf16.mxu0 0
    %8406 = vmatpush1.bf16.xpose.msra.mxu0 0
    %8407 = vmatprep.subr.bf16.mxu0 0
    %8408 = vmatpush1.bf16.xpose.msra.mxu0 0
    %8409 = vmatprep.subr.bf16.mxu0 0
    %8410 = vmatpush1.bf16.xpose.msra.mxu0 0
    %8411 = vmatprep.subr.bf16.mxu0 0
    %8412 = vmatpush1.bf16.xpose.msra.mxu0 0
    %8413 = vmatprep.subr.bf16.mxu0 0
    %8414 = vmatpush1.bf16.xpose.msra.mxu0 0
    %8415 = vmatprep.subr.bf16.mxu0 0
    %8416 = vmatpush1.bf16.xpose.msra.mxu0 0
    %8417 = vmatprep.subr.bf16.mxu0 0
    %8418 = vmatpush1.bf16.xpose.msra.mxu0 0
    %8419 = vmatprep.subr.bf16.mxu0 0
    %8420 = vmatpush1.bf16.xpose.msra.mxu0 0
    %8421 = vmatprep.subr.bf16.mxu0 0
    %8422 = vmatpush1.bf16.xpose.msra.mxu0 0
    %8423 = vmatprep.subr.bf16.mxu0 0
    %8424 = vmatpush1.bf16.xpose.msra.mxu0 0
    %8425 = vmatprep.mubr.bf16.mxu0 0
    %8426 = vmatmul.mubr.bf16.gmra.mrb[0].mxu0 %v8388
    %v8427 = vpop.f32.mrb[0].mxu0
    %v8428 = vadd.f32 0.0, %v8427
    %v8429 = vpop.f32.mrb[0].mxu0
    %v8430 = vpop.f32.mrb[0].mxu0
    %v8431 = vadd.f32 0.0, %v8430
    %v8432 = vpop.f32.mrb[0].mxu0
    %8433 = vdwg.mxu0
    %v8435 = vsel %vm4237, %v8384, 0
    %v8438 = vsel %vm4237, %v8386, 0
    %8440 = vmatprep.subr.bf16.mxu0 0
    %8441 = vmatpush1.bf16.xpose.msra.mxu0 %v8438
    %8442 = vmatprep.subr.bf16.mxu0 0
    %8443 = vmatpush1.bf16.xpose.msra.mxu0 0
    %8444 = vmatprep.subr.bf16.mxu0 0
    %8445 = vmatpush1.bf16.xpose.msra.mxu0 0
    %8446 = vmatprep.subr.bf16.mxu0 0
    %8447 = vmatpush1.bf16.xpose.msra.mxu0 0
    %8448 = vmatprep.subr.bf16.mxu0 0
    %8449 = vmatpush1.bf16.xpose.msra.mxu0 0
    %8450 = vmatprep.subr.bf16.mxu0 0
    %8451 = vmatpush1.bf16.xpose.msra.mxu0 0
    %8452 = vmatprep.subr.bf16.mxu0 0
    %8453 = vmatpush1.bf16.xpose.msra.mxu0 0
    %8454 = vmatprep.subr.bf16.mxu0 0
    %8455 = vmatpush1.bf16.xpose.msra.mxu0 0
    %8456 = vmatprep.subr.bf16.mxu0 0
    %8457 = vmatpush1.bf16.xpose.msra.mxu0 0
    %8458 = vmatprep.subr.bf16.mxu0 0
    %8459 = vmatpush1.bf16.xpose.msra.mxu0 0
    %8460 = vmatprep.subr.bf16.mxu0 0
    %8461 = vmatpush1.bf16.xpose.msra.mxu0 0
    %8462 = vmatprep.subr.bf16.mxu0 0
    %8463 = vmatpush1.bf16.xpose.msra.mxu0 0
    %8464 = vmatprep.subr.bf16.mxu0 0
    %8465 = vmatpush1.bf16.xpose.msra.mxu0 0
    %8466 = vmatprep.subr.bf16.mxu0 0
    %8467 = vmatpush1.bf16.xpose.msra.mxu0 0
    %8468 = vmatprep.subr.bf16.mxu0 0
    %8469 = vmatpush1.bf16.xpose.msra.mxu0 0
    %8470 = vmatprep.subr.bf16.mxu0 0
    %8471 = vmatpush1.bf16.xpose.msra.mxu0 0
    %8472 = vmatprep.mubr.bf16.mxu0 0
    %8473 = vmatmul.mubr.bf16.gmra.mrb[0].mxu0 %v8435
    %v8474 = vpop.f32.mrb[0].mxu0
    %v8475 = vadd.f32 0.0, %v8474
    %v8476 = vpop.f32.mrb[0].mxu0
    %v8477 = vpop.f32.mrb[0].mxu0
    %v8478 = vadd.f32 0.0, %v8477
    %v8479 = vpop.f32.mrb[0].mxu0
    %8480 = vdwg.mxu0
    %v8481 = vsel %vm660, %v8428, -inf
    %8482 = vmax.xlane.f32.xlu0 %v8481
    %v8483 = vpop.xlane.xlu0 %8482
    %v8484 = vsel %vm660, %v8431, -inf
    %8485 = vmax.xlane.f32.xlu0 %v8484
    %v8486 = vpop.xlane.xlu0 %8485
    %v8487 = vsel %vm660, %v8475, -inf
    %8488 = vmax.xlane.f32.xlu0 %v8487
    %v8489 = vpop.xlane.xlu0 %8488
    %v8490 = vsel %vm660, %v8478, -inf
    %8491 = vmax.xlane.f32.xlu0 %v8490
    %v8492 = vpop.xlane.xlu0 %8491
    %v8493 = vsub.f32 %v8428, %v8483
    %v8494 = vsub.f32 %v8431, %v8486
    %v8495 = vsub.f32 %v8475, %v8489
    %v8496 = vsub.f32 %v8478, %v8492
    %v8497 = vmul.f32 %v8493, 1.442695
    %v8498 = vpow.pop %v8497
    %v8499 = vmul.f32 %v8494, 1.442695
    %v8500 = vpow.pop %v8499
    %v8501 = vmul.f32 %v8495, 1.442695
    %v8502 = vpow.pop %v8501
    %v8503 = vmul.f32 %v8496, 1.442695
    %v8504 = vpow.pop %v8503
    %v8505 = vsel %vm660, %v8498, 0.0
    %8506 = vadd.xlane.f32.xlu0 %v8505
    %v8507 = vpop.xlane.xlu0 %8506
    %v8508 = vsel %vm660, %v8500, 0.0
    %8509 = vadd.xlane.f32.xlu0 %v8508
    %v8510 = vpop.xlane.xlu0 %8509
    %v8511 = vsel %vm660, %v8502, 0.0
    %8512 = vadd.xlane.f32.xlu0 %v8511
    %v8513 = vpop.xlane.xlu0 %8512
    %v8514 = vsel %vm660, %v8504, 0.0
    %8515 = vadd.xlane.f32.xlu0 %v8514
    %v8516 = vpop.xlane.xlu0 %8515
    %v8517 = vrcp.pop %v8507
    %v8518 = vrcp.pop %v8510
    %v8519 = vrcp.pop %v8513
    %v8520 = vrcp.pop %v8516
    %v8521 = vmul.f32 %v8498, %v8517
    %v8522 = vmul.f32 %v8500, %v8518
    %v8523 = vmul.f32 %v8502, %v8519
    %v8524 = vmul.f32 %v8504, %v8520
    %v8525 = vpack.c.bf16 %v8522, %v8521
    %v8526 = vpack.c.bf16 %v8524, %v8523
    %v8527 = vpack.c.bf16 %v7341, %v7337
    %v8528 = vpack.c.bf16 %v7351, %v7347
    %v8530 = vsel %vm660, %v8525, 0
    %8532 = vmatprep.subr.bf16.mxu0 0
    %8533 = vmatpush1.bf16.msra.mxu0 %v8527
    %8534 = vmatprep.subr.bf16.mxu0 0
    %8535 = vmatpush1.bf16.msra.mxu0 0
    %8536 = vmatprep.subr.bf16.mxu0 0
    %8537 = vmatpush1.bf16.msra.mxu0 0
    %8538 = vmatprep.subr.bf16.mxu0 0
    %8539 = vmatpush1.bf16.msra.mxu0 0
    %8540 = vmatprep.subr.bf16.mxu0 0
    %8541 = vmatpush1.bf16.msra.mxu0 0
    %8542 = vmatprep.subr.bf16.mxu0 0
    %8543 = vmatpush1.bf16.msra.mxu0 0
    %8544 = vmatprep.subr.bf16.mxu0 0
    %8545 = vmatpush1.bf16.msra.mxu0 0
    %8546 = vmatprep.subr.bf16.mxu0 0
    %8547 = vmatpush1.bf16.msra.mxu0 0
    %8548 = vmatprep.subr.bf16.mxu0 0
    %8549 = vmatpush1.bf16.msra.mxu0 0
    %8550 = vmatprep.subr.bf16.mxu0 0
    %8551 = vmatpush1.bf16.msra.mxu0 0
    %8552 = vmatprep.subr.bf16.mxu0 0
    %8553 = vmatpush1.bf16.msra.mxu0 0
    %8554 = vmatprep.subr.bf16.mxu0 0
    %8555 = vmatpush1.bf16.msra.mxu0 0
    %8556 = vmatprep.subr.bf16.mxu0 0
    %8557 = vmatpush1.bf16.msra.mxu0 0
    %8558 = vmatprep.subr.bf16.mxu0 0
    %8559 = vmatpush1.bf16.msra.mxu0 0
    %8560 = vmatprep.subr.bf16.mxu0 0
    %8561 = vmatpush1.bf16.msra.mxu0 0
    %8562 = vmatprep.subr.bf16.mxu0 0
    %8563 = vmatpush1.bf16.msra.mxu0 0
    %8564 = vmatprep.mubr.bf16.mxu0 0
    %8565 = vmatmul.mubr.bf16.gmra.mrb[0].mxu0 %v8530
    %v8566 = vpop.f32.mrb[0].mxu0
    %v8567 = vadd.f32 0.0, %v8566
    %v8568 = vpop.f32.mrb[0].mxu0
    %v8569 = vpop.f32.mrb[0].mxu0
    %v8570 = vadd.f32 0.0, %v8569
    %v8571 = vpop.f32.mrb[0].mxu0
    %8572 = vdwg.mxu0
    %v8574 = vsel %vm660, %v8526, 0
    %8576 = vmatprep.subr.bf16.mxu0 0
    %8577 = vmatpush1.bf16.msra.mxu0 %v8528
    %8578 = vmatprep.subr.bf16.mxu0 0
    %8579 = vmatpush1.bf16.msra.mxu0 0
    %8580 = vmatprep.subr.bf16.mxu0 0
    %8581 = vmatpush1.bf16.msra.mxu0 0
    %8582 = vmatprep.subr.bf16.mxu0 0
    %8583 = vmatpush1.bf16.msra.mxu0 0
    %8584 = vmatprep.subr.bf16.mxu0 0
    %8585 = vmatpush1.bf16.msra.mxu0 0
    %8586 = vmatprep.subr.bf16.mxu0 0
    %8587 = vmatpush1.bf16.msra.mxu0 0
    %8588 = vmatprep.subr.bf16.mxu0 0
    %8589 = vmatpush1.bf16.msra.mxu0 0
    %8590 = vmatprep.subr.bf16.mxu0 0
    %8591 = vmatpush1.bf16.msra.mxu0 0
    %8592 = vmatprep.subr.bf16.mxu0 0
    %8593 = vmatpush1.bf16.msra.mxu0 0
    %8594 = vmatprep.subr.bf16.mxu0 0
    %8595 = vmatpush1.bf16.msra.mxu0 0
    %8596 = vmatprep.subr.bf16.mxu0 0
    %8597 = vmatpush1.bf16.msra.mxu0 0
    %8598 = vmatprep.subr.bf16.mxu0 0
    %8599 = vmatpush1.bf16.msra.mxu0 0
    %8600 = vmatprep.subr.bf16.mxu0 0
    %8601 = vmatpush1.bf16.msra.mxu0 0
    %8602 = vmatprep.subr.bf16.mxu0 0
    %8603 = vmatpush1.bf16.msra.mxu0 0
    %8604 = vmatprep.subr.bf16.mxu0 0
    %8605 = vmatpush1.bf16.msra.mxu0 0
    %8606 = vmatprep.subr.bf16.mxu0 0
    %8607 = vmatpush1.bf16.msra.mxu0 0
    %8608 = vmatprep.mubr.bf16.mxu0 0
    %8609 = vmatmul.mubr.bf16.gmra.mrb[0].mxu0 %v8574
    %v8610 = vpop.f32.mrb[0].mxu0
    %v8611 = vadd.f32 0.0, %v8610
    %v8612 = vpop.f32.mrb[0].mxu0
    %v8613 = vpop.f32.mrb[0].mxu0
    %v8614 = vadd.f32 0.0, %v8613
    %v8615 = vpop.f32.mrb[0].mxu0
    %8616 = vdwg.mxu0
    %8617 = vst.msk [vmem:[#allocation3 + $0x8] sm:$0xff] %vm4237, %v8567
    %8618 = vst.msk [vmem:[#allocation3 + $0x18] sm:$0xff] %vm4237, %v8570
    %8619 = vst.msk [vmem:[#allocation3 + $0x28] sm:$0xff] %vm4237, %v8611
    %8620 = vst.msk [vmem:[#allocation3 + $0x38] sm:$0xff] %vm4237, %v8614
    %8622 = vrot.lane.b32.xlu0 %v8383, 96
    %v8623 = vpop.permute.xlu0 %8622
    %8625 = vrot.lane.b32.xlu0 %v8385, 96
    %v8626 = vpop.permute.xlu0 %8625
    %v8628 = vsel %vm4237, %v8623, 0
    %v8631 = vsel %vm4237, %v8626, 0
    %8633 = vmatprep.subr.bf16.mxu0 0
    %8634 = vmatpush1.bf16.xpose.msra.mxu0 %v8631
    %8635 = vmatprep.subr.bf16.mxu0 0
    %8636 = vmatpush1.bf16.xpose.msra.mxu0 0
    %8637 = vmatprep.subr.bf16.mxu0 0
    %8638 = vmatpush1.bf16.xpose.msra.mxu0 0
    %8639 = vmatprep.subr.bf16.mxu0 0
    %8640 = vmatpush1.bf16.xpose.msra.mxu0 0
    %8641 = vmatprep.subr.bf16.mxu0 0
    %8642 = vmatpush1.bf16.xpose.msra.mxu0 0
    %8643 = vmatprep.subr.bf16.mxu0 0
    %8644 = vmatpush1.bf16.xpose.msra.mxu0 0
    %8645 = vmatprep.subr.bf16.mxu0 0
    %8646 = vmatpush1.bf16.xpose.msra.mxu0 0
    %8647 = vmatprep.subr.bf16.mxu0 0
    %8648 = vmatpush1.bf16.xpose.msra.mxu0 0
    %8649 = vmatprep.subr.bf16.mxu0 0
    %8650 = vmatpush1.bf16.xpose.msra.mxu0 0
    %8651 = vmatprep.subr.bf16.mxu0 0
    %8652 = vmatpush1.bf16.xpose.msra.mxu0 0
    %8653 = vmatprep.subr.bf16.mxu0 0
    %8654 = vmatpush1.bf16.xpose.msra.mxu0 0
    %8655 = vmatprep.subr.bf16.mxu0 0
    %8656 = vmatpush1.bf16.xpose.msra.mxu0 0
    %8657 = vmatprep.subr.bf16.mxu0 0
    %8658 = vmatpush1.bf16.xpose.msra.mxu0 0
    %8659 = vmatprep.subr.bf16.mxu0 0
    %8660 = vmatpush1.bf16.xpose.msra.mxu0 0
    %8661 = vmatprep.subr.bf16.mxu0 0
    %8662 = vmatpush1.bf16.xpose.msra.mxu0 0
    %8663 = vmatprep.subr.bf16.mxu0 0
    %8664 = vmatpush1.bf16.xpose.msra.mxu0 0
    %8665 = vmatprep.mubr.bf16.mxu0 0
    %8666 = vmatmul.mubr.bf16.gmra.mrb[0].mxu0 %v8628
    %v8667 = vpop.f32.mrb[0].mxu0
    %v8668 = vadd.f32 0.0, %v8667
    %v8669 = vpop.f32.mrb[0].mxu0
    %v8670 = vpop.f32.mrb[0].mxu0
    %v8671 = vadd.f32 0.0, %v8670
    %v8672 = vpop.f32.mrb[0].mxu0
    %8673 = vdwg.mxu0
    %8675 = vrot.lane.b32.xlu0 %v8384, 96
    %v8676 = vpop.permute.xlu0 %8675
    %8678 = vrot.lane.b32.xlu0 %v8386, 96
    %v8679 = vpop.permute.xlu0 %8678
    %v8681 = vsel %vm4237, %v8676, 0
    %v8684 = vsel %vm4237, %v8679, 0
    %8686 = vmatprep.subr.bf16.mxu0 0
    %8687 = vmatpush1.bf16.xpose.msra.mxu0 %v8684
    %8688 = vmatprep.subr.bf16.mxu0 0
    %8689 = vmatpush1.bf16.xpose.msra.mxu0 0
    %8690 = vmatprep.subr.bf16.mxu0 0
    %8691 = vmatpush1.bf16.xpose.msra.mxu0 0
    %8692 = vmatprep.subr.bf16.mxu0 0
    %8693 = vmatpush1.bf16.xpose.msra.mxu0 0
    %8694 = vmatprep.subr.bf16.mxu0 0
    %8695 = vmatpush1.bf16.xpose.msra.mxu0 0
    %8696 = vmatprep.subr.bf16.mxu0 0
    %8697 = vmatpush1.bf16.xpose.msra.mxu0 0
    %8698 = vmatprep.subr.bf16.mxu0 0
    %8699 = vmatpush1.bf16.xpose.msra.mxu0 0
    %8700 = vmatprep.subr.bf16.mxu0 0
    %8701 = vmatpush1.bf16.xpose.msra.mxu0 0
    %8702 = vmatprep.subr.bf16.mxu0 0
    %8703 = vmatpush1.bf16.xpose.msra.mxu0 0
    %8704 = vmatprep.subr.bf16.mxu0 0
    %8705 = vmatpush1.bf16.xpose.msra.mxu0 0
    %8706 = vmatprep.subr.bf16.mxu0 0
    %8707 = vmatpush1.bf16.xpose.msra.mxu0 0
    %8708 = vmatprep.subr.bf16.mxu0 0
    %8709 = vmatpush1.bf16.xpose.msra.mxu0 0
    %8710 = vmatprep.subr.bf16.mxu0 0
    %8711 = vmatpush1.bf16.xpose.msra.mxu0 0
    %8712 = vmatprep.subr.bf16.mxu0 0
    %8713 = vmatpush1.bf16.xpose.msra.mxu0 0
    %8714 = vmatprep.subr.bf16.mxu0 0
    %8715 = vmatpush1.bf16.xpose.msra.mxu0 0
    %8716 = vmatprep.subr.bf16.mxu0 0
    %8717 = vmatpush1.bf16.xpose.msra.mxu0 0
    %8718 = vmatprep.mubr.bf16.mxu0 0
    %8719 = vmatmul.mubr.bf16.gmra.mrb[0].mxu0 %v8681
    %v8720 = vpop.f32.mrb[0].mxu0
    %v8721 = vadd.f32 0.0, %v8720
    %v8722 = vpop.f32.mrb[0].mxu0
    %v8723 = vpop.f32.mrb[0].mxu0
    %v8724 = vadd.f32 0.0, %v8723
    %v8725 = vpop.f32.mrb[0].mxu0
    %8726 = vdwg.mxu0
    %v8727 = vsel %vm660, %v8668, -inf
    %8728 = vmax.xlane.f32.xlu0 %v8727
    %v8729 = vpop.xlane.xlu0 %8728
    %v8730 = vsel %vm660, %v8671, -inf
    %8731 = vmax.xlane.f32.xlu0 %v8730
    %v8732 = vpop.xlane.xlu0 %8731
    %v8733 = vsel %vm660, %v8721, -inf
    %8734 = vmax.xlane.f32.xlu0 %v8733
    %v8735 = vpop.xlane.xlu0 %8734
    %v8736 = vsel %vm660, %v8724, -inf
    %8737 = vmax.xlane.f32.xlu0 %v8736
    %v8738 = vpop.xlane.xlu0 %8737
    %v8739 = vsub.f32 %v8668, %v8729
    %v8740 = vsub.f32 %v8671, %v8732
    %v8741 = vsub.f32 %v8721, %v8735
    %v8742 = vsub.f32 %v8724, %v8738
    %v8743 = vmul.f32 %v8739, 1.442695
    %v8744 = vpow.pop %v8743
    %v8745 = vmul.f32 %v8740, 1.442695
    %v8746 = vpow.pop %v8745
    %v8747 = vmul.f32 %v8741, 1.442695
    %v8748 = vpow.pop %v8747
    %v8749 = vmul.f32 %v8742, 1.442695
    %v8750 = vpow.pop %v8749
    %v8751 = vsel %vm660, %v8744, 0.0
    %8752 = vadd.xlane.f32.xlu0 %v8751
    %v8753 = vpop.xlane.xlu0 %8752
    %v8754 = vsel %vm660, %v8746, 0.0
    %8755 = vadd.xlane.f32.xlu0 %v8754
    %v8756 = vpop.xlane.xlu0 %8755
    %v8757 = vsel %vm660, %v8748, 0.0
    %8758 = vadd.xlane.f32.xlu0 %v8757
    %v8759 = vpop.xlane.xlu0 %8758
    %v8760 = vsel %vm660, %v8750, 0.0
    %8761 = vadd.xlane.f32.xlu0 %v8760
    %v8762 = vpop.xlane.xlu0 %8761
    %v8763 = vrcp.pop %v8753
    %v8764 = vrcp.pop %v8756
    %v8765 = vrcp.pop %v8759
    %v8766 = vrcp.pop %v8762
    %v8767 = vmul.f32 %v8744, %v8763
    %v8768 = vmul.f32 %v8746, %v8764
    %v8769 = vmul.f32 %v8748, %v8765
    %v8770 = vmul.f32 %v8750, %v8766
    %v8771 = vpack.c.bf16 %v8768, %v8767
    %v8772 = vpack.c.bf16 %v8770, %v8769
    %8774 = vrot.lane.b32.xlu0 %v8527, 96
    %v8775 = vpop.permute.xlu0 %8774
    %v8778 = vsel %vm660, %v8771, 0
    %8780 = vmatprep.subr.bf16.mxu0 0
    %8781 = vmatpush1.bf16.msra.mxu0 %v8775
    %8782 = vmatprep.subr.bf16.mxu0 0
    %8783 = vmatpush1.bf16.msra.mxu0 0
    %8784 = vmatprep.subr.bf16.mxu0 0
    %8785 = vmatpush1.bf16.msra.mxu0 0
    %8786 = vmatprep.subr.bf16.mxu0 0
    %8787 = vmatpush1.bf16.msra.mxu0 0
    %8788 = vmatprep.subr.bf16.mxu0 0
    %8789 = vmatpush1.bf16.msra.mxu0 0
    %8790 = vmatprep.subr.bf16.mxu0 0
    %8791 = vmatpush1.bf16.msra.mxu0 0
    %8792 = vmatprep.subr.bf16.mxu0 0
    %8793 = vmatpush1.bf16.msra.mxu0 0
    %8794 = vmatprep.subr.bf16.mxu0 0
    %8795 = vmatpush1.bf16.msra.mxu0 0
    %8796 = vmatprep.subr.bf16.mxu0 0
    %8797 = vmatpush1.bf16.msra.mxu0 0
    %8798 = vmatprep.subr.bf16.mxu0 0
    %8799 = vmatpush1.bf16.msra.mxu0 0
    %8800 = vmatprep.subr.bf16.mxu0 0
    %8801 = vmatpush1.bf16.msra.mxu0 0
    %8802 = vmatprep.subr.bf16.mxu0 0
    %8803 = vmatpush1.bf16.msra.mxu0 0
    %8804 = vmatprep.subr.bf16.mxu0 0
    %8805 = vmatpush1.bf16.msra.mxu0 0
    %8806 = vmatprep.subr.bf16.mxu0 0
    %8807 = vmatpush1.bf16.msra.mxu0 0
    %8808 = vmatprep.subr.bf16.mxu0 0
    %8809 = vmatpush1.bf16.msra.mxu0 0
    %8810 = vmatprep.subr.bf16.mxu0 0
    %8811 = vmatpush1.bf16.msra.mxu0 0
    %8812 = vmatprep.mubr.bf16.mxu0 0
    %8813 = vmatmul.mubr.bf16.gmra.mrb[0].mxu0 %v8778
    %v8814 = vpop.f32.mrb[0].mxu0
    %v8815 = vadd.f32 0.0, %v8814
    %v8816 = vpop.f32.mrb[0].mxu0
    %v8817 = vpop.f32.mrb[0].mxu0
    %v8818 = vadd.f32 0.0, %v8817
    %v8819 = vpop.f32.mrb[0].mxu0
    %8820 = vdwg.mxu0
    %8822 = vrot.lane.b32.xlu0 %v8528, 96
    %v8823 = vpop.permute.xlu0 %8822
    %v8826 = vsel %vm660, %v8772, 0
    %8828 = vmatprep.subr.bf16.mxu0 0
    %8829 = vmatpush1.bf16.msra.mxu0 %v8823
    %8830 = vmatprep.subr.bf16.mxu0 0
    %8831 = vmatpush1.bf16.msra.mxu0 0
    %8832 = vmatprep.subr.bf16.mxu0 0
    %8833 = vmatpush1.bf16.msra.mxu0 0
    %8834 = vmatprep.subr.bf16.mxu0 0
    %8835 = vmatpush1.bf16.msra.mxu0 0
    %8836 = vmatprep.subr.bf16.mxu0 0
    %8837 = vmatpush1.bf16.msra.mxu0 0
    %8838 = vmatprep.subr.bf16.mxu0 0
    %8839 = vmatpush1.bf16.msra.mxu0 0
    %8840 = vmatprep.subr.bf16.mxu0 0
    %8841 = vmatpush1.bf16.msra.mxu0 0
    %8842 = vmatprep.subr.bf16.mxu0 0
    %8843 = vmatpush1.bf16.msra.mxu0 0
    %8844 = vmatprep.subr.bf16.mxu0 0
    %8845 = vmatpush1.bf16.msra.mxu0 0
    %8846 = vmatprep.subr.bf16.mxu0 0
    %8847 = vmatpush1.bf16.msra.mxu0 0
    %8848 = vmatprep.subr.bf16.mxu0 0
    %8849 = vmatpush1.bf16.msra.mxu0 0
    %8850 = vmatprep.subr.bf16.mxu0 0
    %8851 = vmatpush1.bf16.msra.mxu0 0
    %8852 = vmatprep.subr.bf16.mxu0 0
    %8853 = vmatpush1.bf16.msra.mxu0 0
    %8854 = vmatprep.subr.bf16.mxu0 0
    %8855 = vmatpush1.bf16.msra.mxu0 0
    %8856 = vmatprep.subr.bf16.mxu0 0
    %8857 = vmatpush1.bf16.msra.mxu0 0
    %8858 = vmatprep.subr.bf16.mxu0 0
    %8859 = vmatpush1.bf16.msra.mxu0 0
    %8860 = vmatprep.mubr.bf16.mxu0 0
    %8861 = vmatmul.mubr.bf16.gmra.mrb[0].mxu0 %v8826
    %v8862 = vpop.f32.mrb[0].mxu0
    %v8863 = vadd.f32 0.0, %v8862
    %v8864 = vpop.f32.mrb[0].mxu0
    %v8865 = vpop.f32.mrb[0].mxu0
    %v8866 = vadd.f32 0.0, %v8865
    %v8867 = vpop.f32.mrb[0].mxu0
    %8868 = vdwg.mxu0
    %8873 = vrot.lane.b32.xlu0 %v8815, 32
    %v8874 = vpop.permute.xlu0 %8873
    %8875 = vrot.lane.b32.xlu0 %v8818, 32
    %v8876 = vpop.permute.xlu0 %8875
    %8877 = vrot.lane.b32.xlu0 %v8863, 32
    %v8878 = vpop.permute.xlu0 %8877
    %8879 = vrot.lane.b32.xlu0 %v8866, 32
    %v8880 = vpop.permute.xlu0 %8879
    %8885 = vst.msk [vmem:[#allocation3 + $0x8] sm:$0xff] %vm4736, %v8874
    %8886 = vst.msk [vmem:[#allocation3 + $0x18] sm:$0xff] %vm4736, %v8876
    %8887 = vst.msk [vmem:[#allocation3 + $0x28] sm:$0xff] %vm4736, %v8878
    %8888 = vst.msk [vmem:[#allocation3 + $0x38] sm:$0xff] %vm4736, %v8880
    %8889 = vrot.lane.b32.xlu0 %v8383, 64
    %v8890 = vpop.permute.xlu0 %8889
    %8891 = vrot.lane.b32.xlu0 %v8385, 64
    %v8892 = vpop.permute.xlu0 %8891
    %v8894 = vsel %vm4237, %v8890, 0
    %v8897 = vsel %vm4237, %v8892, 0
    %8899 = vmatprep.subr.bf16.mxu0 0
    %8900 = vmatpush1.bf16.xpose.msra.mxu0 %v8897
    %8901 = vmatprep.subr.bf16.mxu0 0
    %8902 = vmatpush1.bf16.xpose.msra.mxu0 0
    %8903 = vmatprep.subr.bf16.mxu0 0
    %8904 = vmatpush1.bf16.xpose.msra.mxu0 0
    %8905 = vmatprep.subr.bf16.mxu0 0
    %8906 = vmatpush1.bf16.xpose.msra.mxu0 0
    %8907 = vmatprep.subr.bf16.mxu0 0
    %8908 = vmatpush1.bf16.xpose.msra.mxu0 0
    %8909 = vmatprep.subr.bf16.mxu0 0
    %8910 = vmatpush1.bf16.xpose.msra.mxu0 0
    %8911 = vmatprep.subr.bf16.mxu0 0
    %8912 = vmatpush1.bf16.xpose.msra.mxu0 0
    %8913 = vmatprep.subr.bf16.mxu0 0
    %8914 = vmatpush1.bf16.xpose.msra.mxu0 0
    %8915 = vmatprep.subr.bf16.mxu0 0
    %8916 = vmatpush1.bf16.xpose.msra.mxu0 0
    %8917 = vmatprep.subr.bf16.mxu0 0
    %8918 = vmatpush1.bf16.xpose.msra.mxu0 0
    %8919 = vmatprep.subr.bf16.mxu0 0
    %8920 = vmatpush1.bf16.xpose.msra.mxu0 0
    %8921 = vmatprep.subr.bf16.mxu0 0
    %8922 = vmatpush1.bf16.xpose.msra.mxu0 0
    %8923 = vmatprep.subr.bf16.mxu0 0
    %8924 = vmatpush1.bf16.xpose.msra.mxu0 0
    %8925 = vmatprep.subr.bf16.mxu0 0
    %8926 = vmatpush1.bf16.xpose.msra.mxu0 0
    %8927 = vmatprep.subr.bf16.mxu0 0
    %8928 = vmatpush1.bf16.xpose.msra.mxu0 0
    %8929 = vmatprep.subr.bf16.mxu0 0
    %8930 = vmatpush1.bf16.xpose.msra.mxu0 0
    %8931 = vmatprep.mubr.bf16.mxu0 0
    %8932 = vmatmul.mubr.bf16.gmra.mrb[0].mxu0 %v8894
    %v8933 = vpop.f32.mrb[0].mxu0
    %v8934 = vadd.f32 0.0, %v8933
    %v8935 = vpop.f32.mrb[0].mxu0
    %v8936 = vpop.f32.mrb[0].mxu0
    %v8937 = vadd.f32 0.0, %v8936
    %v8938 = vpop.f32.mrb[0].mxu0
    %8939 = vdwg.mxu0
    %8940 = vrot.lane.b32.xlu0 %v8384, 64
    %v8941 = vpop.permute.xlu0 %8940
    %8942 = vrot.lane.b32.xlu0 %v8386, 64
    %v8943 = vpop.permute.xlu0 %8942
    %v8945 = vsel %vm4237, %v8941, 0
    %v8948 = vsel %vm4237, %v8943, 0
    %8950 = vmatprep.subr.bf16.mxu0 0
    %8951 = vmatpush1.bf16.xpose.msra.mxu0 %v8948
    %8952 = vmatprep.subr.bf16.mxu0 0
    %8953 = vmatpush1.bf16.xpose.msra.mxu0 0
    %8954 = vmatprep.subr.bf16.mxu0 0
    %8955 = vmatpush1.bf16.xpose.msra.mxu0 0
    %8956 = vmatprep.subr.bf16.mxu0 0
    %8957 = vmatpush1.bf16.xpose.msra.mxu0 0
    %8958 = vmatprep.subr.bf16.mxu0 0
    %8959 = vmatpush1.bf16.xpose.msra.mxu0 0
    %8960 = vmatprep.subr.bf16.mxu0 0
    %8961 = vmatpush1.bf16.xpose.msra.mxu0 0
    %8962 = vmatprep.subr.bf16.mxu0 0
    %8963 = vmatpush1.bf16.xpose.msra.mxu0 0
    %8964 = vmatprep.subr.bf16.mxu0 0
    %8965 = vmatpush1.bf16.xpose.msra.mxu0 0
    %8966 = vmatprep.subr.bf16.mxu0 0
    %8967 = vmatpush1.bf16.xpose.msra.mxu0 0
    %8968 = vmatprep.subr.bf16.mxu0 0
    %8969 = vmatpush1.bf16.xpose.msra.mxu0 0
    %8970 = vmatprep.subr.bf16.mxu0 0
    %8971 = vmatpush1.bf16.xpose.msra.mxu0 0
    %8972 = vmatprep.subr.bf16.mxu0 0
    %8973 = vmatpush1.bf16.xpose.msra.mxu0 0
    %8974 = vmatprep.subr.bf16.mxu0 0
    %8975 = vmatpush1.bf16.xpose.msra.mxu0 0
    %8976 = vmatprep.subr.bf16.mxu0 0
    %8977 = vmatpush1.bf16.xpose.msra.mxu0 0
    %8978 = vmatprep.subr.bf16.mxu0 0
    %8979 = vmatpush1.bf16.xpose.msra.mxu0 0
    %8980 = vmatprep.subr.bf16.mxu0 0
    %8981 = vmatpush1.bf16.xpose.msra.mxu0 0
    %8982 = vmatprep.mubr.bf16.mxu0 0
    %8983 = vmatmul.mubr.bf16.gmra.mrb[0].mxu0 %v8945
    %v8984 = vpop.f32.mrb[0].mxu0
    %v8985 = vadd.f32 0.0, %v8984
    %v8986 = vpop.f32.mrb[0].mxu0
    %v8987 = vpop.f32.mrb[0].mxu0
    %v8988 = vadd.f32 0.0, %v8987
    %v8989 = vpop.f32.mrb[0].mxu0
    %8990 = vdwg.mxu0
    %v8991 = vsel %vm660, %v8934, -inf
    %8992 = vmax.xlane.f32.xlu0 %v8991
    %v8993 = vpop.xlane.xlu0 %8992
    %v8994 = vsel %vm660, %v8937, -inf
    %8995 = vmax.xlane.f32.xlu0 %v8994
    %v8996 = vpop.xlane.xlu0 %8995
    %v8997 = vsel %vm660, %v8985, -inf
    %8998 = vmax.xlane.f32.xlu0 %v8997
    %v8999 = vpop.xlane.xlu0 %8998
    %v9000 = vsel %vm660, %v8988, -inf
    %9001 = vmax.xlane.f32.xlu0 %v9000
    %v9002 = vpop.xlane.xlu0 %9001
    %v9003 = vsub.f32 %v8934, %v8993
    %v9004 = vsub.f32 %v8937, %v8996
    %v9005 = vsub.f32 %v8985, %v8999
    %v9006 = vsub.f32 %v8988, %v9002
    %v9007 = vmul.f32 %v9003, 1.442695
    %v9008 = vpow.pop %v9007
    %v9009 = vmul.f32 %v9004, 1.442695
    %v9010 = vpow.pop %v9009
    %v9011 = vmul.f32 %v9005, 1.442695
    %v9012 = vpow.pop %v9011
    %v9013 = vmul.f32 %v9006, 1.442695
    %v9014 = vpow.pop %v9013
    %v9015 = vsel %vm660, %v9008, 0.0
    %9016 = vadd.xlane.f32.xlu0 %v9015
    %v9017 = vpop.xlane.xlu0 %9016
    %v9018 = vsel %vm660, %v9010, 0.0
    %9019 = vadd.xlane.f32.xlu0 %v9018
    %v9020 = vpop.xlane.xlu0 %9019
    %v9021 = vsel %vm660, %v9012, 0.0
    %9022 = vadd.xlane.f32.xlu0 %v9021
    %v9023 = vpop.xlane.xlu0 %9022
    %v9024 = vsel %vm660, %v9014, 0.0
    %9025 = vadd.xlane.f32.xlu0 %v9024
    %v9026 = vpop.xlane.xlu0 %9025
    %v9027 = vrcp.pop %v9017
    %v9028 = vrcp.pop %v9020
    %v9029 = vrcp.pop %v9023
    %v9030 = vrcp.pop %v9026
    %v9031 = vmul.f32 %v9008, %v9027
    %v9032 = vmul.f32 %v9010, %v9028
    %v9033 = vmul.f32 %v9012, %v9029
    %v9034 = vmul.f32 %v9014, %v9030
    %v9035 = vpack.c.bf16 %v9032, %v9031
    %v9036 = vpack.c.bf16 %v9034, %v9033
    %9037 = vrot.lane.b32.xlu0 %v8527, 64
    %v9038 = vpop.permute.xlu0 %9037
    %v9041 = vsel %vm660, %v9035, 0
    %9043 = vmatprep.subr.bf16.mxu0 0
    %9044 = vmatpush1.bf16.msra.mxu0 %v9038
    %9045 = vmatprep.subr.bf16.mxu0 0
    %9046 = vmatpush1.bf16.msra.mxu0 0
    %9047 = vmatprep.subr.bf16.mxu0 0
    %9048 = vmatpush1.bf16.msra.mxu0 0
    %9049 = vmatprep.subr.bf16.mxu0 0
    %9050 = vmatpush1.bf16.msra.mxu0 0
    %9051 = vmatprep.subr.bf16.mxu0 0
    %9052 = vmatpush1.bf16.msra.mxu0 0
    %9053 = vmatprep.subr.bf16.mxu0 0
    %9054 = vmatpush1.bf16.msra.mxu0 0
    %9055 = vmatprep.subr.bf16.mxu0 0
    %9056 = vmatpush1.bf16.msra.mxu0 0
    %9057 = vmatprep.subr.bf16.mxu0 0
    %9058 = vmatpush1.bf16.msra.mxu0 0
    %9059 = vmatprep.subr.bf16.mxu0 0
    %9060 = vmatpush1.bf16.msra.mxu0 0
    %9061 = vmatprep.subr.bf16.mxu0 0
    %9062 = vmatpush1.bf16.msra.mxu0 0
    %9063 = vmatprep.subr.bf16.mxu0 0
    %9064 = vmatpush1.bf16.msra.mxu0 0
    %9065 = vmatprep.subr.bf16.mxu0 0
    %9066 = vmatpush1.bf16.msra.mxu0 0
    %9067 = vmatprep.subr.bf16.mxu0 0
    %9068 = vmatpush1.bf16.msra.mxu0 0
    %9069 = vmatprep.subr.bf16.mxu0 0
    %9070 = vmatpush1.bf16.msra.mxu0 0
    %9071 = vmatprep.subr.bf16.mxu0 0
    %9072 = vmatpush1.bf16.msra.mxu0 0
    %9073 = vmatprep.subr.bf16.mxu0 0
    %9074 = vmatpush1.bf16.msra.mxu0 0
    %9075 = vmatprep.mubr.bf16.mxu0 0
    %9076 = vmatmul.mubr.bf16.gmra.mrb[0].mxu0 %v9041
    %v9077 = vpop.f32.mrb[0].mxu0
    %v9078 = vadd.f32 0.0, %v9077
    %v9079 = vpop.f32.mrb[0].mxu0
    %v9080 = vpop.f32.mrb[0].mxu0
    %v9081 = vadd.f32 0.0, %v9080
    %v9082 = vpop.f32.mrb[0].mxu0
    %9083 = vdwg.mxu0
    %9084 = vrot.lane.b32.xlu0 %v8528, 64
    %v9085 = vpop.permute.xlu0 %9084
    %v9088 = vsel %vm660, %v9036, 0
    %9090 = vmatprep.subr.bf16.mxu0 0
    %9091 = vmatpush1.bf16.msra.mxu0 %v9085
    %9092 = vmatprep.subr.bf16.mxu0 0
    %9093 = vmatpush1.bf16.msra.mxu0 0
    %9094 = vmatprep.subr.bf16.mxu0 0
    %9095 = vmatpush1.bf16.msra.mxu0 0
    %9096 = vmatprep.subr.bf16.mxu0 0
    %9097 = vmatpush1.bf16.msra.mxu0 0
    %9098 = vmatprep.subr.bf16.mxu0 0
    %9099 = vmatpush1.bf16.msra.mxu0 0
    %9100 = vmatprep.subr.bf16.mxu0 0
    %9101 = vmatpush1.bf16.msra.mxu0 0
    %9102 = vmatprep.subr.bf16.mxu0 0
    %9103 = vmatpush1.bf16.msra.mxu0 0
    %9104 = vmatprep.subr.bf16.mxu0 0
    %9105 = vmatpush1.bf16.msra.mxu0 0
    %9106 = vmatprep.subr.bf16.mxu0 0
    %9107 = vmatpush1.bf16.msra.mxu0 0
    %9108 = vmatprep.subr.bf16.mxu0 0
    %9109 = vmatpush1.bf16.msra.mxu0 0
    %9110 = vmatprep.subr.bf16.mxu0 0
    %9111 = vmatpush1.bf16.msra.mxu0 0
    %9112 = vmatprep.subr.bf16.mxu0 0
    %9113 = vmatpush1.bf16.msra.mxu0 0
    %9114 = vmatprep.subr.bf16.mxu0 0
    %9115 = vmatpush1.bf16.msra.mxu0 0
    %9116 = vmatprep.subr.bf16.mxu0 0
    %9117 = vmatpush1.bf16.msra.mxu0 0
    %9118 = vmatprep.subr.bf16.mxu0 0
    %9119 = vmatpush1.bf16.msra.mxu0 0
    %9120 = vmatprep.subr.bf16.mxu0 0
    %9121 = vmatpush1.bf16.msra.mxu0 0
    %9122 = vmatprep.mubr.bf16.mxu0 0
    %9123 = vmatmul.mubr.bf16.gmra.mrb[0].mxu0 %v9088
    %v9124 = vpop.f32.mrb[0].mxu0
    %v9125 = vadd.f32 0.0, %v9124
    %v9126 = vpop.f32.mrb[0].mxu0
    %v9127 = vpop.f32.mrb[0].mxu0
    %v9128 = vadd.f32 0.0, %v9127
    %v9129 = vpop.f32.mrb[0].mxu0
    %9130 = vdwg.mxu0
    %9135 = vrot.lane.b32.xlu0 %v9078, 64
    %v9136 = vpop.permute.xlu0 %9135
    %9137 = vrot.lane.b32.xlu0 %v9081, 64
    %v9138 = vpop.permute.xlu0 %9137
    %9139 = vrot.lane.b32.xlu0 %v9125, 64
    %v9140 = vpop.permute.xlu0 %9139
    %9141 = vrot.lane.b32.xlu0 %v9128, 64
    %v9142 = vpop.permute.xlu0 %9141
    %9147 = vst.msk [vmem:[#allocation3 + $0x8] sm:$0xff] %vm4999, %v9136
    %9148 = vst.msk [vmem:[#allocation3 + $0x18] sm:$0xff] %vm4999, %v9138
    %9149 = vst.msk [vmem:[#allocation3 + $0x28] sm:$0xff] %vm4999, %v9140
    %9150 = vst.msk [vmem:[#allocation3 + $0x38] sm:$0xff] %vm4999, %v9142
    %9151 = vrot.lane.b32.xlu0 %v8383, 32
    %v9152 = vpop.permute.xlu0 %9151
    %9153 = vrot.lane.b32.xlu0 %v8385, 32
    %v9154 = vpop.permute.xlu0 %9153
    %v9156 = vsel %vm4237, %v9152, 0
    %v9159 = vsel %vm4237, %v9154, 0
    %9161 = vmatprep.subr.bf16.mxu0 0
    %9162 = vmatpush1.bf16.xpose.msra.mxu0 %v9159
    %9163 = vmatprep.subr.bf16.mxu0 0
    %9164 = vmatpush1.bf16.xpose.msra.mxu0 0
    %9165 = vmatprep.subr.bf16.mxu0 0
    %9166 = vmatpush1.bf16.xpose.msra.mxu0 0
    %9167 = vmatprep.subr.bf16.mxu0 0
    %9168 = vmatpush1.bf16.xpose.msra.mxu0 0
    %9169 = vmatprep.subr.bf16.mxu0 0
    %9170 = vmatpush1.bf16.xpose.msra.mxu0 0
    %9171 = vmatprep.subr.bf16.mxu0 0
    %9172 = vmatpush1.bf16.xpose.msra.mxu0 0
    %9173 = vmatprep.subr.bf16.mxu0 0
    %9174 = vmatpush1.bf16.xpose.msra.mxu0 0
    %9175 = vmatprep.subr.bf16.mxu0 0
    %9176 = vmatpush1.bf16.xpose.msra.mxu0 0
    %9177 = vmatprep.subr.bf16.mxu0 0
    %9178 = vmatpush1.bf16.xpose.msra.mxu0 0
    %9179 = vmatprep.subr.bf16.mxu0 0
    %9180 = vmatpush1.bf16.xpose.msra.mxu0 0
    %9181 = vmatprep.subr.bf16.mxu0 0
    %9182 = vmatpush1.bf16.xpose.msra.mxu0 0
    %9183 = vmatprep.subr.bf16.mxu0 0
    %9184 = vmatpush1.bf16.xpose.msra.mxu0 0
    %9185 = vmatprep.subr.bf16.mxu0 0
    %9186 = vmatpush1.bf16.xpose.msra.mxu0 0
    %9187 = vmatprep.subr.bf16.mxu0 0
    %9188 = vmatpush1.bf16.xpose.msra.mxu0 0
    %9189 = vmatprep.subr.bf16.mxu0 0
    %9190 = vmatpush1.bf16.xpose.msra.mxu0 0
    %9191 = vmatprep.subr.bf16.mxu0 0
    %9192 = vmatpush1.bf16.xpose.msra.mxu0 0
    %9193 = vmatprep.mubr.bf16.mxu0 0
    %9194 = vmatmul.mubr.bf16.gmra.mrb[0].mxu0 %v9156
    %v9195 = vpop.f32.mrb[0].mxu0
    %v9196 = vadd.f32 0.0, %v9195
    %v9197 = vpop.f32.mrb[0].mxu0
    %v9198 = vpop.f32.mrb[0].mxu0
    %v9199 = vadd.f32 0.0, %v9198
    %v9200 = vpop.f32.mrb[0].mxu0
    %9201 = vdwg.mxu0
    %9202 = vrot.lane.b32.xlu0 %v8384, 32
    %v9203 = vpop.permute.xlu0 %9202
    %9204 = vrot.lane.b32.xlu0 %v8386, 32
    %v9205 = vpop.permute.xlu0 %9204
    %v9207 = vsel %vm4237, %v9203, 0
    %v9210 = vsel %vm4237, %v9205, 0
    %9212 = vmatprep.subr.bf16.mxu0 0
    %9213 = vmatpush1.bf16.xpose.msra.mxu0 %v9210
    %9214 = vmatprep.subr.bf16.mxu0 0
    %9215 = vmatpush1.bf16.xpose.msra.mxu0 0
    %9216 = vmatprep.subr.bf16.mxu0 0
    %9217 = vmatpush1.bf16.xpose.msra.mxu0 0
    %9218 = vmatprep.subr.bf16.mxu0 0
    %9219 = vmatpush1.bf16.xpose.msra.mxu0 0
    %9220 = vmatprep.subr.bf16.mxu0 0
    %9221 = vmatpush1.bf16.xpose.msra.mxu0 0
    %9222 = vmatprep.subr.bf16.mxu0 0
    %9223 = vmatpush1.bf16.xpose.msra.mxu0 0
    %9224 = vmatprep.subr.bf16.mxu0 0
    %9225 = vmatpush1.bf16.xpose.msra.mxu0 0
    %9226 = vmatprep.subr.bf16.mxu0 0
    %9227 = vmatpush1.bf16.xpose.msra.mxu0 0
    %9228 = vmatprep.subr.bf16.mxu0 0
    %9229 = vmatpush1.bf16.xpose.msra.mxu0 0
    %9230 = vmatprep.subr.bf16.mxu0 0
    %9231 = vmatpush1.bf16.xpose.msra.mxu0 0
    %9232 = vmatprep.subr.bf16.mxu0 0
    %9233 = vmatpush1.bf16.xpose.msra.mxu0 0
    %9234 = vmatprep.subr.bf16.mxu0 0
    %9235 = vmatpush1.bf16.xpose.msra.mxu0 0
    %9236 = vmatprep.subr.bf16.mxu0 0
    %9237 = vmatpush1.bf16.xpose.msra.mxu0 0
    %9238 = vmatprep.subr.bf16.mxu0 0
    %9239 = vmatpush1.bf16.xpose.msra.mxu0 0
    %9240 = vmatprep.subr.bf16.mxu0 0
    %9241 = vmatpush1.bf16.xpose.msra.mxu0 0
    %9242 = vmatprep.subr.bf16.mxu0 0
    %9243 = vmatpush1.bf16.xpose.msra.mxu0 0
    %9244 = vmatprep.mubr.bf16.mxu0 0
    %9245 = vmatmul.mubr.bf16.gmra.mrb[0].mxu0 %v9207
    %v9246 = vpop.f32.mrb[0].mxu0
    %v9247 = vadd.f32 0.0, %v9246
    %v9248 = vpop.f32.mrb[0].mxu0
    %v9249 = vpop.f32.mrb[0].mxu0
    %v9250 = vadd.f32 0.0, %v9249
    %v9251 = vpop.f32.mrb[0].mxu0
    %9252 = vdwg.mxu0
    %v9253 = vsel %vm660, %v9196, -inf
    %9254 = vmax.xlane.f32.xlu0 %v9253
    %v9255 = vpop.xlane.xlu0 %9254
    %v9256 = vsel %vm660, %v9199, -inf
    %9257 = vmax.xlane.f32.xlu0 %v9256
    %v9258 = vpop.xlane.xlu0 %9257
    %v9259 = vsel %vm660, %v9247, -inf
    %9260 = vmax.xlane.f32.xlu0 %v9259
    %v9261 = vpop.xlane.xlu0 %9260
    %v9262 = vsel %vm660, %v9250, -inf
    %9263 = vmax.xlane.f32.xlu0 %v9262
    %v9264 = vpop.xlane.xlu0 %9263
    %v9265 = vsub.f32 %v9196, %v9255
    %v9266 = vsub.f32 %v9199, %v9258
    %v9267 = vsub.f32 %v9247, %v9261
    %v9268 = vsub.f32 %v9250, %v9264
    %v9269 = vmul.f32 %v9265, 1.442695
    %v9270 = vpow.pop %v9269
    %v9271 = vmul.f32 %v9266, 1.442695
    %v9272 = vpow.pop %v9271
    %v9273 = vmul.f32 %v9267, 1.442695
    %v9274 = vpow.pop %v9273
    %v9275 = vmul.f32 %v9268, 1.442695
    %v9276 = vpow.pop %v9275
    %v9277 = vsel %vm660, %v9270, 0.0
    %9278 = vadd.xlane.f32.xlu0 %v9277
    %v9279 = vpop.xlane.xlu0 %9278
    %v9280 = vsel %vm660, %v9272, 0.0
    %9281 = vadd.xlane.f32.xlu0 %v9280
    %v9282 = vpop.xlane.xlu0 %9281
    %v9283 = vsel %vm660, %v9274, 0.0
    %9284 = vadd.xlane.f32.xlu0 %v9283
    %v9285 = vpop.xlane.xlu0 %9284
    %v9286 = vsel %vm660, %v9276, 0.0
    %9287 = vadd.xlane.f32.xlu0 %v9286
    %v9288 = vpop.xlane.xlu0 %9287
    %v9289 = vrcp.pop %v9279
    %v9290 = vrcp.pop %v9282
    %v9291 = vrcp.pop %v9285
    %v9292 = vrcp.pop %v9288
    %v9293 = vmul.f32 %v9270, %v9289
    %v9294 = vmul.f32 %v9272, %v9290
    %v9295 = vmul.f32 %v9274, %v9291
    %v9296 = vmul.f32 %v9276, %v9292
    %v9297 = vpack.c.bf16 %v9294, %v9293
    %v9298 = vpack.c.bf16 %v9296, %v9295
    %9299 = vrot.lane.b32.xlu0 %v8527, 32
    %v9300 = vpop.permute.xlu0 %9299
    %v9303 = vsel %vm660, %v9297, 0
    %9305 = vmatprep.subr.bf16.mxu0 0
    %9306 = vmatpush1.bf16.msra.mxu0 %v9300
    %9307 = vmatprep.subr.bf16.mxu0 0
    %9308 = vmatpush1.bf16.msra.mxu0 0
    %9309 = vmatprep.subr.bf16.mxu0 0
    %9310 = vmatpush1.bf16.msra.mxu0 0
    %9311 = vmatprep.subr.bf16.mxu0 0
    %9312 = vmatpush1.bf16.msra.mxu0 0
    %9313 = vmatprep.subr.bf16.mxu0 0
    %9314 = vmatpush1.bf16.msra.mxu0 0
    %9315 = vmatprep.subr.bf16.mxu0 0
    %9316 = vmatpush1.bf16.msra.mxu0 0
    %9317 = vmatprep.subr.bf16.mxu0 0
    %9318 = vmatpush1.bf16.msra.mxu0 0
    %9319 = vmatprep.subr.bf16.mxu0 0
    %9320 = vmatpush1.bf16.msra.mxu0 0
    %9321 = vmatprep.subr.bf16.mxu0 0
    %9322 = vmatpush1.bf16.msra.mxu0 0
    %9323 = vmatprep.subr.bf16.mxu0 0
    %9324 = vmatpush1.bf16.msra.mxu0 0
    %9325 = vmatprep.subr.bf16.mxu0 0
    %9326 = vmatpush1.bf16.msra.mxu0 0
    %9327 = vmatprep.subr.bf16.mxu0 0
    %9328 = vmatpush1.bf16.msra.mxu0 0
    %9329 = vmatprep.subr.bf16.mxu0 0
    %9330 = vmatpush1.bf16.msra.mxu0 0
    %9331 = vmatprep.subr.bf16.mxu0 0
    %9332 = vmatpush1.bf16.msra.mxu0 0
    %9333 = vmatprep.subr.bf16.mxu0 0
    %9334 = vmatpush1.bf16.msra.mxu0 0
    %9335 = vmatprep.subr.bf16.mxu0 0
    %9336 = vmatpush1.bf16.msra.mxu0 0
    %9337 = vmatprep.mubr.bf16.mxu0 0
    %9338 = vmatmul.mubr.bf16.gmra.mrb[0].mxu0 %v9303
    %v9339 = vpop.f32.mrb[0].mxu0
    %v9340 = vadd.f32 0.0, %v9339
    %v9341 = vpop.f32.mrb[0].mxu0
    %v9342 = vpop.f32.mrb[0].mxu0
    %v9343 = vadd.f32 0.0, %v9342
    %v9344 = vpop.f32.mrb[0].mxu0
    %9345 = vdwg.mxu0
    %9346 = vrot.lane.b32.xlu0 %v8528, 32
    %v9347 = vpop.permute.xlu0 %9346
    %v9350 = vsel %vm660, %v9298, 0
    %9352 = vmatprep.subr.bf16.mxu0 0
    %9353 = vmatpush1.bf16.msra.mxu0 %v9347
    %9354 = vmatprep.subr.bf16.mxu0 0
    %9355 = vmatpush1.bf16.msra.mxu0 0
    %9356 = vmatprep.subr.bf16.mxu0 0
    %9357 = vmatpush1.bf16.msra.mxu0 0
    %9358 = vmatprep.subr.bf16.mxu0 0
    %9359 = vmatpush1.bf16.msra.mxu0 0
    %9360 = vmatprep.subr.bf16.mxu0 0
    %9361 = vmatpush1.bf16.msra.mxu0 0
    %9362 = vmatprep.subr.bf16.mxu0 0
    %9363 = vmatpush1.bf16.msra.mxu0 0
    %9364 = vmatprep.subr.bf16.mxu0 0
    %9365 = vmatpush1.bf16.msra.mxu0 0
    %9366 = vmatprep.subr.bf16.mxu0 0
    %9367 = vmatpush1.bf16.msra.mxu0 0
    %9368 = vmatprep.subr.bf16.mxu0 0
    %9369 = vmatpush1.bf16.msra.mxu0 0
    %9370 = vmatprep.subr.bf16.mxu0 0
    %9371 = vmatpush1.bf16.msra.mxu0 0
    %9372 = vmatprep.subr.bf16.mxu0 0
    %9373 = vmatpush1.bf16.msra.mxu0 0
    %9374 = vmatprep.subr.bf16.mxu0 0
    %9375 = vmatpush1.bf16.msra.mxu0 0
    %9376 = vmatprep.subr.bf16.mxu0 0
    %9377 = vmatpush1.bf16.msra.mxu0 0
    %9378 = vmatprep.subr.bf16.mxu0 0
    %9379 = vmatpush1.bf16.msra.mxu0 0
    %9380 = vmatprep.subr.bf16.mxu0 0
    %9381 = vmatpush1.bf16.msra.mxu0 0
    %9382 = vmatprep.subr.bf16.mxu0 0
    %9383 = vmatpush1.bf16.msra.mxu0 0
    %9384 = vmatprep.mubr.bf16.mxu0 0
    %9385 = vmatmul.mubr.bf16.gmra.mrb[0].mxu0 %v9350
    %v9386 = vpop.f32.mrb[0].mxu0
    %v9387 = vadd.f32 0.0, %v9386
    %v9388 = vpop.f32.mrb[0].mxu0
    %v9389 = vpop.f32.mrb[0].mxu0
    %v9390 = vadd.f32 0.0, %v9389
    %v9391 = vpop.f32.mrb[0].mxu0
    %9392 = vdwg.mxu0
    %9397 = vrot.lane.b32.xlu0 %v9340, 96
    %v9398 = vpop.permute.xlu0 %9397
    %9399 = vrot.lane.b32.xlu0 %v9343, 96
    %v9400 = vpop.permute.xlu0 %9399
    %9401 = vrot.lane.b32.xlu0 %v9387, 96
    %v9402 = vpop.permute.xlu0 %9401
    %9403 = vrot.lane.b32.xlu0 %v9390, 96
    %v9404 = vpop.permute.xlu0 %9403
    %9409 = vst.msk [vmem:[#allocation3 + $0x8] sm:$0xff] %vm5262, %v9398
    %9410 = vst.msk [vmem:[#allocation3 + $0x18] sm:$0xff] %vm5262, %v9400
    %9411 = vst.msk [vmem:[#allocation3 + $0x28] sm:$0xff] %vm5262, %v9402
    %9412 = vst.msk [vmem:[#allocation3 + $0x38] sm:$0xff] %vm5262, %v9404
    %v9413 = vld [vmem:[#allocation3] sm:$0xff]
    %v9414 = vld [vmem:[#allocation3 + $0x8] sm:$0xff]
    %v9415 = vld [vmem:[#allocation3 + $0x10] sm:$0xff]
    %v9416 = vld [vmem:[#allocation3 + $0x18] sm:$0xff]
    %v9417 = vld [vmem:[#allocation3 + $0x20] sm:$0xff]
    %v9418 = vld [vmem:[#allocation3 + $0x28] sm:$0xff]
    %v9419 = vld [vmem:[#allocation3 + $0x30] sm:$0xff]
    %v9420 = vld [vmem:[#allocation3 + $0x38] sm:$0xff]
    %v9421 = vpack.c.bf16 %v9415, %v9413
    %v9422 = vpack.c.bf16 %v9416, %v9414
    %v9423 = vpack.c.bf16 %v9419, %v9417
    %v9424 = vpack.c.bf16 %v9420, %v9418
    %v9425 = vld [vmem:[#allocation45] sm:$0xff]
    %v9426 = vld [vmem:[#allocation45 + $0x8] sm:$0xff]
    %v9427 = vld [vmem:[#allocation45 + $0x10] sm:$0xff]
    %v9428 = vld [vmem:[#allocation45 + $0x18] sm:$0xff]
    %v9429 = vld [vmem:[#allocation45 + $0x20] sm:$0xff]
    %v9430 = vld [vmem:[#allocation45 + $0x28] sm:$0xff]
    %v9431 = vld [vmem:[#allocation45 + $0x30] sm:$0xff]
    %v9432 = vld [vmem:[#allocation45 + $0x38] sm:$0xff]
    %v9433 = vld [vmem:[#allocation45 + $0x40] sm:$0xff]
    %v9434 = vld [vmem:[#allocation45 + $0x48] sm:$0xff]
    %v9435 = vld [vmem:[#allocation45 + $0x50] sm:$0xff]
    %v9436 = vld [vmem:[#allocation45 + $0x58] sm:$0xff]
    %v9437 = vld [vmem:[#allocation45 + $0x60] sm:$0xff]
    %v9438 = vld [vmem:[#allocation45 + $0x68] sm:$0xff]
    %v9439 = vld [vmem:[#allocation45 + $0x70] sm:$0xff]
    %v9440 = vld [vmem:[#allocation45 + $0x78] sm:$0xff]
    %v9441 = vld [vmem:[#allocation45 + $0x80] sm:$0xff]
    %v9442 = vld [vmem:[#allocation45 + $0x88] sm:$0xff]
    %v9443 = vld [vmem:[#allocation45 + $0x90] sm:$0xff]
    %v9444 = vld [vmem:[#allocation45 + $0x98] sm:$0xff]
    %v9445 = vld [vmem:[#allocation45 + $0xa0] sm:$0xff]
    %v9446 = vld [vmem:[#allocation45 + $0xa8] sm:$0xff]
    %v9447 = vld [vmem:[#allocation45 + $0xb0] sm:$0xff]
    %v9448 = vld [vmem:[#allocation45 + $0xb8] sm:$0xff]
    %v9449 = vld [vmem:[#allocation45 + $0xc0] sm:$0xff]
    %v9450 = vld [vmem:[#allocation45 + $0xc8] sm:$0xff]
    %v9451 = vld [vmem:[#allocation45 + $0xd0] sm:$0xff]
    %v9452 = vld [vmem:[#allocation45 + $0xd8] sm:$0xff]
    %v9453 = vld [vmem:[#allocation45 + $0xe0] sm:$0xff]
    %v9454 = vld [vmem:[#allocation45 + $0xe8] sm:$0xff]
    %v9455 = vld [vmem:[#allocation45 + $0xf0] sm:$0xff]
    %v9456 = vld [vmem:[#allocation45 + $0xf8] sm:$0xff]
    %v9457 = vld [vmem:[#allocation46] sm:$0x3]
    %v9459 = vlaneseq
    %v9460 = vshrl.u32 %v9459, 7
    %v9461 = vsub.s32 0, %v9460
    %v9462 = vrot.slane %v9457, %v9461
    %v9463 = vlaneseq
    %v9464 = vshrl.u32 %v9463, 7
    %v9465 = vsub.s32 1, %v9464
    %v9466 = vrot.slane %v9457, %v9465
    %v9501 = vunpack.c.l.b16 %v9425
    %v9502 = vunpack.c.h.b16 %v9425
    %v9503 = vunpack.c.l.b16 %v9426
    %v9504 = vunpack.c.h.b16 %v9426
    %v9505 = vunpack.c.l.b16 %v9427
    %v9506 = vunpack.c.h.b16 %v9427
    %v9507 = vunpack.c.l.b16 %v9428
    %v9508 = vunpack.c.h.b16 %v9428
    %v9509 = vunpack.c.l.b16 %v9429
    %v9510 = vunpack.c.h.b16 %v9429
    %v9511 = vunpack.c.l.b16 %v9430
    %v9512 = vunpack.c.h.b16 %v9430
    %v9513 = vunpack.c.l.b16 %v9431
    %v9514 = vunpack.c.h.b16 %v9431
    %v9515 = vunpack.c.l.b16 %v9432
    %v9516 = vunpack.c.h.b16 %v9432
    %v9517 = vunpack.c.l.b16 %v9433
    %v9518 = vunpack.c.h.b16 %v9433
    %v9519 = vunpack.c.l.b16 %v9434
    %v9520 = vunpack.c.h.b16 %v9434
    %v9521 = vunpack.c.l.b16 %v9435
    %v9522 = vunpack.c.h.b16 %v9435
    %v9523 = vunpack.c.l.b16 %v9436
    %v9524 = vunpack.c.h.b16 %v9436
    %v9525 = vunpack.c.l.b16 %v9437
    %v9526 = vunpack.c.h.b16 %v9437
    %v9527 = vunpack.c.l.b16 %v9438
    %v9528 = vunpack.c.h.b16 %v9438
    %v9529 = vunpack.c.l.b16 %v9439
    %v9530 = vunpack.c.h.b16 %v9439
    %v9531 = vunpack.c.l.b16 %v9440
    %v9532 = vunpack.c.h.b16 %v9440
    %v9533 = vunpack.c.l.b16 %v9441
    %v9534 = vunpack.c.h.b16 %v9441
    %v9535 = vunpack.c.l.b16 %v9442
    %v9536 = vunpack.c.h.b16 %v9442
    %v9537 = vunpack.c.l.b16 %v9443
    %v9538 = vunpack.c.h.b16 %v9443
    %v9539 = vunpack.c.l.b16 %v9444
    %v9540 = vunpack.c.h.b16 %v9444
    %v9541 = vunpack.c.l.b16 %v9445
    %v9542 = vunpack.c.h.b16 %v9445
    %v9543 = vunpack.c.l.b16 %v9446
    %v9544 = vunpack.c.h.b16 %v9446
    %v9545 = vunpack.c.l.b16 %v9447
    %v9546 = vunpack.c.h.b16 %v9447
    %v9547 = vunpack.c.l.b16 %v9448
    %v9548 = vunpack.c.h.b16 %v9448
    %v9549 = vunpack.c.l.b16 %v9449
    %v9550 = vunpack.c.h.b16 %v9449
    %v9551 = vunpack.c.l.b16 %v9450
    %v9552 = vunpack.c.h.b16 %v9450
    %v9553 = vunpack.c.l.b16 %v9451
    %v9554 = vunpack.c.h.b16 %v9451
    %v9555 = vunpack.c.l.b16 %v9452
    %v9556 = vunpack.c.h.b16 %v9452
    %v9557 = vunpack.c.l.b16 %v9453
    %v9558 = vunpack.c.h.b16 %v9453
    %v9559 = vunpack.c.l.b16 %v9454
    %v9560 = vunpack.c.h.b16 %v9454
    %v9561 = vunpack.c.l.b16 %v9455
    %v9562 = vunpack.c.h.b16 %v9455
    %v9563 = vunpack.c.l.b16 %v9456
    %v9564 = vunpack.c.h.b16 %v9456
    %v9565 = vpack.c.b16 %v9503, %v9501
    %v9566 = vpack.c.b16 %v9504, %v9502
    %v9567 = vpack.c.b16 %v9507, %v9505
    %v9568 = vpack.c.b16 %v9508, %v9506
    %v9569 = vpack.c.b16 %v9511, %v9509
    %v9570 = vpack.c.b16 %v9512, %v9510
    %v9571 = vpack.c.b16 %v9515, %v9513
    %v9572 = vpack.c.b16 %v9516, %v9514
    %v9573 = vpack.c.b16 %v9519, %v9517
    %v9574 = vpack.c.b16 %v9520, %v9518
    %v9575 = vpack.c.b16 %v9523, %v9521
    %v9576 = vpack.c.b16 %v9524, %v9522
    %v9577 = vpack.c.b16 %v9527, %v9525
    %v9578 = vpack.c.b16 %v9528, %v9526
    %v9579 = vpack.c.b16 %v9531, %v9529
    %v9580 = vpack.c.b16 %v9532, %v9530
    %v9581 = vpack.c.b16 %v9535, %v9533
    %v9582 = vpack.c.b16 %v9536, %v9534
    %v9583 = vpack.c.b16 %v9539, %v9537
    %v9584 = vpack.c.b16 %v9540, %v9538
    %v9585 = vpack.c.b16 %v9543, %v9541
    %v9586 = vpack.c.b16 %v9544, %v9542
    %v9587 = vpack.c.b16 %v9547, %v9545
    %v9588 = vpack.c.b16 %v9548, %v9546
    %v9589 = vpack.c.b16 %v9551, %v9549
    %v9590 = vpack.c.b16 %v9552, %v9550
    %v9591 = vpack.c.b16 %v9555, %v9553
    %v9592 = vpack.c.b16 %v9556, %v9554
    %v9593 = vpack.c.b16 %v9559, %v9557
    %v9594 = vpack.c.b16 %v9560, %v9558
    %v9595 = vpack.c.b16 %v9563, %v9561
    %v9596 = vpack.c.b16 %v9564, %v9562
    %9629 = vmatprep.subr.bf16.mxu0 %v9566
    %9630 = vmatpush1.bf16.msra.mxu0 %v9565
    %9631 = vmatprep.subr.bf16.mxu0 %v9568
    %9632 = vmatpush1.bf16.msra.mxu0 %v9567
    %9633 = vmatprep.subr.bf16.mxu0 %v9570
    %9634 = vmatpush1.bf16.msra.mxu0 %v9569
    %9635 = vmatprep.subr.bf16.mxu0 %v9572
    %9636 = vmatpush1.bf16.msra.mxu0 %v9571
    %9637 = vmatprep.subr.bf16.mxu0 %v9574
    %9638 = vmatpush1.bf16.msra.mxu0 %v9573
    %9639 = vmatprep.subr.bf16.mxu0 %v9576
    %9640 = vmatpush1.bf16.msra.mxu0 %v9575
    %9641 = vmatprep.subr.bf16.mxu0 %v9578
    %9642 = vmatpush1.bf16.msra.mxu0 %v9577
    %9643 = vmatprep.subr.bf16.mxu0 %v9580
    %9644 = vmatpush1.bf16.msra.mxu0 %v9579
    %9645 = vmatprep.subr.bf16.mxu0 %v9582
    %9646 = vmatpush1.bf16.msra.mxu0 %v9581
    %9647 = vmatprep.subr.bf16.mxu0 %v9584
    %9648 = vmatpush1.bf16.msra.mxu0 %v9583
    %9649 = vmatprep.subr.bf16.mxu0 %v9586
    %9650 = vmatpush1.bf16.msra.mxu0 %v9585
    %9651 = vmatprep.subr.bf16.mxu0 %v9588
    %9652 = vmatpush1.bf16.msra.mxu0 %v9587
    %9653 = vmatprep.subr.bf16.mxu0 %v9590
    %9654 = vmatpush1.bf16.msra.mxu0 %v9589
    %9655 = vmatprep.subr.bf16.mxu0 %v9592
    %9656 = vmatpush1.bf16.msra.mxu0 %v9591
    %9657 = vmatprep.subr.bf16.mxu0 %v9594
    %9658 = vmatpush1.bf16.msra.mxu0 %v9593
    %9659 = vmatprep.subr.bf16.mxu0 %v9596
    %9660 = vmatpush1.bf16.msra.mxu0 %v9595
    %9661 = vmatprep.mubr.bf16.mxu0 %v9422
    %9662 = vmatmul.mubr.bf16.gmra.mrb[0].mxu0 %v9421
    %v9663 = vpop.f32.mrb[0].mxu0
    %v9664 = vadd.f32 %v9462, %v9663
    %v9665 = vpop.f32.mrb[0].mxu0
    %v9666 = vadd.f32 %v9466, %v9665
    %v9667 = vpop.f32.mrb[0].mxu0
    %v9668 = vadd.f32 %v9462, %v9667
    %v9669 = vpop.f32.mrb[0].mxu0
    %v9670 = vadd.f32 %v9466, %v9669
    %9671 = vmatprep.mubr.bf16.mxu0 %v9424
    %9672 = vmatmul.mubr.bf16.gmra.mrb[0].mxu0 %v9423
    %v9673 = vpop.f32.mrb[0].mxu0
    %v9674 = vadd.f32 %v9462, %v9673
    %v9675 = vpop.f32.mrb[0].mxu0
    %v9676 = vadd.f32 %v9466, %v9675
    %v9677 = vpop.f32.mrb[0].mxu0
    %v9678 = vadd.f32 %v9462, %v9677
    %v9679 = vpop.f32.mrb[0].mxu0
    %v9680 = vadd.f32 %v9466, %v9679
    %9681 = vdwg.mxu0
    %v9682 = vadd.f32 %v9664, %v6574
    %v9683 = vadd.f32 %v9666, %v6575
    %v9684 = vadd.f32 %v9668, %v6576
    %v9685 = vadd.f32 %v9670, %v6577
    %v9686 = vadd.f32 %v9674, %v6578
    %v9687 = vadd.f32 %v9676, %v6579
    %v9688 = vadd.f32 %v9678, %v6580
    %v9689 = vadd.f32 %v9680, %v6581
    %v9690 = vmax.f32 %v9682, 0.0
    %v9691 = vmax.f32 %v9683, 0.0
    %v9692 = vmax.f32 %v9684, 0.0
    %v9693 = vmax.f32 %v9685, 0.0
    %v9694 = vmax.f32 %v9686, 0.0
    %v9695 = vmax.f32 %v9687, 0.0
    %v9696 = vmax.f32 %v9688, 0.0
    %v9697 = vmax.f32 %v9689, 0.0
    %v9698 = vadd.f32 %v9690, %v9692
    %v9699 = vrot.slane %v9698, 4
    %v9700 = vadd.f32 %v9698, %v9699
    %v9701 = vrot.slane %v9700, 2
    %v9702 = vadd.f32 %v9700, %v9701
    %v9703 = vrot.slane %v9702, 1
    %v9704 = vadd.f32 %v9702, %v9703
    %v9705 = vadd.f32 %v9691, %v9693
    %v9706 = vrot.slane %v9705, 4
    %v9707 = vadd.f32 %v9705, %v9706
    %v9708 = vrot.slane %v9707, 2
    %v9709 = vadd.f32 %v9707, %v9708
    %v9710 = vrot.slane %v9709, 1
    %v9711 = vadd.f32 %v9709, %v9710
    %v9712 = vadd.f32 %v9694, %v9696
    %v9713 = vrot.slane %v9712, 4
    %v9714 = vadd.f32 %v9712, %v9713
    %v9715 = vrot.slane %v9714, 2
    %v9716 = vadd.f32 %v9714, %v9715
    %v9717 = vrot.slane %v9716, 1
    %v9718 = vadd.f32 %v9716, %v9717
    %v9719 = vadd.f32 %v9695, %v9697
    %v9720 = vrot.slane %v9719, 4
    %v9721 = vadd.f32 %v9719, %v9720
    %v9722 = vrot.slane %v9721, 2
    %v9723 = vadd.f32 %v9721, %v9722
    %v9724 = vrot.slane %v9723, 1
    %v9725 = vadd.f32 %v9723, %v9724
    %v9726 = vrcp.pop 16.0
    %v9727 = vmul.f32 %v9704, %v9726
    %v9728 = vmul.f32 %v9711, %v9726
    %v9729 = vmul.f32 %v9718, %v9726
    %v9730 = vmul.f32 %v9725, %v9726
    %v9731 = vpack.c.bf16 %v9727, %v9727
    %v9732 = vpack.c.bf16 %v9728, %v9728
    %v9733 = vpack.c.bf16 %v9729, %v9729
    %v9734 = vpack.c.bf16 %v9730, %v9730
    %v9735 = vld [vmem:[#allocation48] sm:$0xf]
    %v9736 = vld [vmem:[#allocation48 + $0x4] sm:$0xf]
    %v9737 = vld [vmem:[#allocation48 + $0x8] sm:$0xf]
    %v9738 = vld [vmem:[#allocation48 + $0xc] sm:$0xf]
    %v9739 = vld [vmem:[#allocation48 + $0x10] sm:$0xf]
    %v9740 = vld [vmem:[#allocation48 + $0x14] sm:$0xf]
    %v9741 = vld [vmem:[#allocation48 + $0x18] sm:$0xf]
    %v9742 = vld [vmem:[#allocation48 + $0x1c] sm:$0xf]
    %v9743 = vld [vmem:[#allocation48 + $0x20] sm:$0xf]
    %v9744 = vld [vmem:[#allocation48 + $0x24] sm:$0xf]
    %v9745 = vld [vmem:[#allocation48 + $0x28] sm:$0xf]
    %v9746 = vld [vmem:[#allocation48 + $0x2c] sm:$0xf]
    %v9747 = vld [vmem:[#allocation48 + $0x30] sm:$0xf]
    %v9748 = vld [vmem:[#allocation48 + $0x34] sm:$0xf]
    %v9749 = vld [vmem:[#allocation48 + $0x38] sm:$0xf]
    %v9750 = vld [vmem:[#allocation48 + $0x3c] sm:$0xf]
    %v9751 = vld [vmem:[#allocation48 + $0x40] sm:$0xf]
    %v9752 = vld [vmem:[#allocation48 + $0x44] sm:$0xf]
    %v9753 = vld [vmem:[#allocation48 + $0x48] sm:$0xf]
    %v9754 = vld [vmem:[#allocation48 + $0x4c] sm:$0xf]
    %v9755 = vld [vmem:[#allocation48 + $0x50] sm:$0xf]
    %v9756 = vld [vmem:[#allocation48 + $0x54] sm:$0xf]
    %v9757 = vld [vmem:[#allocation48 + $0x58] sm:$0xf]
    %v9758 = vld [vmem:[#allocation48 + $0x5c] sm:$0xf]
    %v9759 = vld [vmem:[#allocation48 + $0x60] sm:$0xf]
    %v9760 = vld [vmem:[#allocation48 + $0x64] sm:$0xf]
    %v9761 = vld [vmem:[#allocation48 + $0x68] sm:$0xf]
    %v9762 = vld [vmem:[#allocation48 + $0x6c] sm:$0xf]
    %v9763 = vld [vmem:[#allocation48 + $0x70] sm:$0xf]
    %v9764 = vld [vmem:[#allocation48 + $0x74] sm:$0xf]
    %v9765 = vld [vmem:[#allocation48 + $0x78] sm:$0xf]
    %v9766 = vld [vmem:[#allocation48 + $0x7c] sm:$0xf]
    %v9767 = vld [vmem:[%s69] sm:$0x1]
    %v9769 = vlaneseq
    %v9770 = vshrl.u32 %v9769, 7
    %v9771 = vsub.s32 0, %v9770
    %v9772 = vrot.slane %v9767, %v9771
    %v9778 = vunpack.c.l.b16 %v9731
    %v9779 = vunpack.c.l.b16 %v9732
    %v9780 = vunpack.c.l.b16 %v9733
    %v9781 = vunpack.c.l.b16 %v9734
    %vm9782 = vcmask 1041409
    %v9783 = vsel %vm9782, %v9780, %v9778
    %v9784 = vsel %vm9782, %v9781, %v9779
    %v9785 = vpack.c.b16 %v9783, %v9783
    %v9786 = vpack.c.b16 %v9784, %v9784
    %v9821 = vunpack.c.l.b16 %v9735
    %v9822 = vunpack.c.l.b16 %v9736
    %v9823 = vunpack.c.l.b16 %v9737
    %v9824 = vunpack.c.l.b16 %v9738
    %v9825 = vunpack.c.l.b16 %v9739
    %v9826 = vunpack.c.l.b16 %v9740
    %v9827 = vunpack.c.l.b16 %v9741
    %v9828 = vunpack.c.l.b16 %v9742
    %v9829 = vunpack.c.l.b16 %v9743
    %v9830 = vunpack.c.l.b16 %v9744
    %v9831 = vunpack.c.l.b16 %v9745
    %v9832 = vunpack.c.l.b16 %v9746
    %v9833 = vunpack.c.l.b16 %v9747
    %v9834 = vunpack.c.l.b16 %v9748
    %v9835 = vunpack.c.l.b16 %v9749
    %v9836 = vunpack.c.l.b16 %v9750
    %v9837 = vunpack.c.l.b16 %v9751
    %v9838 = vunpack.c.l.b16 %v9752
    %v9839 = vunpack.c.l.b16 %v9753
    %v9840 = vunpack.c.l.b16 %v9754
    %v9841 = vunpack.c.l.b16 %v9755
    %v9842 = vunpack.c.l.b16 %v9756
    %v9843 = vunpack.c.l.b16 %v9757
    %v9844 = vunpack.c.l.b16 %v9758
    %v9845 = vunpack.c.l.b16 %v9759
    %v9846 = vunpack.c.l.b16 %v9760
    %v9847 = vunpack.c.l.b16 %v9761
    %v9848 = vunpack.c.l.b16 %v9762
    %v9849 = vunpack.c.l.b16 %v9763
    %v9850 = vunpack.c.l.b16 %v9764
    %v9851 = vunpack.c.l.b16 %v9765
    %v9852 = vunpack.c.l.b16 %v9766
    %v9853 = vpack.c.b16 %v9822, %v9821
    %v9854 = vpack.c.b16 %v9824, %v9823
    %v9855 = vpack.c.b16 %v9826, %v9825
    %v9856 = vpack.c.b16 %v9828, %v9827
    %v9857 = vpack.c.b16 %v9830, %v9829
    %v9858 = vpack.c.b16 %v9832, %v9831
    %v9859 = vpack.c.b16 %v9834, %v9833
    %v9860 = vpack.c.b16 %v9836, %v9835
    %v9861 = vpack.c.b16 %v9838, %v9837
    %v9862 = vpack.c.b16 %v9840, %v9839
    %v9863 = vpack.c.b16 %v9842, %v9841
    %v9864 = vpack.c.b16 %v9844, %v9843
    %v9865 = vpack.c.b16 %v9846, %v9845
    %v9866 = vpack.c.b16 %v9848, %v9847
    %v9867 = vpack.c.b16 %v9850, %v9849
    %v9868 = vpack.c.b16 %v9852, %v9851
    %9885 = vmatprep.subr.bf16.mxu0 0
    %9886 = vmatpush1.bf16.msra.mxu0 %v9853
    %9887 = vmatprep.subr.bf16.mxu0 0
    %9888 = vmatpush1.bf16.msra.mxu0 %v9854
    %9889 = vmatprep.subr.bf16.mxu0 0
    %9890 = vmatpush1.bf16.msra.mxu0 %v9855
    %9891 = vmatprep.subr.bf16.mxu0 0
    %9892 = vmatpush1.bf16.msra.mxu0 %v9856
    %9893 = vmatprep.subr.bf16.mxu0 0
    %9894 = vmatpush1.bf16.msra.mxu0 %v9857
    %9895 = vmatprep.subr.bf16.mxu0 0
    %9896 = vmatpush1.bf16.msra.mxu0 %v9858
    %9897 = vmatprep.subr.bf16.mxu0 0
    %9898 = vmatpush1.bf16.msra.mxu0 %v9859
    %9899 = vmatprep.subr.bf16.mxu0 0
    %9900 = vmatpush1.bf16.msra.mxu0 %v9860
    %9901 = vmatprep.subr.bf16.mxu0 0
    %9902 = vmatpush1.bf16.msra.mxu0 %v9861
    %9903 = vmatprep.subr.bf16.mxu0 0
    %9904 = vmatpush1.bf16.msra.mxu0 %v9862
    %9905 = vmatprep.subr.bf16.mxu0 0
    %9906 = vmatpush1.bf16.msra.mxu0 %v9863
    %9907 = vmatprep.subr.bf16.mxu0 0
    %9908 = vmatpush1.bf16.msra.mxu0 %v9864
    %9909 = vmatprep.subr.bf16.mxu0 0
    %9910 = vmatpush1.bf16.msra.mxu0 %v9865
    %9911 = vmatprep.subr.bf16.mxu0 0
    %9912 = vmatpush1.bf16.msra.mxu0 %v9866
    %9913 = vmatprep.subr.bf16.mxu0 0
    %9914 = vmatpush1.bf16.msra.mxu0 %v9867
    %9915 = vmatprep.subr.bf16.mxu0 0
    %9916 = vmatpush1.bf16.msra.mxu0 %v9868
    %9917 = vmatprep.mubr.bf16.mxu0 %v9786
    %9918 = vmatmul.mubr.bf16.gmra.mrb[0].mxu0 %v9785
    %v9919 = vpop.f32.mrb[0].mxu0
    %v9920 = vadd.f32 %v9772, %v9919
    %v9921 = vpop.f32.mrb[0].mxu0
    %v9922 = vpop.f32.mrb[0].mxu0
    %v9923 = vpop.f32.mrb[0].mxu0
    %9924 = vdwg.mxu0
    %v9925 = vpack.c.bf16 %v9920, %v9920
    %v9926 = vld [vmem:[%s71] sm:$0xf]
    %v9927 = vld [vmem:[%s71 + $0x4] sm:$0xf]
    %v9928 = vld [vmem:[%s71 + $0x8] sm:$0xf]
    %v9929 = vld [vmem:[%s71 + $0xc] sm:$0xf]
    %v9930 = vld [vmem:[%s71 + $0x10] sm:$0xf]
    %v9931 = vld [vmem:[%s71 + $0x14] sm:$0xf]
    %v9932 = vld [vmem:[%s71 + $0x18] sm:$0xf]
    %v9933 = vld [vmem:[%s71 + $0x1c] sm:$0xf]
    %v9934 = vld [vmem:[%s71 + $0x20] sm:$0xf]
    %v9935 = vld [vmem:[%s71 + $0x24] sm:$0xf]
    %v9936 = vld [vmem:[%s71 + $0x28] sm:$0xf]
    %v9937 = vld [vmem:[%s71 + $0x2c] sm:$0xf]
    %v9938 = vld [vmem:[%s71 + $0x30] sm:$0xf]
    %v9939 = vld [vmem:[%s71 + $0x34] sm:$0xf]
    %v9940 = vld [vmem:[%s71 + $0x38] sm:$0xf]
    %v9941 = vld [vmem:[%s71 + $0x3c] sm:$0xf]
    %v9942 = vld [vmem:[#allocation49] sm:$0x1]
    %v9944 = vlaneseq
    %v9945 = vshrl.u32 %v9944, 7
    %v9946 = vsub.s32 0, %v9945
    %v9947 = vrot.slane %v9942, %v9946
    %v9965 = vunpack.c.l.b16 %v9926
    %v9966 = vunpack.c.l.b16 %v9927
    %v9967 = vunpack.c.l.b16 %v9928
    %v9968 = vunpack.c.l.b16 %v9929
    %v9969 = vunpack.c.l.b16 %v9930
    %v9970 = vunpack.c.l.b16 %v9931
    %v9971 = vunpack.c.l.b16 %v9932
    %v9972 = vunpack.c.l.b16 %v9933
    %v9973 = vunpack.c.l.b16 %v9934
    %v9974 = vunpack.c.l.b16 %v9935
    %v9975 = vunpack.c.l.b16 %v9936
    %v9976 = vunpack.c.l.b16 %v9937
    %v9977 = vunpack.c.l.b16 %v9938
    %v9978 = vunpack.c.l.b16 %v9939
    %v9979 = vunpack.c.l.b16 %v9940
    %v9980 = vunpack.c.l.b16 %v9941
    %v9981 = vpack.c.b16 %v9966, %v9965
    %v9982 = vpack.c.b16 %v9968, %v9967
    %v9983 = vpack.c.b16 %v9970, %v9969
    %v9984 = vpack.c.b16 %v9972, %v9971
    %v9985 = vpack.c.b16 %v9974, %v9973
    %v9986 = vpack.c.b16 %v9976, %v9975
    %v9987 = vpack.c.b16 %v9978, %v9977
    %v9988 = vpack.c.b16 %v9980, %v9979
    %9997 = vmatprep.subr.bf16.mxu0 0
    %9998 = vmatpush1.bf16.msra.mxu0 %v9981
    %9999 = vmatprep.subr.bf16.mxu0 0
    %10000 = vmatpush1.bf16.msra.mxu0 %v9982
    %10001 = vmatprep.subr.bf16.mxu0 0
    %10002 = vmatpush1.bf16.msra.mxu0 %v9983
    %10003 = vmatprep.subr.bf16.mxu0 0
    %10004 = vmatpush1.bf16.msra.mxu0 %v9984
    %10005 = vmatprep.subr.bf16.mxu0 0
    %10006 = vmatpush1.bf16.msra.mxu0 %v9985
    %10007 = vmatprep.subr.bf16.mxu0 0
    %10008 = vmatpush1.bf16.msra.mxu0 %v9986
    %10009 = vmatprep.subr.bf16.mxu0 0
    %10010 = vmatpush1.bf16.msra.mxu0 %v9987
    %10011 = vmatprep.subr.bf16.mxu0 0
    %10012 = vmatpush1.bf16.msra.mxu0 %v9988
    %10013 = vmatprep.subr.bf16.mxu0 0
    %10014 = vmatpush1.bf16.msra.mxu0 0
    %10015 = vmatprep.subr.bf16.mxu0 0
    %10016 = vmatpush1.bf16.msra.mxu0 0
    %10017 = vmatprep.subr.bf16.mxu0 0
    %10018 = vmatpush1.bf16.msra.mxu0 0
    %10019 = vmatprep.subr.bf16.mxu0 0
    %10020 = vmatpush1.bf16.msra.mxu0 0
    %10021 = vmatprep.subr.bf16.mxu0 0
    %10022 = vmatpush1.bf16.msra.mxu0 0
    %10023 = vmatprep.subr.bf16.mxu0 0
    %10024 = vmatpush1.bf16.msra.mxu0 0
    %10025 = vmatprep.subr.bf16.mxu0 0
    %10026 = vmatpush1.bf16.msra.mxu0 0
    %10027 = vmatprep.subr.bf16.mxu0 0
    %10028 = vmatpush1.bf16.msra.mxu0 0
    %10029 = vmatprep.mubr.bf16.mxu0 0
    %10030 = vmatmul.mubr.bf16.gmra.mrb[0].mxu0 %v9925
    %v10031 = vpop.f32.mrb[0].mxu0
    %v10032 = vadd.f32 %v9947, %v10031
    %v10033 = vpop.f32.mrb[0].mxu0
    %v10034 = vpop.f32.mrb[0].mxu0
    %v10035 = vpop.f32.mrb[0].mxu0
    %10036 = vdwg.mxu0
    %v10037 = vmax.f32 %v10032, 0.0
    %v10038 = vpack.c.bf16 %v10037, %v10037
    %v10039 = vld [vmem:[%s75] sm:$0xf]
    %v10040 = vld [vmem:[%s75 + $0x4] sm:$0xf]
    %v10041 = vld [vmem:[%s75 + $0x8] sm:$0xf]
    %v10042 = vld [vmem:[%s75 + $0xc] sm:$0xf]
    %v10043 = vld [vmem:[%s75 + $0x10] sm:$0xf]
    %v10044 = vld [vmem:[%s75 + $0x14] sm:$0xf]
    %v10045 = vld [vmem:[%s75 + $0x18] sm:$0xf]
    %v10046 = vld [vmem:[%s75 + $0x1c] sm:$0xf]
    %v10047 = vld [vmem:[%s75 + $0x20] sm:$0xf]
    %v10048 = vld [vmem:[%s75 + $0x24] sm:$0xf]
    %v10049 = vld [vmem:[%s75 + $0x28] sm:$0xf]
    %v10050 = vld [vmem:[%s75 + $0x2c] sm:$0xf]
    %v10051 = vld [vmem:[%s75 + $0x30] sm:$0xf]
    %v10052 = vld [vmem:[%s75 + $0x34] sm:$0xf]
    %v10053 = vld [vmem:[%s75 + $0x38] sm:$0xf]
    %v10054 = vld [vmem:[%s75 + $0x3c] sm:$0xf]
    %v10055 = vld [vmem:[#allocation51] sm:$0x1]
    %v10057 = vlaneseq
    %v10058 = vshrl.u32 %v10057, 7
    %v10059 = vsub.s32 0, %v10058
    %v10060 = vrot.slane %v10055, %v10059
    %v10078 = vunpack.c.l.b16 %v10039
    %v10079 = vunpack.c.l.b16 %v10040
    %v10080 = vunpack.c.l.b16 %v10041
    %v10081 = vunpack.c.l.b16 %v10042
    %v10082 = vunpack.c.l.b16 %v10043
    %v10083 = vunpack.c.l.b16 %v10044
    %v10084 = vunpack.c.l.b16 %v10045
    %v10085 = vunpack.c.l.b16 %v10046
    %v10086 = vunpack.c.l.b16 %v10047
    %v10087 = vunpack.c.l.b16 %v10048
    %v10088 = vunpack.c.l.b16 %v10049
    %v10089 = vunpack.c.l.b16 %v10050
    %v10090 = vunpack.c.l.b16 %v10051
    %v10091 = vunpack.c.l.b16 %v10052
    %v10092 = vunpack.c.l.b16 %v10053
    %v10093 = vunpack.c.l.b16 %v10054
    %v10094 = vpack.c.b16 %v10079, %v10078
    %v10095 = vpack.c.b16 %v10081, %v10080
    %v10096 = vpack.c.b16 %v10083, %v10082
    %v10097 = vpack.c.b16 %v10085, %v10084
    %v10098 = vpack.c.b16 %v10087, %v10086
    %v10099 = vpack.c.b16 %v10089, %v10088
    %v10100 = vpack.c.b16 %v10091, %v10090
    %v10101 = vpack.c.b16 %v10093, %v10092
    %10110 = vmatprep.subr.bf16.mxu0 0
    %10111 = vmatpush1.bf16.msra.mxu0 %v10094
    %10112 = vmatprep.subr.bf16.mxu0 0
    %10113 = vmatpush1.bf16.msra.mxu0 %v10095
    %10114 = vmatprep.subr.bf16.mxu0 0
    %10115 = vmatpush1.bf16.msra.mxu0 %v10096
    %10116 = vmatprep.subr.bf16.mxu0 0
    %10117 = vmatpush1.bf16.msra.mxu0 %v10097
    %10118 = vmatprep.subr.bf16.mxu0 0
    %10119 = vmatpush1.bf16.msra.mxu0 %v10098
    %10120 = vmatprep.subr.bf16.mxu0 0
    %10121 = vmatpush1.bf16.msra.mxu0 %v10099
    %10122 = vmatprep.subr.bf16.mxu0 0
    %10123 = vmatpush1.bf16.msra.mxu0 %v10100
    %10124 = vmatprep.subr.bf16.mxu0 0
    %10125 = vmatpush1.bf16.msra.mxu0 %v10101
    %10126 = vmatprep.subr.bf16.mxu0 0
    %10127 = vmatpush1.bf16.msra.mxu0 0
    %10128 = vmatprep.subr.bf16.mxu0 0
    %10129 = vmatpush1.bf16.msra.mxu0 0
    %10130 = vmatprep.subr.bf16.mxu0 0
    %10131 = vmatpush1.bf16.msra.mxu0 0
    %10132 = vmatprep.subr.bf16.mxu0 0
    %10133 = vmatpush1.bf16.msra.mxu0 0
    %10134 = vmatprep.subr.bf16.mxu0 0
    %10135 = vmatpush1.bf16.msra.mxu0 0
    %10136 = vmatprep.subr.bf16.mxu0 0
    %10137 = vmatpush1.bf16.msra.mxu0 0
    %10138 = vmatprep.subr.bf16.mxu0 0
    %10139 = vmatpush1.bf16.msra.mxu0 0
    %10140 = vmatprep.subr.bf16.mxu0 0
    %10141 = vmatpush1.bf16.msra.mxu0 0
    %10142 = vmatprep.mubr.bf16.mxu0 0
    %10143 = vmatmul.mubr.bf16.gmra.mrb[0].mxu0 %v10038
    %v10144 = vpop.f32.mrb[0].mxu0
    %v10145 = vadd.f32 %v10060, %v10144
    %v10146 = vpop.f32.mrb[0].mxu0
    %v10147 = vpop.f32.mrb[0].mxu0
    %v10148 = vpop.f32.mrb[0].mxu0
    %10149 = vdwg.mxu0
    %v10150 = vmul.f32 %v10145, %v10145
    %vm10151 = vcmask 517120
    %v10152 = vsel %vm10151, %v10150, 0.0
    %10153 = vadd.xlane.f32.xlu0 %v10152
    %v10154 = vpop.xlane.xlu0 %10153
    %v10155 = vrsqrt.pop %v10154
    %v10156 = vmul.f32 %v10154, %v10155
    %vm10157 = vcmp.eq.f32.partialorder %v10154, inf
    %v10158 = vsel %vm10157, %v10154, %v10156
    %vm10159 = vcmp.eq.f32.partialorder %v10154, 0.0
    %v10160 = vand.u32 %v10154, 2147483648
    %v10161 = vsel %vm10159, %v10160, %v10158
    %v10162 = vmax.f32 %v10161, 1e-12
    %v10163 = vrcp.pop %v10162
    %v10164 = vmul.f32 %v10145, %v10163
    %10165 = vst.msk [vmem:[#allocation52] sm:$0x3] %vm10151, %v10164
    // Predicated region
    $region282: #{supcon_cnn_attention_forward.1} parent=1 // pred_check
      _
    $region283: #{supcon_cnn_attention_forward.1} parent=1 // pred_check_branch
      %10167 = sbr.rel (0) target = $region285
    $region284: #{supcon_cnn_attention_forward.1} parent=1 // pred_region
      %s10169 = ssub.s32 32, 32
      %10170 = vsyncadd [#allocation6], %s10169
      %s10172 = sshll.u32 [#allocation52], 4
      %s10173 = int_to_ptr.vmem [resolvable:$true] %s10172
      %10175 = dma.vmem_to_hbm [thread:$0]  %s10173, 32, %s79, [#allocation6]
    $region285: #{supcon_cnn_attention_forward.1} parent=1 // pred_fallthru
      _
    // Predicated region
    $region286: #{supcon_cnn_attention_forward.1} parent=1 // pred_check
      _
    $region287: #{supcon_cnn_attention_forward.1} parent=1 // pred_check_branch
      %10177 = sbr.rel (0) target = $region289
    $region288: #{supcon_cnn_attention_forward.1} parent=1 // pred_region
      %10178 = dma.done [#allocation6], 32
    $region289: #{supcon_cnn_attention_forward.1} parent=1 // pred_fallthru
      _
    %10179 = vsyncpa [#allocation5], 1
    %10180 = vsyncpa [#allocation8], 1
    %10181 = vsyncpa [#allocation11], 1
    %10182 = vsyncpa [#allocation14], 1
    %10183 = vsyncpa [#allocation17], 1
    %10184 = vsyncpa [#allocation20], 1
    %10185 = vsyncpa [#allocation23], 1
    %10186 = vsyncpa [#allocation26], 1
    %10187 = vsyncpa [#allocation29], 1
    %10188 = vsyncpa [#allocation32], 1
    %10189 = vsyncpa [#allocation35], 1
    %10190 = vsyncpa [#allocation38], 1
    %10191 = vsyncpa [#allocation41], 1
    %10192 = vsyncpa [#allocation44], 1
    %10193 = vsyncpa [#allocation47], 1
    %10194 = vsyncpa [#allocation50], 1
    %10195 = vsyncpa [#allocation6], 1

</llo_original>
